<compile_context>
chip_gen: v7x
topology: tpu7x:2x2x1
jax: 0.10.0
libtpu: 0.0.40
codegen_flags: <defaults>
</compile_context>

<pallas_src>
import functools
import math

import jax
import jax.numpy as jnp
from jax.experimental import pallas as pl
from jax.experimental.pallas import tpu as pltpu

_LANE = 128


def _round_up(x, m):
    return (x + m - 1) // m * m


def _pick_m_tile(m):
    # single tile at small M; split into 256-row parallel tiles when it divides evenly
    if m > 256 and m % 256 == 0:
        return 256
    return m


# ----------------------------- Pallas kernels --------------------------------

def _conv_kernel(x_ref, w_ref, s_ref, b_ref, o_ref):
    """Fused im2col-matmul + folded-BatchNorm scale/shift + ReLU (one M tile)."""
    acc = jnp.dot(x_ref[...], w_ref[...], preferred_element_type=jnp.float32)
    o_ref[...] = jnp.maximum(acc * s_ref[...] + b_ref[...], 0.0).astype(o_ref.dtype)


def _conv_pool_kernel(x_ref, w_ref, s_ref, b_ref, o_ref):
    """Fused conv + BN + ReLU + 2x2/stride-2 maxpool.

    x_ref[c] (c=0..3) holds the im2col patches of the four pooling-window
    corners; within each corner rows are ordered (n, ho, wo), so the pool is a
    pure element-wise max across the four matmul results (VPU only).
    """
    w = w_ref[...]
    s = s_ref[...]
    b = b_ref[...]

    def corner(c):
        acc = jnp.dot(x_ref[c], w, preferred_element_type=jnp.float32)
        return jnp.maximum(acc * s + b, 0.0)

    o_ref[...] = jnp.maximum(jnp.maximum(corner(0), corner(1)),
                             jnp.maximum(corner(2), corner(3))).astype(o_ref.dtype)


def _linear_kernel(x_ref, w_ref, s_ref, b_ref, o_ref, *, apply_relu):
    """Full-K single-block matmul with fused scale/shift (+ReLU)."""
    acc = jnp.dot(x_ref[...], w_ref[...], preferred_element_type=jnp.float32)
    y = acc * s_ref[...] + b_ref[...]
    if apply_relu:
        y = jnp.maximum(y, 0.0)
    o_ref[...] = y.astype(o_ref.dtype)


# ----------------------------- layer wrappers ---------------------------------

def _im2col(x, ksize, pad):
    """x: (N,H,W,Cin) -> 'same'-conv patches (N,H,W, ksize*ksize*Cin)."""
    n, h, w, c = x.shape
    xp = jnp.pad(x, ((0, 0), (pad, pad), (pad, pad), (0, 0)))
    taps = [xp[:, dy:dy + h, dx:dx + w, :]
            for dy in range(ksize) for dx in range(ksize)]
    return jnp.concatenate(taps, axis=-1)


def conv_bn_relu(x, w, scale, shift, *, ksize, pool):
    """x: (N,H,W,Cin) f32.  w: (Kpad, Cout) bf16, tap-major/channel-minor, K
    zero-padded to a multiple of 128.  Returns NHWC activation, pooled if pool."""
    n, h, wd, cin = x.shape
    kdim, cout = w.shape
    pad = ksize // 2

    patches = _im2col(x, ksize, pad)                       # (N,H,W, kk*Cin)
    k_raw = patches.shape[-1]
    if kdim > k_raw:                                       # pad K to lane multiple
        patches = jnp.pad(patches, ((0, 0), (0, 0), (0, 0), (0, kdim - k_raw)))
    patches = patches.astype(jnp.bfloat16)

    s2 = scale.reshape(1, cout)
    b2 = shift.reshape(1, cout)

    if pool:
        ho, wo = h // 2, wd // 2
        mo = n * ho * wo
        # corner-major (4, Mo, K); each corner's rows ordered (n, ho, wo)
        pc = patches.reshape(n, ho, 2, wo, 2, kdim)
        pc = pc.transpose(2, 4, 0, 1, 3, 5).reshape(4, mo, kdim)
        tmo = _pick_m_tile(mo)
        out = pl.pallas_call(
            _conv_pool_kernel,
            out_shape=jax.ShapeDtypeStruct((mo, cout), jnp.float32),
            grid=(mo // tmo,),
            in_specs=[
                pl.BlockSpec((4, tmo, kdim), lambda i: (0, i, 0)),
                pl.BlockSpec((kdim, cout), lambda i: (0, 0)),
                pl.BlockSpec((1, cout), lambda i: (0, 0)),
                pl.BlockSpec((1, cout), lambda i: (0, 0)),
            ],
            out_specs=pl.BlockSpec((tmo, cout), lambda i: (i, 0)),
            compiler_params=pltpu.CompilerParams(
                dimension_semantics=("parallel",)),
        )(pc, w, s2, b2)
        return out.reshape(n, ho, wo, cout)

    m = n * h * wd
    xm = patches.reshape(m, kdim)
    tm = _pick_m_tile(m)
    out = pl.pallas_call(
        _conv_kernel,
        out_shape=jax.ShapeDtypeStruct((m, cout), jnp.float32),
        grid=(m // tm,),
        in_specs=[
            pl.BlockSpec((tm, kdim), lambda i: (i, 0)),
            pl.BlockSpec((kdim, cout), lambda i: (0, 0)),
            pl.BlockSpec((1, cout), lambda i: (0, 0)),
            pl.BlockSpec((1, cout), lambda i: (0, 0)),
        ],
        out_specs=pl.BlockSpec((tm, cout), lambda i: (i, 0)),
        compiler_params=pltpu.CompilerParams(
            dimension_semantics=("parallel",)),
    )(xm, w, s2, b2)
    return out.reshape(n, h, wd, cout)


def linear_fused(x, w, scale, shift, *, apply_relu):
    """x: (M,K) f32 -> (x_bf16 @ w_bf16)*scale + shift (f32 acc), optional ReLU.
    Full-K / full-N single block (sizes here are tiny; no reduction grid)."""
    m, kdim = x.shape
    ndim = w.shape[1]
    return pl.pallas_call(
        functools.partial(_linear_kernel, apply_relu=apply_relu),
        out_shape=jax.ShapeDtypeStruct((m, ndim), jnp.float32),
    )(x.astype(jnp.bfloat16), w, scale.reshape(1, ndim), shift.reshape(1, ndim))


# ----------------------------- parameters -------------------------------------

def _fold_bn(bias, gamma, beta, mean, var, eps=1e-5):
    # y = gamma*(z - mean)/sqrt(var+eps) + beta, with z = conv/linear + bias
    scale = gamma / jnp.sqrt(var + eps)
    shift = beta + (bias - mean) * scale
    return scale, shift


def _init_conv(key, ksize, cin, cout):
    kk = ksize * ksize
    std = math.sqrt(2.0 / (kk * cin))
    w = jax.random.normal(key, (kk, cin, cout), jnp.float32) * std
    b = jnp.zeros((cout,), jnp.float32)
    # BatchNorm2d inference defaults: gamma=1, beta=0, running_mean=0, running_var=1
    scale, shift = _fold_bn(b, jnp.ones((cout,)), jnp.zeros((cout,)),
                            jnp.zeros((cout,)), jnp.ones((cout,)))
    k_raw = kk * cin
    k_pad = _round_up(k_raw, _LANE)
    wf = jnp.pad(w.reshape(k_raw, cout), ((0, k_pad - k_raw), (0, 0)))
    return {"w": wf.astype(jnp.bfloat16), "scale": scale, "shift": shift}


def _init_fc(key, fin, fout, *, with_bn):
    std = math.sqrt(2.0 / fin)
    w = jax.random.normal(key, (fin, fout), jnp.float32) * std
    b = jnp.zeros((fout,), jnp.float32)
    if with_bn:  # BatchNorm1d inference defaults
        scale, shift = _fold_bn(b, jnp.ones((fout,)), jnp.zeros((fout,)),
                                jnp.zeros((fout,)), jnp.ones((fout,)))
    else:
        scale, shift = jnp.ones((fout,), jnp.float32), b
    return {"w": w.astype(jnp.bfloat16), "scale": scale, "shift": shift}


def init_params(key, input_shape):
    c, h, w = input_shape
    keys = jax.random.split(key, 8)
    params = {
        "conv1":   _init_conv(keys[0], 5, c,   64),
        "conv2_0": _init_conv(keys[1], 3, 64,  128),
        "conv2_1": _init_conv(keys[2], 3, 128, 128),
        "conv2_2": _init_conv(keys[3], 3, 128, 128),
        "conv3_0": _init_conv(keys[4], 3, 128, 256),
        "conv3_1": _init_conv(keys[5], 3, 256, 256),
    }
    sh, sw = h, w
    for _ in range(3):                       # three MaxPool2d(2,2)
        sh, sw = sh // 2, sw // 2
    flat = 256 * sh * sw                     # == self.flattened_size
    params["fc1"] = _init_fc(keys[6], flat, 256, with_bn=True)
    # fc2 (256 -> 1): pad out-features to 128 lanes; output sliced to 1 outside.
    p2 = _init_fc(keys[7], 256, 1, with_bn=False)
    params["fc2"] = {
        "w": jnp.pad(p2["w"], ((0, 0), (0, _LANE - 1))),
        "scale": jnp.ones((_LANE,), jnp.float32),
        "shift": jnp.pad(p2["shift"], (0, _LANE - 1)),
    }
    return params


# ----------------------------- forward -----------------------------------------

@jax.jit
def cnn_forward(params, x_nchw, drop_key):
    x = jnp.transpose(x_nchw, (0, 2, 3, 1))               # NCHW -> NHWC

    # conv1: Conv2d(3->64, k=5, pad=2) + BN + ReLU + MaxPool(2,2)   (pool fused)
    p = params["conv1"]
    x = conv_bn_relu(x, p["w"], p["scale"], p["shift"], ksize=5, pool=True)

    # conv2: 3 x (Conv3x3 + BN + ReLU), MaxPool fused into the last block
    for i, name in enumerate(("conv2_0", "conv2_1", "conv2_2")):
        p = params[name]
        x = conv_bn_relu(x, p["w"], p["scale"], p["shift"], ksize=3, pool=(i == 2))

    # conv3: 2 x (Conv3x3 + BN + ReLU), MaxPool fused into the last block
    for i, name in enumerate(("conv3_0", "conv3_1")):
        p = params[name]
        x = conv_bn_relu(x, p["w"], p["scale"], p["shift"], ksize=3, pool=(i == 1))

    # flatten exactly like torch: NCHW order, x.view(-1, flattened_size)
    n = x.shape[0]
    x = jnp.transpose(x, (0, 3, 1, 2)).reshape(n, -1)

    p = params["fc1"]
    x = linear_fused(x, p["w"], p["scale"], p["shift"], apply_relu=True)

    # TODO(synk): nn.Dropout(0.5) in training mode (module default); eval mode would be identity.
    keep = jax.random.bernoulli(drop_key, 0.5, x.shape)
    x = jnp.where(keep, x * 2.0, jnp.zeros_like(x))

    p = params["fc2"]
    x = linear_fused(x, p["w"], p["scale"], p["shift"], apply_relu=False)
    return x[:, :1]                                        # un-pad fc2 output to (N, 1)


# ----------------------------- main ---------------------------------------------

if __name__ == "__main__":
    key = jax.random.PRNGKey(0)
    k_param, k_input, k_drop = jax.random.split(key, 3)

    input_shape = (3, 16, 16)                # (C, H, W); 3 pools -> 2x2x256 feature map
    batch = 2
    params = init_params(k_param, input_shape)

    x = jax.random.normal(k_input, (batch,) + input_shape, jnp.float32)   # NCHW

    out = cnn_forward(params, x, k_drop)
    out = jax.block_until_ready(out)
    assert out.shape == (batch, 1), out.shape
    assert bool(jnp.all(jnp.isfinite(out)))
    print("KERNEL_OK")
</pallas_src>

<mosaic_0001>
module attributes {stable_mosaic.version = 11 : i64} {
  func.func @_conv_pool_kernel(%arg0: i32, %arg1: memref<4x128x128xbf16, #tpu.memory_space<vmem>>, %arg2: memref<128x64xbf16, #tpu.memory_space<vmem>>, %arg3: memref<1x64xf32, #tpu.memory_space<vmem>>, %arg4: memref<1x64xf32, #tpu.memory_space<vmem>>, %arg5: memref<128x64xf32, #tpu.memory_space<vmem>>) attributes {dimension_semantics = [#tpu.dimension_semantics<parallel>], iteration_bounds = array<i64: 1>, scalar_prefetch = 0 : i64, scratch_operands = 0 : i64, tpu.core_type = #tpu.core_type<tc>, window_params = [{transform_indices = @transform_0, window_bounds = array<i64: 4, 128, 128>}, {pipeline_mode = #tpu.pipeline_mode<synchronous>, transform_indices = @transform_1, window_bounds = array<i64: 128, 64>}, {pipeline_mode = #tpu.pipeline_mode<synchronous>, transform_indices = @transform_2, window_bounds = array<i64: 1, 64>}, {pipeline_mode = #tpu.pipeline_mode<synchronous>, transform_indices = @transform_3, window_bounds = array<i64: 1, 64>}, {transform_indices = @transform_4, window_bounds = array<i64: 128, 64>}]} {
    %c0 = arith.constant 0 : index
    %c0_0 = arith.constant 0 : index
    %0 = vector.load %arg2[%c0, %c0_0] : memref<128x64xbf16, #tpu.memory_space<vmem>>, vector<128x64xbf16>
    %c0_1 = arith.constant 0 : index
    %c0_2 = arith.constant 0 : index
    %1 = vector.load %arg3[%c0_1, %c0_2] : memref<1x64xf32, #tpu.memory_space<vmem>>, vector<1x64xf32>
    %c0_3 = arith.constant 0 : index
    %c0_4 = arith.constant 0 : index
    %2 = vector.load %arg4[%c0_3, %c0_4] : memref<1x64xf32, #tpu.memory_space<vmem>>, vector<1x64xf32>
    %c0_5 = arith.constant 0 : index
    %c0_6 = arith.constant 0 : index
    %c0_7 = arith.constant 0 : index
    %3 = vector.load %arg1[%c0_5, %c0_6, %c0_7] : memref<4x128x128xbf16, #tpu.memory_space<vmem>>, vector<1x128x128xbf16>
    %4 = vector.shape_cast %3 : vector<1x128x128xbf16> to vector<128x128xbf16>
    %cst = arith.constant dense<0.000000e+00> : vector<128x64xf32>
    %5 = tpu.matmul %4, %0, %cst {dimension_numbers = #tpu.dot_dimension_numbers<[1], [0], [0], [1], [0, 0, 1, 1], [], []>} : vector<128x128xbf16>, vector<128x64xbf16>, vector<128x64xf32> -> vector<128x64xf32>
    %6 = vector.broadcast %1 : vector<1x64xf32> to vector<128x64xf32>
    %7 = arith.mulf %5, %6 : vector<128x64xf32>
    %8 = vector.broadcast %2 : vector<1x64xf32> to vector<128x64xf32>
    %9 = arith.addf %7, %8 : vector<128x64xf32>
    %cst_8 = arith.constant 0.000000e+00 : f32
    %10 = vector.broadcast %cst_8 : f32 to vector<128x64xf32>
    %11 = arith.maximumf %9, %10 : vector<128x64xf32>
    %c1 = arith.constant 1 : index
    %c0_9 = arith.constant 0 : index
    %c0_10 = arith.constant 0 : index
    %12 = vector.load %arg1[%c1, %c0_9, %c0_10] : memref<4x128x128xbf16, #tpu.memory_space<vmem>>, vector<1x128x128xbf16>
    %13 = vector.shape_cast %12 : vector<1x128x128xbf16> to vector<128x128xbf16>
    %cst_11 = arith.constant dense<0.000000e+00> : vector<128x64xf32>
    %14 = tpu.matmul %13, %0, %cst_11 {dimension_numbers = #tpu.dot_dimension_numbers<[1], [0], [0], [1], [0, 0, 1, 1], [], []>} : vector<128x128xbf16>, vector<128x64xbf16>, vector<128x64xf32> -> vector<128x64xf32>
    %15 = vector.broadcast %1 : vector<1x64xf32> to vector<128x64xf32>
    %16 = arith.mulf %14, %15 : vector<128x64xf32>
    %17 = vector.broadcast %2 : vector<1x64xf32> to vector<128x64xf32>
    %18 = arith.addf %16, %17 : vector<128x64xf32>
    %cst_12 = arith.constant 0.000000e+00 : f32
    %19 = vector.broadcast %cst_12 : f32 to vector<128x64xf32>
    %20 = arith.maximumf %18, %19 : vector<128x64xf32>
    %21 = arith.maximumf %11, %20 : vector<128x64xf32>
    %c2 = arith.constant 2 : index
    %c0_13 = arith.constant 0 : index
    %c0_14 = arith.constant 0 : index
    %22 = vector.load %arg1[%c2, %c0_13, %c0_14] : memref<4x128x128xbf16, #tpu.memory_space<vmem>>, vector<1x128x128xbf16>
    %23 = vector.shape_cast %22 : vector<1x128x128xbf16> to vector<128x128xbf16>
    %cst_15 = arith.constant dense<0.000000e+00> : vector<128x64xf32>
    %24 = tpu.matmul %23, %0, %cst_15 {dimension_numbers = #tpu.dot_dimension_numbers<[1], [0], [0], [1], [0, 0, 1, 1], [], []>} : vector<128x128xbf16>, vector<128x64xbf16>, vector<128x64xf32> -> vector<128x64xf32>
    %25 = vector.broadcast %1 : vector<1x64xf32> to vector<128x64xf32>
    %26 = arith.mulf %24, %25 : vector<128x64xf32>
    %27 = vector.broadcast %2 : vector<1x64xf32> to vector<128x64xf32>
    %28 = arith.addf %26, %27 : vector<128x64xf32>
    %cst_16 = arith.constant 0.000000e+00 : f32
    %29 = vector.broadcast %cst_16 : f32 to vector<128x64xf32>
    %30 = arith.maximumf %28, %29 : vector<128x64xf32>
    %c3 = arith.constant 3 : index
    %c0_17 = arith.constant 0 : index
    %c0_18 = arith.constant 0 : index
    %31 = vector.load %arg1[%c3, %c0_17, %c0_18] : memref<4x128x128xbf16, #tpu.memory_space<vmem>>, vector<1x128x128xbf16>
    %32 = vector.shape_cast %31 : vector<1x128x128xbf16> to vector<128x128xbf16>
    %cst_19 = arith.constant dense<0.000000e+00> : vector<128x64xf32>
    %33 = tpu.matmul %32, %0, %cst_19 {dimension_numbers = #tpu.dot_dimension_numbers<[1], [0], [0], [1], [0, 0, 1, 1], [], []>} : vector<128x128xbf16>, vector<128x64xbf16>, vector<128x64xf32> -> vector<128x64xf32>
    %34 = vector.broadcast %1 : vector<1x64xf32> to vector<128x64xf32>
    %35 = arith.mulf %33, %34 : vector<128x64xf32>
    %36 = vector.broadcast %2 : vector<1x64xf32> to vector<128x64xf32>
    %37 = arith.addf %35, %36 : vector<128x64xf32>
    %cst_20 = arith.constant 0.000000e+00 : f32
    %38 = vector.broadcast %cst_20 : f32 to vector<128x64xf32>
    %39 = arith.maximumf %37, %38 : vector<128x64xf32>
    %40 = arith.maximumf %30, %39 : vector<128x64xf32>
    %41 = arith.maximumf %21, %40 : vector<128x64xf32>
    %c0_21 = arith.constant 0 : index
    %c0_22 = arith.constant 0 : index
    %42 = vector.load %arg5[%c0_21, %c0_22] : memref<128x64xf32, #tpu.memory_space<vmem>>, vector<128x64xf32>
    tpu.vector_store %arg5[%c0_21, %c0_22], %41 {strides = array<i32>} : memref<128x64xf32, #tpu.memory_space<vmem>>, vector<128x64xf32>,
    return
  }
  func.func @transform_0(%arg0: i32) -> (i32, i32, i32) {
    %c0_i32 = arith.constant 0 : i32
    %c0_i32_0 = arith.constant 0 : i32
    %c0_i32_1 = arith.constant 0 : i32
    return %c0_i32, %arg0, %c0_i32_0 : i32, i32, i32
  }
  func.func @transform_1(%arg0: i32) -> (i32, i32) {
    %c0_i32 = arith.constant 0 : i32
    %c0_i32_0 = arith.constant 0 : i32
    %c0_i32_1 = arith.constant 0 : i32
    return %c0_i32, %c0_i32_0 : i32, i32
  }
  func.func @transform_2(%arg0: i32) -> (i32, i32) {
    %c0_i32 = arith.constant 0 : i32
    %c0_i32_0 = arith.constant 0 : i32
    %c0_i32_1 = arith.constant 0 : i32
    return %c0_i32, %c0_i32_0 : i32, i32
  }
  func.func @transform_3(%arg0: i32) -> (i32, i32) {
    %c0_i32 = arith.constant 0 : i32
    %c0_i32_0 = arith.constant 0 : i32
    %c0_i32_1 = arith.constant 0 : i32
    return %c0_i32, %c0_i32_0 : i32, i32
  }
  func.func @transform_4(%arg0: i32) -> (i32, i32) {
    %c0_i32 = arith.constant 0 : i32
    %c0_i32_0 = arith.constant 0 : i32
    return %arg0, %c0_i32 : i32, i32
  }
}

module attributes {stable_mosaic.version = 11 : i64} {
  func.func @_conv_kernel(%arg0: i32, %arg1: memref<128x640xbf16, #tpu.memory_space<vmem>>, %arg2: memref<640x128xbf16, #tpu.memory_space<vmem>>, %arg3: memref<1x128xf32, #tpu.memory_space<vmem>>, %arg4: memref<1x128xf32, #tpu.memory_space<vmem>>, %arg5: memref<128x128xf32, #tpu.memory_space<vmem>>) attributes {dimension_semantics = [#tpu.dimension_semantics<parallel>], iteration_bounds = array<i64: 1>, scalar_prefetch = 0 : i64, scratch_operands = 0 : i64, tpu.core_type = #tpu.core_type<tc>, window_params = [{transform_indices = @transform_0, window_bounds = array<i64: 128, 640>}, {pipeline_mode = #tpu.pipeline_mode<synchronous>, transform_indices = @transform_1, window_bounds = array<i64: 640, 128>}, {pipeline_mode = #tpu.pipeline_mode<synchronous>, transform_indices = @transform_2, window_bounds = array<i64: 1, 128>}, {pipeline_mode = #tpu.pipeline_mode<synchronous>, transform_indices = @transform_3, window_bounds = array<i64: 1, 128>}, {transform_indices = @transform_4, window_bounds = array<i64: 128, 128>}]} {
    %c0 = arith.constant 0 : index
    %c0_0 = arith.constant 0 : index
    %0 = vector.load %arg1[%c0, %c0_0] : memref<128x640xbf16, #tpu.memory_space<vmem>>, vector<128x640xbf16>
    %c0_1 = arith.constant 0 : index
    %c0_2 = arith.constant 0 : index
    %1 = vector.load %arg2[%c0_1, %c0_2] : memref<640x128xbf16, #tpu.memory_space<vmem>>, vector<640x128xbf16>
    %cst = arith.constant dense<0.000000e+00> : vector<128x128xf32>
    %2 = tpu.matmul %0, %1, %cst {dimension_numbers = #tpu.dot_dimension_numbers<[1], [0], [0], [1], [0, 0, 1, 1], [], []>} : vector<128x640xbf16>, vector<640x128xbf16>, vector<128x128xf32> -> vector<128x128xf32>
    %c0_3 = arith.constant 0 : index
    %c0_4 = arith.constant 0 : index
    %3 = vector.load %arg3[%c0_3, %c0_4] : memref<1x128xf32, #tpu.memory_space<vmem>>, vector<1x128xf32>
    %4 = vector.broadcast %3 : vector<1x128xf32> to vector<128x128xf32>
    %5 = arith.mulf %2, %4 : vector<128x128xf32>
    %c0_5 = arith.constant 0 : index
    %c0_6 = arith.constant 0 : index
    %6 = vector.load %arg4[%c0_5, %c0_6] : memref<1x128xf32, #tpu.memory_space<vmem>>, vector<1x128xf32>
    %7 = vector.broadcast %6 : vector<1x128xf32> to vector<128x128xf32>
    %8 = arith.addf %5, %7 : vector<128x128xf32>
    %cst_7 = arith.constant 0.000000e+00 : f32
    %9 = vector.broadcast %cst_7 : f32 to vector<128x128xf32>
    %10 = arith.maximumf %8, %9 : vector<128x128xf32>
    %c0_8 = arith.constant 0 : index
    %c0_9 = arith.constant 0 : index
    %11 = vector.load %arg5[%c0_8, %c0_9] : memref<128x128xf32, #tpu.memory_space<vmem>>, vector<128x128xf32>
    tpu.vector_store %arg5[%c0_8, %c0_9], %10 {strides = array<i32>} : memref<128x128xf32, #tpu.memory_space<vmem>>, vector<128x128xf32>,
    return
  }
  func.func @transform_0(%arg0: i32) -> (i32, i32) {
    %c0_i32 = arith.constant 0 : i32
    %c0_i32_0 = arith.constant 0 : i32
    return %arg0, %c0_i32 : i32, i32
  }
  func.func @transform_1(%arg0: i32) -> (i32, i32) {
    %c0_i32 = arith.constant 0 : i32
    %c0_i32_0 = arith.constant 0 : i32
    %c0_i32_1 = arith.constant 0 : i32
    return %c0_i32, %c0_i32_0 : i32, i32
  }
  func.func @transform_2(%arg0: i32) -> (i32, i32) {
    %c0_i32 = arith.constant 0 : i32
    %c0_i32_0 = arith.constant 0 : i32
    %c0_i32_1 = arith.constant 0 : i32
    return %c0_i32, %c0_i32_0 : i32, i32
  }
  func.func @transform_3(%arg0: i32) -> (i32, i32) {
    %c0_i32 = arith.constant 0 : i32
    %c0_i32_0 = arith.constant 0 : i32
    %c0_i32_1 = arith.constant 0 : i32
    return %c0_i32, %c0_i32_0 : i32, i32
  }
  func.func @transform_4(%arg0: i32) -> (i32, i32) {
    %c0_i32 = arith.constant 0 : i32
    %c0_i32_0 = arith.constant 0 : i32
    return %arg0, %c0_i32 : i32, i32
  }
}

module attributes {stable_mosaic.version = 11 : i64} {
  func.func @_conv_kernel(%arg0: i32, %arg1: memref<128x1152xbf16, #tpu.memory_space<vmem>>, %arg2: memref<1152x128xbf16, #tpu.memory_space<vmem>>, %arg3: memref<1x128xf32, #tpu.memory_space<vmem>>, %arg4: memref<1x128xf32, #tpu.memory_space<vmem>>, %arg5: memref<128x128xf32, #tpu.memory_space<vmem>>) attributes {dimension_semantics = [#tpu.dimension_semantics<parallel>], iteration_bounds = array<i64: 1>, scalar_prefetch = 0 : i64, scratch_operands = 0 : i64, tpu.core_type = #tpu.core_type<tc>, window_params = [{transform_indices = @transform_0, window_bounds = array<i64: 128, 1152>}, {pipeline_mode = #tpu.pipeline_mode<synchronous>, transform_indices = @transform_1, window_bounds = array<i64: 1152, 128>}, {pipeline_mode = #tpu.pipeline_mode<synchronous>, transform_indices = @transform_2, window_bounds = array<i64: 1, 128>}, {pipeline_mode = #tpu.pipeline_mode<synchronous>, transform_indices = @transform_3, window_bounds = array<i64: 1, 128>}, {transform_indices = @transform_4, window_bounds = array<i64: 128, 128>}]} {
    %c0 = arith.constant 0 : index
    %c0_0 = arith.constant 0 : index
    %0 = vector.load %arg1[%c0, %c0_0] : memref<128x1152xbf16, #tpu.memory_space<vmem>>, vector<128x1152xbf16>
    %c0_1 = arith.constant 0 : index
    %c0_2 = arith.constant 0 : index
    %1 = vector.load %arg2[%c0_1, %c0_2] : memref<1152x128xbf16, #tpu.memory_space<vmem>>, vector<1152x128xbf16>
    %cst = arith.constant dense<0.000000e+00> : vector<128x128xf32>
    %2 = tpu.matmul %0, %1, %cst {dimension_numbers = #tpu.dot_dimension_numbers<[1], [0], [0], [1], [0, 0, 1, 1], [], []>} : vector<128x1152xbf16>, vector<1152x128xbf16>, vector<128x128xf32> -> vector<128x128xf32>
    %c0_3 = arith.constant 0 : index
    %c0_4 = arith.constant 0 : index
    %3 = vector.load %arg3[%c0_3, %c0_4] : memref<1x128xf32, #tpu.memory_space<vmem>>, vector<1x128xf32>
    %4 = vector.broadcast %3 : vector<1x128xf32> to vector<128x128xf32>
    %5 = arith.mulf %2, %4 : vector<128x128xf32>
    %c0_5 = arith.constant 0 : index
    %c0_6 = arith.constant 0 : index
    %6 = vector.load %arg4[%c0_5, %c0_6] : memref<1x128xf32, #tpu.memory_space<vmem>>, vector<1x128xf32>
    %7 = vector.broadcast %6 : vector<1x128xf32> to vector<128x128xf32>
    %8 = arith.addf %5, %7 : vector<128x128xf32>
    %cst_7 = arith.constant 0.000000e+00 : f32
    %9 = vector.broadcast %cst_7 : f32 to vector<128x128xf32>
    %10 = arith.maximumf %8, %9 : vector<128x128xf32>
    %c0_8 = arith.constant 0 : index
    %c0_9 = arith.constant 0 : index
    %11 = vector.load %arg5[%c0_8, %c0_9] : memref<128x128xf32, #tpu.memory_space<vmem>>, vector<128x128xf32>
    tpu.vector_store %arg5[%c0_8, %c0_9], %10 {strides = array<i32>} : memref<128x128xf32, #tpu.memory_space<vmem>>, vector<128x128xf32>,
    return
  }
  func.func @transform_0(%arg0: i32) -> (i32, i32) {
    %c0_i32 = arith.constant 0 : i32
    %c0_i32_0 = arith.constant 0 : i32
    return %arg0, %c0_i32 : i32, i32
  }
  func.func @transform_1(%arg0: i32) -> (i32, i32) {
    %c0_i32 = arith.constant 0 : i32
    %c0_i32_0 = arith.constant 0 : i32
    %c0_i32_1 = arith.constant 0 : i32
    return %c0_i32, %c0_i32_0 : i32, i32
  }
  func.func @transform_2(%arg0: i32) -> (i32, i32) {
    %c0_i32 = arith.constant 0 : i32
    %c0_i32_0 = arith.constant 0 : i32
    %c0_i32_1 = arith.constant 0 : i32
    return %c0_i32, %c0_i32_0 : i32, i32
  }
  func.func @transform_3(%arg0: i32) -> (i32, i32) {
    %c0_i32 = arith.constant 0 : i32
    %c0_i32_0 = arith.constant 0 : i32
    %c0_i32_1 = arith.constant 0 : i32
    return %c0_i32, %c0_i32_0 : i32, i32
  }
  func.func @transform_4(%arg0: i32) -> (i32, i32) {
    %c0_i32 = arith.constant 0 : i32
    %c0_i32_0 = arith.constant 0 : i32
    return %arg0, %c0_i32 : i32, i32
  }
}

module attributes {stable_mosaic.version = 11 : i64} {
  func.func @_conv_pool_kernel(%arg0: i32, %arg1: memref<4x32x1152xbf16, #tpu.memory_space<vmem>>, %arg2: memref<1152x128xbf16, #tpu.memory_space<vmem>>, %arg3: memref<1x128xf32, #tpu.memory_space<vmem>>, %arg4: memref<1x128xf32, #tpu.memory_space<vmem>>, %arg5: memref<32x128xf32, #tpu.memory_space<vmem>>) attributes {dimension_semantics = [#tpu.dimension_semantics<parallel>], iteration_bounds = array<i64: 1>, scalar_prefetch = 0 : i64, scratch_operands = 0 : i64, tpu.core_type = #tpu.core_type<tc>, window_params = [{transform_indices = @transform_0, window_bounds = array<i64: 4, 32, 1152>}, {pipeline_mode = #tpu.pipeline_mode<synchronous>, transform_indices = @transform_1, window_bounds = array<i64: 1152, 128>}, {pipeline_mode = #tpu.pipeline_mode<synchronous>, transform_indices = @transform_2, window_bounds = array<i64: 1, 128>}, {pipeline_mode = #tpu.pipeline_mode<synchronous>, transform_indices = @transform_3, window_bounds = array<i64: 1, 128>}, {transform_indices = @transform_4, window_bounds = array<i64: 32, 128>}]} {
    %c0 = arith.constant 0 : index
    %c0_0 = arith.constant 0 : index
    %0 = vector.load %arg2[%c0, %c0_0] : memref<1152x128xbf16, #tpu.memory_space<vmem>>, vector<1152x128xbf16>
    %c0_1 = arith.constant 0 : index
    %c0_2 = arith.constant 0 : index
    %1 = vector.load %arg3[%c0_1, %c0_2] : memref<1x128xf32, #tpu.memory_space<vmem>>, vector<1x128xf32>
    %c0_3 = arith.constant 0 : index
    %c0_4 = arith.constant 0 : index
    %2 = vector.load %arg4[%c0_3, %c0_4] : memref<1x128xf32, #tpu.memory_space<vmem>>, vector<1x128xf32>
    %c0_5 = arith.constant 0 : index
    %c0_6 = arith.constant 0 : index
    %c0_7 = arith.constant 0 : index
    %3 = vector.load %arg1[%c0_5, %c0_6, %c0_7] : memref<4x32x1152xbf16, #tpu.memory_space<vmem>>, vector<1x32x1152xbf16>
    %4 = vector.shape_cast %3 : vector<1x32x1152xbf16> to vector<32x1152xbf16>
    %cst = arith.constant dense<0.000000e+00> : vector<32x128xf32>
    %5 = tpu.matmul %4, %0, %cst {dimension_numbers = #tpu.dot_dimension_numbers<[1], [0], [0], [1], [0, 0, 1, 1], [], []>} : vector<32x1152xbf16>, vector<1152x128xbf16>, vector<32x128xf32> -> vector<32x128xf32>
    %6 = vector.broadcast %1 : vector<1x128xf32> to vector<32x128xf32>
    %7 = arith.mulf %5, %6 : vector<32x128xf32>
    %8 = vector.broadcast %2 : vector<1x128xf32> to vector<32x128xf32>
    %9 = arith.addf %7, %8 : vector<32x128xf32>
    %cst_8 = arith.constant 0.000000e+00 : f32
    %10 = vector.broadcast %cst_8 : f32 to vector<32x128xf32>
    %11 = arith.maximumf %9, %10 : vector<32x128xf32>
    %c1 = arith.constant 1 : index
    %c0_9 = arith.constant 0 : index
    %c0_10 = arith.constant 0 : index
    %12 = vector.load %arg1[%c1, %c0_9, %c0_10] : memref<4x32x1152xbf16, #tpu.memory_space<vmem>>, vector<1x32x1152xbf16>
    %13 = vector.shape_cast %12 : vector<1x32x1152xbf16> to vector<32x1152xbf16>
    %cst_11 = arith.constant dense<0.000000e+00> : vector<32x128xf32>
    %14 = tpu.matmul %13, %0, %cst_11 {dimension_numbers = #tpu.dot_dimension_numbers<[1], [0], [0], [1], [0, 0, 1, 1], [], []>} : vector<32x1152xbf16>, vector<1152x128xbf16>, vector<32x128xf32> -> vector<32x128xf32>
    %15 = vector.broadcast %1 : vector<1x128xf32> to vector<32x128xf32>
    %16 = arith.mulf %14, %15 : vector<32x128xf32>
    %17 = vector.broadcast %2 : vector<1x128xf32> to vector<32x128xf32>
    %18 = arith.addf %16, %17 : vector<32x128xf32>
    %cst_12 = arith.constant 0.000000e+00 : f32
    %19 = vector.broadcast %cst_12 : f32 to vector<32x128xf32>
    %20 = arith.maximumf %18, %19 : vector<32x128xf32>
    %21 = arith.maximumf %11, %20 : vector<32x128xf32>
    %c2 = arith.constant 2 : index
    %c0_13 = arith.constant 0 : index
    %c0_14 = arith.constant 0 : index
    %22 = vector.load %arg1[%c2, %c0_13, %c0_14] : memref<4x32x1152xbf16, #tpu.memory_space<vmem>>, vector<1x32x1152xbf16>
    %23 = vector.shape_cast %22 : vector<1x32x1152xbf16> to vector<32x1152xbf16>
    %cst_15 = arith.constant dense<0.000000e+00> : vector<32x128xf32>
    %24 = tpu.matmul %23, %0, %cst_15 {dimension_numbers = #tpu.dot_dimension_numbers<[1], [0], [0], [1], [0, 0, 1, 1], [], []>} : vector<32x1152xbf16>, vector<1152x128xbf16>, vector<32x128xf32> -> vector<32x128xf32>
    %25 = vector.broadcast %1 : vector<1x128xf32> to vector<32x128xf32>
    %26 = arith.mulf %24, %25 : vector<32x128xf32>
    %27 = vector.broadcast %2 : vector<1x128xf32> to vector<32x128xf32>
    %28 = arith.addf %26, %27 : vector<32x128xf32>
    %cst_16 = arith.constant 0.000000e+00 : f32
    %29 = vector.broadcast %cst_16 : f32 to vector<32x128xf32>
    %30 = arith.maximumf %28, %29 : vector<32x128xf32>
    %c3 = arith.constant 3 : index
    %c0_17 = arith.constant 0 : index
    %c0_18 = arith.constant 0 : index
    %31 = vector.load %arg1[%c3, %c0_17, %c0_18] : memref<4x32x1152xbf16, #tpu.memory_space<vmem>>, vector<1x32x1152xbf16>
    %32 = vector.shape_cast %31 : vector<1x32x1152xbf16> to vector<32x1152xbf16>
    %cst_19 = arith.constant dense<0.000000e+00> : vector<32x128xf32>
    %33 = tpu.matmul %32, %0, %cst_19 {dimension_numbers = #tpu.dot_dimension_numbers<[1], [0], [0], [1], [0, 0, 1, 1], [], []>} : vector<32x1152xbf16>, vector<1152x128xbf16>, vector<32x128xf32> -> vector<32x128xf32>
    %34 = vector.broadcast %1 : vector<1x128xf32> to vector<32x128xf32>
    %35 = arith.mulf %33, %34 : vector<32x128xf32>
    %36 = vector.broadcast %2 : vector<1x128xf32> to vector<32x128xf32>
    %37 = arith.addf %35, %36 : vector<32x128xf32>
    %cst_20 = arith.constant 0.000000e+00 : f32
    %38 = vector.broadcast %cst_20 : f32 to vector<32x128xf32>
    %39 = arith.maximumf %37, %38 : vector<32x128xf32>
    %40 = arith.maximumf %30, %39 : vector<32x128xf32>
    %41 = arith.maximumf %21, %40 : vector<32x128xf32>
    %c0_21 = arith.constant 0 : index
    %c0_22 = arith.constant 0 : index
    %42 = vector.load %arg5[%c0_21, %c0_22] : memref<32x128xf32, #tpu.memory_space<vmem>>, vector<32x128xf32>
    tpu.vector_store %arg5[%c0_21, %c0_22], %41 {strides = array<i32>} : memref<32x128xf32, #tpu.memory_space<vmem>>, vector<32x128xf32>,
    return
  }
  func.func @transform_0(%arg0: i32) -> (i32, i32, i32) {
    %c0_i32 = arith.constant 0 : i32
    %c0_i32_0 = arith.constant 0 : i32
    %c0_i32_1 = arith.constant 0 : i32
    return %c0_i32, %arg0, %c0_i32_0 : i32, i32, i32
  }
  func.func @transform_1(%arg0: i32) -> (i32, i32) {
    %c0_i32 = arith.constant 0 : i32
    %c0_i32_0 = arith.constant 0 : i32
    %c0_i32_1 = arith.constant 0 : i32
    return %c0_i32, %c0_i32_0 : i32, i32
  }
  func.func @transform_2(%arg0: i32) -> (i32, i32) {
    %c0_i32 = arith.constant 0 : i32
    %c0_i32_0 = arith.constant 0 : i32
    %c0_i32_1 = arith.constant 0 : i32
    return %c0_i32, %c0_i32_0 : i32, i32
  }
  func.func @transform_3(%arg0: i32) -> (i32, i32) {
    %c0_i32 = arith.constant 0 : i32
    %c0_i32_0 = arith.constant 0 : i32
    %c0_i32_1 = arith.constant 0 : i32
    return %c0_i32, %c0_i32_0 : i32, i32
  }
  func.func @transform_4(%arg0: i32) -> (i32, i32) {
    %c0_i32 = arith.constant 0 : i32
    %c0_i32_0 = arith.constant 0 : i32
    return %arg0, %c0_i32 : i32, i32
  }
}

module attributes {stable_mosaic.version = 11 : i64} {
  func.func @_conv_kernel(%arg0: i32, %arg1: memref<32x1152xbf16, #tpu.memory_space<vmem>>, %arg2: memref<1152x256xbf16, #tpu.memory_space<vmem>>, %arg3: memref<1x256xf32, #tpu.memory_space<vmem>>, %arg4: memref<1x256xf32, #tpu.memory_space<vmem>>, %arg5: memref<32x256xf32, #tpu.memory_space<vmem>>) attributes {dimension_semantics = [#tpu.dimension_semantics<parallel>], iteration_bounds = array<i64: 1>, scalar_prefetch = 0 : i64, scratch_operands = 0 : i64, tpu.core_type = #tpu.core_type<tc>, window_params = [{transform_indices = @transform_0, window_bounds = array<i64: 32, 1152>}, {pipeline_mode = #tpu.pipeline_mode<synchronous>, transform_indices = @transform_1, window_bounds = array<i64: 1152, 256>}, {pipeline_mode = #tpu.pipeline_mode<synchronous>, transform_indices = @transform_2, window_bounds = array<i64: 1, 256>}, {pipeline_mode = #tpu.pipeline_mode<synchronous>, transform_indices = @transform_3, window_bounds = array<i64: 1, 256>}, {transform_indices = @transform_4, window_bounds = array<i64: 32, 256>}]} {
    %c0 = arith.constant 0 : index
    %c0_0 = arith.constant 0 : index
    %0 = vector.load %arg1[%c0, %c0_0] : memref<32x1152xbf16, #tpu.memory_space<vmem>>, vector<32x1152xbf16>
    %c0_1 = arith.constant 0 : index
    %c0_2 = arith.constant 0 : index
    %1 = vector.load %arg2[%c0_1, %c0_2] : memref<1152x256xbf16, #tpu.memory_space<vmem>>, vector<1152x256xbf16>
    %cst = arith.constant dense<0.000000e+00> : vector<32x256xf32>
    %2 = tpu.matmul %0, %1, %cst {dimension_numbers = #tpu.dot_dimension_numbers<[1], [0], [0], [1], [0, 0, 1, 1], [], []>} : vector<32x1152xbf16>, vector<1152x256xbf16>, vector<32x256xf32> -> vector<32x256xf32>
    %c0_3 = arith.constant 0 : index
    %c0_4 = arith.constant 0 : index
    %3 = vector.load %arg3[%c0_3, %c0_4] : memref<1x256xf32, #tpu.memory_space<vmem>>, vector<1x256xf32>
    %4 = vector.broadcast %3 : vector<1x256xf32> to vector<32x256xf32>
    %5 = arith.mulf %2, %4 : vector<32x256xf32>
    %c0_5 = arith.constant 0 : index
    %c0_6 = arith.constant 0 : index
    %6 = vector.load %arg4[%c0_5, %c0_6] : memref<1x256xf32, #tpu.memory_space<vmem>>, vector<1x256xf32>
    %7 = vector.broadcast %6 : vector<1x256xf32> to vector<32x256xf32>
    %8 = arith.addf %5, %7 : vector<32x256xf32>
    %cst_7 = arith.constant 0.000000e+00 : f32
    %9 = vector.broadcast %cst_7 : f32 to vector<32x256xf32>
    %10 = arith.maximumf %8, %9 : vector<32x256xf32>
    %c0_8 = arith.constant 0 : index
    %c0_9 = arith.constant 0 : index
    %11 = vector.load %arg5[%c0_8, %c0_9] : memref<32x256xf32, #tpu.memory_space<vmem>>, vector<32x256xf32>
    tpu.vector_store %arg5[%c0_8, %c0_9], %10 {strides = array<i32>} : memref<32x256xf32, #tpu.memory_space<vmem>>, vector<32x256xf32>,
    return
  }
  func.func @transform_0(%arg0: i32) -> (i32, i32) {
    %c0_i32 = arith.constant 0 : i32
    %c0_i32_0 = arith.constant 0 : i32
    return %arg0, %c0_i32 : i32, i32
  }
  func.func @transform_1(%arg0: i32) -> (i32, i32) {
    %c0_i32 = arith.constant 0 : i32
    %c0_i32_0 = arith.constant 0 : i32
    %c0_i32_1 = arith.constant 0 : i32
    return %c0_i32, %c0_i32_0 : i32, i32
  }
  func.func @transform_2(%arg0: i32) -> (i32, i32) {
    %c0_i32 = arith.constant 0 : i32
    %c0_i32_0 = arith.constant 0 : i32
    %c0_i32_1 = arith.constant 0 : i32
    return %c0_i32, %c0_i32_0 : i32, i32
  }
  func.func @transform_3(%arg0: i32) -> (i32, i32) {
    %c0_i32 = arith.constant 0 : i32
    %c0_i32_0 = arith.constant 0 : i32
    %c0_i32_1 = arith.constant 0 : i32
    return %c0_i32, %c0_i32_0 : i32, i32
  }
  func.func @transform_4(%arg0: i32) -> (i32, i32) {
    %c0_i32 = arith.constant 0 : i32
    %c0_i32_0 = arith.constant 0 : i32
    return %arg0, %c0_i32 : i32, i32
  }
}

module attributes {stable_mosaic.version = 11 : i64} {
  func.func @_conv_pool_kernel(%arg0: i32, %arg1: memref<4x8x2304xbf16, #tpu.memory_space<vmem>>, %arg2: memref<2304x256xbf16, #tpu.memory_space<vmem>>, %arg3: memref<1x256xf32, #tpu.memory_space<vmem>>, %arg4: memref<1x256xf32, #tpu.memory_space<vmem>>, %arg5: memref<8x256xf32, #tpu.memory_space<vmem>>) attributes {dimension_semantics = [#tpu.dimension_semantics<parallel>], iteration_bounds = array<i64: 1>, scalar_prefetch = 0 : i64, scratch_operands = 0 : i64, tpu.core_type = #tpu.core_type<tc>, window_params = [{transform_indices = @transform_0, window_bounds = array<i64: 4, 8, 2304>}, {pipeline_mode = #tpu.pipeline_mode<synchronous>, transform_indices = @transform_1, window_bounds = array<i64: 2304, 256>}, {pipeline_mode = #tpu.pipeline_mode<synchronous>, transform_indices = @transform_2, window_bounds = array<i64: 1, 256>}, {pipeline_mode = #tpu.pipeline_mode<synchronous>, transform_indices = @transform_3, window_bounds = array<i64: 1, 256>}, {transform_indices = @transform_4, window_bounds = array<i64: 8, 256>}]} {
    %c0 = arith.constant 0 : index
    %c0_0 = arith.constant 0 : index
    %0 = vector.load %arg2[%c0, %c0_0] : memref<2304x256xbf16, #tpu.memory_space<vmem>>, vector<2304x256xbf16>
    %c0_1 = arith.constant 0 : index
    %c0_2 = arith.constant 0 : index
    %1 = vector.load %arg3[%c0_1, %c0_2] : memref<1x256xf32, #tpu.memory_space<vmem>>, vector<1x256xf32>
    %c0_3 = arith.constant 0 : index
    %c0_4 = arith.constant 0 : index
    %2 = vector.load %arg4[%c0_3, %c0_4] : memref<1x256xf32, #tpu.memory_space<vmem>>, vector<1x256xf32>
    %c0_5 = arith.constant 0 : index
    %c0_6 = arith.constant 0 : index
    %c0_7 = arith.constant 0 : index
    %3 = vector.load %arg1[%c0_5, %c0_6, %c0_7] : memref<4x8x2304xbf16, #tpu.memory_space<vmem>>, vector<1x8x2304xbf16>
    %4 = vector.shape_cast %3 : vector<1x8x2304xbf16> to vector<8x2304xbf16>
    %cst = arith.constant dense<0.000000e+00> : vector<8x256xf32>
    %5 = tpu.matmul %4, %0, %cst {dimension_numbers = #tpu.dot_dimension_numbers<[1], [0], [0], [1], [0, 0, 1, 1], [], []>} : vector<8x2304xbf16>, vector<2304x256xbf16>, vector<8x256xf32> -> vector<8x256xf32>
    %6 = vector.broadcast %1 : vector<1x256xf32> to vector<8x256xf32>
    %7 = arith.mulf %5, %6 : vector<8x256xf32>
    %8 = vector.broadcast %2 : vector<1x256xf32> to vector<8x256xf32>
    %9 = arith.addf %7, %8 : vector<8x256xf32>
    %cst_8 = arith.constant 0.000000e+00 : f32
    %10 = vector.broadcast %cst_8 : f32 to vector<8x256xf32>
    %11 = arith.maximumf %9, %10 : vector<8x256xf32>
    %c1 = arith.constant 1 : index
    %c0_9 = arith.constant 0 : index
    %c0_10 = arith.constant 0 : index
    %12 = vector.load %arg1[%c1, %c0_9, %c0_10] : memref<4x8x2304xbf16, #tpu.memory_space<vmem>>, vector<1x8x2304xbf16>
    %13 = vector.shape_cast %12 : vector<1x8x2304xbf16> to vector<8x2304xbf16>
    %cst_11 = arith.constant dense<0.000000e+00> : vector<8x256xf32>
    %14 = tpu.matmul %13, %0, %cst_11 {dimension_numbers = #tpu.dot_dimension_numbers<[1], [0], [0], [1], [0, 0, 1, 1], [], []>} : vector<8x2304xbf16>, vector<2304x256xbf16>, vector<8x256xf32> -> vector<8x256xf32>
    %15 = vector.broadcast %1 : vector<1x256xf32> to vector<8x256xf32>
    %16 = arith.mulf %14, %15 : vector<8x256xf32>
    %17 = vector.broadcast %2 : vector<1x256xf32> to vector<8x256xf32>
    %18 = arith.addf %16, %17 : vector<8x256xf32>
    %cst_12 = arith.constant 0.000000e+00 : f32
    %19 = vector.broadcast %cst_12 : f32 to vector<8x256xf32>
    %20 = arith.maximumf %18, %19 : vector<8x256xf32>
    %21 = arith.maximumf %11, %20 : vector<8x256xf32>
    %c2 = arith.constant 2 : index
    %c0_13 = arith.constant 0 : index
    %c0_14 = arith.constant 0 : index
    %22 = vector.load %arg1[%c2, %c0_13, %c0_14] : memref<4x8x2304xbf16, #tpu.memory_space<vmem>>, vector<1x8x2304xbf16>
    %23 = vector.shape_cast %22 : vector<1x8x2304xbf16> to vector<8x2304xbf16>
    %cst_15 = arith.constant dense<0.000000e+00> : vector<8x256xf32>
    %24 = tpu.matmul %23, %0, %cst_15 {dimension_numbers = #tpu.dot_dimension_numbers<[1], [0], [0], [1], [0, 0, 1, 1], [], []>} : vector<8x2304xbf16>, vector<2304x256xbf16>, vector<8x256xf32> -> vector<8x256xf32>
    %25 = vector.broadcast %1 : vector<1x256xf32> to vector<8x256xf32>
    %26 = arith.mulf %24, %25 : vector<8x256xf32>
    %27 = vector.broadcast %2 : vector<1x256xf32> to vector<8x256xf32>
    %28 = arith.addf %26, %27 : vector<8x256xf32>
    %cst_16 = arith.constant 0.000000e+00 : f32
    %29 = vector.broadcast %cst_16 : f32 to vector<8x256xf32>
    %30 = arith.maximumf %28, %29 : vector<8x256xf32>
    %c3 = arith.constant 3 : index
    %c0_17 = arith.constant 0 : index
    %c0_18 = arith.constant 0 : index
    %31 = vector.load %arg1[%c3, %c0_17, %c0_18] : memref<4x8x2304xbf16, #tpu.memory_space<vmem>>, vector<1x8x2304xbf16>
    %32 = vector.shape_cast %31 : vector<1x8x2304xbf16> to vector<8x2304xbf16>
    %cst_19 = arith.constant dense<0.000000e+00> : vector<8x256xf32>
    %33 = tpu.matmul %32, %0, %cst_19 {dimension_numbers = #tpu.dot_dimension_numbers<[1], [0], [0], [1], [0, 0, 1, 1], [], []>} : vector<8x2304xbf16>, vector<2304x256xbf16>, vector<8x256xf32> -> vector<8x256xf32>
    %34 = vector.broadcast %1 : vector<1x256xf32> to vector<8x256xf32>
    %35 = arith.mulf %33, %34 : vector<8x256xf32>
    %36 = vector.broadcast %2 : vector<1x256xf32> to vector<8x256xf32>
    %37 = arith.addf %35, %36 : vector<8x256xf32>
    %cst_20 = arith.constant 0.000000e+00 : f32
    %38 = vector.broadcast %cst_20 : f32 to vector<8x256xf32>
    %39 = arith.maximumf %37, %38 : vector<8x256xf32>
    %40 = arith.maximumf %30, %39 : vector<8x256xf32>
    %41 = arith.maximumf %21, %40 : vector<8x256xf32>
    %c0_21 = arith.constant 0 : index
    %c0_22 = arith.constant 0 : index
    %42 = vector.load %arg5[%c0_21, %c0_22] : memref<8x256xf32, #tpu.memory_space<vmem>>, vector<8x256xf32>
    tpu.vector_store %arg5[%c0_21, %c0_22], %41 {strides = array<i32>} : memref<8x256xf32, #tpu.memory_space<vmem>>, vector<8x256xf32>,
    return
  }
  func.func @transform_0(%arg0: i32) -> (i32, i32, i32) {
    %c0_i32 = arith.constant 0 : i32
    %c0_i32_0 = arith.constant 0 : i32
    %c0_i32_1 = arith.constant 0 : i32
    return %c0_i32, %arg0, %c0_i32_0 : i32, i32, i32
  }
  func.func @transform_1(%arg0: i32) -> (i32, i32) {
    %c0_i32 = arith.constant 0 : i32
    %c0_i32_0 = arith.constant 0 : i32
    %c0_i32_1 = arith.constant 0 : i32
    return %c0_i32, %c0_i32_0 : i32, i32
  }
  func.func @transform_2(%arg0: i32) -> (i32, i32) {
    %c0_i32 = arith.constant 0 : i32
    %c0_i32_0 = arith.constant 0 : i32
    %c0_i32_1 = arith.constant 0 : i32
    return %c0_i32, %c0_i32_0 : i32, i32
  }
  func.func @transform_3(%arg0: i32) -> (i32, i32) {
    %c0_i32 = arith.constant 0 : i32
    %c0_i32_0 = arith.constant 0 : i32
    %c0_i32_1 = arith.constant 0 : i32
    return %c0_i32, %c0_i32_0 : i32, i32
  }
  func.func @transform_4(%arg0: i32) -> (i32, i32) {
    %c0_i32 = arith.constant 0 : i32
    %c0_i32_0 = arith.constant 0 : i32
    return %arg0, %c0_i32 : i32, i32
  }
}

module attributes {stable_mosaic.version = 11 : i64} {
  func.func @_linear_kernel(%arg0: memref<2x1024xbf16, #tpu.memory_space<vmem>>, %arg1: memref<1024x256xbf16, #tpu.memory_space<vmem>>, %arg2: memref<1x256xf32, #tpu.memory_space<vmem>>, %arg3: memref<1x256xf32, #tpu.memory_space<vmem>>, %arg4: memref<2x256xf32, #tpu.memory_space<vmem>>) attributes {dimension_semantics = [], scalar_prefetch = 0 : i64, scratch_operands = 0 : i64, tpu.core_type = #tpu.core_type<tc>} {
    %c0 = arith.constant 0 : index
    %c0_0 = arith.constant 0 : index
    %0 = vector.load %arg0[%c0, %c0_0] : memref<2x1024xbf16, #tpu.memory_space<vmem>>, vector<2x1024xbf16>
    %c0_1 = arith.constant 0 : index
    %c0_2 = arith.constant 0 : index
    %1 = vector.load %arg1[%c0_1, %c0_2] : memref<1024x256xbf16, #tpu.memory_space<vmem>>, vector<1024x256xbf16>
    %cst = arith.constant dense<0.000000e+00> : vector<2x256xf32>
    %2 = tpu.matmul %0, %1, %cst {dimension_numbers = #tpu.dot_dimension_numbers<[1], [0], [0], [1], [0, 0, 1, 1], [], []>} : vector<2x1024xbf16>, vector<1024x256xbf16>, vector<2x256xf32> -> vector<2x256xf32>
    %c0_3 = arith.constant 0 : index
    %c0_4 = arith.constant 0 : index
    %3 = vector.load %arg2[%c0_3, %c0_4] : memref<1x256xf32, #tpu.memory_space<vmem>>, vector<1x256xf32>
    %4 = vector.broadcast %3 : vector<1x256xf32> to vector<2x256xf32>
    %5 = arith.mulf %2, %4 : vector<2x256xf32>
    %c0_5 = arith.constant 0 : index
    %c0_6 = arith.constant 0 : index
    %6 = vector.load %arg3[%c0_5, %c0_6] : memref<1x256xf32, #tpu.memory_space<vmem>>, vector<1x256xf32>
    %7 = vector.broadcast %6 : vector<1x256xf32> to vector<2x256xf32>
    %8 = arith.addf %5, %7 : vector<2x256xf32>
    %cst_7 = arith.constant 0.000000e+00 : f32
    %9 = vector.broadcast %cst_7 : f32 to vector<2x256xf32>
    %10 = arith.maximumf %8, %9 : vector<2x256xf32>
    %c0_8 = arith.constant 0 : index
    %c0_9 = arith.constant 0 : index
    %11 = vector.load %arg4[%c0_8, %c0_9] : memref<2x256xf32, #tpu.memory_space<vmem>>, vector<2x256xf32>
    tpu.vector_store %arg4[%c0_8, %c0_9], %10 {strides = array<i32>} : memref<2x256xf32, #tpu.memory_space<vmem>>, vector<2x256xf32>,
    return
  }
}

module attributes {stable_mosaic.version = 11 : i64} {
  func.func @_linear_kernel(%arg0: memref<2x256xbf16, #tpu.memory_space<vmem>>, %arg1: memref<256x128xbf16, #tpu.memory_space<vmem>>, %arg2: memref<1x128xf32, #tpu.memory_space<vmem>>, %arg3: memref<1x128xf32, #tpu.memory_space<vmem>>, %arg4: memref<2x128xf32, #tpu.memory_space<vmem>>) attributes {dimension_semantics = [], scalar_prefetch = 0 : i64, scratch_operands = 0 : i64, tpu.core_type = #tpu.core_type<tc>} {
    %c0 = arith.constant 0 : index
    %c0_0 = arith.constant 0 : index
    %0 = vector.load %arg0[%c0, %c0_0] : memref<2x256xbf16, #tpu.memory_space<vmem>>, vector<2x256xbf16>
    %c0_1 = arith.constant 0 : index
    %c0_2 = arith.constant 0 : index
    %1 = vector.load %arg1[%c0_1, %c0_2] : memref<256x128xbf16, #tpu.memory_space<vmem>>, vector<256x128xbf16>
    %cst = arith.constant dense<0.000000e+00> : vector<2x128xf32>
    %2 = tpu.matmul %0, %1, %cst {dimension_numbers = #tpu.dot_dimension_numbers<[1], [0], [0], [1], [0, 0, 1, 1], [], []>} : vector<2x256xbf16>, vector<256x128xbf16>, vector<2x128xf32> -> vector<2x128xf32>
    %c0_3 = arith.constant 0 : index
    %c0_4 = arith.constant 0 : index
    %3 = vector.load %arg2[%c0_3, %c0_4] : memref<1x128xf32, #tpu.memory_space<vmem>>, vector<1x128xf32>
    %4 = vector.broadcast %3 : vector<1x128xf32> to vector<2x128xf32>
    %5 = arith.mulf %2, %4 : vector<2x128xf32>
    %c0_5 = arith.constant 0 : index
    %c0_6 = arith.constant 0 : index
    %6 = vector.load %arg3[%c0_5, %c0_6] : memref<1x128xf32, #tpu.memory_space<vmem>>, vector<1x128xf32>
    %7 = vector.broadcast %6 : vector<1x128xf32> to vector<2x128xf32>
    %8 = arith.addf %5, %7 : vector<2x128xf32>
    %c0_7 = arith.constant 0 : index
    %c0_8 = arith.constant 0 : index
    %9 = vector.load %arg4[%c0_7, %c0_8] : memref<2x128xf32, #tpu.memory_space<vmem>>, vector<2x128xf32>
    tpu.vector_store %arg4[%c0_7, %c0_8], %8 {strides = array<i32>} : memref<2x128xf32, #tpu.memory_space<vmem>>, vector<2x128xf32>,
    return
  }
}

</mosaic_0001>

<llo_original>
// kernel: cnn_forward.8
$region0: #{cnn_forward.8}
  #allocation0 [shape = 'u32[]', space=smem, size = 0x4, offset = 0x4, fixed_abs, tag = 'smem constant byte address 0x4 - core index']
  #allocation1 [shape = 'u32[144,128]{1,0:T(1,128)}', space=vmem, size = 0x12000, scoped, tag = 'internal scratch']
  %s0 = inlined_call_operand.vmem [shape: bf16[4,128,128], index: 0, kind: input, shape index: {}]
  %s1 = inlined_call_operand.vmem [shape: bf16[128,64], index: 1, kind: input, shape index: {}]
  %s2 = inlined_call_operand.vmem [shape: f32[1,64], index: 2, kind: input, shape index: {}]
  %s3 = inlined_call_operand.vmem [shape: f32[1,64], index: 3, kind: input, shape index: {}]
  %s4 = inlined_call_operand.vmem [shape: f32[128,64], index: 4, kind: output, shape index: {}]
  %s5 = sld [smem:[#allocation0]]
  $region26: #{cnn_forward.8} parent=0
    _
  %s7 = ssub.s32 1, %s5
  %s8 = scalar_select 0, %s7, %s5
  // Predicated region
  $region2: #{cnn_forward.8} parent=0 // pred_check
    _
  $region3: #{cnn_forward.8} parent=0 // pred_check_branch
    %10 = sbr.rel (0) target = $region5
  $region4: #{cnn_forward.8} parent=0 // pred_region
    _
  $region5: #{cnn_forward.8} parent=0 // pred_fallthru
    _
  // Predicated region
  $region6: #{cnn_forward.8} parent=0 // pred_check
    _
  $region7: #{cnn_forward.8} parent=0 // pred_check_branch
    %12 = sbr.rel (0) target = $region9
  $region8: #{cnn_forward.8} parent=0 // pred_region
    _
  $region9: #{cnn_forward.8} parent=0 // pred_fallthru
    _
  // Predicated region
  $region10: #{cnn_forward.8} parent=0 // pred_check
    _
  $region11: #{cnn_forward.8} parent=0 // pred_check_branch
    %14 = sbr.rel (0) target = $region13
  $region12: #{cnn_forward.8} parent=0 // pred_region
    _
  $region13: #{cnn_forward.8} parent=0 // pred_fallthru
    _
  // Predicated region
  $region14: #{cnn_forward.8} parent=0 // pred_check
    _
  $region15: #{cnn_forward.8} parent=0 // pred_check_branch
    %16 = sbr.rel (0) target = $region17
  $region16: #{cnn_forward.8} parent=0 // pred_region
    _
  $region17: #{cnn_forward.8} parent=0 // pred_fallthru
    _
  %v18 = vld [vmem:[%s1] sm:$0xf]
  %v19 = vld [vmem:[%s1 + $0x4] sm:$0xf]
  %v20 = vld [vmem:[%s1 + $0x8] sm:$0xf]
  %v21 = vld [vmem:[%s1 + $0xc] sm:$0xf]
  %v22 = vld [vmem:[%s1 + $0x10] sm:$0xf]
  %v23 = vld [vmem:[%s1 + $0x14] sm:$0xf]
  %v24 = vld [vmem:[%s1 + $0x18] sm:$0xf]
  %v25 = vld [vmem:[%s1 + $0x1c] sm:$0xf]
  %v26 = vld [vmem:[%s1 + $0x20] sm:$0xf]
  %v27 = vld [vmem:[%s1 + $0x24] sm:$0xf]
  %v28 = vld [vmem:[%s1 + $0x28] sm:$0xf]
  %v29 = vld [vmem:[%s1 + $0x2c] sm:$0xf]
  %v30 = vld [vmem:[%s1 + $0x30] sm:$0xf]
  %v31 = vld [vmem:[%s1 + $0x34] sm:$0xf]
  %v32 = vld [vmem:[%s1 + $0x38] sm:$0xf]
  %v33 = vld [vmem:[%s1 + $0x3c] sm:$0xf]
  %v34 = vld [vmem:[%s2] sm:$0x1]
  %v35 = vld [vmem:[%s3] sm:$0x1]
  %v36 = vld [vmem:[%s0] sm:$0xf]
  %v37 = vld [vmem:[%s0 + $0x4] sm:$0xf]
  %v38 = vld [vmem:[%s0 + $0x8] sm:$0xf]
  %v39 = vld [vmem:[%s0 + $0xc] sm:$0xf]
  %v40 = vld [vmem:[%s0 + $0x10] sm:$0xf]
  %v41 = vld [vmem:[%s0 + $0x14] sm:$0xf]
  %v42 = vld [vmem:[%s0 + $0x18] sm:$0xf]
  %v43 = vld [vmem:[%s0 + $0x1c] sm:$0xf]
  %v44 = vld [vmem:[%s0 + $0x20] sm:$0xf]
  %v45 = vld [vmem:[%s0 + $0x24] sm:$0xf]
  %v46 = vld [vmem:[%s0 + $0x28] sm:$0xf]
  %v47 = vld [vmem:[%s0 + $0x2c] sm:$0xf]
  %v48 = vld [vmem:[%s0 + $0x30] sm:$0xf]
  %v49 = vld [vmem:[%s0 + $0x34] sm:$0xf]
  %v50 = vld [vmem:[%s0 + $0x38] sm:$0xf]
  %v51 = vld [vmem:[%s0 + $0x3c] sm:$0xf]
  %v68 = vunpack.c.l.b16 %v36
  %v69 = vunpack.c.l.b16 %v37
  %v70 = vunpack.c.l.b16 %v38
  %v71 = vunpack.c.l.b16 %v39
  %v72 = vunpack.c.l.b16 %v40
  %v73 = vunpack.c.l.b16 %v41
  %v74 = vunpack.c.l.b16 %v42
  %v75 = vunpack.c.l.b16 %v43
  %v76 = vunpack.c.l.b16 %v44
  %v77 = vunpack.c.l.b16 %v45
  %v78 = vunpack.c.l.b16 %v46
  %v79 = vunpack.c.l.b16 %v47
  %v80 = vunpack.c.l.b16 %v48
  %v81 = vunpack.c.l.b16 %v49
  %v82 = vunpack.c.l.b16 %v50
  %v83 = vunpack.c.l.b16 %v51
  %v84 = vpack.c.b16 %v69, %v68
  %v85 = vpack.c.b16 %v71, %v70
  %v86 = vpack.c.b16 %v73, %v72
  %v87 = vpack.c.b16 %v75, %v74
  %v88 = vpack.c.b16 %v77, %v76
  %v89 = vpack.c.b16 %v79, %v78
  %v90 = vpack.c.b16 %v81, %v80
  %v91 = vpack.c.b16 %v83, %v82
  %v116 = vunpack.c.l.b16 %v18
  %v117 = vunpack.c.l.b16 %v19
  %v118 = vunpack.c.l.b16 %v20
  %v119 = vunpack.c.l.b16 %v21
  %v120 = vunpack.c.l.b16 %v22
  %v121 = vunpack.c.l.b16 %v23
  %v122 = vunpack.c.l.b16 %v24
  %v123 = vunpack.c.l.b16 %v25
  %v124 = vunpack.c.l.b16 %v26
  %v125 = vunpack.c.l.b16 %v27
  %v126 = vunpack.c.l.b16 %v28
  %v127 = vunpack.c.l.b16 %v29
  %v128 = vunpack.c.l.b16 %v30
  %v129 = vunpack.c.l.b16 %v31
  %v130 = vunpack.c.l.b16 %v32
  %v131 = vunpack.c.l.b16 %v33
  %v132 = vpack.c.b16 %v117, %v116
  %v133 = vpack.c.b16 %v119, %v118
  %v134 = vpack.c.b16 %v121, %v120
  %v135 = vpack.c.b16 %v123, %v122
  %v136 = vpack.c.b16 %v125, %v124
  %v137 = vpack.c.b16 %v127, %v126
  %v138 = vpack.c.b16 %v129, %v128
  %v139 = vpack.c.b16 %v131, %v130
  %148 = vmatprep.subr.bf16.mxu0 0
  %149 = vmatpush1.bf16.msra.mxu0 %v132
  %150 = vmatprep.subr.bf16.mxu0 0
  %151 = vmatpush1.bf16.msra.mxu0 %v133
  %152 = vmatprep.subr.bf16.mxu0 0
  %153 = vmatpush1.bf16.msra.mxu0 %v134
  %154 = vmatprep.subr.bf16.mxu0 0
  %155 = vmatpush1.bf16.msra.mxu0 %v135
  %156 = vmatprep.subr.bf16.mxu0 0
  %157 = vmatpush1.bf16.msra.mxu0 %v136
  %158 = vmatprep.subr.bf16.mxu0 0
  %159 = vmatpush1.bf16.msra.mxu0 %v137
  %160 = vmatprep.subr.bf16.mxu0 0
  %161 = vmatpush1.bf16.msra.mxu0 %v138
  %162 = vmatprep.subr.bf16.mxu0 0
  %163 = vmatpush1.bf16.msra.mxu0 %v139
  %164 = vmatprep.subr.bf16.mxu0 0
  %165 = vmatpush1.bf16.msra.mxu0 0
  %166 = vmatprep.subr.bf16.mxu0 0
  %167 = vmatpush1.bf16.msra.mxu0 0
  %168 = vmatprep.subr.bf16.mxu0 0
  %169 = vmatpush1.bf16.msra.mxu0 0
  %170 = vmatprep.subr.bf16.mxu0 0
  %171 = vmatpush1.bf16.msra.mxu0 0
  %172 = vmatprep.subr.bf16.mxu0 0
  %173 = vmatpush1.bf16.msra.mxu0 0
  %174 = vmatprep.subr.bf16.mxu0 0
  %175 = vmatpush1.bf16.msra.mxu0 0
  %176 = vmatprep.subr.bf16.mxu0 0
  %177 = vmatpush1.bf16.msra.mxu0 0
  %178 = vmatprep.subr.bf16.mxu0 0
  %179 = vmatpush1.bf16.msra.mxu0 0
  %180 = vmatprep.mubr.bf16.mxu0 0
  %181 = vmatmul.mubr.bf16.gmra.mrb[0].mxu0 %v84
  %v182 = vpop.f32.mrb[0].mxu0
  %v183 = vadd.f32 0.0, %v182
  %v184 = vpop.f32.mrb[0].mxu0
  %v185 = vpop.f32.mrb[0].mxu0
  %v186 = vadd.f32 0.0, %v185
  %v187 = vpop.f32.mrb[0].mxu0
  %188 = vmatprep.mubr.bf16.mxu0 0
  %189 = vmatmul.mubr.bf16.gmra.mrb[0].mxu0 %v85
  %v190 = vpop.f32.mrb[0].mxu0
  %v191 = vadd.f32 0.0, %v190
  %v192 = vpop.f32.mrb[0].mxu0
  %v193 = vpop.f32.mrb[0].mxu0
  %v194 = vadd.f32 0.0, %v193
  %v195 = vpop.f32.mrb[0].mxu0
  %196 = vmatprep.mubr.bf16.mxu0 0
  %197 = vmatmul.mubr.bf16.gmra.mrb[0].mxu0 %v86
  %v198 = vpop.f32.mrb[0].mxu0
  %v199 = vadd.f32 0.0, %v198
  %v200 = vpop.f32.mrb[0].mxu0
  %v201 = vpop.f32.mrb[0].mxu0
  %v202 = vadd.f32 0.0, %v201
  %v203 = vpop.f32.mrb[0].mxu0
  %204 = vmatprep.mubr.bf16.mxu0 0
  %205 = vmatmul.mubr.bf16.gmra.mrb[0].mxu0 %v87
  %v206 = vpop.f32.mrb[0].mxu0
  %v207 = vadd.f32 0.0, %v206
  %v208 = vpop.f32.mrb[0].mxu0
  %v209 = vpop.f32.mrb[0].mxu0
  %v210 = vadd.f32 0.0, %v209
  %v211 = vpop.f32.mrb[0].mxu0
  %212 = vmatprep.mubr.bf16.mxu0 0
  %213 = vmatmul.mubr.bf16.gmra.mrb[0].mxu0 %v88
  %v214 = vpop.f32.mrb[0].mxu0
  %v215 = vadd.f32 0.0, %v214
  %v216 = vpop.f32.mrb[0].mxu0
  %v217 = vpop.f32.mrb[0].mxu0
  %v218 = vadd.f32 0.0, %v217
  %v219 = vpop.f32.mrb[0].mxu0
  %220 = vmatprep.mubr.bf16.mxu0 0
  %221 = vmatmul.mubr.bf16.gmra.mrb[0].mxu0 %v89
  %v222 = vpop.f32.mrb[0].mxu0
  %v223 = vadd.f32 0.0, %v222
  %v224 = vpop.f32.mrb[0].mxu0
  %v225 = vpop.f32.mrb[0].mxu0
  %v226 = vadd.f32 0.0, %v225
  %v227 = vpop.f32.mrb[0].mxu0
  %228 = vmatprep.mubr.bf16.mxu0 0
  %229 = vmatmul.mubr.bf16.gmra.mrb[0].mxu0 %v90
  %v230 = vpop.f32.mrb[0].mxu0
  %v231 = vadd.f32 0.0, %v230
  %v232 = vpop.f32.mrb[0].mxu0
  %v233 = vpop.f32.mrb[0].mxu0
  %v234 = vadd.f32 0.0, %v233
  %v235 = vpop.f32.mrb[0].mxu0
  %236 = vmatprep.mubr.bf16.mxu0 0
  %237 = vmatmul.mubr.bf16.gmra.mrb[0].mxu0 %v91
  %v238 = vpop.f32.mrb[0].mxu0
  %v239 = vadd.f32 0.0, %v238
  %v240 = vpop.f32.mrb[0].mxu0
  %v241 = vpop.f32.mrb[0].mxu0
  %v242 = vadd.f32 0.0, %v241
  %v243 = vpop.f32.mrb[0].mxu0
  %244 = vdwg.mxu0
  %v246 = vlaneseq
  %v247 = vshrl.u32 %v246, 7
  %v248 = vsub.s32 0, %v247
  %v249 = vrot.slane %v34, %v248
  %v251 = vmul.f32 %v183, %v249
  %v252 = vmul.f32 %v186, %v249
  %v253 = vmul.f32 %v191, %v249
  %v254 = vmul.f32 %v194, %v249
  %v255 = vmul.f32 %v199, %v249
  %v256 = vmul.f32 %v202, %v249
  %v257 = vmul.f32 %v207, %v249
  %v258 = vmul.f32 %v210, %v249
  %v259 = vmul.f32 %v215, %v249
  %v260 = vmul.f32 %v218, %v249
  %v261 = vmul.f32 %v223, %v249
  %v262 = vmul.f32 %v226, %v249
  %v263 = vmul.f32 %v231, %v249
  %v264 = vmul.f32 %v234, %v249
  %v265 = vmul.f32 %v239, %v249
  %v266 = vmul.f32 %v242, %v249
  %v268 = vlaneseq
  %v269 = vshrl.u32 %v268, 7
  %v270 = vsub.s32 0, %v269
  %v271 = vrot.slane %v35, %v270
  %v273 = vadd.f32 %v251, %v271
  %v274 = vadd.f32 %v252, %v271
  %v275 = vadd.f32 %v253, %v271
  %v276 = vadd.f32 %v254, %v271
  %v277 = vadd.f32 %v255, %v271
  %v278 = vadd.f32 %v256, %v271
  %v279 = vadd.f32 %v257, %v271
  %v280 = vadd.f32 %v258, %v271
  %v281 = vadd.f32 %v259, %v271
  %v282 = vadd.f32 %v260, %v271
  %v283 = vadd.f32 %v261, %v271
  %v284 = vadd.f32 %v262, %v271
  %v285 = vadd.f32 %v263, %v271
  %v286 = vadd.f32 %v264, %v271
  %v287 = vadd.f32 %v265, %v271
  %v288 = vadd.f32 %v266, %v271
  %v289 = vmax.f32 %v273, 0.0
  %v290 = vmax.f32 %v274, 0.0
  %v291 = vmax.f32 %v275, 0.0
  %v292 = vmax.f32 %v276, 0.0
  %v293 = vmax.f32 %v277, 0.0
  %v294 = vmax.f32 %v278, 0.0
  %v295 = vmax.f32 %v279, 0.0
  %v296 = vmax.f32 %v280, 0.0
  %v297 = vmax.f32 %v281, 0.0
  %v298 = vmax.f32 %v282, 0.0
  %v299 = vmax.f32 %v283, 0.0
  %v300 = vmax.f32 %v284, 0.0
  %v301 = vmax.f32 %v285, 0.0
  %v302 = vmax.f32 %v286, 0.0
  %v303 = vmax.f32 %v287, 0.0
  %v304 = vmax.f32 %v288, 0.0
  %s305 = scalar_lea.vmem %s0, 64
  %v306 = vld [vmem:[%s305] sm:$0xf]
  %v307 = vld [vmem:[%s305 + $0x4] sm:$0xf]
  %v308 = vld [vmem:[%s305 + $0x8] sm:$0xf]
  %v309 = vld [vmem:[%s305 + $0xc] sm:$0xf]
  %v310 = vld [vmem:[%s305 + $0x10] sm:$0xf]
  %v311 = vld [vmem:[%s305 + $0x14] sm:$0xf]
  %v312 = vld [vmem:[%s305 + $0x18] sm:$0xf]
  %v313 = vld [vmem:[%s305 + $0x1c] sm:$0xf]
  %v314 = vld [vmem:[%s305 + $0x20] sm:$0xf]
  %v315 = vld [vmem:[%s305 + $0x24] sm:$0xf]
  %v316 = vld [vmem:[%s305 + $0x28] sm:$0xf]
  %v317 = vld [vmem:[%s305 + $0x2c] sm:$0xf]
  %v318 = vld [vmem:[%s305 + $0x30] sm:$0xf]
  %v319 = vld [vmem:[%s305 + $0x34] sm:$0xf]
  %v320 = vld [vmem:[%s305 + $0x38] sm:$0xf]
  %v321 = vld [vmem:[%s305 + $0x3c] sm:$0xf]
  %v338 = vunpack.c.l.b16 %v306
  %v339 = vunpack.c.l.b16 %v307
  %v340 = vunpack.c.l.b16 %v308
  %v341 = vunpack.c.l.b16 %v309
  %v342 = vunpack.c.l.b16 %v310
  %v343 = vunpack.c.l.b16 %v311
  %v344 = vunpack.c.l.b16 %v312
  %v345 = vunpack.c.l.b16 %v313
  %v346 = vunpack.c.l.b16 %v314
  %v347 = vunpack.c.l.b16 %v315
  %v348 = vunpack.c.l.b16 %v316
  %v349 = vunpack.c.l.b16 %v317
  %v350 = vunpack.c.l.b16 %v318
  %v351 = vunpack.c.l.b16 %v319
  %v352 = vunpack.c.l.b16 %v320
  %v353 = vunpack.c.l.b16 %v321
  %v354 = vpack.c.b16 %v339, %v338
  %v355 = vpack.c.b16 %v341, %v340
  %v356 = vpack.c.b16 %v343, %v342
  %v357 = vpack.c.b16 %v345, %v344
  %v358 = vpack.c.b16 %v347, %v346
  %v359 = vpack.c.b16 %v349, %v348
  %v360 = vpack.c.b16 %v351, %v350
  %v361 = vpack.c.b16 %v353, %v352
  %370 = vmatprep.subr.bf16.mxu0 0
  %371 = vmatpush1.bf16.msra.mxu0 %v132
  %372 = vmatprep.subr.bf16.mxu0 0
  %373 = vmatpush1.bf16.msra.mxu0 %v133
  %374 = vmatprep.subr.bf16.mxu0 0
  %375 = vmatpush1.bf16.msra.mxu0 %v134
  %376 = vmatprep.subr.bf16.mxu0 0
  %377 = vmatpush1.bf16.msra.mxu0 %v135
  %378 = vmatprep.subr.bf16.mxu0 0
  %379 = vmatpush1.bf16.msra.mxu0 %v136
  %380 = vmatprep.subr.bf16.mxu0 0
  %381 = vmatpush1.bf16.msra.mxu0 %v137
  %382 = vmatprep.subr.bf16.mxu0 0
  %383 = vmatpush1.bf16.msra.mxu0 %v138
  %384 = vmatprep.subr.bf16.mxu0 0
  %385 = vmatpush1.bf16.msra.mxu0 %v139
  %386 = vmatprep.subr.bf16.mxu0 0
  %387 = vmatpush1.bf16.msra.mxu0 0
  %388 = vmatprep.subr.bf16.mxu0 0
  %389 = vmatpush1.bf16.msra.mxu0 0
  %390 = vmatprep.subr.bf16.mxu0 0
  %391 = vmatpush1.bf16.msra.mxu0 0
  %392 = vmatprep.subr.bf16.mxu0 0
  %393 = vmatpush1.bf16.msra.mxu0 0
  %394 = vmatprep.subr.bf16.mxu0 0
  %395 = vmatpush1.bf16.msra.mxu0 0
  %396 = vmatprep.subr.bf16.mxu0 0
  %397 = vmatpush1.bf16.msra.mxu0 0
  %398 = vmatprep.subr.bf16.mxu0 0
  %399 = vmatpush1.bf16.msra.mxu0 0
  %400 = vmatprep.subr.bf16.mxu0 0
  %401 = vmatpush1.bf16.msra.mxu0 0
  %402 = vmatprep.mubr.bf16.mxu0 0
  %403 = vmatmul.mubr.bf16.gmra.mrb[0].mxu0 %v354
  %v404 = vpop.f32.mrb[0].mxu0
  %v405 = vadd.f32 0.0, %v404
  %v406 = vpop.f32.mrb[0].mxu0
  %v407 = vpop.f32.mrb[0].mxu0
  %v408 = vadd.f32 0.0, %v407
  %v409 = vpop.f32.mrb[0].mxu0
  %410 = vmatprep.mubr.bf16.mxu0 0
  %411 = vmatmul.mubr.bf16.gmra.mrb[0].mxu0 %v355
  %v412 = vpop.f32.mrb[0].mxu0
  %v413 = vadd.f32 0.0, %v412
  %v414 = vpop.f32.mrb[0].mxu0
  %v415 = vpop.f32.mrb[0].mxu0
  %v416 = vadd.f32 0.0, %v415
  %v417 = vpop.f32.mrb[0].mxu0
  %418 = vmatprep.mubr.bf16.mxu0 0
  %419 = vmatmul.mubr.bf16.gmra.mrb[0].mxu0 %v356
  %v420 = vpop.f32.mrb[0].mxu0
  %v421 = vadd.f32 0.0, %v420
  %v422 = vpop.f32.mrb[0].mxu0
  %v423 = vpop.f32.mrb[0].mxu0
  %v424 = vadd.f32 0.0, %v423
  %v425 = vpop.f32.mrb[0].mxu0
  %426 = vmatprep.mubr.bf16.mxu0 0
  %427 = vmatmul.mubr.bf16.gmra.mrb[0].mxu0 %v357
  %v428 = vpop.f32.mrb[0].mxu0
  %v429 = vadd.f32 0.0, %v428
  %v430 = vpop.f32.mrb[0].mxu0
  %v431 = vpop.f32.mrb[0].mxu0
  %v432 = vadd.f32 0.0, %v431
  %v433 = vpop.f32.mrb[0].mxu0
  %434 = vmatprep.mubr.bf16.mxu0 0
  %435 = vmatmul.mubr.bf16.gmra.mrb[0].mxu0 %v358
  %v436 = vpop.f32.mrb[0].mxu0
  %v437 = vadd.f32 0.0, %v436
  %v438 = vpop.f32.mrb[0].mxu0
  %v439 = vpop.f32.mrb[0].mxu0
  %v440 = vadd.f32 0.0, %v439
  %v441 = vpop.f32.mrb[0].mxu0
  %442 = vmatprep.mubr.bf16.mxu0 0
  %443 = vmatmul.mubr.bf16.gmra.mrb[0].mxu0 %v359
  %v444 = vpop.f32.mrb[0].mxu0
  %v445 = vadd.f32 0.0, %v444
  %v446 = vpop.f32.mrb[0].mxu0
  %v447 = vpop.f32.mrb[0].mxu0
  %v448 = vadd.f32 0.0, %v447
  %v449 = vpop.f32.mrb[0].mxu0
  %450 = vmatprep.mubr.bf16.mxu0 0
  %451 = vmatmul.mubr.bf16.gmra.mrb[0].mxu0 %v360
  %v452 = vpop.f32.mrb[0].mxu0
  %v453 = vadd.f32 0.0, %v452
  %v454 = vpop.f32.mrb[0].mxu0
  %v455 = vpop.f32.mrb[0].mxu0
  %v456 = vadd.f32 0.0, %v455
  %v457 = vpop.f32.mrb[0].mxu0
  %458 = vmatprep.mubr.bf16.mxu0 0
  %459 = vmatmul.mubr.bf16.gmra.mrb[0].mxu0 %v361
  %v460 = vpop.f32.mrb[0].mxu0
  %v461 = vadd.f32 0.0, %v460
  %v462 = vpop.f32.mrb[0].mxu0
  %v463 = vpop.f32.mrb[0].mxu0
  %v464 = vadd.f32 0.0, %v463
  %v465 = vpop.f32.mrb[0].mxu0
  %466 = vdwg.mxu0
  %v467 = vmul.f32 %v405, %v249
  %v468 = vmul.f32 %v408, %v249
  %v469 = vmul.f32 %v413, %v249
  %v470 = vmul.f32 %v416, %v249
  %v471 = vmul.f32 %v421, %v249
  %v472 = vmul.f32 %v424, %v249
  %v473 = vmul.f32 %v429, %v249
  %v474 = vmul.f32 %v432, %v249
  %v475 = vmul.f32 %v437, %v249
  %v476 = vmul.f32 %v440, %v249
  %v477 = vmul.f32 %v445, %v249
  %v478 = vmul.f32 %v448, %v249
  %v479 = vmul.f32 %v453, %v249
  %v480 = vmul.f32 %v456, %v249
  %v481 = vmul.f32 %v461, %v249
  %v482 = vmul.f32 %v464, %v249
  %v483 = vadd.f32 %v467, %v271
  %v484 = vadd.f32 %v468, %v271
  %v485 = vadd.f32 %v469, %v271
  %v486 = vadd.f32 %v470, %v271
  %v487 = vadd.f32 %v471, %v271
  %v488 = vadd.f32 %v472, %v271
  %v489 = vadd.f32 %v473, %v271
  %v490 = vadd.f32 %v474, %v271
  %v491 = vadd.f32 %v475, %v271
  %v492 = vadd.f32 %v476, %v271
  %v493 = vadd.f32 %v477, %v271
  %v494 = vadd.f32 %v478, %v271
  %v495 = vadd.f32 %v479, %v271
  %v496 = vadd.f32 %v480, %v271
  %v497 = vadd.f32 %v481, %v271
  %v498 = vadd.f32 %v482, %v271
  %v499 = vmax.f32 %v483, 0.0
  %v500 = vmax.f32 %v484, 0.0
  %v501 = vmax.f32 %v485, 0.0
  %v502 = vmax.f32 %v486, 0.0
  %v503 = vmax.f32 %v487, 0.0
  %v504 = vmax.f32 %v488, 0.0
  %v505 = vmax.f32 %v489, 0.0
  %v506 = vmax.f32 %v490, 0.0
  %v507 = vmax.f32 %v491, 0.0
  %v508 = vmax.f32 %v492, 0.0
  %v509 = vmax.f32 %v493, 0.0
  %v510 = vmax.f32 %v494, 0.0
  %v511 = vmax.f32 %v495, 0.0
  %v512 = vmax.f32 %v496, 0.0
  %v513 = vmax.f32 %v497, 0.0
  %v514 = vmax.f32 %v498, 0.0
  %v515 = vmax.f32 %v289, %v499
  %v516 = vmax.f32 %v290, %v500
  %v517 = vmax.f32 %v291, %v501
  %v518 = vmax.f32 %v292, %v502
  %v519 = vmax.f32 %v293, %v503
  %v520 = vmax.f32 %v294, %v504
  %v521 = vmax.f32 %v295, %v505
  %v522 = vmax.f32 %v296, %v506
  %v523 = vmax.f32 %v297, %v507
  %v524 = vmax.f32 %v298, %v508
  %v525 = vmax.f32 %v299, %v509
  %v526 = vmax.f32 %v300, %v510
  %v527 = vmax.f32 %v301, %v511
  %v528 = vmax.f32 %v302, %v512
  %v529 = vmax.f32 %v303, %v513
  %v530 = vmax.f32 %v304, %v514
  %s531 = scalar_lea.vmem %s0, 128
  %v532 = vld [vmem:[%s531] sm:$0xf]
  %v533 = vld [vmem:[%s531 + $0x4] sm:$0xf]
  %v534 = vld [vmem:[%s531 + $0x8] sm:$0xf]
  %v535 = vld [vmem:[%s531 + $0xc] sm:$0xf]
  %v536 = vld [vmem:[%s531 + $0x10] sm:$0xf]
  %v537 = vld [vmem:[%s531 + $0x14] sm:$0xf]
  %v538 = vld [vmem:[%s531 + $0x18] sm:$0xf]
  %v539 = vld [vmem:[%s531 + $0x1c] sm:$0xf]
  %v540 = vld [vmem:[%s531 + $0x20] sm:$0xf]
  %v541 = vld [vmem:[%s531 + $0x24] sm:$0xf]
  %v542 = vld [vmem:[%s531 + $0x28] sm:$0xf]
  %v543 = vld [vmem:[%s531 + $0x2c] sm:$0xf]
  %v544 = vld [vmem:[%s531 + $0x30] sm:$0xf]
  %v545 = vld [vmem:[%s531 + $0x34] sm:$0xf]
  %v546 = vld [vmem:[%s531 + $0x38] sm:$0xf]
  %v547 = vld [vmem:[%s531 + $0x3c] sm:$0xf]
  %v564 = vunpack.c.l.b16 %v532
  %v565 = vunpack.c.l.b16 %v533
  %v566 = vunpack.c.l.b16 %v534
  %v567 = vunpack.c.l.b16 %v535
  %v568 = vunpack.c.l.b16 %v536
  %v569 = vunpack.c.l.b16 %v537
  %v570 = vunpack.c.l.b16 %v538
  %v571 = vunpack.c.l.b16 %v539
  %v572 = vunpack.c.l.b16 %v540
  %v573 = vunpack.c.l.b16 %v541
  %v574 = vunpack.c.l.b16 %v542
  %v575 = vunpack.c.l.b16 %v543
  %v576 = vunpack.c.l.b16 %v544
  %v577 = vunpack.c.l.b16 %v545
  %v578 = vunpack.c.l.b16 %v546
  %v579 = vunpack.c.l.b16 %v547
  %v580 = vpack.c.b16 %v565, %v564
  %v581 = vpack.c.b16 %v567, %v566
  %v582 = vpack.c.b16 %v569, %v568
  %v583 = vpack.c.b16 %v571, %v570
  %v584 = vpack.c.b16 %v573, %v572
  %v585 = vpack.c.b16 %v575, %v574
  %v586 = vpack.c.b16 %v577, %v576
  %v587 = vpack.c.b16 %v579, %v578
  %596 = vmatprep.subr.bf16.mxu0 0
  %597 = vmatpush1.bf16.msra.mxu0 %v132
  %598 = vmatprep.subr.bf16.mxu0 0
  %599 = vmatpush1.bf16.msra.mxu0 %v133
  %600 = vmatprep.subr.bf16.mxu0 0
  %601 = vmatpush1.bf16.msra.mxu0 %v134
  %602 = vmatprep.subr.bf16.mxu0 0
  %603 = vmatpush1.bf16.msra.mxu0 %v135
  %604 = vmatprep.subr.bf16.mxu0 0
  %605 = vmatpush1.bf16.msra.mxu0 %v136
  %606 = vmatprep.subr.bf16.mxu0 0
  %607 = vmatpush1.bf16.msra.mxu0 %v137
  %608 = vmatprep.subr.bf16.mxu0 0
  %609 = vmatpush1.bf16.msra.mxu0 %v138
  %610 = vmatprep.subr.bf16.mxu0 0
  %611 = vmatpush1.bf16.msra.mxu0 %v139
  %612 = vmatprep.subr.bf16.mxu0 0
  %613 = vmatpush1.bf16.msra.mxu0 0
  %614 = vmatprep.subr.bf16.mxu0 0
  %615 = vmatpush1.bf16.msra.mxu0 0
  %616 = vmatprep.subr.bf16.mxu0 0
  %617 = vmatpush1.bf16.msra.mxu0 0
  %618 = vmatprep.subr.bf16.mxu0 0
  %619 = vmatpush1.bf16.msra.mxu0 0
  %620 = vmatprep.subr.bf16.mxu0 0
  %621 = vmatpush1.bf16.msra.mxu0 0
  %622 = vmatprep.subr.bf16.mxu0 0
  %623 = vmatpush1.bf16.msra.mxu0 0
  %624 = vmatprep.subr.bf16.mxu0 0
  %625 = vmatpush1.bf16.msra.mxu0 0
  %626 = vmatprep.subr.bf16.mxu0 0
  %627 = vmatpush1.bf16.msra.mxu0 0
  %628 = vmatprep.mubr.bf16.mxu0 0
  %629 = vmatmul.mubr.bf16.gmra.mrb[0].mxu0 %v580
  %v630 = vpop.f32.mrb[0].mxu0
  %v631 = vadd.f32 0.0, %v630
  %v632 = vpop.f32.mrb[0].mxu0
  %v633 = vpop.f32.mrb[0].mxu0
  %v634 = vadd.f32 0.0, %v633
  %v635 = vpop.f32.mrb[0].mxu0
  %636 = vmatprep.mubr.bf16.mxu0 0
  %637 = vmatmul.mubr.bf16.gmra.mrb[0].mxu0 %v581
  %v638 = vpop.f32.mrb[0].mxu0
  %v639 = vadd.f32 0.0, %v638
  %v640 = vpop.f32.mrb[0].mxu0
  %v641 = vpop.f32.mrb[0].mxu0
  %v642 = vadd.f32 0.0, %v641
  %v643 = vpop.f32.mrb[0].mxu0
  %644 = vmatprep.mubr.bf16.mxu0 0
  %645 = vmatmul.mubr.bf16.gmra.mrb[0].mxu0 %v582
  %v646 = vpop.f32.mrb[0].mxu0
  %v647 = vadd.f32 0.0, %v646
  %v648 = vpop.f32.mrb[0].mxu0
  %v649 = vpop.f32.mrb[0].mxu0
  %v650 = vadd.f32 0.0, %v649
  %v651 = vpop.f32.mrb[0].mxu0
  %652 = vmatprep.mubr.bf16.mxu0 0
  %653 = vmatmul.mubr.bf16.gmra.mrb[0].mxu0 %v583
  %v654 = vpop.f32.mrb[0].mxu0
  %v655 = vadd.f32 0.0, %v654
  %v656 = vpop.f32.mrb[0].mxu0
  %v657 = vpop.f32.mrb[0].mxu0
  %v658 = vadd.f32 0.0, %v657
  %v659 = vpop.f32.mrb[0].mxu0
  %660 = vmatprep.mubr.bf16.mxu0 0
  %661 = vmatmul.mubr.bf16.gmra.mrb[0].mxu0 %v584
  %v662 = vpop.f32.mrb[0].mxu0
  %v663 = vadd.f32 0.0, %v662
  %v664 = vpop.f32.mrb[0].mxu0
  %v665 = vpop.f32.mrb[0].mxu0
  %v666 = vadd.f32 0.0, %v665
  %v667 = vpop.f32.mrb[0].mxu0
  %668 = vmatprep.mubr.bf16.mxu0 0
  %669 = vmatmul.mubr.bf16.gmra.mrb[0].mxu0 %v585
  %v670 = vpop.f32.mrb[0].mxu0
  %v671 = vadd.f32 0.0, %v670
  %v672 = vpop.f32.mrb[0].mxu0
  %v673 = vpop.f32.mrb[0].mxu0
  %v674 = vadd.f32 0.0, %v673
  %v675 = vpop.f32.mrb[0].mxu0
  %676 = vmatprep.mubr.bf16.mxu0 0
  %677 = vmatmul.mubr.bf16.gmra.mrb[0].mxu0 %v586
  %v678 = vpop.f32.mrb[0].mxu0
  %v679 = vadd.f32 0.0, %v678
  %v680 = vpop.f32.mrb[0].mxu0
  %v681 = vpop.f32.mrb[0].mxu0
  %v682 = vadd.f32 0.0, %v681
  %v683 = vpop.f32.mrb[0].mxu0
  %684 = vmatprep.mubr.bf16.mxu0 0
  %685 = vmatmul.mubr.bf16.gmra.mrb[0].mxu0 %v587
  %v686 = vpop.f32.mrb[0].mxu0
  %v687 = vadd.f32 0.0, %v686
  %v688 = vpop.f32.mrb[0].mxu0
  %v689 = vpop.f32.mrb[0].mxu0
  %v690 = vadd.f32 0.0, %v689
  %v691 = vpop.f32.mrb[0].mxu0
  %692 = vdwg.mxu0
  %v693 = vmul.f32 %v631, %v249
  %v694 = vmul.f32 %v634, %v249
  %v695 = vmul.f32 %v639, %v249
  %v696 = vmul.f32 %v642, %v249
  %v697 = vmul.f32 %v647, %v249
  %v698 = vmul.f32 %v650, %v249
  %v699 = vmul.f32 %v655, %v249
  %v700 = vmul.f32 %v658, %v249
  %v701 = vmul.f32 %v663, %v249
  %v702 = vmul.f32 %v666, %v249
  %v703 = vmul.f32 %v671, %v249
  %v704 = vmul.f32 %v674, %v249
  %v705 = vmul.f32 %v679, %v249
  %v706 = vmul.f32 %v682, %v249
  %v707 = vmul.f32 %v687, %v249
  %v708 = vmul.f32 %v690, %v249
  %v709 = vadd.f32 %v693, %v271
  %v710 = vadd.f32 %v694, %v271
  %v711 = vadd.f32 %v695, %v271
  %v712 = vadd.f32 %v696, %v271
  %v713 = vadd.f32 %v697, %v271
  %v714 = vadd.f32 %v698, %v271
  %v715 = vadd.f32 %v699, %v271
  %v716 = vadd.f32 %v700, %v271
  %v717 = vadd.f32 %v701, %v271
  %v718 = vadd.f32 %v702, %v271
  %v719 = vadd.f32 %v703, %v271
  %v720 = vadd.f32 %v704, %v271
  %v721 = vadd.f32 %v705, %v271
  %v722 = vadd.f32 %v706, %v271
  %v723 = vadd.f32 %v707, %v271
  %v724 = vadd.f32 %v708, %v271
  %v725 = vmax.f32 %v709, 0.0
  %v726 = vmax.f32 %v710, 0.0
  %v727 = vmax.f32 %v711, 0.0
  %v728 = vmax.f32 %v712, 0.0
  %v729 = vmax.f32 %v713, 0.0
  %v730 = vmax.f32 %v714, 0.0
  %v731 = vmax.f32 %v715, 0.0
  %v732 = vmax.f32 %v716, 0.0
  %v733 = vmax.f32 %v717, 0.0
  %v734 = vmax.f32 %v718, 0.0
  %v735 = vmax.f32 %v719, 0.0
  %v736 = vmax.f32 %v720, 0.0
  %v737 = vmax.f32 %v721, 0.0
  %v738 = vmax.f32 %v722, 0.0
  %v739 = vmax.f32 %v723, 0.0
  %v740 = vmax.f32 %v724, 0.0
  %s741 = scalar_lea.vmem %s0, 192
  %v742 = vld [vmem:[%s741] sm:$0xf]
  %v743 = vld [vmem:[%s741 + $0x4] sm:$0xf]
  %v744 = vld [vmem:[%s741 + $0x8] sm:$0xf]
  %v745 = vld [vmem:[%s741 + $0xc] sm:$0xf]
  %v746 = vld [vmem:[%s741 + $0x10] sm:$0xf]
  %v747 = vld [vmem:[%s741 + $0x14] sm:$0xf]
  %v748 = vld [vmem:[%s741 + $0x18] sm:$0xf]
  %v749 = vld [vmem:[%s741 + $0x1c] sm:$0xf]
  %v750 = vld [vmem:[%s741 + $0x20] sm:$0xf]
  %v751 = vld [vmem:[%s741 + $0x24] sm:$0xf]
  %v752 = vld [vmem:[%s741 + $0x28] sm:$0xf]
  %v753 = vld [vmem:[%s741 + $0x2c] sm:$0xf]
  %v754 = vld [vmem:[%s741 + $0x30] sm:$0xf]
  %v755 = vld [vmem:[%s741 + $0x34] sm:$0xf]
  %v756 = vld [vmem:[%s741 + $0x38] sm:$0xf]
  %v757 = vld [vmem:[%s741 + $0x3c] sm:$0xf]
  %v774 = vunpack.c.l.b16 %v742
  %v775 = vunpack.c.l.b16 %v743
  %v776 = vunpack.c.l.b16 %v744
  %v777 = vunpack.c.l.b16 %v745
  %v778 = vunpack.c.l.b16 %v746
  %v779 = vunpack.c.l.b16 %v747
  %v780 = vunpack.c.l.b16 %v748
  %v781 = vunpack.c.l.b16 %v749
  %v782 = vunpack.c.l.b16 %v750
  %v783 = vunpack.c.l.b16 %v751
  %v784 = vunpack.c.l.b16 %v752
  %v785 = vunpack.c.l.b16 %v753
  %v786 = vunpack.c.l.b16 %v754
  %v787 = vunpack.c.l.b16 %v755
  %v788 = vunpack.c.l.b16 %v756
  %v789 = vunpack.c.l.b16 %v757
  %v790 = vpack.c.b16 %v775, %v774
  %v791 = vpack.c.b16 %v777, %v776
  %v792 = vpack.c.b16 %v779, %v778
  %v793 = vpack.c.b16 %v781, %v780
  %v794 = vpack.c.b16 %v783, %v782
  %v795 = vpack.c.b16 %v785, %v784
  %v796 = vpack.c.b16 %v787, %v786
  %v797 = vpack.c.b16 %v789, %v788
  %806 = vmatprep.subr.bf16.mxu0 0
  %807 = vmatpush1.bf16.msra.mxu0 %v132
  %808 = vmatprep.subr.bf16.mxu0 0
  %809 = vmatpush1.bf16.msra.mxu0 %v133
  %810 = vmatprep.subr.bf16.mxu0 0
  %811 = vmatpush1.bf16.msra.mxu0 %v134
  %812 = vmatprep.subr.bf16.mxu0 0
  %813 = vmatpush1.bf16.msra.mxu0 %v135
  %814 = vmatprep.subr.bf16.mxu0 0
  %815 = vmatpush1.bf16.msra.mxu0 %v136
  %816 = vmatprep.subr.bf16.mxu0 0
  %817 = vmatpush1.bf16.msra.mxu0 %v137
  %818 = vmatprep.subr.bf16.mxu0 0
  %819 = vmatpush1.bf16.msra.mxu0 %v138
  %820 = vmatprep.subr.bf16.mxu0 0
  %821 = vmatpush1.bf16.msra.mxu0 %v139
  %822 = vmatprep.subr.bf16.mxu0 0
  %823 = vmatpush1.bf16.msra.mxu0 0
  %824 = vmatprep.subr.bf16.mxu0 0
  %825 = vmatpush1.bf16.msra.mxu0 0
  %826 = vmatprep.subr.bf16.mxu0 0
  %827 = vmatpush1.bf16.msra.mxu0 0
  %828 = vmatprep.subr.bf16.mxu0 0
  %829 = vmatpush1.bf16.msra.mxu0 0
  %830 = vmatprep.subr.bf16.mxu0 0
  %831 = vmatpush1.bf16.msra.mxu0 0
  %832 = vmatprep.subr.bf16.mxu0 0
  %833 = vmatpush1.bf16.msra.mxu0 0
  %834 = vmatprep.subr.bf16.mxu0 0
  %835 = vmatpush1.bf16.msra.mxu0 0
  %836 = vmatprep.subr.bf16.mxu0 0
  %837 = vmatpush1.bf16.msra.mxu0 0
  %838 = vmatprep.mubr.bf16.mxu0 0
  %839 = vmatmul.mubr.bf16.gmra.mrb[0].mxu0 %v790
  %v840 = vpop.f32.mrb[0].mxu0
  %v841 = vadd.f32 0.0, %v840
  %v842 = vpop.f32.mrb[0].mxu0
  %v843 = vpop.f32.mrb[0].mxu0
  %v844 = vadd.f32 0.0, %v843
  %v845 = vpop.f32.mrb[0].mxu0
  %846 = vmatprep.mubr.bf16.mxu0 0
  %847 = vmatmul.mubr.bf16.gmra.mrb[0].mxu0 %v791
  %v848 = vpop.f32.mrb[0].mxu0
  %v849 = vadd.f32 0.0, %v848
  %v850 = vpop.f32.mrb[0].mxu0
  %v851 = vpop.f32.mrb[0].mxu0
  %v852 = vadd.f32 0.0, %v851
  %v853 = vpop.f32.mrb[0].mxu0
  %854 = vmatprep.mubr.bf16.mxu0 0
  %855 = vmatmul.mubr.bf16.gmra.mrb[0].mxu0 %v792
  %v856 = vpop.f32.mrb[0].mxu0
  %v857 = vadd.f32 0.0, %v856
  %v858 = vpop.f32.mrb[0].mxu0
  %v859 = vpop.f32.mrb[0].mxu0
  %v860 = vadd.f32 0.0, %v859
  %v861 = vpop.f32.mrb[0].mxu0
  %862 = vmatprep.mubr.bf16.mxu0 0
  %863 = vmatmul.mubr.bf16.gmra.mrb[0].mxu0 %v793
  %v864 = vpop.f32.mrb[0].mxu0
  %v865 = vadd.f32 0.0, %v864
  %v866 = vpop.f32.mrb[0].mxu0
  %v867 = vpop.f32.mrb[0].mxu0
  %v868 = vadd.f32 0.0, %v867
  %v869 = vpop.f32.mrb[0].mxu0
  %870 = vmatprep.mubr.bf16.mxu0 0
  %871 = vmatmul.mubr.bf16.gmra.mrb[0].mxu0 %v794
  %v872 = vpop.f32.mrb[0].mxu0
  %v873 = vadd.f32 0.0, %v872
  %v874 = vpop.f32.mrb[0].mxu0
  %v875 = vpop.f32.mrb[0].mxu0
  %v876 = vadd.f32 0.0, %v875
  %v877 = vpop.f32.mrb[0].mxu0
  %878 = vmatprep.mubr.bf16.mxu0 0
  %879 = vmatmul.mubr.bf16.gmra.mrb[0].mxu0 %v795
  %v880 = vpop.f32.mrb[0].mxu0
  %v881 = vadd.f32 0.0, %v880
  %v882 = vpop.f32.mrb[0].mxu0
  %v883 = vpop.f32.mrb[0].mxu0
  %v884 = vadd.f32 0.0, %v883
  %v885 = vpop.f32.mrb[0].mxu0
  %886 = vmatprep.mubr.bf16.mxu0 0
  %887 = vmatmul.mubr.bf16.gmra.mrb[0].mxu0 %v796
  %v888 = vpop.f32.mrb[0].mxu0
  %v889 = vadd.f32 0.0, %v888
  %v890 = vpop.f32.mrb[0].mxu0
  %v891 = vpop.f32.mrb[0].mxu0
  %v892 = vadd.f32 0.0, %v891
  %v893 = vpop.f32.mrb[0].mxu0
  %894 = vmatprep.mubr.bf16.mxu0 0
  %895 = vmatmul.mubr.bf16.gmra.mrb[0].mxu0 %v797
  %v896 = vpop.f32.mrb[0].mxu0
  %v897 = vadd.f32 0.0, %v896
  %v898 = vpop.f32.mrb[0].mxu0
  %v899 = vpop.f32.mrb[0].mxu0
  %v900 = vadd.f32 0.0, %v899
  %v901 = vpop.f32.mrb[0].mxu0
  %902 = vdwg.mxu0
  %v903 = vmul.f32 %v841, %v249
  %v904 = vmul.f32 %v844, %v249
  %v905 = vmul.f32 %v849, %v249
  %v906 = vmul.f32 %v852, %v249
  %v907 = vmul.f32 %v857, %v249
  %v908 = vmul.f32 %v860, %v249
  %v909 = vmul.f32 %v865, %v249
  %v910 = vmul.f32 %v868, %v249
  %v911 = vmul.f32 %v873, %v249
  %v912 = vmul.f32 %v876, %v249
  %v913 = vmul.f32 %v881, %v249
  %v914 = vmul.f32 %v884, %v249
  %v915 = vmul.f32 %v889, %v249
  %v916 = vmul.f32 %v892, %v249
  %v917 = vmul.f32 %v897, %v249
  %v918 = vmul.f32 %v900, %v249
  %v919 = vadd.f32 %v903, %v271
  %v920 = vadd.f32 %v904, %v271
  %v921 = vadd.f32 %v905, %v271
  %v922 = vadd.f32 %v906, %v271
  %v923 = vadd.f32 %v907, %v271
  %v924 = vadd.f32 %v908, %v271
  %v925 = vadd.f32 %v909, %v271
  %v926 = vadd.f32 %v910, %v271
  %v927 = vadd.f32 %v911, %v271
  %v928 = vadd.f32 %v912, %v271
  %v929 = vadd.f32 %v913, %v271
  %v930 = vadd.f32 %v914, %v271
  %v931 = vadd.f32 %v915, %v271
  %v932 = vadd.f32 %v916, %v271
  %v933 = vadd.f32 %v917, %v271
  %v934 = vadd.f32 %v918, %v271
  %v935 = vmax.f32 %v919, 0.0
  %v936 = vmax.f32 %v920, 0.0
  %v937 = vmax.f32 %v921, 0.0
  %v938 = vmax.f32 %v922, 0.0
  %v939 = vmax.f32 %v923, 0.0
  %v940 = vmax.f32 %v924, 0.0
  %v941 = vmax.f32 %v925, 0.0
  %v942 = vmax.f32 %v926, 0.0
  %v943 = vmax.f32 %v927, 0.0
  %v944 = vmax.f32 %v928, 0.0
  %v945 = vmax.f32 %v929, 0.0
  %v946 = vmax.f32 %v930, 0.0
  %v947 = vmax.f32 %v931, 0.0
  %v948 = vmax.f32 %v932, 0.0
  %v949 = vmax.f32 %v933, 0.0
  %v950 = vmax.f32 %v934, 0.0
  %v951 = vmax.f32 %v725, %v935
  %v952 = vmax.f32 %v726, %v936
  %v953 = vmax.f32 %v727, %v937
  %v954 = vmax.f32 %v728, %v938
  %v955 = vmax.f32 %v729, %v939
  %v956 = vmax.f32 %v730, %v940
  %v957 = vmax.f32 %v731, %v941
  %v958 = vmax.f32 %v732, %v942
  %v959 = vmax.f32 %v733, %v943
  %v960 = vmax.f32 %v734, %v944
  %v961 = vmax.f32 %v735, %v945
  %v962 = vmax.f32 %v736, %v946
  %v963 = vmax.f32 %v737, %v947
  %v964 = vmax.f32 %v738, %v948
  %v965 = vmax.f32 %v739, %v949
  %v966 = vmax.f32 %v740, %v950
  %v967 = vmax.f32 %v515, %v951
  %v968 = vmax.f32 %v516, %v952
  %v969 = vmax.f32 %v517, %v953
  %v970 = vmax.f32 %v518, %v954
  %v971 = vmax.f32 %v519, %v955
  %v972 = vmax.f32 %v520, %v956
  %v973 = vmax.f32 %v521, %v957
  %v974 = vmax.f32 %v522, %v958
  %v975 = vmax.f32 %v523, %v959
  %v976 = vmax.f32 %v524, %v960
  %v977 = vmax.f32 %v525, %v961
  %v978 = vmax.f32 %v526, %v962
  %v979 = vmax.f32 %v527, %v963
  %v980 = vmax.f32 %v528, %v964
  %v981 = vmax.f32 %v529, %v965
  %v982 = vmax.f32 %v530, %v966
  %vm983 = vcmask 523264
  %984 = vst.msk [vmem:[%s4] sm:$0xff] %vm983, %v967
  %985 = vst.msk [vmem:[%s4 + $0x8] sm:$0xff] %vm983, %v968
  %986 = vst.msk [vmem:[%s4 + $0x10] sm:$0xff] %vm983, %v969
  %987 = vst.msk [vmem:[%s4 + $0x18] sm:$0xff] %vm983, %v970
  %988 = vst.msk [vmem:[%s4 + $0x20] sm:$0xff] %vm983, %v971
  %989 = vst.msk [vmem:[%s4 + $0x28] sm:$0xff] %vm983, %v972
  %990 = vst.msk [vmem:[%s4 + $0x30] sm:$0xff] %vm983, %v973
  %991 = vst.msk [vmem:[%s4 + $0x38] sm:$0xff] %vm983, %v974
  %992 = vst.msk [vmem:[%s4 + $0x40] sm:$0xff] %vm983, %v975
  %993 = vst.msk [vmem:[%s4 + $0x48] sm:$0xff] %vm983, %v976
  %994 = vst.msk [vmem:[%s4 + $0x50] sm:$0xff] %vm983, %v977
  %995 = vst.msk [vmem:[%s4 + $0x58] sm:$0xff] %vm983, %v978
  %996 = vst.msk [vmem:[%s4 + $0x60] sm:$0xff] %vm983, %v979
  %997 = vst.msk [vmem:[%s4 + $0x68] sm:$0xff] %vm983, %v980
  %998 = vst.msk [vmem:[%s4 + $0x70] sm:$0xff] %vm983, %v981
  %999 = vst.msk [vmem:[%s4 + $0x78] sm:$0xff] %vm983, %v982
  // Predicated region
  $region18: #{cnn_forward.8} parent=0 // pred_check
    _
  $region19: #{cnn_forward.8} parent=0 // pred_check_branch
    %1001 = sbr.rel (0) target = $region21
  $region20: #{cnn_forward.8} parent=0 // pred_region
    _
  $region21: #{cnn_forward.8} parent=0 // pred_fallthru
    _
  // Predicated region
  $region22: #{cnn_forward.8} parent=0 // pred_check
    _
  $region23: #{cnn_forward.8} parent=0 // pred_check_branch
    %1003 = sbr.rel (0) target = $region25
  $region24: #{cnn_forward.8} parent=0 // pred_region
    _
  $region25: #{cnn_forward.8} parent=0 // pred_fallthru
    _

// kernel: cnn_forward.9
$region0: #{cnn_forward.9}
  #allocation0 [shape = 'u32[]', space=smem, size = 0x4, offset = 0x4, fixed_abs, tag = 'smem constant byte address 0x4 - core index']
  #allocation1 [shape = 'u32[144,128]{1,0:T(1,128)}', space=vmem, size = 0x12000, scoped, tag = 'internal scratch']
  %s0 = inlined_call_operand.vmem [shape: bf16[128,640], index: 0, kind: input, shape index: {}]
  %s1 = inlined_call_operand.vmem [shape: bf16[640,128], index: 1, kind: input, shape index: {}]
  %s2 = inlined_call_operand.vmem [shape: f32[1,128], index: 2, kind: input, shape index: {}]
  %s3 = inlined_call_operand.vmem [shape: f32[1,128], index: 3, kind: input, shape index: {}]
  %s4 = inlined_call_operand.vmem [shape: f32[128,128], index: 4, kind: output, shape index: {}]
  %s5 = sld [smem:[#allocation0]]
  $region26: #{cnn_forward.9} parent=0
    _
  %s7 = ssub.s32 1, %s5
  %s8 = scalar_select 0, %s7, %s5
  // Predicated region
  $region2: #{cnn_forward.9} parent=0 // pred_check
    _
  $region3: #{cnn_forward.9} parent=0 // pred_check_branch
    %10 = sbr.rel (0) target = $region5
  $region4: #{cnn_forward.9} parent=0 // pred_region
    _
  $region5: #{cnn_forward.9} parent=0 // pred_fallthru
    _
  // Predicated region
  $region6: #{cnn_forward.9} parent=0 // pred_check
    _
  $region7: #{cnn_forward.9} parent=0 // pred_check_branch
    %12 = sbr.rel (0) target = $region9
  $region8: #{cnn_forward.9} parent=0 // pred_region
    _
  $region9: #{cnn_forward.9} parent=0 // pred_fallthru
    _
  // Predicated region
  $region10: #{cnn_forward.9} parent=0 // pred_check
    _
  $region11: #{cnn_forward.9} parent=0 // pred_check_branch
    %14 = sbr.rel (0) target = $region13
  $region12: #{cnn_forward.9} parent=0 // pred_region
    _
  $region13: #{cnn_forward.9} parent=0 // pred_fallthru
    _
  // Predicated region
  $region14: #{cnn_forward.9} parent=0 // pred_check
    _
  $region15: #{cnn_forward.9} parent=0 // pred_check_branch
    %16 = sbr.rel (0) target = $region17
  $region16: #{cnn_forward.9} parent=0 // pred_region
    _
  $region17: #{cnn_forward.9} parent=0 // pred_fallthru
    _
  %v18 = vld [vmem:[%s0] sm:$0xff]
  %v19 = vld [vmem:[%s0 + $0x8] sm:$0xff]
  %v20 = vld [vmem:[%s0 + $0x10] sm:$0xf]
  %v21 = vld [vmem:[%s0 + $0x14] sm:$0xff]
  %v22 = vld [vmem:[%s0 + $0x1c] sm:$0xff]
  %v23 = vld [vmem:[%s0 + $0x24] sm:$0xf]
  %v24 = vld [vmem:[%s0 + $0x28] sm:$0xff]
  %v25 = vld [vmem:[%s0 + $0x30] sm:$0xff]
  %v26 = vld [vmem:[%s0 + $0x38] sm:$0xf]
  %v27 = vld [vmem:[%s0 + $0x3c] sm:$0xff]
  %v28 = vld [vmem:[%s0 + $0x44] sm:$0xff]
  %v29 = vld [vmem:[%s0 + $0x4c] sm:$0xf]
  %v30 = vld [vmem:[%s0 + $0x50] sm:$0xff]
  %v31 = vld [vmem:[%s0 + $0x58] sm:$0xff]
  %v32 = vld [vmem:[%s0 + $0x60] sm:$0xf]
  %v33 = vld [vmem:[%s0 + $0x64] sm:$0xff]
  %v34 = vld [vmem:[%s0 + $0x6c] sm:$0xff]
  %v35 = vld [vmem:[%s0 + $0x74] sm:$0xf]
  %v36 = vld [vmem:[%s0 + $0x78] sm:$0xff]
  %v37 = vld [vmem:[%s0 + $0x80] sm:$0xff]
  %v38 = vld [vmem:[%s0 + $0x88] sm:$0xf]
  %v39 = vld [vmem:[%s0 + $0x8c] sm:$0xff]
  %v40 = vld [vmem:[%s0 + $0x94] sm:$0xff]
  %v41 = vld [vmem:[%s0 + $0x9c] sm:$0xf]
  %v42 = vld [vmem:[%s0 + $0xa0] sm:$0xff]
  %v43 = vld [vmem:[%s0 + $0xa8] sm:$0xff]
  %v44 = vld [vmem:[%s0 + $0xb0] sm:$0xf]
  %v45 = vld [vmem:[%s0 + $0xb4] sm:$0xff]
  %v46 = vld [vmem:[%s0 + $0xbc] sm:$0xff]
  %v47 = vld [vmem:[%s0 + $0xc4] sm:$0xf]
  %v48 = vld [vmem:[%s0 + $0xc8] sm:$0xff]
  %v49 = vld [vmem:[%s0 + $0xd0] sm:$0xff]
  %v50 = vld [vmem:[%s0 + $0xd8] sm:$0xf]
  %v51 = vld [vmem:[%s0 + $0xdc] sm:$0xff]
  %v52 = vld [vmem:[%s0 + $0xe4] sm:$0xff]
  %v53 = vld [vmem:[%s0 + $0xec] sm:$0xf]
  %v54 = vld [vmem:[%s0 + $0xf0] sm:$0xff]
  %v55 = vld [vmem:[%s0 + $0xf8] sm:$0xff]
  %v56 = vld [vmem:[%s0 + $0x100] sm:$0xf]
  %v57 = vld [vmem:[%s0 + $0x104] sm:$0xff]
  %v58 = vld [vmem:[%s0 + $0x10c] sm:$0xff]
  %v59 = vld [vmem:[%s0 + $0x114] sm:$0xf]
  %v60 = vld [vmem:[%s0 + $0x118] sm:$0xff]
  %v61 = vld [vmem:[%s0 + $0x120] sm:$0xff]
  %v62 = vld [vmem:[%s0 + $0x128] sm:$0xf]
  %v63 = vld [vmem:[%s0 + $0x12c] sm:$0xff]
  %v64 = vld [vmem:[%s0 + $0x134] sm:$0xff]
  %v65 = vld [vmem:[%s0 + $0x13c] sm:$0xf]
  %v66 = vld [vmem:[%s1] sm:$0xf]
  %v67 = vld [vmem:[%s1 + $0x4] sm:$0xf]
  %v68 = vld [vmem:[%s1 + $0x8] sm:$0xf]
  %v69 = vld [vmem:[%s1 + $0xc] sm:$0xf]
  %v70 = vld [vmem:[%s1 + $0x10] sm:$0xf]
  %v71 = vld [vmem:[%s1 + $0x14] sm:$0xf]
  %v72 = vld [vmem:[%s1 + $0x18] sm:$0xf]
  %v73 = vld [vmem:[%s1 + $0x1c] sm:$0xf]
  %v74 = vld [vmem:[%s1 + $0x20] sm:$0xf]
  %v75 = vld [vmem:[%s1 + $0x24] sm:$0xf]
  %v76 = vld [vmem:[%s1 + $0x28] sm:$0xf]
  %v77 = vld [vmem:[%s1 + $0x2c] sm:$0xf]
  %v78 = vld [vmem:[%s1 + $0x30] sm:$0xf]
  %v79 = vld [vmem:[%s1 + $0x34] sm:$0xf]
  %v80 = vld [vmem:[%s1 + $0x38] sm:$0xf]
  %v81 = vld [vmem:[%s1 + $0x3c] sm:$0xf]
  %v82 = vld [vmem:[%s1 + $0x40] sm:$0xf]
  %v83 = vld [vmem:[%s1 + $0x44] sm:$0xf]
  %v84 = vld [vmem:[%s1 + $0x48] sm:$0xf]
  %v85 = vld [vmem:[%s1 + $0x4c] sm:$0xf]
  %v86 = vld [vmem:[%s1 + $0x50] sm:$0xf]
  %v87 = vld [vmem:[%s1 + $0x54] sm:$0xf]
  %v88 = vld [vmem:[%s1 + $0x58] sm:$0xf]
  %v89 = vld [vmem:[%s1 + $0x5c] sm:$0xf]
  %v90 = vld [vmem:[%s1 + $0x60] sm:$0xf]
  %v91 = vld [vmem:[%s1 + $0x64] sm:$0xf]
  %v92 = vld [vmem:[%s1 + $0x68] sm:$0xf]
  %v93 = vld [vmem:[%s1 + $0x6c] sm:$0xf]
  %v94 = vld [vmem:[%s1 + $0x70] sm:$0xf]
  %v95 = vld [vmem:[%s1 + $0x74] sm:$0xf]
  %v96 = vld [vmem:[%s1 + $0x78] sm:$0xf]
  %v97 = vld [vmem:[%s1 + $0x7c] sm:$0xf]
  %v98 = vld [vmem:[%s1 + $0x80] sm:$0xf]
  %v99 = vld [vmem:[%s1 + $0x84] sm:$0xf]
  %v100 = vld [vmem:[%s1 + $0x88] sm:$0xf]
  %v101 = vld [vmem:[%s1 + $0x8c] sm:$0xf]
  %v102 = vld [vmem:[%s1 + $0x90] sm:$0xf]
  %v103 = vld [vmem:[%s1 + $0x94] sm:$0xf]
  %v104 = vld [vmem:[%s1 + $0x98] sm:$0xf]
  %v105 = vld [vmem:[%s1 + $0x9c] sm:$0xf]
  %v106 = vld [vmem:[%s1 + $0xa0] sm:$0xf]
  %v107 = vld [vmem:[%s1 + $0xa4] sm:$0xf]
  %v108 = vld [vmem:[%s1 + $0xa8] sm:$0xf]
  %v109 = vld [vmem:[%s1 + $0xac] sm:$0xf]
  %v110 = vld [vmem:[%s1 + $0xb0] sm:$0xf]
  %v111 = vld [vmem:[%s1 + $0xb4] sm:$0xf]
  %v112 = vld [vmem:[%s1 + $0xb8] sm:$0xf]
  %v113 = vld [vmem:[%s1 + $0xbc] sm:$0xf]
  %v114 = vld [vmem:[%s1 + $0xc0] sm:$0xf]
  %v115 = vld [vmem:[%s1 + $0xc4] sm:$0xf]
  %v116 = vld [vmem:[%s1 + $0xc8] sm:$0xf]
  %v117 = vld [vmem:[%s1 + $0xcc] sm:$0xf]
  %v118 = vld [vmem:[%s1 + $0xd0] sm:$0xf]
  %v119 = vld [vmem:[%s1 + $0xd4] sm:$0xf]
  %v120 = vld [vmem:[%s1 + $0xd8] sm:$0xf]
  %v121 = vld [vmem:[%s1 + $0xdc] sm:$0xf]
  %v122 = vld [vmem:[%s1 + $0xe0] sm:$0xf]
  %v123 = vld [vmem:[%s1 + $0xe4] sm:$0xf]
  %v124 = vld [vmem:[%s1 + $0xe8] sm:$0xf]
  %v125 = vld [vmem:[%s1 + $0xec] sm:$0xf]
  %v126 = vld [vmem:[%s1 + $0xf0] sm:$0xf]
  %v127 = vld [vmem:[%s1 + $0xf4] sm:$0xf]
  %v128 = vld [vmem:[%s1 + $0xf8] sm:$0xf]
  %v129 = vld [vmem:[%s1 + $0xfc] sm:$0xf]
  %v130 = vld [vmem:[%s1 + $0x100] sm:$0xf]
  %v131 = vld [vmem:[%s1 + $0x104] sm:$0xf]
  %v132 = vld [vmem:[%s1 + $0x108] sm:$0xf]
  %v133 = vld [vmem:[%s1 + $0x10c] sm:$0xf]
  %v134 = vld [vmem:[%s1 + $0x110] sm:$0xf]
  %v135 = vld [vmem:[%s1 + $0x114] sm:$0xf]
  %v136 = vld [vmem:[%s1 + $0x118] sm:$0xf]
  %v137 = vld [vmem:[%s1 + $0x11c] sm:$0xf]
  %v138 = vld [vmem:[%s1 + $0x120] sm:$0xf]
  %v139 = vld [vmem:[%s1 + $0x124] sm:$0xf]
  %v140 = vld [vmem:[%s1 + $0x128] sm:$0xf]
  %v141 = vld [vmem:[%s1 + $0x12c] sm:$0xf]
  %v142 = vld [vmem:[%s1 + $0x130] sm:$0xf]
  %v143 = vld [vmem:[%s1 + $0x134] sm:$0xf]
  %v144 = vld [vmem:[%s1 + $0x138] sm:$0xf]
  %v145 = vld [vmem:[%s1 + $0x13c] sm:$0xf]
  %v194 = vunpack.c.l.b16 %v18
  %v195 = vunpack.c.h.b16 %v18
  %v196 = vunpack.c.l.b16 %v19
  %v197 = vunpack.c.h.b16 %v19
  %v198 = vunpack.c.l.b16 %v20
  %v199 = vunpack.c.l.b16 %v21
  %v200 = vunpack.c.h.b16 %v21
  %v201 = vunpack.c.l.b16 %v22
  %v202 = vunpack.c.h.b16 %v22
  %v203 = vunpack.c.l.b16 %v23
  %v204 = vunpack.c.l.b16 %v24
  %v205 = vunpack.c.h.b16 %v24
  %v206 = vunpack.c.l.b16 %v25
  %v207 = vunpack.c.h.b16 %v25
  %v208 = vunpack.c.l.b16 %v26
  %v209 = vunpack.c.l.b16 %v27
  %v210 = vunpack.c.h.b16 %v27
  %v211 = vunpack.c.l.b16 %v28
  %v212 = vunpack.c.h.b16 %v28
  %v213 = vunpack.c.l.b16 %v29
  %v214 = vunpack.c.l.b16 %v30
  %v215 = vunpack.c.h.b16 %v30
  %v216 = vunpack.c.l.b16 %v31
  %v217 = vunpack.c.h.b16 %v31
  %v218 = vunpack.c.l.b16 %v32
  %v219 = vunpack.c.l.b16 %v33
  %v220 = vunpack.c.h.b16 %v33
  %v221 = vunpack.c.l.b16 %v34
  %v222 = vunpack.c.h.b16 %v34
  %v223 = vunpack.c.l.b16 %v35
  %v224 = vunpack.c.l.b16 %v36
  %v225 = vunpack.c.h.b16 %v36
  %v226 = vunpack.c.l.b16 %v37
  %v227 = vunpack.c.h.b16 %v37
  %v228 = vunpack.c.l.b16 %v38
  %v229 = vunpack.c.l.b16 %v39
  %v230 = vunpack.c.h.b16 %v39
  %v231 = vunpack.c.l.b16 %v40
  %v232 = vunpack.c.h.b16 %v40
  %v233 = vunpack.c.l.b16 %v41
  %v234 = vunpack.c.l.b16 %v42
  %v235 = vunpack.c.h.b16 %v42
  %v236 = vunpack.c.l.b16 %v43
  %v237 = vunpack.c.h.b16 %v43
  %v238 = vunpack.c.l.b16 %v44
  %v239 = vunpack.c.l.b16 %v45
  %v240 = vunpack.c.h.b16 %v45
  %v241 = vunpack.c.l.b16 %v46
  %v242 = vunpack.c.h.b16 %v46
  %v243 = vunpack.c.l.b16 %v47
  %v244 = vunpack.c.l.b16 %v48
  %v245 = vunpack.c.h.b16 %v48
  %v246 = vunpack.c.l.b16 %v49
  %v247 = vunpack.c.h.b16 %v49
  %v248 = vunpack.c.l.b16 %v50
  %v249 = vunpack.c.l.b16 %v51
  %v250 = vunpack.c.h.b16 %v51
  %v251 = vunpack.c.l.b16 %v52
  %v252 = vunpack.c.h.b16 %v52
  %v253 = vunpack.c.l.b16 %v53
  %v254 = vunpack.c.l.b16 %v54
  %v255 = vunpack.c.h.b16 %v54
  %v256 = vunpack.c.l.b16 %v55
  %v257 = vunpack.c.h.b16 %v55
  %v258 = vunpack.c.l.b16 %v56
  %v259 = vunpack.c.l.b16 %v57
  %v260 = vunpack.c.h.b16 %v57
  %v261 = vunpack.c.l.b16 %v58
  %v262 = vunpack.c.h.b16 %v58
  %v263 = vunpack.c.l.b16 %v59
  %v264 = vunpack.c.l.b16 %v60
  %v265 = vunpack.c.h.b16 %v60
  %v266 = vunpack.c.l.b16 %v61
  %v267 = vunpack.c.h.b16 %v61
  %v268 = vunpack.c.l.b16 %v62
  %v269 = vunpack.c.l.b16 %v63
  %v270 = vunpack.c.h.b16 %v63
  %v271 = vunpack.c.l.b16 %v64
  %v272 = vunpack.c.h.b16 %v64
  %v273 = vunpack.c.l.b16 %v65
  %v274 = vpack.c.b16 %v199, %v194
  %v275 = vpack.c.b16 %v200, %v195
  %v276 = vpack.c.b16 %v201, %v196
  %v277 = vpack.c.b16 %v202, %v197
  %v278 = vpack.c.b16 %v203, %v198
  %v279 = vpack.c.b16 %v209, %v204
  %v280 = vpack.c.b16 %v210, %v205
  %v281 = vpack.c.b16 %v211, %v206
  %v282 = vpack.c.b16 %v212, %v207
  %v283 = vpack.c.b16 %v213, %v208
  %v284 = vpack.c.b16 %v219, %v214
  %v285 = vpack.c.b16 %v220, %v215
  %v286 = vpack.c.b16 %v221, %v216
  %v287 = vpack.c.b16 %v222, %v217
  %v288 = vpack.c.b16 %v223, %v218
  %v289 = vpack.c.b16 %v229, %v224
  %v290 = vpack.c.b16 %v230, %v225
  %v291 = vpack.c.b16 %v231, %v226
  %v292 = vpack.c.b16 %v232, %v227
  %v293 = vpack.c.b16 %v233, %v228
  %v294 = vpack.c.b16 %v239, %v234
  %v295 = vpack.c.b16 %v240, %v235
  %v296 = vpack.c.b16 %v241, %v236
  %v297 = vpack.c.b16 %v242, %v237
  %v298 = vpack.c.b16 %v243, %v238
  %v299 = vpack.c.b16 %v249, %v244
  %v300 = vpack.c.b16 %v250, %v245
  %v301 = vpack.c.b16 %v251, %v246
  %v302 = vpack.c.b16 %v252, %v247
  %v303 = vpack.c.b16 %v253, %v248
  %v304 = vpack.c.b16 %v259, %v254
  %v305 = vpack.c.b16 %v260, %v255
  %v306 = vpack.c.b16 %v261, %v256
  %v307 = vpack.c.b16 %v262, %v257
  %v308 = vpack.c.b16 %v263, %v258
  %v309 = vpack.c.b16 %v269, %v264
  %v310 = vpack.c.b16 %v270, %v265
  %v311 = vpack.c.b16 %v271, %v266
  %v312 = vpack.c.b16 %v272, %v267
  %v313 = vpack.c.b16 %v273, %v268
  %v434 = vunpack.c.l.b16 %v66
  %v435 = vunpack.c.l.b16 %v67
  %v436 = vunpack.c.l.b16 %v68
  %v437 = vunpack.c.l.b16 %v69
  %v438 = vunpack.c.l.b16 %v70
  %v439 = vunpack.c.l.b16 %v71
  %v440 = vunpack.c.l.b16 %v72
  %v441 = vunpack.c.l.b16 %v73
  %v442 = vunpack.c.l.b16 %v74
  %v443 = vunpack.c.l.b16 %v75
  %v444 = vunpack.c.l.b16 %v76
  %v445 = vunpack.c.l.b16 %v77
  %v446 = vunpack.c.l.b16 %v78
  %v447 = vunpack.c.l.b16 %v79
  %v448 = vunpack.c.l.b16 %v80
  %v449 = vunpack.c.l.b16 %v81
  %v450 = vunpack.c.l.b16 %v82
  %v451 = vunpack.c.l.b16 %v83
  %v452 = vunpack.c.l.b16 %v84
  %v453 = vunpack.c.l.b16 %v85
  %v454 = vunpack.c.l.b16 %v86
  %v455 = vunpack.c.l.b16 %v87
  %v456 = vunpack.c.l.b16 %v88
  %v457 = vunpack.c.l.b16 %v89
  %v458 = vunpack.c.l.b16 %v90
  %v459 = vunpack.c.l.b16 %v91
  %v460 = vunpack.c.l.b16 %v92
  %v461 = vunpack.c.l.b16 %v93
  %v462 = vunpack.c.l.b16 %v94
  %v463 = vunpack.c.l.b16 %v95
  %v464 = vunpack.c.l.b16 %v96
  %v465 = vunpack.c.l.b16 %v97
  %v466 = vunpack.c.l.b16 %v98
  %v467 = vunpack.c.l.b16 %v99
  %v468 = vunpack.c.l.b16 %v100
  %v469 = vunpack.c.l.b16 %v101
  %v470 = vunpack.c.l.b16 %v102
  %v471 = vunpack.c.l.b16 %v103
  %v472 = vunpack.c.l.b16 %v104
  %v473 = vunpack.c.l.b16 %v105
  %v474 = vunpack.c.l.b16 %v106
  %v475 = vunpack.c.l.b16 %v107
  %v476 = vunpack.c.l.b16 %v108
  %v477 = vunpack.c.l.b16 %v109
  %v478 = vunpack.c.l.b16 %v110
  %v479 = vunpack.c.l.b16 %v111
  %v480 = vunpack.c.l.b16 %v112
  %v481 = vunpack.c.l.b16 %v113
  %v482 = vunpack.c.l.b16 %v114
  %v483 = vunpack.c.l.b16 %v115
  %v484 = vunpack.c.l.b16 %v116
  %v485 = vunpack.c.l.b16 %v117
  %v486 = vunpack.c.l.b16 %v118
  %v487 = vunpack.c.l.b16 %v119
  %v488 = vunpack.c.l.b16 %v120
  %v489 = vunpack.c.l.b16 %v121
  %v490 = vunpack.c.l.b16 %v122
  %v491 = vunpack.c.l.b16 %v123
  %v492 = vunpack.c.l.b16 %v124
  %v493 = vunpack.c.l.b16 %v125
  %v494 = vunpack.c.l.b16 %v126
  %v495 = vunpack.c.l.b16 %v127
  %v496 = vunpack.c.l.b16 %v128
  %v497 = vunpack.c.l.b16 %v129
  %v498 = vunpack.c.l.b16 %v130
  %v499 = vunpack.c.l.b16 %v131
  %v500 = vunpack.c.l.b16 %v132
  %v501 = vunpack.c.l.b16 %v133
  %v502 = vunpack.c.l.b16 %v134
  %v503 = vunpack.c.l.b16 %v135
  %v504 = vunpack.c.l.b16 %v136
  %v505 = vunpack.c.l.b16 %v137
  %v506 = vunpack.c.l.b16 %v138
  %v507 = vunpack.c.l.b16 %v139
  %v508 = vunpack.c.l.b16 %v140
  %v509 = vunpack.c.l.b16 %v141
  %v510 = vunpack.c.l.b16 %v142
  %v511 = vunpack.c.l.b16 %v143
  %v512 = vunpack.c.l.b16 %v144
  %v513 = vunpack.c.l.b16 %v145
  %v514 = vpack.c.b16 %v435, %v434
  %v515 = vpack.c.b16 %v437, %v436
  %v516 = vpack.c.b16 %v439, %v438
  %v517 = vpack.c.b16 %v441, %v440
  %v518 = vpack.c.b16 %v443, %v442
  %v519 = vpack.c.b16 %v445, %v444
  %v520 = vpack.c.b16 %v447, %v446
  %v521 = vpack.c.b16 %v449, %v448
  %v522 = vpack.c.b16 %v451, %v450
  %v523 = vpack.c.b16 %v453, %v452
  %v524 = vpack.c.b16 %v455, %v454
  %v525 = vpack.c.b16 %v457, %v456
  %v526 = vpack.c.b16 %v459, %v458
  %v527 = vpack.c.b16 %v461, %v460
  %v528 = vpack.c.b16 %v463, %v462
  %v529 = vpack.c.b16 %v465, %v464
  %v530 = vpack.c.b16 %v467, %v466
  %v531 = vpack.c.b16 %v469, %v468
  %v532 = vpack.c.b16 %v471, %v470
  %v533 = vpack.c.b16 %v473, %v472
  %v534 = vpack.c.b16 %v475, %v474
  %v535 = vpack.c.b16 %v477, %v476
  %v536 = vpack.c.b16 %v479, %v478
  %v537 = vpack.c.b16 %v481, %v480
  %v538 = vpack.c.b16 %v483, %v482
  %v539 = vpack.c.b16 %v485, %v484
  %v540 = vpack.c.b16 %v487, %v486
  %v541 = vpack.c.b16 %v489, %v488
  %v542 = vpack.c.b16 %v491, %v490
  %v543 = vpack.c.b16 %v493, %v492
  %v544 = vpack.c.b16 %v495, %v494
  %v545 = vpack.c.b16 %v497, %v496
  %v546 = vpack.c.b16 %v499, %v498
  %v547 = vpack.c.b16 %v501, %v500
  %v548 = vpack.c.b16 %v503, %v502
  %v549 = vpack.c.b16 %v505, %v504
  %v550 = vpack.c.b16 %v507, %v506
  %v551 = vpack.c.b16 %v509, %v508
  %v552 = vpack.c.b16 %v511, %v510
  %v553 = vpack.c.b16 %v513, %v512
  %594 = vmatprep.subr.bf16.mxu0 0
  %595 = vmatpush1.bf16.msra.mxu0 %v514
  %596 = vmatprep.subr.bf16.mxu0 0
  %597 = vmatpush1.bf16.msra.mxu0 %v515
  %598 = vmatprep.subr.bf16.mxu0 0
  %599 = vmatpush1.bf16.msra.mxu0 %v516
  %600 = vmatprep.subr.bf16.mxu0 0
  %601 = vmatpush1.bf16.msra.mxu0 %v517
  %602 = vmatprep.subr.bf16.mxu0 0
  %603 = vmatpush1.bf16.msra.mxu0 %v518
  %604 = vmatprep.subr.bf16.mxu0 0
  %605 = vmatpush1.bf16.msra.mxu0 %v519
  %606 = vmatprep.subr.bf16.mxu0 0
  %607 = vmatpush1.bf16.msra.mxu0 %v520
  %608 = vmatprep.subr.bf16.mxu0 0
  %609 = vmatpush1.bf16.msra.mxu0 %v521
  %610 = vmatprep.subr.bf16.mxu0 0
  %611 = vmatpush1.bf16.msra.mxu0 %v522
  %612 = vmatprep.subr.bf16.mxu0 0
  %613 = vmatpush1.bf16.msra.mxu0 %v523
  %614 = vmatprep.subr.bf16.mxu0 0
  %615 = vmatpush1.bf16.msra.mxu0 %v524
  %616 = vmatprep.subr.bf16.mxu0 0
  %617 = vmatpush1.bf16.msra.mxu0 %v525
  %618 = vmatprep.subr.bf16.mxu0 0
  %619 = vmatpush1.bf16.msra.mxu0 %v526
  %620 = vmatprep.subr.bf16.mxu0 0
  %621 = vmatpush1.bf16.msra.mxu0 %v527
  %622 = vmatprep.subr.bf16.mxu0 0
  %623 = vmatpush1.bf16.msra.mxu0 %v528
  %624 = vmatprep.subr.bf16.mxu0 0
  %625 = vmatpush1.bf16.msra.mxu0 %v529
  %626 = vmatprep.mubr.bf16.mxu0 %v275
  %627 = vmatmul.mubr.bf16.gmra.mrb[0].mxu0 %v274
  %v628 = vpop.f32.mrb[0].mxu0
  %v629 = vadd.f32 0.0, %v628
  %v630 = vpop.f32.mrb[0].mxu0
  %v631 = vpop.f32.mrb[0].mxu0
  %v632 = vadd.f32 0.0, %v631
  %v633 = vpop.f32.mrb[0].mxu0
  %634 = vmatprep.mubr.bf16.mxu0 %v280
  %635 = vmatmul.mubr.bf16.gmra.mrb[0].mxu0 %v279
  %v636 = vpop.f32.mrb[0].mxu0
  %v637 = vadd.f32 0.0, %v636
  %v638 = vpop.f32.mrb[0].mxu0
  %v639 = vpop.f32.mrb[0].mxu0
  %v640 = vadd.f32 0.0, %v639
  %v641 = vpop.f32.mrb[0].mxu0
  %642 = vmatprep.mubr.bf16.mxu0 %v285
  %643 = vmatmul.mubr.bf16.gmra.mrb[0].mxu0 %v284
  %v644 = vpop.f32.mrb[0].mxu0
  %v645 = vadd.f32 0.0, %v644
  %v646 = vpop.f32.mrb[0].mxu0
  %v647 = vpop.f32.mrb[0].mxu0
  %v648 = vadd.f32 0.0, %v647
  %v649 = vpop.f32.mrb[0].mxu0
  %650 = vmatprep.mubr.bf16.mxu0 %v290
  %651 = vmatmul.mubr.bf16.gmra.mrb[0].mxu0 %v289
  %v652 = vpop.f32.mrb[0].mxu0
  %v653 = vadd.f32 0.0, %v652
  %v654 = vpop.f32.mrb[0].mxu0
  %v655 = vpop.f32.mrb[0].mxu0
  %v656 = vadd.f32 0.0, %v655
  %v657 = vpop.f32.mrb[0].mxu0
  %658 = vmatprep.mubr.bf16.mxu0 %v295
  %659 = vmatmul.mubr.bf16.gmra.mrb[0].mxu0 %v294
  %v660 = vpop.f32.mrb[0].mxu0
  %v661 = vadd.f32 0.0, %v660
  %v662 = vpop.f32.mrb[0].mxu0
  %v663 = vpop.f32.mrb[0].mxu0
  %v664 = vadd.f32 0.0, %v663
  %v665 = vpop.f32.mrb[0].mxu0
  %666 = vmatprep.mubr.bf16.mxu0 %v300
  %667 = vmatmul.mubr.bf16.gmra.mrb[0].mxu0 %v299
  %v668 = vpop.f32.mrb[0].mxu0
  %v669 = vadd.f32 0.0, %v668
  %v670 = vpop.f32.mrb[0].mxu0
  %v671 = vpop.f32.mrb[0].mxu0
  %v672 = vadd.f32 0.0, %v671
  %v673 = vpop.f32.mrb[0].mxu0
  %674 = vmatprep.mubr.bf16.mxu0 %v305
  %675 = vmatmul.mubr.bf16.gmra.mrb[0].mxu0 %v304
  %v676 = vpop.f32.mrb[0].mxu0
  %v677 = vadd.f32 0.0, %v676
  %v678 = vpop.f32.mrb[0].mxu0
  %v679 = vpop.f32.mrb[0].mxu0
  %v680 = vadd.f32 0.0, %v679
  %v681 = vpop.f32.mrb[0].mxu0
  %682 = vmatprep.mubr.bf16.mxu0 %v310
  %683 = vmatmul.mubr.bf16.gmra.mrb[0].mxu0 %v309
  %v684 = vpop.f32.mrb[0].mxu0
  %v685 = vadd.f32 0.0, %v684
  %v686 = vpop.f32.mrb[0].mxu0
  %v687 = vpop.f32.mrb[0].mxu0
  %v688 = vadd.f32 0.0, %v687
  %v689 = vpop.f32.mrb[0].mxu0
  %690 = vdwg.mxu0
  %691 = vmatprep.subr.bf16.mxu0 0
  %692 = vmatpush1.bf16.msra.mxu0 %v530
  %693 = vmatprep.subr.bf16.mxu0 0
  %694 = vmatpush1.bf16.msra.mxu0 %v531
  %695 = vmatprep.subr.bf16.mxu0 0
  %696 = vmatpush1.bf16.msra.mxu0 %v532
  %697 = vmatprep.subr.bf16.mxu0 0
  %698 = vmatpush1.bf16.msra.mxu0 %v533
  %699 = vmatprep.subr.bf16.mxu0 0
  %700 = vmatpush1.bf16.msra.mxu0 %v534
  %701 = vmatprep.subr.bf16.mxu0 0
  %702 = vmatpush1.bf16.msra.mxu0 %v535
  %703 = vmatprep.subr.bf16.mxu0 0
  %704 = vmatpush1.bf16.msra.mxu0 %v536
  %705 = vmatprep.subr.bf16.mxu0 0
  %706 = vmatpush1.bf16.msra.mxu0 %v537
  %707 = vmatprep.subr.bf16.mxu0 0
  %708 = vmatpush1.bf16.msra.mxu0 %v538
  %709 = vmatprep.subr.bf16.mxu0 0
  %710 = vmatpush1.bf16.msra.mxu0 %v539
  %711 = vmatprep.subr.bf16.mxu0 0
  %712 = vmatpush1.bf16.msra.mxu0 %v540
  %713 = vmatprep.subr.bf16.mxu0 0
  %714 = vmatpush1.bf16.msra.mxu0 %v541
  %715 = vmatprep.subr.bf16.mxu0 0
  %716 = vmatpush1.bf16.msra.mxu0 %v542
  %717 = vmatprep.subr.bf16.mxu0 0
  %718 = vmatpush1.bf16.msra.mxu0 %v543
  %719 = vmatprep.subr.bf16.mxu0 0
  %720 = vmatpush1.bf16.msra.mxu0 %v544
  %721 = vmatprep.subr.bf16.mxu0 0
  %722 = vmatpush1.bf16.msra.mxu0 %v545
  %723 = vmatprep.mubr.bf16.mxu0 %v277
  %724 = vmatmul.mubr.bf16.gmra.mrb[0].mxu0 %v276
  %v725 = vpop.f32.mrb[0].mxu0
  %v726 = vadd.f32 %v629, %v725
  %v727 = vpop.f32.mrb[0].mxu0
  %v728 = vpop.f32.mrb[0].mxu0
  %v729 = vadd.f32 %v632, %v728
  %v730 = vpop.f32.mrb[0].mxu0
  %731 = vmatprep.mubr.bf16.mxu0 %v282
  %732 = vmatmul.mubr.bf16.gmra.mrb[0].mxu0 %v281
  %v733 = vpop.f32.mrb[0].mxu0
  %v734 = vadd.f32 %v637, %v733
  %v735 = vpop.f32.mrb[0].mxu0
  %v736 = vpop.f32.mrb[0].mxu0
  %v737 = vadd.f32 %v640, %v736
  %v738 = vpop.f32.mrb[0].mxu0
  %739 = vmatprep.mubr.bf16.mxu0 %v287
  %740 = vmatmul.mubr.bf16.gmra.mrb[0].mxu0 %v286
  %v741 = vpop.f32.mrb[0].mxu0
  %v742 = vadd.f32 %v645, %v741
  %v743 = vpop.f32.mrb[0].mxu0
  %v744 = vpop.f32.mrb[0].mxu0
  %v745 = vadd.f32 %v648, %v744
  %v746 = vpop.f32.mrb[0].mxu0
  %747 = vmatprep.mubr.bf16.mxu0 %v292
  %748 = vmatmul.mubr.bf16.gmra.mrb[0].mxu0 %v291
  %v749 = vpop.f32.mrb[0].mxu0
  %v750 = vadd.f32 %v653, %v749
  %v751 = vpop.f32.mrb[0].mxu0
  %v752 = vpop.f32.mrb[0].mxu0
  %v753 = vadd.f32 %v656, %v752
  %v754 = vpop.f32.mrb[0].mxu0
  %755 = vmatprep.mubr.bf16.mxu0 %v297
  %756 = vmatmul.mubr.bf16.gmra.mrb[0].mxu0 %v296
  %v757 = vpop.f32.mrb[0].mxu0
  %v758 = vadd.f32 %v661, %v757
  %v759 = vpop.f32.mrb[0].mxu0
  %v760 = vpop.f32.mrb[0].mxu0
  %v761 = vadd.f32 %v664, %v760
  %v762 = vpop.f32.mrb[0].mxu0
  %763 = vmatprep.mubr.bf16.mxu0 %v302
  %764 = vmatmul.mubr.bf16.gmra.mrb[0].mxu0 %v301
  %v765 = vpop.f32.mrb[0].mxu0
  %v766 = vadd.f32 %v669, %v765
  %v767 = vpop.f32.mrb[0].mxu0
  %v768 = vpop.f32.mrb[0].mxu0
  %v769 = vadd.f32 %v672, %v768
  %v770 = vpop.f32.mrb[0].mxu0
  %771 = vmatprep.mubr.bf16.mxu0 %v307
  %772 = vmatmul.mubr.bf16.gmra.mrb[0].mxu0 %v306
  %v773 = vpop.f32.mrb[0].mxu0
  %v774 = vadd.f32 %v677, %v773
  %v775 = vpop.f32.mrb[0].mxu0
  %v776 = vpop.f32.mrb[0].mxu0
  %v777 = vadd.f32 %v680, %v776
  %v778 = vpop.f32.mrb[0].mxu0
  %779 = vmatprep.mubr.bf16.mxu0 %v312
  %780 = vmatmul.mubr.bf16.gmra.mrb[0].mxu0 %v311
  %v781 = vpop.f32.mrb[0].mxu0
  %v782 = vadd.f32 %v685, %v781
  %v783 = vpop.f32.mrb[0].mxu0
  %v784 = vpop.f32.mrb[0].mxu0
  %v785 = vadd.f32 %v688, %v784
  %v786 = vpop.f32.mrb[0].mxu0
  %787 = vdwg.mxu0
  %788 = vmatprep.subr.bf16.mxu0 0
  %789 = vmatpush1.bf16.msra.mxu0 %v546
  %790 = vmatprep.subr.bf16.mxu0 0
  %791 = vmatpush1.bf16.msra.mxu0 %v547
  %792 = vmatprep.subr.bf16.mxu0 0
  %793 = vmatpush1.bf16.msra.mxu0 %v548
  %794 = vmatprep.subr.bf16.mxu0 0
  %795 = vmatpush1.bf16.msra.mxu0 %v549
  %796 = vmatprep.subr.bf16.mxu0 0
  %797 = vmatpush1.bf16.msra.mxu0 %v550
  %798 = vmatprep.subr.bf16.mxu0 0
  %799 = vmatpush1.bf16.msra.mxu0 %v551
  %800 = vmatprep.subr.bf16.mxu0 0
  %801 = vmatpush1.bf16.msra.mxu0 %v552
  %802 = vmatprep.subr.bf16.mxu0 0
  %803 = vmatpush1.bf16.msra.mxu0 %v553
  %804 = vmatprep.subr.bf16.mxu0 0
  %805 = vmatpush1.bf16.msra.mxu0 0
  %806 = vmatprep.subr.bf16.mxu0 0
  %807 = vmatpush1.bf16.msra.mxu0 0
  %808 = vmatprep.subr.bf16.mxu0 0
  %809 = vmatpush1.bf16.msra.mxu0 0
  %810 = vmatprep.subr.bf16.mxu0 0
  %811 = vmatpush1.bf16.msra.mxu0 0
  %812 = vmatprep.subr.bf16.mxu0 0
  %813 = vmatpush1.bf16.msra.mxu0 0
  %814 = vmatprep.subr.bf16.mxu0 0
  %815 = vmatpush1.bf16.msra.mxu0 0
  %816 = vmatprep.subr.bf16.mxu0 0
  %817 = vmatpush1.bf16.msra.mxu0 0
  %818 = vmatprep.subr.bf16.mxu0 0
  %819 = vmatpush1.bf16.msra.mxu0 0
  %820 = vmatprep.mubr.bf16.mxu0 0
  %821 = vmatmul.mubr.bf16.gmra.mrb[0].mxu0 %v278
  %v822 = vpop.f32.mrb[0].mxu0
  %v823 = vadd.f32 %v726, %v822
  %v824 = vpop.f32.mrb[0].mxu0
  %v825 = vpop.f32.mrb[0].mxu0
  %v826 = vadd.f32 %v729, %v825
  %v827 = vpop.f32.mrb[0].mxu0
  %828 = vmatprep.mubr.bf16.mxu0 0
  %829 = vmatmul.mubr.bf16.gmra.mrb[0].mxu0 %v283
  %v830 = vpop.f32.mrb[0].mxu0
  %v831 = vadd.f32 %v734, %v830
  %v832 = vpop.f32.mrb[0].mxu0
  %v833 = vpop.f32.mrb[0].mxu0
  %v834 = vadd.f32 %v737, %v833
  %v835 = vpop.f32.mrb[0].mxu0
  %836 = vmatprep.mubr.bf16.mxu0 0
  %837 = vmatmul.mubr.bf16.gmra.mrb[0].mxu0 %v288
  %v838 = vpop.f32.mrb[0].mxu0
  %v839 = vadd.f32 %v742, %v838
  %v840 = vpop.f32.mrb[0].mxu0
  %v841 = vpop.f32.mrb[0].mxu0
  %v842 = vadd.f32 %v745, %v841
  %v843 = vpop.f32.mrb[0].mxu0
  %844 = vmatprep.mubr.bf16.mxu0 0
  %845 = vmatmul.mubr.bf16.gmra.mrb[0].mxu0 %v293
  %v846 = vpop.f32.mrb[0].mxu0
  %v847 = vadd.f32 %v750, %v846
  %v848 = vpop.f32.mrb[0].mxu0
  %v849 = vpop.f32.mrb[0].mxu0
  %v850 = vadd.f32 %v753, %v849
  %v851 = vpop.f32.mrb[0].mxu0
  %852 = vmatprep.mubr.bf16.mxu0 0
  %853 = vmatmul.mubr.bf16.gmra.mrb[0].mxu0 %v298
  %v854 = vpop.f32.mrb[0].mxu0
  %v855 = vadd.f32 %v758, %v854
  %v856 = vpop.f32.mrb[0].mxu0
  %v857 = vpop.f32.mrb[0].mxu0
  %v858 = vadd.f32 %v761, %v857
  %v859 = vpop.f32.mrb[0].mxu0
  %860 = vmatprep.mubr.bf16.mxu0 0
  %861 = vmatmul.mubr.bf16.gmra.mrb[0].mxu0 %v303
  %v862 = vpop.f32.mrb[0].mxu0
  %v863 = vadd.f32 %v766, %v862
  %v864 = vpop.f32.mrb[0].mxu0
  %v865 = vpop.f32.mrb[0].mxu0
  %v866 = vadd.f32 %v769, %v865
  %v867 = vpop.f32.mrb[0].mxu0
  %868 = vmatprep.mubr.bf16.mxu0 0
  %869 = vmatmul.mubr.bf16.gmra.mrb[0].mxu0 %v308
  %v870 = vpop.f32.mrb[0].mxu0
  %v871 = vadd.f32 %v774, %v870
  %v872 = vpop.f32.mrb[0].mxu0
  %v873 = vpop.f32.mrb[0].mxu0
  %v874 = vadd.f32 %v777, %v873
  %v875 = vpop.f32.mrb[0].mxu0
  %876 = vmatprep.mubr.bf16.mxu0 0
  %877 = vmatmul.mubr.bf16.gmra.mrb[0].mxu0 %v313
  %v878 = vpop.f32.mrb[0].mxu0
  %v879 = vadd.f32 %v782, %v878
  %v880 = vpop.f32.mrb[0].mxu0
  %v881 = vpop.f32.mrb[0].mxu0
  %v882 = vadd.f32 %v785, %v881
  %v883 = vpop.f32.mrb[0].mxu0
  %884 = vdwg.mxu0
  %v885 = vld [vmem:[%s2] sm:$0x1]
  %v887 = vlaneseq
  %v888 = vshrl.u32 %v887, 7
  %v889 = vsub.s32 0, %v888
  %v890 = vrot.slane %v885, %v889
  %v892 = vmul.f32 %v823, %v890
  %v893 = vmul.f32 %v826, %v890
  %v894 = vmul.f32 %v831, %v890
  %v895 = vmul.f32 %v834, %v890
  %v896 = vmul.f32 %v839, %v890
  %v897 = vmul.f32 %v842, %v890
  %v898 = vmul.f32 %v847, %v890
  %v899 = vmul.f32 %v850, %v890
  %v900 = vmul.f32 %v855, %v890
  %v901 = vmul.f32 %v858, %v890
  %v902 = vmul.f32 %v863, %v890
  %v903 = vmul.f32 %v866, %v890
  %v904 = vmul.f32 %v871, %v890
  %v905 = vmul.f32 %v874, %v890
  %v906 = vmul.f32 %v879, %v890
  %v907 = vmul.f32 %v882, %v890
  %v908 = vld [vmem:[%s3] sm:$0x1]
  %v910 = vlaneseq
  %v911 = vshrl.u32 %v910, 7
  %v912 = vsub.s32 0, %v911
  %v913 = vrot.slane %v908, %v912
  %v915 = vadd.f32 %v892, %v913
  %v916 = vadd.f32 %v893, %v913
  %v917 = vadd.f32 %v894, %v913
  %v918 = vadd.f32 %v895, %v913
  %v919 = vadd.f32 %v896, %v913
  %v920 = vadd.f32 %v897, %v913
  %v921 = vadd.f32 %v898, %v913
  %v922 = vadd.f32 %v899, %v913
  %v923 = vadd.f32 %v900, %v913
  %v924 = vadd.f32 %v901, %v913
  %v925 = vadd.f32 %v902, %v913
  %v926 = vadd.f32 %v903, %v913
  %v927 = vadd.f32 %v904, %v913
  %v928 = vadd.f32 %v905, %v913
  %v929 = vadd.f32 %v906, %v913
  %v930 = vadd.f32 %v907, %v913
  %v931 = vmax.f32 %v915, 0.0
  %v932 = vmax.f32 %v916, 0.0
  %v933 = vmax.f32 %v917, 0.0
  %v934 = vmax.f32 %v918, 0.0
  %v935 = vmax.f32 %v919, 0.0
  %v936 = vmax.f32 %v920, 0.0
  %v937 = vmax.f32 %v921, 0.0
  %v938 = vmax.f32 %v922, 0.0
  %v939 = vmax.f32 %v923, 0.0
  %v940 = vmax.f32 %v924, 0.0
  %v941 = vmax.f32 %v925, 0.0
  %v942 = vmax.f32 %v926, 0.0
  %v943 = vmax.f32 %v927, 0.0
  %v944 = vmax.f32 %v928, 0.0
  %v945 = vmax.f32 %v929, 0.0
  %v946 = vmax.f32 %v930, 0.0
  %947 = vst [vmem:[%s4] sm:$0xff] %v931
  %948 = vst [vmem:[%s4 + $0x8] sm:$0xff] %v932
  %949 = vst [vmem:[%s4 + $0x10] sm:$0xff] %v933
  %950 = vst [vmem:[%s4 + $0x18] sm:$0xff] %v934
  %951 = vst [vmem:[%s4 + $0x20] sm:$0xff] %v935
  %952 = vst [vmem:[%s4 + $0x28] sm:$0xff] %v936
  %953 = vst [vmem:[%s4 + $0x30] sm:$0xff] %v937
  %954 = vst [vmem:[%s4 + $0x38] sm:$0xff] %v938
  %955 = vst [vmem:[%s4 + $0x40] sm:$0xff] %v939
  %956 = vst [vmem:[%s4 + $0x48] sm:$0xff] %v940
  %957 = vst [vmem:[%s4 + $0x50] sm:$0xff] %v941
  %958 = vst [vmem:[%s4 + $0x58] sm:$0xff] %v942
  %959 = vst [vmem:[%s4 + $0x60] sm:$0xff] %v943
  %960 = vst [vmem:[%s4 + $0x68] sm:$0xff] %v944
  %961 = vst [vmem:[%s4 + $0x70] sm:$0xff] %v945
  %962 = vst [vmem:[%s4 + $0x78] sm:$0xff] %v946
  // Predicated region
  $region18: #{cnn_forward.9} parent=0 // pred_check
    _
  $region19: #{cnn_forward.9} parent=0 // pred_check_branch
    %964 = sbr.rel (0) target = $region21
  $region20: #{cnn_forward.9} parent=0 // pred_region
    _
  $region21: #{cnn_forward.9} parent=0 // pred_fallthru
    _
  // Predicated region
  $region22: #{cnn_forward.9} parent=0 // pred_check
    _
  $region23: #{cnn_forward.9} parent=0 // pred_check_branch
    %966 = sbr.rel (0) target = $region25
  $region24: #{cnn_forward.9} parent=0 // pred_region
    _
  $region25: #{cnn_forward.9} parent=0 // pred_fallthru
    _

// kernel: cnn_forward.10
$region0: #{cnn_forward.10}
  #allocation0 [shape = 'u32[]', space=smem, size = 0x4, offset = 0x4, fixed_abs, tag = 'smem constant byte address 0x4 - core index']
  #allocation1 [shape = 'u32[144,128]{1,0:T(1,128)}', space=vmem, size = 0x12000, scoped, tag = 'internal scratch']
  %s0 = inlined_call_operand.vmem [shape: bf16[128,1152], index: 0, kind: input, shape index: {}]
  %s1 = inlined_call_operand.vmem [shape: bf16[1152,128], index: 1, kind: input, shape index: {}]
  %s2 = inlined_call_operand.vmem [shape: f32[1,128], index: 2, kind: input, shape index: {}]
  %s3 = inlined_call_operand.vmem [shape: f32[1,128], index: 3, kind: input, shape index: {}]
  %s4 = inlined_call_operand.vmem [shape: f32[128,128], index: 4, kind: output, shape index: {}]
  %s5 = sld [smem:[#allocation0]]
  $region26: #{cnn_forward.10} parent=0
    _
  %s7 = ssub.s32 1, %s5
  %s8 = scalar_select 0, %s7, %s5
  // Predicated region
  $region2: #{cnn_forward.10} parent=0 // pred_check
    _
  $region3: #{cnn_forward.10} parent=0 // pred_check_branch
    %10 = sbr.rel (0) target = $region5
  $region4: #{cnn_forward.10} parent=0 // pred_region
    _
  $region5: #{cnn_forward.10} parent=0 // pred_fallthru
    _
  // Predicated region
  $region6: #{cnn_forward.10} parent=0 // pred_check
    _
  $region7: #{cnn_forward.10} parent=0 // pred_check_branch
    %12 = sbr.rel (0) target = $region9
  $region8: #{cnn_forward.10} parent=0 // pred_region
    _
  $region9: #{cnn_forward.10} parent=0 // pred_fallthru
    _
  // Predicated region
  $region10: #{cnn_forward.10} parent=0 // pred_check
    _
  $region11: #{cnn_forward.10} parent=0 // pred_check_branch
    %14 = sbr.rel (0) target = $region13
  $region12: #{cnn_forward.10} parent=0 // pred_region
    _
  $region13: #{cnn_forward.10} parent=0 // pred_fallthru
    _
  // Predicated region
  $region14: #{cnn_forward.10} parent=0 // pred_check
    _
  $region15: #{cnn_forward.10} parent=0 // pred_check_branch
    %16 = sbr.rel (0) target = $region17
  $region16: #{cnn_forward.10} parent=0 // pred_region
    _
  $region17: #{cnn_forward.10} parent=0 // pred_fallthru
    _
  %v18 = vld [vmem:[%s0] sm:$0xff]
  %v19 = vld [vmem:[%s0 + $0x8] sm:$0xff]
  %v20 = vld [vmem:[%s0 + $0x10] sm:$0xff]
  %v21 = vld [vmem:[%s0 + $0x18] sm:$0xff]
  %v22 = vld [vmem:[%s0 + $0x20] sm:$0xf]
  %v23 = vld [vmem:[%s0 + $0x24] sm:$0xff]
  %v24 = vld [vmem:[%s0 + $0x2c] sm:$0xff]
  %v25 = vld [vmem:[%s0 + $0x34] sm:$0xff]
  %v26 = vld [vmem:[%s0 + $0x3c] sm:$0xff]
  %v27 = vld [vmem:[%s0 + $0x44] sm:$0xf]
  %v28 = vld [vmem:[%s0 + $0x48] sm:$0xff]
  %v29 = vld [vmem:[%s0 + $0x50] sm:$0xff]
  %v30 = vld [vmem:[%s0 + $0x58] sm:$0xff]
  %v31 = vld [vmem:[%s0 + $0x60] sm:$0xff]
  %v32 = vld [vmem:[%s0 + $0x68] sm:$0xf]
  %v33 = vld [vmem:[%s0 + $0x6c] sm:$0xff]
  %v34 = vld [vmem:[%s0 + $0x74] sm:$0xff]
  %v35 = vld [vmem:[%s0 + $0x7c] sm:$0xff]
  %v36 = vld [vmem:[%s0 + $0x84] sm:$0xff]
  %v37 = vld [vmem:[%s0 + $0x8c] sm:$0xf]
  %v38 = vld [vmem:[%s0 + $0x90] sm:$0xff]
  %v39 = vld [vmem:[%s0 + $0x98] sm:$0xff]
  %v40 = vld [vmem:[%s0 + $0xa0] sm:$0xff]
  %v41 = vld [vmem:[%s0 + $0xa8] sm:$0xff]
  %v42 = vld [vmem:[%s0 + $0xb0] sm:$0xf]
  %v43 = vld [vmem:[%s0 + $0xb4] sm:$0xff]
  %v44 = vld [vmem:[%s0 + $0xbc] sm:$0xff]
  %v45 = vld [vmem:[%s0 + $0xc4] sm:$0xff]
  %v46 = vld [vmem:[%s0 + $0xcc] sm:$0xff]
  %v47 = vld [vmem:[%s0 + $0xd4] sm:$0xf]
  %v48 = vld [vmem:[%s0 + $0xd8] sm:$0xff]
  %v49 = vld [vmem:[%s0 + $0xe0] sm:$0xff]
  %v50 = vld [vmem:[%s0 + $0xe8] sm:$0xff]
  %v51 = vld [vmem:[%s0 + $0xf0] sm:$0xff]
  %v52 = vld [vmem:[%s0 + $0xf8] sm:$0xf]
  %v53 = vld [vmem:[%s0 + $0xfc] sm:$0xff]
  %v54 = vld [vmem:[%s0 + $0x104] sm:$0xff]
  %v55 = vld [vmem:[%s0 + $0x10c] sm:$0xff]
  %v56 = vld [vmem:[%s0 + $0x114] sm:$0xff]
  %v57 = vld [vmem:[%s0 + $0x11c] sm:$0xf]
  %v58 = vld [vmem:[%s0 + $0x120] sm:$0xff]
  %v59 = vld [vmem:[%s0 + $0x128] sm:$0xff]
  %v60 = vld [vmem:[%s0 + $0x130] sm:$0xff]
  %v61 = vld [vmem:[%s0 + $0x138] sm:$0xff]
  %v62 = vld [vmem:[%s0 + $0x140] sm:$0xf]
  %v63 = vld [vmem:[%s0 + $0x144] sm:$0xff]
  %v64 = vld [vmem:[%s0 + $0x14c] sm:$0xff]
  %v65 = vld [vmem:[%s0 + $0x154] sm:$0xff]
  %v66 = vld [vmem:[%s0 + $0x15c] sm:$0xff]
  %v67 = vld [vmem:[%s0 + $0x164] sm:$0xf]
  %v68 = vld [vmem:[%s0 + $0x168] sm:$0xff]
  %v69 = vld [vmem:[%s0 + $0x170] sm:$0xff]
  %v70 = vld [vmem:[%s0 + $0x178] sm:$0xff]
  %v71 = vld [vmem:[%s0 + $0x180] sm:$0xff]
  %v72 = vld [vmem:[%s0 + $0x188] sm:$0xf]
  %v73 = vld [vmem:[%s0 + $0x18c] sm:$0xff]
  %v74 = vld [vmem:[%s0 + $0x194] sm:$0xff]
  %v75 = vld [vmem:[%s0 + $0x19c] sm:$0xff]
  %v76 = vld [vmem:[%s0 + $0x1a4] sm:$0xff]
  %v77 = vld [vmem:[%s0 + $0x1ac] sm:$0xf]
  %v78 = vld [vmem:[%s0 + $0x1b0] sm:$0xff]
  %v79 = vld [vmem:[%s0 + $0x1b8] sm:$0xff]
  %v80 = vld [vmem:[%s0 + $0x1c0] sm:$0xff]
  %v81 = vld [vmem:[%s0 + $0x1c8] sm:$0xff]
  %v82 = vld [vmem:[%s0 + $0x1d0] sm:$0xf]
  %v83 = vld [vmem:[%s0 + $0x1d4] sm:$0xff]
  %v84 = vld [vmem:[%s0 + $0x1dc] sm:$0xff]
  %v85 = vld [vmem:[%s0 + $0x1e4] sm:$0xff]
  %v86 = vld [vmem:[%s0 + $0x1ec] sm:$0xff]
  %v87 = vld [vmem:[%s0 + $0x1f4] sm:$0xf]
  %v88 = vld [vmem:[%s0 + $0x1f8] sm:$0xff]
  %v89 = vld [vmem:[%s0 + $0x200] sm:$0xff]
  %v90 = vld [vmem:[%s0 + $0x208] sm:$0xff]
  %v91 = vld [vmem:[%s0 + $0x210] sm:$0xff]
  %v92 = vld [vmem:[%s0 + $0x218] sm:$0xf]
  %v93 = vld [vmem:[%s0 + $0x21c] sm:$0xff]
  %v94 = vld [vmem:[%s0 + $0x224] sm:$0xff]
  %v95 = vld [vmem:[%s0 + $0x22c] sm:$0xff]
  %v96 = vld [vmem:[%s0 + $0x234] sm:$0xff]
  %v97 = vld [vmem:[%s0 + $0x23c] sm:$0xf]
  %v98 = vld [vmem:[%s1] sm:$0xf]
  %v99 = vld [vmem:[%s1 + $0x4] sm:$0xf]
  %v100 = vld [vmem:[%s1 + $0x8] sm:$0xf]
  %v101 = vld [vmem:[%s1 + $0xc] sm:$0xf]
  %v102 = vld [vmem:[%s1 + $0x10] sm:$0xf]
  %v103 = vld [vmem:[%s1 + $0x14] sm:$0xf]
  %v104 = vld [vmem:[%s1 + $0x18] sm:$0xf]
  %v105 = vld [vmem:[%s1 + $0x1c] sm:$0xf]
  %v106 = vld [vmem:[%s1 + $0x20] sm:$0xf]
  %v107 = vld [vmem:[%s1 + $0x24] sm:$0xf]
  %v108 = vld [vmem:[%s1 + $0x28] sm:$0xf]
  %v109 = vld [vmem:[%s1 + $0x2c] sm:$0xf]
  %v110 = vld [vmem:[%s1 + $0x30] sm:$0xf]
  %v111 = vld [vmem:[%s1 + $0x34] sm:$0xf]
  %v112 = vld [vmem:[%s1 + $0x38] sm:$0xf]
  %v113 = vld [vmem:[%s1 + $0x3c] sm:$0xf]
  %v114 = vld [vmem:[%s1 + $0x40] sm:$0xf]
  %v115 = vld [vmem:[%s1 + $0x44] sm:$0xf]
  %v116 = vld [vmem:[%s1 + $0x48] sm:$0xf]
  %v117 = vld [vmem:[%s1 + $0x4c] sm:$0xf]
  %v118 = vld [vmem:[%s1 + $0x50] sm:$0xf]
  %v119 = vld [vmem:[%s1 + $0x54] sm:$0xf]
  %v120 = vld [vmem:[%s1 + $0x58] sm:$0xf]
  %v121 = vld [vmem:[%s1 + $0x5c] sm:$0xf]
  %v122 = vld [vmem:[%s1 + $0x60] sm:$0xf]
  %v123 = vld [vmem:[%s1 + $0x64] sm:$0xf]
  %v124 = vld [vmem:[%s1 + $0x68] sm:$0xf]
  %v125 = vld [vmem:[%s1 + $0x6c] sm:$0xf]
  %v126 = vld [vmem:[%s1 + $0x70] sm:$0xf]
  %v127 = vld [vmem:[%s1 + $0x74] sm:$0xf]
  %v128 = vld [vmem:[%s1 + $0x78] sm:$0xf]
  %v129 = vld [vmem:[%s1 + $0x7c] sm:$0xf]
  %v130 = vld [vmem:[%s1 + $0x80] sm:$0xf]
  %v131 = vld [vmem:[%s1 + $0x84] sm:$0xf]
  %v132 = vld [vmem:[%s1 + $0x88] sm:$0xf]
  %v133 = vld [vmem:[%s1 + $0x8c] sm:$0xf]
  %v134 = vld [vmem:[%s1 + $0x90] sm:$0xf]
  %v135 = vld [vmem:[%s1 + $0x94] sm:$0xf]
  %v136 = vld [vmem:[%s1 + $0x98] sm:$0xf]
  %v137 = vld [vmem:[%s1 + $0x9c] sm:$0xf]
  %v138 = vld [vmem:[%s1 + $0xa0] sm:$0xf]
  %v139 = vld [vmem:[%s1 + $0xa4] sm:$0xf]
  %v140 = vld [vmem:[%s1 + $0xa8] sm:$0xf]
  %v141 = vld [vmem:[%s1 + $0xac] sm:$0xf]
  %v142 = vld [vmem:[%s1 + $0xb0] sm:$0xf]
  %v143 = vld [vmem:[%s1 + $0xb4] sm:$0xf]
  %v144 = vld [vmem:[%s1 + $0xb8] sm:$0xf]
  %v145 = vld [vmem:[%s1 + $0xbc] sm:$0xf]
  %v146 = vld [vmem:[%s1 + $0xc0] sm:$0xf]
  %v147 = vld [vmem:[%s1 + $0xc4] sm:$0xf]
  %v148 = vld [vmem:[%s1 + $0xc8] sm:$0xf]
  %v149 = vld [vmem:[%s1 + $0xcc] sm:$0xf]
  %v150 = vld [vmem:[%s1 + $0xd0] sm:$0xf]
  %v151 = vld [vmem:[%s1 + $0xd4] sm:$0xf]
  %v152 = vld [vmem:[%s1 + $0xd8] sm:$0xf]
  %v153 = vld [vmem:[%s1 + $0xdc] sm:$0xf]
  %v154 = vld [vmem:[%s1 + $0xe0] sm:$0xf]
  %v155 = vld [vmem:[%s1 + $0xe4] sm:$0xf]
  %v156 = vld [vmem:[%s1 + $0xe8] sm:$0xf]
  %v157 = vld [vmem:[%s1 + $0xec] sm:$0xf]
  %v158 = vld [vmem:[%s1 + $0xf0] sm:$0xf]
  %v159 = vld [vmem:[%s1 + $0xf4] sm:$0xf]
  %v160 = vld [vmem:[%s1 + $0xf8] sm:$0xf]
  %v161 = vld [vmem:[%s1 + $0xfc] sm:$0xf]
  %v162 = vld [vmem:[%s1 + $0x100] sm:$0xf]
  %v163 = vld [vmem:[%s1 + $0x104] sm:$0xf]
  %v164 = vld [vmem:[%s1 + $0x108] sm:$0xf]
  %v165 = vld [vmem:[%s1 + $0x10c] sm:$0xf]
  %v166 = vld [vmem:[%s1 + $0x110] sm:$0xf]
  %v167 = vld [vmem:[%s1 + $0x114] sm:$0xf]
  %v168 = vld [vmem:[%s1 + $0x118] sm:$0xf]
  %v169 = vld [vmem:[%s1 + $0x11c] sm:$0xf]
  %v170 = vld [vmem:[%s1 + $0x120] sm:$0xf]
  %v171 = vld [vmem:[%s1 + $0x124] sm:$0xf]
  %v172 = vld [vmem:[%s1 + $0x128] sm:$0xf]
  %v173 = vld [vmem:[%s1 + $0x12c] sm:$0xf]
  %v174 = vld [vmem:[%s1 + $0x130] sm:$0xf]
  %v175 = vld [vmem:[%s1 + $0x134] sm:$0xf]
  %v176 = vld [vmem:[%s1 + $0x138] sm:$0xf]
  %v177 = vld [vmem:[%s1 + $0x13c] sm:$0xf]
  %v178 = vld [vmem:[%s1 + $0x140] sm:$0xf]
  %v179 = vld [vmem:[%s1 + $0x144] sm:$0xf]
  %v180 = vld [vmem:[%s1 + $0x148] sm:$0xf]
  %v181 = vld [vmem:[%s1 + $0x14c] sm:$0xf]
  %v182 = vld [vmem:[%s1 + $0x150] sm:$0xf]
  %v183 = vld [vmem:[%s1 + $0x154] sm:$0xf]
  %v184 = vld [vmem:[%s1 + $0x158] sm:$0xf]
  %v185 = vld [vmem:[%s1 + $0x15c] sm:$0xf]
  %v186 = vld [vmem:[%s1 + $0x160] sm:$0xf]
  %v187 = vld [vmem:[%s1 + $0x164] sm:$0xf]
  %v188 = vld [vmem:[%s1 + $0x168] sm:$0xf]
  %v189 = vld [vmem:[%s1 + $0x16c] sm:$0xf]
  %v190 = vld [vmem:[%s1 + $0x170] sm:$0xf]
  %v191 = vld [vmem:[%s1 + $0x174] sm:$0xf]
  %v192 = vld [vmem:[%s1 + $0x178] sm:$0xf]
  %v193 = vld [vmem:[%s1 + $0x17c] sm:$0xf]
  %v194 = vld [vmem:[%s1 + $0x180] sm:$0xf]
  %v195 = vld [vmem:[%s1 + $0x184] sm:$0xf]
  %v196 = vld [vmem:[%s1 + $0x188] sm:$0xf]
  %v197 = vld [vmem:[%s1 + $0x18c] sm:$0xf]
  %v198 = vld [vmem:[%s1 + $0x190] sm:$0xf]
  %v199 = vld [vmem:[%s1 + $0x194] sm:$0xf]
  %v200 = vld [vmem:[%s1 + $0x198] sm:$0xf]
  %v201 = vld [vmem:[%s1 + $0x19c] sm:$0xf]
  %v202 = vld [vmem:[%s1 + $0x1a0] sm:$0xf]
  %v203 = vld [vmem:[%s1 + $0x1a4] sm:$0xf]
  %v204 = vld [vmem:[%s1 + $0x1a8] sm:$0xf]
  %v205 = vld [vmem:[%s1 + $0x1ac] sm:$0xf]
  %v206 = vld [vmem:[%s1 + $0x1b0] sm:$0xf]
  %v207 = vld [vmem:[%s1 + $0x1b4] sm:$0xf]
  %v208 = vld [vmem:[%s1 + $0x1b8] sm:$0xf]
  %v209 = vld [vmem:[%s1 + $0x1bc] sm:$0xf]
  %v210 = vld [vmem:[%s1 + $0x1c0] sm:$0xf]
  %v211 = vld [vmem:[%s1 + $0x1c4] sm:$0xf]
  %v212 = vld [vmem:[%s1 + $0x1c8] sm:$0xf]
  %v213 = vld [vmem:[%s1 + $0x1cc] sm:$0xf]
  %v214 = vld [vmem:[%s1 + $0x1d0] sm:$0xf]
  %v215 = vld [vmem:[%s1 + $0x1d4] sm:$0xf]
  %v216 = vld [vmem:[%s1 + $0x1d8] sm:$0xf]
  %v217 = vld [vmem:[%s1 + $0x1dc] sm:$0xf]
  %v218 = vld [vmem:[%s1 + $0x1e0] sm:$0xf]
  %v219 = vld [vmem:[%s1 + $0x1e4] sm:$0xf]
  %v220 = vld [vmem:[%s1 + $0x1e8] sm:$0xf]
  %v221 = vld [vmem:[%s1 + $0x1ec] sm:$0xf]
  %v222 = vld [vmem:[%s1 + $0x1f0] sm:$0xf]
  %v223 = vld [vmem:[%s1 + $0x1f4] sm:$0xf]
  %v224 = vld [vmem:[%s1 + $0x1f8] sm:$0xf]
  %v225 = vld [vmem:[%s1 + $0x1fc] sm:$0xf]
  %v226 = vld [vmem:[%s1 + $0x200] sm:$0xf]
  %v227 = vld [vmem:[%s1 + $0x204] sm:$0xf]
  %v228 = vld [vmem:[%s1 + $0x208] sm:$0xf]
  %v229 = vld [vmem:[%s1 + $0x20c] sm:$0xf]
  %v230 = vld [vmem:[%s1 + $0x210] sm:$0xf]
  %v231 = vld [vmem:[%s1 + $0x214] sm:$0xf]
  %v232 = vld [vmem:[%s1 + $0x218] sm:$0xf]
  %v233 = vld [vmem:[%s1 + $0x21c] sm:$0xf]
  %v234 = vld [vmem:[%s1 + $0x220] sm:$0xf]
  %v235 = vld [vmem:[%s1 + $0x224] sm:$0xf]
  %v236 = vld [vmem:[%s1 + $0x228] sm:$0xf]
  %v237 = vld [vmem:[%s1 + $0x22c] sm:$0xf]
  %v238 = vld [vmem:[%s1 + $0x230] sm:$0xf]
  %v239 = vld [vmem:[%s1 + $0x234] sm:$0xf]
  %v240 = vld [vmem:[%s1 + $0x238] sm:$0xf]
  %v241 = vld [vmem:[%s1 + $0x23c] sm:$0xf]
  %v322 = vunpack.c.l.b16 %v18
  %v323 = vunpack.c.h.b16 %v18
  %v324 = vunpack.c.l.b16 %v19
  %v325 = vunpack.c.h.b16 %v19
  %v326 = vunpack.c.l.b16 %v20
  %v327 = vunpack.c.h.b16 %v20
  %v328 = vunpack.c.l.b16 %v21
  %v329 = vunpack.c.h.b16 %v21
  %v330 = vunpack.c.l.b16 %v22
  %v331 = vunpack.c.l.b16 %v23
  %v332 = vunpack.c.h.b16 %v23
  %v333 = vunpack.c.l.b16 %v24
  %v334 = vunpack.c.h.b16 %v24
  %v335 = vunpack.c.l.b16 %v25
  %v336 = vunpack.c.h.b16 %v25
  %v337 = vunpack.c.l.b16 %v26
  %v338 = vunpack.c.h.b16 %v26
  %v339 = vunpack.c.l.b16 %v27
  %v340 = vunpack.c.l.b16 %v28
  %v341 = vunpack.c.h.b16 %v28
  %v342 = vunpack.c.l.b16 %v29
  %v343 = vunpack.c.h.b16 %v29
  %v344 = vunpack.c.l.b16 %v30
  %v345 = vunpack.c.h.b16 %v30
  %v346 = vunpack.c.l.b16 %v31
  %v347 = vunpack.c.h.b16 %v31
  %v348 = vunpack.c.l.b16 %v32
  %v349 = vunpack.c.l.b16 %v33
  %v350 = vunpack.c.h.b16 %v33
  %v351 = vunpack.c.l.b16 %v34
  %v352 = vunpack.c.h.b16 %v34
  %v353 = vunpack.c.l.b16 %v35
  %v354 = vunpack.c.h.b16 %v35
  %v355 = vunpack.c.l.b16 %v36
  %v356 = vunpack.c.h.b16 %v36
  %v357 = vunpack.c.l.b16 %v37
  %v358 = vunpack.c.l.b16 %v38
  %v359 = vunpack.c.h.b16 %v38
  %v360 = vunpack.c.l.b16 %v39
  %v361 = vunpack.c.h.b16 %v39
  %v362 = vunpack.c.l.b16 %v40
  %v363 = vunpack.c.h.b16 %v40
  %v364 = vunpack.c.l.b16 %v41
  %v365 = vunpack.c.h.b16 %v41
  %v366 = vunpack.c.l.b16 %v42
  %v367 = vunpack.c.l.b16 %v43
  %v368 = vunpack.c.h.b16 %v43
  %v369 = vunpack.c.l.b16 %v44
  %v370 = vunpack.c.h.b16 %v44
  %v371 = vunpack.c.l.b16 %v45
  %v372 = vunpack.c.h.b16 %v45
  %v373 = vunpack.c.l.b16 %v46
  %v374 = vunpack.c.h.b16 %v46
  %v375 = vunpack.c.l.b16 %v47
  %v376 = vunpack.c.l.b16 %v48
  %v377 = vunpack.c.h.b16 %v48
  %v378 = vunpack.c.l.b16 %v49
  %v379 = vunpack.c.h.b16 %v49
  %v380 = vunpack.c.l.b16 %v50
  %v381 = vunpack.c.h.b16 %v50
  %v382 = vunpack.c.l.b16 %v51
  %v383 = vunpack.c.h.b16 %v51
  %v384 = vunpack.c.l.b16 %v52
  %v385 = vunpack.c.l.b16 %v53
  %v386 = vunpack.c.h.b16 %v53
  %v387 = vunpack.c.l.b16 %v54
  %v388 = vunpack.c.h.b16 %v54
  %v389 = vunpack.c.l.b16 %v55
  %v390 = vunpack.c.h.b16 %v55
  %v391 = vunpack.c.l.b16 %v56
  %v392 = vunpack.c.h.b16 %v56
  %v393 = vunpack.c.l.b16 %v57
  %v394 = vunpack.c.l.b16 %v58
  %v395 = vunpack.c.h.b16 %v58
  %v396 = vunpack.c.l.b16 %v59
  %v397 = vunpack.c.h.b16 %v59
  %v398 = vunpack.c.l.b16 %v60
  %v399 = vunpack.c.h.b16 %v60
  %v400 = vunpack.c.l.b16 %v61
  %v401 = vunpack.c.h.b16 %v61
  %v402 = vunpack.c.l.b16 %v62
  %v403 = vunpack.c.l.b16 %v63
  %v404 = vunpack.c.h.b16 %v63
  %v405 = vunpack.c.l.b16 %v64
  %v406 = vunpack.c.h.b16 %v64
  %v407 = vunpack.c.l.b16 %v65
  %v408 = vunpack.c.h.b16 %v65
  %v409 = vunpack.c.l.b16 %v66
  %v410 = vunpack.c.h.b16 %v66
  %v411 = vunpack.c.l.b16 %v67
  %v412 = vunpack.c.l.b16 %v68
  %v413 = vunpack.c.h.b16 %v68
  %v414 = vunpack.c.l.b16 %v69
  %v415 = vunpack.c.h.b16 %v69
  %v416 = vunpack.c.l.b16 %v70
  %v417 = vunpack.c.h.b16 %v70
  %v418 = vunpack.c.l.b16 %v71
  %v419 = vunpack.c.h.b16 %v71
  %v420 = vunpack.c.l.b16 %v72
  %v421 = vunpack.c.l.b16 %v73
  %v422 = vunpack.c.h.b16 %v73
  %v423 = vunpack.c.l.b16 %v74
  %v424 = vunpack.c.h.b16 %v74
  %v425 = vunpack.c.l.b16 %v75
  %v426 = vunpack.c.h.b16 %v75
  %v427 = vunpack.c.l.b16 %v76
  %v428 = vunpack.c.h.b16 %v76
  %v429 = vunpack.c.l.b16 %v77
  %v430 = vunpack.c.l.b16 %v78
  %v431 = vunpack.c.h.b16 %v78
  %v432 = vunpack.c.l.b16 %v79
  %v433 = vunpack.c.h.b16 %v79
  %v434 = vunpack.c.l.b16 %v80
  %v435 = vunpack.c.h.b16 %v80
  %v436 = vunpack.c.l.b16 %v81
  %v437 = vunpack.c.h.b16 %v81
  %v438 = vunpack.c.l.b16 %v82
  %v439 = vunpack.c.l.b16 %v83
  %v440 = vunpack.c.h.b16 %v83
  %v441 = vunpack.c.l.b16 %v84
  %v442 = vunpack.c.h.b16 %v84
  %v443 = vunpack.c.l.b16 %v85
  %v444 = vunpack.c.h.b16 %v85
  %v445 = vunpack.c.l.b16 %v86
  %v446 = vunpack.c.h.b16 %v86
  %v447 = vunpack.c.l.b16 %v87
  %v448 = vunpack.c.l.b16 %v88
  %v449 = vunpack.c.h.b16 %v88
  %v450 = vunpack.c.l.b16 %v89
  %v451 = vunpack.c.h.b16 %v89
  %v452 = vunpack.c.l.b16 %v90
  %v453 = vunpack.c.h.b16 %v90
  %v454 = vunpack.c.l.b16 %v91
  %v455 = vunpack.c.h.b16 %v91
  %v456 = vunpack.c.l.b16 %v92
  %v457 = vunpack.c.l.b16 %v93
  %v458 = vunpack.c.h.b16 %v93
  %v459 = vunpack.c.l.b16 %v94
  %v460 = vunpack.c.h.b16 %v94
  %v461 = vunpack.c.l.b16 %v95
  %v462 = vunpack.c.h.b16 %v95
  %v463 = vunpack.c.l.b16 %v96
  %v464 = vunpack.c.h.b16 %v96
  %v465 = vunpack.c.l.b16 %v97
  %v466 = vpack.c.b16 %v331, %v322
  %v467 = vpack.c.b16 %v332, %v323
  %v468 = vpack.c.b16 %v333, %v324
  %v469 = vpack.c.b16 %v334, %v325
  %v470 = vpack.c.b16 %v335, %v326
  %v471 = vpack.c.b16 %v336, %v327
  %v472 = vpack.c.b16 %v337, %v328
  %v473 = vpack.c.b16 %v338, %v329
  %v474 = vpack.c.b16 %v339, %v330
  %v475 = vpack.c.b16 %v349, %v340
  %v476 = vpack.c.b16 %v350, %v341
  %v477 = vpack.c.b16 %v351, %v342
  %v478 = vpack.c.b16 %v352, %v343
  %v479 = vpack.c.b16 %v353, %v344
  %v480 = vpack.c.b16 %v354, %v345
  %v481 = vpack.c.b16 %v355, %v346
  %v482 = vpack.c.b16 %v356, %v347
  %v483 = vpack.c.b16 %v357, %v348
  %v484 = vpack.c.b16 %v367, %v358
  %v485 = vpack.c.b16 %v368, %v359
  %v486 = vpack.c.b16 %v369, %v360
  %v487 = vpack.c.b16 %v370, %v361
  %v488 = vpack.c.b16 %v371, %v362
  %v489 = vpack.c.b16 %v372, %v363
  %v490 = vpack.c.b16 %v373, %v364
  %v491 = vpack.c.b16 %v374, %v365
  %v492 = vpack.c.b16 %v375, %v366
  %v493 = vpack.c.b16 %v385, %v376
  %v494 = vpack.c.b16 %v386, %v377
  %v495 = vpack.c.b16 %v387, %v378
  %v496 = vpack.c.b16 %v388, %v379
  %v497 = vpack.c.b16 %v389, %v380
  %v498 = vpack.c.b16 %v390, %v381
  %v499 = vpack.c.b16 %v391, %v382
  %v500 = vpack.c.b16 %v392, %v383
  %v501 = vpack.c.b16 %v393, %v384
  %v502 = vpack.c.b16 %v403, %v394
  %v503 = vpack.c.b16 %v404, %v395
  %v504 = vpack.c.b16 %v405, %v396
  %v505 = vpack.c.b16 %v406, %v397
  %v506 = vpack.c.b16 %v407, %v398
  %v507 = vpack.c.b16 %v408, %v399
  %v508 = vpack.c.b16 %v409, %v400
  %v509 = vpack.c.b16 %v410, %v401
  %v510 = vpack.c.b16 %v411, %v402
  %v511 = vpack.c.b16 %v421, %v412
  %v512 = vpack.c.b16 %v422, %v413
  %v513 = vpack.c.b16 %v423, %v414
  %v514 = vpack.c.b16 %v424, %v415
  %v515 = vpack.c.b16 %v425, %v416
  %v516 = vpack.c.b16 %v426, %v417
  %v517 = vpack.c.b16 %v427, %v418
  %v518 = vpack.c.b16 %v428, %v419
  %v519 = vpack.c.b16 %v429, %v420
  %v520 = vpack.c.b16 %v439, %v430
  %v521 = vpack.c.b16 %v440, %v431
  %v522 = vpack.c.b16 %v441, %v432
  %v523 = vpack.c.b16 %v442, %v433
  %v524 = vpack.c.b16 %v443, %v434
  %v525 = vpack.c.b16 %v444, %v435
  %v526 = vpack.c.b16 %v445, %v436
  %v527 = vpack.c.b16 %v446, %v437
  %v528 = vpack.c.b16 %v447, %v438
  %v529 = vpack.c.b16 %v457, %v448
  %v530 = vpack.c.b16 %v458, %v449
  %v531 = vpack.c.b16 %v459, %v450
  %v532 = vpack.c.b16 %v460, %v451
  %v533 = vpack.c.b16 %v461, %v452
  %v534 = vpack.c.b16 %v462, %v453
  %v535 = vpack.c.b16 %v463, %v454
  %v536 = vpack.c.b16 %v464, %v455
  %v537 = vpack.c.b16 %v465, %v456
  %v754 = vunpack.c.l.b16 %v98
  %v755 = vunpack.c.l.b16 %v99
  %v756 = vunpack.c.l.b16 %v100
  %v757 = vunpack.c.l.b16 %v101
  %v758 = vunpack.c.l.b16 %v102
  %v759 = vunpack.c.l.b16 %v103
  %v760 = vunpack.c.l.b16 %v104
  %v761 = vunpack.c.l.b16 %v105
  %v762 = vunpack.c.l.b16 %v106
  %v763 = vunpack.c.l.b16 %v107
  %v764 = vunpack.c.l.b16 %v108
  %v765 = vunpack.c.l.b16 %v109
  %v766 = vunpack.c.l.b16 %v110
  %v767 = vunpack.c.l.b16 %v111
  %v768 = vunpack.c.l.b16 %v112
  %v769 = vunpack.c.l.b16 %v113
  %v770 = vunpack.c.l.b16 %v114
  %v771 = vunpack.c.l.b16 %v115
  %v772 = vunpack.c.l.b16 %v116
  %v773 = vunpack.c.l.b16 %v117
  %v774 = vunpack.c.l.b16 %v118
  %v775 = vunpack.c.l.b16 %v119
  %v776 = vunpack.c.l.b16 %v120
  %v777 = vunpack.c.l.b16 %v121
  %v778 = vunpack.c.l.b16 %v122
  %v779 = vunpack.c.l.b16 %v123
  %v780 = vunpack.c.l.b16 %v124
  %v781 = vunpack.c.l.b16 %v125
  %v782 = vunpack.c.l.b16 %v126
  %v783 = vunpack.c.l.b16 %v127
  %v784 = vunpack.c.l.b16 %v128
  %v785 = vunpack.c.l.b16 %v129
  %v786 = vunpack.c.l.b16 %v130
  %v787 = vunpack.c.l.b16 %v131
  %v788 = vunpack.c.l.b16 %v132
  %v789 = vunpack.c.l.b16 %v133
  %v790 = vunpack.c.l.b16 %v134
  %v791 = vunpack.c.l.b16 %v135
  %v792 = vunpack.c.l.b16 %v136
  %v793 = vunpack.c.l.b16 %v137
  %v794 = vunpack.c.l.b16 %v138
  %v795 = vunpack.c.l.b16 %v139
  %v796 = vunpack.c.l.b16 %v140
  %v797 = vunpack.c.l.b16 %v141
  %v798 = vunpack.c.l.b16 %v142
  %v799 = vunpack.c.l.b16 %v143
  %v800 = vunpack.c.l.b16 %v144
  %v801 = vunpack.c.l.b16 %v145
  %v802 = vunpack.c.l.b16 %v146
  %v803 = vunpack.c.l.b16 %v147
  %v804 = vunpack.c.l.b16 %v148
  %v805 = vunpack.c.l.b16 %v149
  %v806 = vunpack.c.l.b16 %v150
  %v807 = vunpack.c.l.b16 %v151
  %v808 = vunpack.c.l.b16 %v152
  %v809 = vunpack.c.l.b16 %v153
  %v810 = vunpack.c.l.b16 %v154
  %v811 = vunpack.c.l.b16 %v155
  %v812 = vunpack.c.l.b16 %v156
  %v813 = vunpack.c.l.b16 %v157
  %v814 = vunpack.c.l.b16 %v158
  %v815 = vunpack.c.l.b16 %v159
  %v816 = vunpack.c.l.b16 %v160
  %v817 = vunpack.c.l.b16 %v161
  %v818 = vunpack.c.l.b16 %v162
  %v819 = vunpack.c.l.b16 %v163
  %v820 = vunpack.c.l.b16 %v164
  %v821 = vunpack.c.l.b16 %v165
  %v822 = vunpack.c.l.b16 %v166
  %v823 = vunpack.c.l.b16 %v167
  %v824 = vunpack.c.l.b16 %v168
  %v825 = vunpack.c.l.b16 %v169
  %v826 = vunpack.c.l.b16 %v170
  %v827 = vunpack.c.l.b16 %v171
  %v828 = vunpack.c.l.b16 %v172
  %v829 = vunpack.c.l.b16 %v173
  %v830 = vunpack.c.l.b16 %v174
  %v831 = vunpack.c.l.b16 %v175
  %v832 = vunpack.c.l.b16 %v176
  %v833 = vunpack.c.l.b16 %v177
  %v834 = vunpack.c.l.b16 %v178
  %v835 = vunpack.c.l.b16 %v179
  %v836 = vunpack.c.l.b16 %v180
  %v837 = vunpack.c.l.b16 %v181
  %v838 = vunpack.c.l.b16 %v182
  %v839 = vunpack.c.l.b16 %v183
  %v840 = vunpack.c.l.b16 %v184
  %v841 = vunpack.c.l.b16 %v185
  %v842 = vunpack.c.l.b16 %v186
  %v843 = vunpack.c.l.b16 %v187
  %v844 = vunpack.c.l.b16 %v188
  %v845 = vunpack.c.l.b16 %v189
  %v846 = vunpack.c.l.b16 %v190
  %v847 = vunpack.c.l.b16 %v191
  %v848 = vunpack.c.l.b16 %v192
  %v849 = vunpack.c.l.b16 %v193
  %v850 = vunpack.c.l.b16 %v194
  %v851 = vunpack.c.l.b16 %v195
  %v852 = vunpack.c.l.b16 %v196
  %v853 = vunpack.c.l.b16 %v197
  %v854 = vunpack.c.l.b16 %v198
  %v855 = vunpack.c.l.b16 %v199
  %v856 = vunpack.c.l.b16 %v200
  %v857 = vunpack.c.l.b16 %v201
  %v858 = vunpack.c.l.b16 %v202
  %v859 = vunpack.c.l.b16 %v203
  %v860 = vunpack.c.l.b16 %v204
  %v861 = vunpack.c.l.b16 %v205
  %v862 = vunpack.c.l.b16 %v206
  %v863 = vunpack.c.l.b16 %v207
  %v864 = vunpack.c.l.b16 %v208
  %v865 = vunpack.c.l.b16 %v209
  %v866 = vunpack.c.l.b16 %v210
  %v867 = vunpack.c.l.b16 %v211
  %v868 = vunpack.c.l.b16 %v212
  %v869 = vunpack.c.l.b16 %v213
  %v870 = vunpack.c.l.b16 %v214
  %v871 = vunpack.c.l.b16 %v215
  %v872 = vunpack.c.l.b16 %v216
  %v873 = vunpack.c.l.b16 %v217
  %v874 = vunpack.c.l.b16 %v218
  %v875 = vunpack.c.l.b16 %v219
  %v876 = vunpack.c.l.b16 %v220
  %v877 = vunpack.c.l.b16 %v221
  %v878 = vunpack.c.l.b16 %v222
  %v879 = vunpack.c.l.b16 %v223
  %v880 = vunpack.c.l.b16 %v224
  %v881 = vunpack.c.l.b16 %v225
  %v882 = vunpack.c.l.b16 %v226
  %v883 = vunpack.c.l.b16 %v227
  %v884 = vunpack.c.l.b16 %v228
  %v885 = vunpack.c.l.b16 %v229
  %v886 = vunpack.c.l.b16 %v230
  %v887 = vunpack.c.l.b16 %v231
  %v888 = vunpack.c.l.b16 %v232
  %v889 = vunpack.c.l.b16 %v233
  %v890 = vunpack.c.l.b16 %v234
  %v891 = vunpack.c.l.b16 %v235
  %v892 = vunpack.c.l.b16 %v236
  %v893 = vunpack.c.l.b16 %v237
  %v894 = vunpack.c.l.b16 %v238
  %v895 = vunpack.c.l.b16 %v239
  %v896 = vunpack.c.l.b16 %v240
  %v897 = vunpack.c.l.b16 %v241
  %v898 = vpack.c.b16 %v755, %v754
  %v899 = vpack.c.b16 %v757, %v756
  %v900 = vpack.c.b16 %v759, %v758
  %v901 = vpack.c.b16 %v761, %v760
  %v902 = vpack.c.b16 %v763, %v762
  %v903 = vpack.c.b16 %v765, %v764
  %v904 = vpack.c.b16 %v767, %v766
  %v905 = vpack.c.b16 %v769, %v768
  %v906 = vpack.c.b16 %v771, %v770
  %v907 = vpack.c.b16 %v773, %v772
  %v908 = vpack.c.b16 %v775, %v774
  %v909 = vpack.c.b16 %v777, %v776
  %v910 = vpack.c.b16 %v779, %v778
  %v911 = vpack.c.b16 %v781, %v780
  %v912 = vpack.c.b16 %v783, %v782
  %v913 = vpack.c.b16 %v785, %v784
  %v914 = vpack.c.b16 %v787, %v786
  %v915 = vpack.c.b16 %v789, %v788
  %v916 = vpack.c.b16 %v791, %v790
  %v917 = vpack.c.b16 %v793, %v792
  %v918 = vpack.c.b16 %v795, %v794
  %v919 = vpack.c.b16 %v797, %v796
  %v920 = vpack.c.b16 %v799, %v798
  %v921 = vpack.c.b16 %v801, %v800
  %v922 = vpack.c.b16 %v803, %v802
  %v923 = vpack.c.b16 %v805, %v804
  %v924 = vpack.c.b16 %v807, %v806
  %v925 = vpack.c.b16 %v809, %v808
  %v926 = vpack.c.b16 %v811, %v810
  %v927 = vpack.c.b16 %v813, %v812
  %v928 = vpack.c.b16 %v815, %v814
  %v929 = vpack.c.b16 %v817, %v816
  %v930 = vpack.c.b16 %v819, %v818
  %v931 = vpack.c.b16 %v821, %v820
  %v932 = vpack.c.b16 %v823, %v822
  %v933 = vpack.c.b16 %v825, %v824
  %v934 = vpack.c.b16 %v827, %v826
  %v935 = vpack.c.b16 %v829, %v828
  %v936 = vpack.c.b16 %v831, %v830
  %v937 = vpack.c.b16 %v833, %v832
  %v938 = vpack.c.b16 %v835, %v834
  %v939 = vpack.c.b16 %v837, %v836
  %v940 = vpack.c.b16 %v839, %v838
  %v941 = vpack.c.b16 %v841, %v840
  %v942 = vpack.c.b16 %v843, %v842
  %v943 = vpack.c.b16 %v845, %v844
  %v944 = vpack.c.b16 %v847, %v846
  %v945 = vpack.c.b16 %v849, %v848
  %v946 = vpack.c.b16 %v851, %v850
  %v947 = vpack.c.b16 %v853, %v852
  %v948 = vpack.c.b16 %v855, %v854
  %v949 = vpack.c.b16 %v857, %v856
  %v950 = vpack.c.b16 %v859, %v858
  %v951 = vpack.c.b16 %v861, %v860
  %v952 = vpack.c.b16 %v863, %v862
  %v953 = vpack.c.b16 %v865, %v864
  %v954 = vpack.c.b16 %v867, %v866
  %v955 = vpack.c.b16 %v869, %v868
  %v956 = vpack.c.b16 %v871, %v870
  %v957 = vpack.c.b16 %v873, %v872
  %v958 = vpack.c.b16 %v875, %v874
  %v959 = vpack.c.b16 %v877, %v876
  %v960 = vpack.c.b16 %v879, %v878
  %v961 = vpack.c.b16 %v881, %v880
  %v962 = vpack.c.b16 %v883, %v882
  %v963 = vpack.c.b16 %v885, %v884
  %v964 = vpack.c.b16 %v887, %v886
  %v965 = vpack.c.b16 %v889, %v888
  %v966 = vpack.c.b16 %v891, %v890
  %v967 = vpack.c.b16 %v893, %v892
  %v968 = vpack.c.b16 %v895, %v894
  %v969 = vpack.c.b16 %v897, %v896
  %1042 = vmatprep.subr.bf16.mxu0 0
  %1043 = vmatpush1.bf16.msra.mxu0 %v898
  %1044 = vmatprep.subr.bf16.mxu0 0
  %1045 = vmatpush1.bf16.msra.mxu0 %v899
  %1046 = vmatprep.subr.bf16.mxu0 0
  %1047 = vmatpush1.bf16.msra.mxu0 %v900
  %1048 = vmatprep.subr.bf16.mxu0 0
  %1049 = vmatpush1.bf16.msra.mxu0 %v901
  %1050 = vmatprep.subr.bf16.mxu0 0
  %1051 = vmatpush1.bf16.msra.mxu0 %v902
  %1052 = vmatprep.subr.bf16.mxu0 0
  %1053 = vmatpush1.bf16.msra.mxu0 %v903
  %1054 = vmatprep.subr.bf16.mxu0 0
  %1055 = vmatpush1.bf16.msra.mxu0 %v904
  %1056 = vmatprep.subr.bf16.mxu0 0
  %1057 = vmatpush1.bf16.msra.mxu0 %v905
  %1058 = vmatprep.subr.bf16.mxu0 0
  %1059 = vmatpush1.bf16.msra.mxu0 %v906
  %1060 = vmatprep.subr.bf16.mxu0 0
  %1061 = vmatpush1.bf16.msra.mxu0 %v907
  %1062 = vmatprep.subr.bf16.mxu0 0
  %1063 = vmatpush1.bf16.msra.mxu0 %v908
  %1064 = vmatprep.subr.bf16.mxu0 0
  %1065 = vmatpush1.bf16.msra.mxu0 %v909
  %1066 = vmatprep.subr.bf16.mxu0 0
  %1067 = vmatpush1.bf16.msra.mxu0 %v910
  %1068 = vmatprep.subr.bf16.mxu0 0
  %1069 = vmatpush1.bf16.msra.mxu0 %v911
  %1070 = vmatprep.subr.bf16.mxu0 0
  %1071 = vmatpush1.bf16.msra.mxu0 %v912
  %1072 = vmatprep.subr.bf16.mxu0 0
  %1073 = vmatpush1.bf16.msra.mxu0 %v913
  %1074 = vmatprep.mubr.bf16.mxu0 %v467
  %1075 = vmatmul.mubr.bf16.gmra.mrb[0].mxu0 %v466
  %v1076 = vpop.f32.mrb[0].mxu0
  %v1077 = vadd.f32 0.0, %v1076
  %v1078 = vpop.f32.mrb[0].mxu0
  %v1079 = vpop.f32.mrb[0].mxu0
  %v1080 = vadd.f32 0.0, %v1079
  %v1081 = vpop.f32.mrb[0].mxu0
  %1082 = vmatprep.mubr.bf16.mxu0 %v476
  %1083 = vmatmul.mubr.bf16.gmra.mrb[0].mxu0 %v475
  %v1084 = vpop.f32.mrb[0].mxu0
  %v1085 = vadd.f32 0.0, %v1084
  %v1086 = vpop.f32.mrb[0].mxu0
  %v1087 = vpop.f32.mrb[0].mxu0
  %v1088 = vadd.f32 0.0, %v1087
  %v1089 = vpop.f32.mrb[0].mxu0
  %1090 = vmatprep.mubr.bf16.mxu0 %v485
  %1091 = vmatmul.mubr.bf16.gmra.mrb[0].mxu0 %v484
  %v1092 = vpop.f32.mrb[0].mxu0
  %v1093 = vadd.f32 0.0, %v1092
  %v1094 = vpop.f32.mrb[0].mxu0
  %v1095 = vpop.f32.mrb[0].mxu0
  %v1096 = vadd.f32 0.0, %v1095
  %v1097 = vpop.f32.mrb[0].mxu0
  %1098 = vmatprep.mubr.bf16.mxu0 %v494
  %1099 = vmatmul.mubr.bf16.gmra.mrb[0].mxu0 %v493
  %v1100 = vpop.f32.mrb[0].mxu0
  %v1101 = vadd.f32 0.0, %v1100
  %v1102 = vpop.f32.mrb[0].mxu0
  %v1103 = vpop.f32.mrb[0].mxu0
  %v1104 = vadd.f32 0.0, %v1103
  %v1105 = vpop.f32.mrb[0].mxu0
  %1106 = vmatprep.mubr.bf16.mxu0 %v503
  %1107 = vmatmul.mubr.bf16.gmra.mrb[0].mxu0 %v502
  %v1108 = vpop.f32.mrb[0].mxu0
  %v1109 = vadd.f32 0.0, %v1108
  %v1110 = vpop.f32.mrb[0].mxu0
  %v1111 = vpop.f32.mrb[0].mxu0
  %v1112 = vadd.f32 0.0, %v1111
  %v1113 = vpop.f32.mrb[0].mxu0
  %1114 = vmatprep.mubr.bf16.mxu0 %v512
  %1115 = vmatmul.mubr.bf16.gmra.mrb[0].mxu0 %v511
  %v1116 = vpop.f32.mrb[0].mxu0
  %v1117 = vadd.f32 0.0, %v1116
  %v1118 = vpop.f32.mrb[0].mxu0
  %v1119 = vpop.f32.mrb[0].mxu0
  %v1120 = vadd.f32 0.0, %v1119
  %v1121 = vpop.f32.mrb[0].mxu0
  %1122 = vmatprep.mubr.bf16.mxu0 %v521
  %1123 = vmatmul.mubr.bf16.gmra.mrb[0].mxu0 %v520
  %v1124 = vpop.f32.mrb[0].mxu0
  %v1125 = vadd.f32 0.0, %v1124
  %v1126 = vpop.f32.mrb[0].mxu0
  %v1127 = vpop.f32.mrb[0].mxu0
  %v1128 = vadd.f32 0.0, %v1127
  %v1129 = vpop.f32.mrb[0].mxu0
  %1130 = vmatprep.mubr.bf16.mxu0 %v530
  %1131 = vmatmul.mubr.bf16.gmra.mrb[0].mxu0 %v529
  %v1132 = vpop.f32.mrb[0].mxu0
  %v1133 = vadd.f32 0.0, %v1132
  %v1134 = vpop.f32.mrb[0].mxu0
  %v1135 = vpop.f32.mrb[0].mxu0
  %v1136 = vadd.f32 0.0, %v1135
  %v1137 = vpop.f32.mrb[0].mxu0
  %1138 = vdwg.mxu0
  %1139 = vmatprep.subr.bf16.mxu0 0
  %1140 = vmatpush1.bf16.msra.mxu0 %v914
  %1141 = vmatprep.subr.bf16.mxu0 0
  %1142 = vmatpush1.bf16.msra.mxu0 %v915
  %1143 = vmatprep.subr.bf16.mxu0 0
  %1144 = vmatpush1.bf16.msra.mxu0 %v916
  %1145 = vmatprep.subr.bf16.mxu0 0
  %1146 = vmatpush1.bf16.msra.mxu0 %v917
  %1147 = vmatprep.subr.bf16.mxu0 0
  %1148 = vmatpush1.bf16.msra.mxu0 %v918
  %1149 = vmatprep.subr.bf16.mxu0 0
  %1150 = vmatpush1.bf16.msra.mxu0 %v919
  %1151 = vmatprep.subr.bf16.mxu0 0
  %1152 = vmatpush1.bf16.msra.mxu0 %v920
  %1153 = vmatprep.subr.bf16.mxu0 0
  %1154 = vmatpush1.bf16.msra.mxu0 %v921
  %1155 = vmatprep.subr.bf16.mxu0 0
  %1156 = vmatpush1.bf16.msra.mxu0 %v922
  %1157 = vmatprep.subr.bf16.mxu0 0
  %1158 = vmatpush1.bf16.msra.mxu0 %v923
  %1159 = vmatprep.subr.bf16.mxu0 0
  %1160 = vmatpush1.bf16.msra.mxu0 %v924
  %1161 = vmatprep.subr.bf16.mxu0 0
  %1162 = vmatpush1.bf16.msra.mxu0 %v925
  %1163 = vmatprep.subr.bf16.mxu0 0
  %1164 = vmatpush1.bf16.msra.mxu0 %v926
  %1165 = vmatprep.subr.bf16.mxu0 0
  %1166 = vmatpush1.bf16.msra.mxu0 %v927
  %1167 = vmatprep.subr.bf16.mxu0 0
  %1168 = vmatpush1.bf16.msra.mxu0 %v928
  %1169 = vmatprep.subr.bf16.mxu0 0
  %1170 = vmatpush1.bf16.msra.mxu0 %v929
  %1171 = vmatprep.mubr.bf16.mxu0 %v469
  %1172 = vmatmul.mubr.bf16.gmra.mrb[0].mxu0 %v468
  %v1173 = vpop.f32.mrb[0].mxu0
  %v1174 = vadd.f32 %v1077, %v1173
  %v1175 = vpop.f32.mrb[0].mxu0
  %v1176 = vpop.f32.mrb[0].mxu0
  %v1177 = vadd.f32 %v1080, %v1176
  %v1178 = vpop.f32.mrb[0].mxu0
  %1179 = vmatprep.mubr.bf16.mxu0 %v478
  %1180 = vmatmul.mubr.bf16.gmra.mrb[0].mxu0 %v477
  %v1181 = vpop.f32.mrb[0].mxu0
  %v1182 = vadd.f32 %v1085, %v1181
  %v1183 = vpop.f32.mrb[0].mxu0
  %v1184 = vpop.f32.mrb[0].mxu0
  %v1185 = vadd.f32 %v1088, %v1184
  %v1186 = vpop.f32.mrb[0].mxu0
  %1187 = vmatprep.mubr.bf16.mxu0 %v487
  %1188 = vmatmul.mubr.bf16.gmra.mrb[0].mxu0 %v486
  %v1189 = vpop.f32.mrb[0].mxu0
  %v1190 = vadd.f32 %v1093, %v1189
  %v1191 = vpop.f32.mrb[0].mxu0
  %v1192 = vpop.f32.mrb[0].mxu0
  %v1193 = vadd.f32 %v1096, %v1192
  %v1194 = vpop.f32.mrb[0].mxu0
  %1195 = vmatprep.mubr.bf16.mxu0 %v496
  %1196 = vmatmul.mubr.bf16.gmra.mrb[0].mxu0 %v495
  %v1197 = vpop.f32.mrb[0].mxu0
  %v1198 = vadd.f32 %v1101, %v1197
  %v1199 = vpop.f32.mrb[0].mxu0
  %v1200 = vpop.f32.mrb[0].mxu0
  %v1201 = vadd.f32 %v1104, %v1200
  %v1202 = vpop.f32.mrb[0].mxu0
  %1203 = vmatprep.mubr.bf16.mxu0 %v505
  %1204 = vmatmul.mubr.bf16.gmra.mrb[0].mxu0 %v504
  %v1205 = vpop.f32.mrb[0].mxu0
  %v1206 = vadd.f32 %v1109, %v1205
  %v1207 = vpop.f32.mrb[0].mxu0
  %v1208 = vpop.f32.mrb[0].mxu0
  %v1209 = vadd.f32 %v1112, %v1208
  %v1210 = vpop.f32.mrb[0].mxu0
  %1211 = vmatprep.mubr.bf16.mxu0 %v514
  %1212 = vmatmul.mubr.bf16.gmra.mrb[0].mxu0 %v513
  %v1213 = vpop.f32.mrb[0].mxu0
  %v1214 = vadd.f32 %v1117, %v1213
  %v1215 = vpop.f32.mrb[0].mxu0
  %v1216 = vpop.f32.mrb[0].mxu0
  %v1217 = vadd.f32 %v1120, %v1216
  %v1218 = vpop.f32.mrb[0].mxu0
  %1219 = vmatprep.mubr.bf16.mxu0 %v523
  %1220 = vmatmul.mubr.bf16.gmra.mrb[0].mxu0 %v522
  %v1221 = vpop.f32.mrb[0].mxu0
  %v1222 = vadd.f32 %v1125, %v1221
  %v1223 = vpop.f32.mrb[0].mxu0
  %v1224 = vpop.f32.mrb[0].mxu0
  %v1225 = vadd.f32 %v1128, %v1224
  %v1226 = vpop.f32.mrb[0].mxu0
  %1227 = vmatprep.mubr.bf16.mxu0 %v532
  %1228 = vmatmul.mubr.bf16.gmra.mrb[0].mxu0 %v531
  %v1229 = vpop.f32.mrb[0].mxu0
  %v1230 = vadd.f32 %v1133, %v1229
  %v1231 = vpop.f32.mrb[0].mxu0
  %v1232 = vpop.f32.mrb[0].mxu0
  %v1233 = vadd.f32 %v1136, %v1232
  %v1234 = vpop.f32.mrb[0].mxu0
  %1235 = vdwg.mxu0
  %1236 = vmatprep.subr.bf16.mxu0 0
  %1237 = vmatpush1.bf16.msra.mxu0 %v930
  %1238 = vmatprep.subr.bf16.mxu0 0
  %1239 = vmatpush1.bf16.msra.mxu0 %v931
  %1240 = vmatprep.subr.bf16.mxu0 0
  %1241 = vmatpush1.bf16.msra.mxu0 %v932
  %1242 = vmatprep.subr.bf16.mxu0 0
  %1243 = vmatpush1.bf16.msra.mxu0 %v933
  %1244 = vmatprep.subr.bf16.mxu0 0
  %1245 = vmatpush1.bf16.msra.mxu0 %v934
  %1246 = vmatprep.subr.bf16.mxu0 0
  %1247 = vmatpush1.bf16.msra.mxu0 %v935
  %1248 = vmatprep.subr.bf16.mxu0 0
  %1249 = vmatpush1.bf16.msra.mxu0 %v936
  %1250 = vmatprep.subr.bf16.mxu0 0
  %1251 = vmatpush1.bf16.msra.mxu0 %v937
  %1252 = vmatprep.subr.bf16.mxu0 0
  %1253 = vmatpush1.bf16.msra.mxu0 %v938
  %1254 = vmatprep.subr.bf16.mxu0 0
  %1255 = vmatpush1.bf16.msra.mxu0 %v939
  %1256 = vmatprep.subr.bf16.mxu0 0
  %1257 = vmatpush1.bf16.msra.mxu0 %v940
  %1258 = vmatprep.subr.bf16.mxu0 0
  %1259 = vmatpush1.bf16.msra.mxu0 %v941
  %1260 = vmatprep.subr.bf16.mxu0 0
  %1261 = vmatpush1.bf16.msra.mxu0 %v942
  %1262 = vmatprep.subr.bf16.mxu0 0
  %1263 = vmatpush1.bf16.msra.mxu0 %v943
  %1264 = vmatprep.subr.bf16.mxu0 0
  %1265 = vmatpush1.bf16.msra.mxu0 %v944
  %1266 = vmatprep.subr.bf16.mxu0 0
  %1267 = vmatpush1.bf16.msra.mxu0 %v945
  %1268 = vmatprep.mubr.bf16.mxu0 %v471
  %1269 = vmatmul.mubr.bf16.gmra.mrb[0].mxu0 %v470
  %v1270 = vpop.f32.mrb[0].mxu0
  %v1271 = vadd.f32 %v1174, %v1270
  %v1272 = vpop.f32.mrb[0].mxu0
  %v1273 = vpop.f32.mrb[0].mxu0
  %v1274 = vadd.f32 %v1177, %v1273
  %v1275 = vpop.f32.mrb[0].mxu0
  %1276 = vmatprep.mubr.bf16.mxu0 %v480
  %1277 = vmatmul.mubr.bf16.gmra.mrb[0].mxu0 %v479
  %v1278 = vpop.f32.mrb[0].mxu0
  %v1279 = vadd.f32 %v1182, %v1278
  %v1280 = vpop.f32.mrb[0].mxu0
  %v1281 = vpop.f32.mrb[0].mxu0
  %v1282 = vadd.f32 %v1185, %v1281
  %v1283 = vpop.f32.mrb[0].mxu0
  %1284 = vmatprep.mubr.bf16.mxu0 %v489
  %1285 = vmatmul.mubr.bf16.gmra.mrb[0].mxu0 %v488
  %v1286 = vpop.f32.mrb[0].mxu0
  %v1287 = vadd.f32 %v1190, %v1286
  %v1288 = vpop.f32.mrb[0].mxu0
  %v1289 = vpop.f32.mrb[0].mxu0
  %v1290 = vadd.f32 %v1193, %v1289
  %v1291 = vpop.f32.mrb[0].mxu0
  %1292 = vmatprep.mubr.bf16.mxu0 %v498
  %1293 = vmatmul.mubr.bf16.gmra.mrb[0].mxu0 %v497
  %v1294 = vpop.f32.mrb[0].mxu0
  %v1295 = vadd.f32 %v1198, %v1294
  %v1296 = vpop.f32.mrb[0].mxu0
  %v1297 = vpop.f32.mrb[0].mxu0
  %v1298 = vadd.f32 %v1201, %v1297
  %v1299 = vpop.f32.mrb[0].mxu0
  %1300 = vmatprep.mubr.bf16.mxu0 %v507
  %1301 = vmatmul.mubr.bf16.gmra.mrb[0].mxu0 %v506
  %v1302 = vpop.f32.mrb[0].mxu0
  %v1303 = vadd.f32 %v1206, %v1302
  %v1304 = vpop.f32.mrb[0].mxu0
  %v1305 = vpop.f32.mrb[0].mxu0
  %v1306 = vadd.f32 %v1209, %v1305
  %v1307 = vpop.f32.mrb[0].mxu0
  %1308 = vmatprep.mubr.bf16.mxu0 %v516
  %1309 = vmatmul.mubr.bf16.gmra.mrb[0].mxu0 %v515
  %v1310 = vpop.f32.mrb[0].mxu0
  %v1311 = vadd.f32 %v1214, %v1310
  %v1312 = vpop.f32.mrb[0].mxu0
  %v1313 = vpop.f32.mrb[0].mxu0
  %v1314 = vadd.f32 %v1217, %v1313
  %v1315 = vpop.f32.mrb[0].mxu0
  %1316 = vmatprep.mubr.bf16.mxu0 %v525
  %1317 = vmatmul.mubr.bf16.gmra.mrb[0].mxu0 %v524
  %v1318 = vpop.f32.mrb[0].mxu0
  %v1319 = vadd.f32 %v1222, %v1318
  %v1320 = vpop.f32.mrb[0].mxu0
  %v1321 = vpop.f32.mrb[0].mxu0
  %v1322 = vadd.f32 %v1225, %v1321
  %v1323 = vpop.f32.mrb[0].mxu0
  %1324 = vmatprep.mubr.bf16.mxu0 %v534
  %1325 = vmatmul.mubr.bf16.gmra.mrb[0].mxu0 %v533
  %v1326 = vpop.f32.mrb[0].mxu0
  %v1327 = vadd.f32 %v1230, %v1326
  %v1328 = vpop.f32.mrb[0].mxu0
  %v1329 = vpop.f32.mrb[0].mxu0
  %v1330 = vadd.f32 %v1233, %v1329
  %v1331 = vpop.f32.mrb[0].mxu0
  %1332 = vdwg.mxu0
  %1333 = vmatprep.subr.bf16.mxu0 0
  %1334 = vmatpush1.bf16.msra.mxu0 %v946
  %1335 = vmatprep.subr.bf16.mxu0 0
  %1336 = vmatpush1.bf16.msra.mxu0 %v947
  %1337 = vmatprep.subr.bf16.mxu0 0
  %1338 = vmatpush1.bf16.msra.mxu0 %v948
  %1339 = vmatprep.subr.bf16.mxu0 0
  %1340 = vmatpush1.bf16.msra.mxu0 %v949
  %1341 = vmatprep.subr.bf16.mxu0 0
  %1342 = vmatpush1.bf16.msra.mxu0 %v950
  %1343 = vmatprep.subr.bf16.mxu0 0
  %1344 = vmatpush1.bf16.msra.mxu0 %v951
  %1345 = vmatprep.subr.bf16.mxu0 0
  %1346 = vmatpush1.bf16.msra.mxu0 %v952
  %1347 = vmatprep.subr.bf16.mxu0 0
  %1348 = vmatpush1.bf16.msra.mxu0 %v953
  %1349 = vmatprep.subr.bf16.mxu0 0
  %1350 = vmatpush1.bf16.msra.mxu0 %v954
  %1351 = vmatprep.subr.bf16.mxu0 0
  %1352 = vmatpush1.bf16.msra.mxu0 %v955
  %1353 = vmatprep.subr.bf16.mxu0 0
  %1354 = vmatpush1.bf16.msra.mxu0 %v956
  %1355 = vmatprep.subr.bf16.mxu0 0
  %1356 = vmatpush1.bf16.msra.mxu0 %v957
  %1357 = vmatprep.subr.bf16.mxu0 0
  %1358 = vmatpush1.bf16.msra.mxu0 %v958
  %1359 = vmatprep.subr.bf16.mxu0 0
  %1360 = vmatpush1.bf16.msra.mxu0 %v959
  %1361 = vmatprep.subr.bf16.mxu0 0
  %1362 = vmatpush1.bf16.msra.mxu0 %v960
  %1363 = vmatprep.subr.bf16.mxu0 0
  %1364 = vmatpush1.bf16.msra.mxu0 %v961
  %1365 = vmatprep.mubr.bf16.mxu0 %v473
  %1366 = vmatmul.mubr.bf16.gmra.mrb[0].mxu0 %v472
  %v1367 = vpop.f32.mrb[0].mxu0
  %v1368 = vadd.f32 %v1271, %v1367
  %v1369 = vpop.f32.mrb[0].mxu0
  %v1370 = vpop.f32.mrb[0].mxu0
  %v1371 = vadd.f32 %v1274, %v1370
  %v1372 = vpop.f32.mrb[0].mxu0
  %1373 = vmatprep.mubr.bf16.mxu0 %v482
  %1374 = vmatmul.mubr.bf16.gmra.mrb[0].mxu0 %v481
  %v1375 = vpop.f32.mrb[0].mxu0
  %v1376 = vadd.f32 %v1279, %v1375
  %v1377 = vpop.f32.mrb[0].mxu0
  %v1378 = vpop.f32.mrb[0].mxu0
  %v1379 = vadd.f32 %v1282, %v1378
  %v1380 = vpop.f32.mrb[0].mxu0
  %1381 = vmatprep.mubr.bf16.mxu0 %v491
  %1382 = vmatmul.mubr.bf16.gmra.mrb[0].mxu0 %v490
  %v1383 = vpop.f32.mrb[0].mxu0
  %v1384 = vadd.f32 %v1287, %v1383
  %v1385 = vpop.f32.mrb[0].mxu0
  %v1386 = vpop.f32.mrb[0].mxu0
  %v1387 = vadd.f32 %v1290, %v1386
  %v1388 = vpop.f32.mrb[0].mxu0
  %1389 = vmatprep.mubr.bf16.mxu0 %v500
  %1390 = vmatmul.mubr.bf16.gmra.mrb[0].mxu0 %v499
  %v1391 = vpop.f32.mrb[0].mxu0
  %v1392 = vadd.f32 %v1295, %v1391
  %v1393 = vpop.f32.mrb[0].mxu0
  %v1394 = vpop.f32.mrb[0].mxu0
  %v1395 = vadd.f32 %v1298, %v1394
  %v1396 = vpop.f32.mrb[0].mxu0
  %1397 = vmatprep.mubr.bf16.mxu0 %v509
  %1398 = vmatmul.mubr.bf16.gmra.mrb[0].mxu0 %v508
  %v1399 = vpop.f32.mrb[0].mxu0
  %v1400 = vadd.f32 %v1303, %v1399
  %v1401 = vpop.f32.mrb[0].mxu0
  %v1402 = vpop.f32.mrb[0].mxu0
  %v1403 = vadd.f32 %v1306, %v1402
  %v1404 = vpop.f32.mrb[0].mxu0
  %1405 = vmatprep.mubr.bf16.mxu0 %v518
  %1406 = vmatmul.mubr.bf16.gmra.mrb[0].mxu0 %v517
  %v1407 = vpop.f32.mrb[0].mxu0
  %v1408 = vadd.f32 %v1311, %v1407
  %v1409 = vpop.f32.mrb[0].mxu0
  %v1410 = vpop.f32.mrb[0].mxu0
  %v1411 = vadd.f32 %v1314, %v1410
  %v1412 = vpop.f32.mrb[0].mxu0
  %1413 = vmatprep.mubr.bf16.mxu0 %v527
  %1414 = vmatmul.mubr.bf16.gmra.mrb[0].mxu0 %v526
  %v1415 = vpop.f32.mrb[0].mxu0
  %v1416 = vadd.f32 %v1319, %v1415
  %v1417 = vpop.f32.mrb[0].mxu0
  %v1418 = vpop.f32.mrb[0].mxu0
  %v1419 = vadd.f32 %v1322, %v1418
  %v1420 = vpop.f32.mrb[0].mxu0
  %1421 = vmatprep.mubr.bf16.mxu0 %v536
  %1422 = vmatmul.mubr.bf16.gmra.mrb[0].mxu0 %v535
  %v1423 = vpop.f32.mrb[0].mxu0
  %v1424 = vadd.f32 %v1327, %v1423
  %v1425 = vpop.f32.mrb[0].mxu0
  %v1426 = vpop.f32.mrb[0].mxu0
  %v1427 = vadd.f32 %v1330, %v1426
  %v1428 = vpop.f32.mrb[0].mxu0
  %1429 = vdwg.mxu0
  %1430 = vmatprep.subr.bf16.mxu0 0
  %1431 = vmatpush1.bf16.msra.mxu0 %v962
  %1432 = vmatprep.subr.bf16.mxu0 0
  %1433 = vmatpush1.bf16.msra.mxu0 %v963
  %1434 = vmatprep.subr.bf16.mxu0 0
  %1435 = vmatpush1.bf16.msra.mxu0 %v964
  %1436 = vmatprep.subr.bf16.mxu0 0
  %1437 = vmatpush1.bf16.msra.mxu0 %v965
  %1438 = vmatprep.subr.bf16.mxu0 0
  %1439 = vmatpush1.bf16.msra.mxu0 %v966
  %1440 = vmatprep.subr.bf16.mxu0 0
  %1441 = vmatpush1.bf16.msra.mxu0 %v967
  %1442 = vmatprep.subr.bf16.mxu0 0
  %1443 = vmatpush1.bf16.msra.mxu0 %v968
  %1444 = vmatprep.subr.bf16.mxu0 0
  %1445 = vmatpush1.bf16.msra.mxu0 %v969
  %1446 = vmatprep.subr.bf16.mxu0 0
  %1447 = vmatpush1.bf16.msra.mxu0 0
  %1448 = vmatprep.subr.bf16.mxu0 0
  %1449 = vmatpush1.bf16.msra.mxu0 0
  %1450 = vmatprep.subr.bf16.mxu0 0
  %1451 = vmatpush1.bf16.msra.mxu0 0
  %1452 = vmatprep.subr.bf16.mxu0 0
  %1453 = vmatpush1.bf16.msra.mxu0 0
  %1454 = vmatprep.subr.bf16.mxu0 0
  %1455 = vmatpush1.bf16.msra.mxu0 0
  %1456 = vmatprep.subr.bf16.mxu0 0
  %1457 = vmatpush1.bf16.msra.mxu0 0
  %1458 = vmatprep.subr.bf16.mxu0 0
  %1459 = vmatpush1.bf16.msra.mxu0 0
  %1460 = vmatprep.subr.bf16.mxu0 0
  %1461 = vmatpush1.bf16.msra.mxu0 0
  %1462 = vmatprep.mubr.bf16.mxu0 0
  %1463 = vmatmul.mubr.bf16.gmra.mrb[0].mxu0 %v474
  %v1464 = vpop.f32.mrb[0].mxu0
  %v1465 = vadd.f32 %v1368, %v1464
  %v1466 = vpop.f32.mrb[0].mxu0
  %v1467 = vpop.f32.mrb[0].mxu0
  %v1468 = vadd.f32 %v1371, %v1467
  %v1469 = vpop.f32.mrb[0].mxu0
  %1470 = vmatprep.mubr.bf16.mxu0 0
  %1471 = vmatmul.mubr.bf16.gmra.mrb[0].mxu0 %v483
  %v1472 = vpop.f32.mrb[0].mxu0
  %v1473 = vadd.f32 %v1376, %v1472
  %v1474 = vpop.f32.mrb[0].mxu0
  %v1475 = vpop.f32.mrb[0].mxu0
  %v1476 = vadd.f32 %v1379, %v1475
  %v1477 = vpop.f32.mrb[0].mxu0
  %1478 = vmatprep.mubr.bf16.mxu0 0
  %1479 = vmatmul.mubr.bf16.gmra.mrb[0].mxu0 %v492
  %v1480 = vpop.f32.mrb[0].mxu0
  %v1481 = vadd.f32 %v1384, %v1480
  %v1482 = vpop.f32.mrb[0].mxu0
  %v1483 = vpop.f32.mrb[0].mxu0
  %v1484 = vadd.f32 %v1387, %v1483
  %v1485 = vpop.f32.mrb[0].mxu0
  %1486 = vmatprep.mubr.bf16.mxu0 0
  %1487 = vmatmul.mubr.bf16.gmra.mrb[0].mxu0 %v501
  %v1488 = vpop.f32.mrb[0].mxu0
  %v1489 = vadd.f32 %v1392, %v1488
  %v1490 = vpop.f32.mrb[0].mxu0
  %v1491 = vpop.f32.mrb[0].mxu0
  %v1492 = vadd.f32 %v1395, %v1491
  %v1493 = vpop.f32.mrb[0].mxu0
  %1494 = vmatprep.mubr.bf16.mxu0 0
  %1495 = vmatmul.mubr.bf16.gmra.mrb[0].mxu0 %v510
  %v1496 = vpop.f32.mrb[0].mxu0
  %v1497 = vadd.f32 %v1400, %v1496
  %v1498 = vpop.f32.mrb[0].mxu0
  %v1499 = vpop.f32.mrb[0].mxu0
  %v1500 = vadd.f32 %v1403, %v1499
  %v1501 = vpop.f32.mrb[0].mxu0
  %1502 = vmatprep.mubr.bf16.mxu0 0
  %1503 = vmatmul.mubr.bf16.gmra.mrb[0].mxu0 %v519
  %v1504 = vpop.f32.mrb[0].mxu0
  %v1505 = vadd.f32 %v1408, %v1504
  %v1506 = vpop.f32.mrb[0].mxu0
  %v1507 = vpop.f32.mrb[0].mxu0
  %v1508 = vadd.f32 %v1411, %v1507
  %v1509 = vpop.f32.mrb[0].mxu0
  %1510 = vmatprep.mubr.bf16.mxu0 0
  %1511 = vmatmul.mubr.bf16.gmra.mrb[0].mxu0 %v528
  %v1512 = vpop.f32.mrb[0].mxu0
  %v1513 = vadd.f32 %v1416, %v1512
  %v1514 = vpop.f32.mrb[0].mxu0
  %v1515 = vpop.f32.mrb[0].mxu0
  %v1516 = vadd.f32 %v1419, %v1515
  %v1517 = vpop.f32.mrb[0].mxu0
  %1518 = vmatprep.mubr.bf16.mxu0 0
  %1519 = vmatmul.mubr.bf16.gmra.mrb[0].mxu0 %v537
  %v1520 = vpop.f32.mrb[0].mxu0
  %v1521 = vadd.f32 %v1424, %v1520
  %v1522 = vpop.f32.mrb[0].mxu0
  %v1523 = vpop.f32.mrb[0].mxu0
  %v1524 = vadd.f32 %v1427, %v1523
  %v1525 = vpop.f32.mrb[0].mxu0
  %1526 = vdwg.mxu0
  %v1527 = vld [vmem:[%s2] sm:$0x1]
  %v1529 = vlaneseq
  %v1530 = vshrl.u32 %v1529, 7
  %v1531 = vsub.s32 0, %v1530
  %v1532 = vrot.slane %v1527, %v1531
  %v1534 = vmul.f32 %v1465, %v1532
  %v1535 = vmul.f32 %v1468, %v1532
  %v1536 = vmul.f32 %v1473, %v1532
  %v1537 = vmul.f32 %v1476, %v1532
  %v1538 = vmul.f32 %v1481, %v1532
  %v1539 = vmul.f32 %v1484, %v1532
  %v1540 = vmul.f32 %v1489, %v1532
  %v1541 = vmul.f32 %v1492, %v1532
  %v1542 = vmul.f32 %v1497, %v1532
  %v1543 = vmul.f32 %v1500, %v1532
  %v1544 = vmul.f32 %v1505, %v1532
  %v1545 = vmul.f32 %v1508, %v1532
  %v1546 = vmul.f32 %v1513, %v1532
  %v1547 = vmul.f32 %v1516, %v1532
  %v1548 = vmul.f32 %v1521, %v1532
  %v1549 = vmul.f32 %v1524, %v1532
  %v1550 = vld [vmem:[%s3] sm:$0x1]
  %v1552 = vlaneseq
  %v1553 = vshrl.u32 %v1552, 7
  %v1554 = vsub.s32 0, %v1553
  %v1555 = vrot.slane %v1550, %v1554
  %v1557 = vadd.f32 %v1534, %v1555
  %v1558 = vadd.f32 %v1535, %v1555
  %v1559 = vadd.f32 %v1536, %v1555
  %v1560 = vadd.f32 %v1537, %v1555
  %v1561 = vadd.f32 %v1538, %v1555
  %v1562 = vadd.f32 %v1539, %v1555
  %v1563 = vadd.f32 %v1540, %v1555
  %v1564 = vadd.f32 %v1541, %v1555
  %v1565 = vadd.f32 %v1542, %v1555
  %v1566 = vadd.f32 %v1543, %v1555
  %v1567 = vadd.f32 %v1544, %v1555
  %v1568 = vadd.f32 %v1545, %v1555
  %v1569 = vadd.f32 %v1546, %v1555
  %v1570 = vadd.f32 %v1547, %v1555
  %v1571 = vadd.f32 %v1548, %v1555
  %v1572 = vadd.f32 %v1549, %v1555
  %v1573 = vmax.f32 %v1557, 0.0
  %v1574 = vmax.f32 %v1558, 0.0
  %v1575 = vmax.f32 %v1559, 0.0
  %v1576 = vmax.f32 %v1560, 0.0
  %v1577 = vmax.f32 %v1561, 0.0
  %v1578 = vmax.f32 %v1562, 0.0
  %v1579 = vmax.f32 %v1563, 0.0
  %v1580 = vmax.f32 %v1564, 0.0
  %v1581 = vmax.f32 %v1565, 0.0
  %v1582 = vmax.f32 %v1566, 0.0
  %v1583 = vmax.f32 %v1567, 0.0
  %v1584 = vmax.f32 %v1568, 0.0
  %v1585 = vmax.f32 %v1569, 0.0
  %v1586 = vmax.f32 %v1570, 0.0
  %v1587 = vmax.f32 %v1571, 0.0
  %v1588 = vmax.f32 %v1572, 0.0
  %1589 = vst [vmem:[%s4] sm:$0xff] %v1573
  %1590 = vst [vmem:[%s4 + $0x8] sm:$0xff] %v1574
  %1591 = vst [vmem:[%s4 + $0x10] sm:$0xff] %v1575
  %1592 = vst [vmem:[%s4 + $0x18] sm:$0xff] %v1576
  %1593 = vst [vmem:[%s4 + $0x20] sm:$0xff] %v1577
  %1594 = vst [vmem:[%s4 + $0x28] sm:$0xff] %v1578
  %1595 = vst [vmem:[%s4 + $0x30] sm:$0xff] %v1579
  %1596 = vst [vmem:[%s4 + $0x38] sm:$0xff] %v1580
  %1597 = vst [vmem:[%s4 + $0x40] sm:$0xff] %v1581
  %1598 = vst [vmem:[%s4 + $0x48] sm:$0xff] %v1582
  %1599 = vst [vmem:[%s4 + $0x50] sm:$0xff] %v1583
  %1600 = vst [vmem:[%s4 + $0x58] sm:$0xff] %v1584
  %1601 = vst [vmem:[%s4 + $0x60] sm:$0xff] %v1585
  %1602 = vst [vmem:[%s4 + $0x68] sm:$0xff] %v1586
  %1603 = vst [vmem:[%s4 + $0x70] sm:$0xff] %v1587
  %1604 = vst [vmem:[%s4 + $0x78] sm:$0xff] %v1588
  // Predicated region
  $region18: #{cnn_forward.10} parent=0 // pred_check
    _
  $region19: #{cnn_forward.10} parent=0 // pred_check_branch
    %1606 = sbr.rel (0) target = $region21
  $region20: #{cnn_forward.10} parent=0 // pred_region
    _
  $region21: #{cnn_forward.10} parent=0 // pred_fallthru
    _
  // Predicated region
  $region22: #{cnn_forward.10} parent=0 // pred_check
    _
  $region23: #{cnn_forward.10} parent=0 // pred_check_branch
    %1608 = sbr.rel (0) target = $region25
  $region24: #{cnn_forward.10} parent=0 // pred_region
    _
  $region25: #{cnn_forward.10} parent=0 // pred_fallthru
    _

// kernel: cnn_forward.11
$region0: #{cnn_forward.11}
  #allocation0 [shape = 'u32[]', space=smem, size = 0x4, offset = 0x4, fixed_abs, tag = 'smem constant byte address 0x4 - core index']
  #allocation1 [shape = 'u32[144,128]{1,0:T(1,128)}', space=vmem, size = 0x12000, scoped, tag = 'internal scratch']
  %s0 = inlined_call_operand.vmem [shape: bf16[4,32,1152], index: 0, kind: input, shape index: {}]
  %s1 = inlined_call_operand.vmem [shape: bf16[1152,128], index: 1, kind: input, shape index: {}]
  %s2 = inlined_call_operand.vmem [shape: f32[1,128], index: 2, kind: input, shape index: {}]
  %s3 = inlined_call_operand.vmem [shape: f32[1,128], index: 3, kind: input, shape index: {}]
  %s4 = inlined_call_operand.vmem [shape: f32[32,128], index: 4, kind: output, shape index: {}]
  %s5 = sld [smem:[#allocation0]]
  $region26: #{cnn_forward.11} parent=0
    _
  %s7 = ssub.s32 1, %s5
  %s8 = scalar_select 0, %s7, %s5
  // Predicated region
  $region2: #{cnn_forward.11} parent=0 // pred_check
    _
  $region3: #{cnn_forward.11} parent=0 // pred_check_branch
    %10 = sbr.rel (0) target = $region5
  $region4: #{cnn_forward.11} parent=0 // pred_region
    _
  $region5: #{cnn_forward.11} parent=0 // pred_fallthru
    _
  // Predicated region
  $region6: #{cnn_forward.11} parent=0 // pred_check
    _
  $region7: #{cnn_forward.11} parent=0 // pred_check_branch
    %12 = sbr.rel (0) target = $region9
  $region8: #{cnn_forward.11} parent=0 // pred_region
    _
  $region9: #{cnn_forward.11} parent=0 // pred_fallthru
    _
  // Predicated region
  $region10: #{cnn_forward.11} parent=0 // pred_check
    _
  $region11: #{cnn_forward.11} parent=0 // pred_check_branch
    %14 = sbr.rel (0) target = $region13
  $region12: #{cnn_forward.11} parent=0 // pred_region
    _
  $region13: #{cnn_forward.11} parent=0 // pred_fallthru
    _
  // Predicated region
  $region14: #{cnn_forward.11} parent=0 // pred_check
    _
  $region15: #{cnn_forward.11} parent=0 // pred_check_branch
    %16 = sbr.rel (0) target = $region17
  $region16: #{cnn_forward.11} parent=0 // pred_region
    _
  $region17: #{cnn_forward.11} parent=0 // pred_fallthru
    _
  %v18 = vld [vmem:[%s1] sm:$0xf]
  %v19 = vld [vmem:[%s1 + $0x4] sm:$0xf]
  %v20 = vld [vmem:[%s1 + $0x8] sm:$0xf]
  %v21 = vld [vmem:[%s1 + $0xc] sm:$0xf]
  %v22 = vld [vmem:[%s1 + $0x10] sm:$0xf]
  %v23 = vld [vmem:[%s1 + $0x14] sm:$0xf]
  %v24 = vld [vmem:[%s1 + $0x18] sm:$0xf]
  %v25 = vld [vmem:[%s1 + $0x1c] sm:$0xf]
  %v26 = vld [vmem:[%s1 + $0x20] sm:$0xf]
  %v27 = vld [vmem:[%s1 + $0x24] sm:$0xf]
  %v28 = vld [vmem:[%s1 + $0x28] sm:$0xf]
  %v29 = vld [vmem:[%s1 + $0x2c] sm:$0xf]
  %v30 = vld [vmem:[%s1 + $0x30] sm:$0xf]
  %v31 = vld [vmem:[%s1 + $0x34] sm:$0xf]
  %v32 = vld [vmem:[%s1 + $0x38] sm:$0xf]
  %v33 = vld [vmem:[%s1 + $0x3c] sm:$0xf]
  %v34 = vld [vmem:[%s1 + $0x40] sm:$0xf]
  %v35 = vld [vmem:[%s1 + $0x44] sm:$0xf]
  %v36 = vld [vmem:[%s1 + $0x48] sm:$0xf]
  %v37 = vld [vmem:[%s1 + $0x4c] sm:$0xf]
  %v38 = vld [vmem:[%s1 + $0x50] sm:$0xf]
  %v39 = vld [vmem:[%s1 + $0x54] sm:$0xf]
  %v40 = vld [vmem:[%s1 + $0x58] sm:$0xf]
  %v41 = vld [vmem:[%s1 + $0x5c] sm:$0xf]
  %v42 = vld [vmem:[%s1 + $0x60] sm:$0xf]
  %v43 = vld [vmem:[%s1 + $0x64] sm:$0xf]
  %v44 = vld [vmem:[%s1 + $0x68] sm:$0xf]
  %v45 = vld [vmem:[%s1 + $0x6c] sm:$0xf]
  %v46 = vld [vmem:[%s1 + $0x70] sm:$0xf]
  %v47 = vld [vmem:[%s1 + $0x74] sm:$0xf]
  %v48 = vld [vmem:[%s1 + $0x78] sm:$0xf]
  %v49 = vld [vmem:[%s1 + $0x7c] sm:$0xf]
  %v50 = vld [vmem:[%s1 + $0x80] sm:$0xf]
  %v51 = vld [vmem:[%s1 + $0x84] sm:$0xf]
  %v52 = vld [vmem:[%s1 + $0x88] sm:$0xf]
  %v53 = vld [vmem:[%s1 + $0x8c] sm:$0xf]
  %v54 = vld [vmem:[%s1 + $0x90] sm:$0xf]
  %v55 = vld [vmem:[%s1 + $0x94] sm:$0xf]
  %v56 = vld [vmem:[%s1 + $0x98] sm:$0xf]
  %v57 = vld [vmem:[%s1 + $0x9c] sm:$0xf]
  %v58 = vld [vmem:[%s1 + $0xa0] sm:$0xf]
  %v59 = vld [vmem:[%s1 + $0xa4] sm:$0xf]
  %v60 = vld [vmem:[%s1 + $0xa8] sm:$0xf]
  %v61 = vld [vmem:[%s1 + $0xac] sm:$0xf]
  %v62 = vld [vmem:[%s1 + $0xb0] sm:$0xf]
  %v63 = vld [vmem:[%s1 + $0xb4] sm:$0xf]
  %v64 = vld [vmem:[%s1 + $0xb8] sm:$0xf]
  %v65 = vld [vmem:[%s1 + $0xbc] sm:$0xf]
  %v66 = vld [vmem:[%s1 + $0xc0] sm:$0xf]
  %v67 = vld [vmem:[%s1 + $0xc4] sm:$0xf]
  %v68 = vld [vmem:[%s1 + $0xc8] sm:$0xf]
  %v69 = vld [vmem:[%s1 + $0xcc] sm:$0xf]
  %v70 = vld [vmem:[%s1 + $0xd0] sm:$0xf]
  %v71 = vld [vmem:[%s1 + $0xd4] sm:$0xf]
  %v72 = vld [vmem:[%s1 + $0xd8] sm:$0xf]
  %v73 = vld [vmem:[%s1 + $0xdc] sm:$0xf]
  %v74 = vld [vmem:[%s1 + $0xe0] sm:$0xf]
  %v75 = vld [vmem:[%s1 + $0xe4] sm:$0xf]
  %v76 = vld [vmem:[%s1 + $0xe8] sm:$0xf]
  %v77 = vld [vmem:[%s1 + $0xec] sm:$0xf]
  %v78 = vld [vmem:[%s1 + $0xf0] sm:$0xf]
  %v79 = vld [vmem:[%s1 + $0xf4] sm:$0xf]
  %v80 = vld [vmem:[%s1 + $0xf8] sm:$0xf]
  %v81 = vld [vmem:[%s1 + $0xfc] sm:$0xf]
  %v82 = vld [vmem:[%s1 + $0x100] sm:$0xf]
  %v83 = vld [vmem:[%s1 + $0x104] sm:$0xf]
  %v84 = vld [vmem:[%s1 + $0x108] sm:$0xf]
  %v85 = vld [vmem:[%s1 + $0x10c] sm:$0xf]
  %v86 = vld [vmem:[%s1 + $0x110] sm:$0xf]
  %v87 = vld [vmem:[%s1 + $0x114] sm:$0xf]
  %v88 = vld [vmem:[%s1 + $0x118] sm:$0xf]
  %v89 = vld [vmem:[%s1 + $0x11c] sm:$0xf]
  %v90 = vld [vmem:[%s1 + $0x120] sm:$0xf]
  %v91 = vld [vmem:[%s1 + $0x124] sm:$0xf]
  %v92 = vld [vmem:[%s1 + $0x128] sm:$0xf]
  %v93 = vld [vmem:[%s1 + $0x12c] sm:$0xf]
  %v94 = vld [vmem:[%s1 + $0x130] sm:$0xf]
  %v95 = vld [vmem:[%s1 + $0x134] sm:$0xf]
  %v96 = vld [vmem:[%s1 + $0x138] sm:$0xf]
  %v97 = vld [vmem:[%s1 + $0x13c] sm:$0xf]
  %v98 = vld [vmem:[%s1 + $0x140] sm:$0xf]
  %v99 = vld [vmem:[%s1 + $0x144] sm:$0xf]
  %v100 = vld [vmem:[%s1 + $0x148] sm:$0xf]
  %v101 = vld [vmem:[%s1 + $0x14c] sm:$0xf]
  %v102 = vld [vmem:[%s1 + $0x150] sm:$0xf]
  %v103 = vld [vmem:[%s1 + $0x154] sm:$0xf]
  %v104 = vld [vmem:[%s1 + $0x158] sm:$0xf]
  %v105 = vld [vmem:[%s1 + $0x15c] sm:$0xf]
  %v106 = vld [vmem:[%s1 + $0x160] sm:$0xf]
  %v107 = vld [vmem:[%s1 + $0x164] sm:$0xf]
  %v108 = vld [vmem:[%s1 + $0x168] sm:$0xf]
  %v109 = vld [vmem:[%s1 + $0x16c] sm:$0xf]
  %v110 = vld [vmem:[%s1 + $0x170] sm:$0xf]
  %v111 = vld [vmem:[%s1 + $0x174] sm:$0xf]
  %v112 = vld [vmem:[%s1 + $0x178] sm:$0xf]
  %v113 = vld [vmem:[%s1 + $0x17c] sm:$0xf]
  %v114 = vld [vmem:[%s1 + $0x180] sm:$0xf]
  %v115 = vld [vmem:[%s1 + $0x184] sm:$0xf]
  %v116 = vld [vmem:[%s1 + $0x188] sm:$0xf]
  %v117 = vld [vmem:[%s1 + $0x18c] sm:$0xf]
  %v118 = vld [vmem:[%s1 + $0x190] sm:$0xf]
  %v119 = vld [vmem:[%s1 + $0x194] sm:$0xf]
  %v120 = vld [vmem:[%s1 + $0x198] sm:$0xf]
  %v121 = vld [vmem:[%s1 + $0x19c] sm:$0xf]
  %v122 = vld [vmem:[%s1 + $0x1a0] sm:$0xf]
  %v123 = vld [vmem:[%s1 + $0x1a4] sm:$0xf]
  %v124 = vld [vmem:[%s1 + $0x1a8] sm:$0xf]
  %v125 = vld [vmem:[%s1 + $0x1ac] sm:$0xf]
  %v126 = vld [vmem:[%s1 + $0x1b0] sm:$0xf]
  %v127 = vld [vmem:[%s1 + $0x1b4] sm:$0xf]
  %v128 = vld [vmem:[%s1 + $0x1b8] sm:$0xf]
  %v129 = vld [vmem:[%s1 + $0x1bc] sm:$0xf]
  %v130 = vld [vmem:[%s1 + $0x1c0] sm:$0xf]
  %v131 = vld [vmem:[%s1 + $0x1c4] sm:$0xf]
  %v132 = vld [vmem:[%s1 + $0x1c8] sm:$0xf]
  %v133 = vld [vmem:[%s1 + $0x1cc] sm:$0xf]
  %v134 = vld [vmem:[%s1 + $0x1d0] sm:$0xf]
  %v135 = vld [vmem:[%s1 + $0x1d4] sm:$0xf]
  %v136 = vld [vmem:[%s1 + $0x1d8] sm:$0xf]
  %v137 = vld [vmem:[%s1 + $0x1dc] sm:$0xf]
  %v138 = vld [vmem:[%s1 + $0x1e0] sm:$0xf]
  %v139 = vld [vmem:[%s1 + $0x1e4] sm:$0xf]
  %v140 = vld [vmem:[%s1 + $0x1e8] sm:$0xf]
  %v141 = vld [vmem:[%s1 + $0x1ec] sm:$0xf]
  %v142 = vld [vmem:[%s1 + $0x1f0] sm:$0xf]
  %v143 = vld [vmem:[%s1 + $0x1f4] sm:$0xf]
  %v144 = vld [vmem:[%s1 + $0x1f8] sm:$0xf]
  %v145 = vld [vmem:[%s1 + $0x1fc] sm:$0xf]
  %v146 = vld [vmem:[%s1 + $0x200] sm:$0xf]
  %v147 = vld [vmem:[%s1 + $0x204] sm:$0xf]
  %v148 = vld [vmem:[%s1 + $0x208] sm:$0xf]
  %v149 = vld [vmem:[%s1 + $0x20c] sm:$0xf]
  %v150 = vld [vmem:[%s1 + $0x210] sm:$0xf]
  %v151 = vld [vmem:[%s1 + $0x214] sm:$0xf]
  %v152 = vld [vmem:[%s1 + $0x218] sm:$0xf]
  %v153 = vld [vmem:[%s1 + $0x21c] sm:$0xf]
  %v154 = vld [vmem:[%s1 + $0x220] sm:$0xf]
  %v155 = vld [vmem:[%s1 + $0x224] sm:$0xf]
  %v156 = vld [vmem:[%s1 + $0x228] sm:$0xf]
  %v157 = vld [vmem:[%s1 + $0x22c] sm:$0xf]
  %v158 = vld [vmem:[%s1 + $0x230] sm:$0xf]
  %v159 = vld [vmem:[%s1 + $0x234] sm:$0xf]
  %v160 = vld [vmem:[%s1 + $0x238] sm:$0xf]
  %v161 = vld [vmem:[%s1 + $0x23c] sm:$0xf]
  %v162 = vld [vmem:[%s2] sm:$0x1]
  %v163 = vld [vmem:[%s3] sm:$0x1]
  %v164 = vld [vmem:[%s0] sm:$0xff]
  %v165 = vld [vmem:[%s0 + $0x8] sm:$0xff]
  %v166 = vld [vmem:[%s0 + $0x10] sm:$0xff]
  %v167 = vld [vmem:[%s0 + $0x18] sm:$0xff]
  %v168 = vld [vmem:[%s0 + $0x20] sm:$0xf]
  %v169 = vld [vmem:[%s0 + $0x24] sm:$0xff]
  %v170 = vld [vmem:[%s0 + $0x2c] sm:$0xff]
  %v171 = vld [vmem:[%s0 + $0x34] sm:$0xff]
  %v172 = vld [vmem:[%s0 + $0x3c] sm:$0xff]
  %v173 = vld [vmem:[%s0 + $0x44] sm:$0xf]
  %v174 = vld [vmem:[%s0 + $0x48] sm:$0xff]
  %v175 = vld [vmem:[%s0 + $0x50] sm:$0xff]
  %v176 = vld [vmem:[%s0 + $0x58] sm:$0xff]
  %v177 = vld [vmem:[%s0 + $0x60] sm:$0xff]
  %v178 = vld [vmem:[%s0 + $0x68] sm:$0xf]
  %v179 = vld [vmem:[%s0 + $0x6c] sm:$0xff]
  %v180 = vld [vmem:[%s0 + $0x74] sm:$0xff]
  %v181 = vld [vmem:[%s0 + $0x7c] sm:$0xff]
  %v182 = vld [vmem:[%s0 + $0x84] sm:$0xff]
  %v183 = vld [vmem:[%s0 + $0x8c] sm:$0xf]
  %v204 = vunpack.c.l.b16 %v164
  %v205 = vunpack.c.h.b16 %v164
  %v206 = vunpack.c.l.b16 %v165
  %v207 = vunpack.c.h.b16 %v165
  %v208 = vunpack.c.l.b16 %v166
  %v209 = vunpack.c.h.b16 %v166
  %v210 = vunpack.c.l.b16 %v167
  %v211 = vunpack.c.h.b16 %v167
  %v212 = vunpack.c.l.b16 %v168
  %v213 = vunpack.c.l.b16 %v169
  %v214 = vunpack.c.h.b16 %v169
  %v215 = vunpack.c.l.b16 %v170
  %v216 = vunpack.c.h.b16 %v170
  %v217 = vunpack.c.l.b16 %v171
  %v218 = vunpack.c.h.b16 %v171
  %v219 = vunpack.c.l.b16 %v172
  %v220 = vunpack.c.h.b16 %v172
  %v221 = vunpack.c.l.b16 %v173
  %v222 = vunpack.c.l.b16 %v174
  %v223 = vunpack.c.h.b16 %v174
  %v224 = vunpack.c.l.b16 %v175
  %v225 = vunpack.c.h.b16 %v175
  %v226 = vunpack.c.l.b16 %v176
  %v227 = vunpack.c.h.b16 %v176
  %v228 = vunpack.c.l.b16 %v177
  %v229 = vunpack.c.h.b16 %v177
  %v230 = vunpack.c.l.b16 %v178
  %v231 = vunpack.c.l.b16 %v179
  %v232 = vunpack.c.h.b16 %v179
  %v233 = vunpack.c.l.b16 %v180
  %v234 = vunpack.c.h.b16 %v180
  %v235 = vunpack.c.l.b16 %v181
  %v236 = vunpack.c.h.b16 %v181
  %v237 = vunpack.c.l.b16 %v182
  %v238 = vunpack.c.h.b16 %v182
  %v239 = vunpack.c.l.b16 %v183
  %v240 = vpack.c.b16 %v213, %v204
  %v241 = vpack.c.b16 %v214, %v205
  %v242 = vpack.c.b16 %v215, %v206
  %v243 = vpack.c.b16 %v216, %v207
  %v244 = vpack.c.b16 %v217, %v208
  %v245 = vpack.c.b16 %v218, %v209
  %v246 = vpack.c.b16 %v219, %v210
  %v247 = vpack.c.b16 %v220, %v211
  %v248 = vpack.c.b16 %v221, %v212
  %v249 = vpack.c.b16 %v231, %v222
  %v250 = vpack.c.b16 %v232, %v223
  %v251 = vpack.c.b16 %v233, %v224
  %v252 = vpack.c.b16 %v234, %v225
  %v253 = vpack.c.b16 %v235, %v226
  %v254 = vpack.c.b16 %v236, %v227
  %v255 = vpack.c.b16 %v237, %v228
  %v256 = vpack.c.b16 %v238, %v229
  %v257 = vpack.c.b16 %v239, %v230
  %v420 = vunpack.c.l.b16 %v18
  %v421 = vunpack.c.l.b16 %v19
  %v422 = vunpack.c.l.b16 %v20
  %v423 = vunpack.c.l.b16 %v21
  %v424 = vunpack.c.l.b16 %v22
  %v425 = vunpack.c.l.b16 %v23
  %v426 = vunpack.c.l.b16 %v24
  %v427 = vunpack.c.l.b16 %v25
  %v428 = vunpack.c.l.b16 %v26
  %v429 = vunpack.c.l.b16 %v27
  %v430 = vunpack.c.l.b16 %v28
  %v431 = vunpack.c.l.b16 %v29
  %v432 = vunpack.c.l.b16 %v30
  %v433 = vunpack.c.l.b16 %v31
  %v434 = vunpack.c.l.b16 %v32
  %v435 = vunpack.c.l.b16 %v33
  %v436 = vunpack.c.l.b16 %v34
  %v437 = vunpack.c.l.b16 %v35
  %v438 = vunpack.c.l.b16 %v36
  %v439 = vunpack.c.l.b16 %v37
  %v440 = vunpack.c.l.b16 %v38
  %v441 = vunpack.c.l.b16 %v39
  %v442 = vunpack.c.l.b16 %v40
  %v443 = vunpack.c.l.b16 %v41
  %v444 = vunpack.c.l.b16 %v42
  %v445 = vunpack.c.l.b16 %v43
  %v446 = vunpack.c.l.b16 %v44
  %v447 = vunpack.c.l.b16 %v45
  %v448 = vunpack.c.l.b16 %v46
  %v449 = vunpack.c.l.b16 %v47
  %v450 = vunpack.c.l.b16 %v48
  %v451 = vunpack.c.l.b16 %v49
  %v452 = vunpack.c.l.b16 %v50
  %v453 = vunpack.c.l.b16 %v51
  %v454 = vunpack.c.l.b16 %v52
  %v455 = vunpack.c.l.b16 %v53
  %v456 = vunpack.c.l.b16 %v54
  %v457 = vunpack.c.l.b16 %v55
  %v458 = vunpack.c.l.b16 %v56
  %v459 = vunpack.c.l.b16 %v57
  %v460 = vunpack.c.l.b16 %v58
  %v461 = vunpack.c.l.b16 %v59
  %v462 = vunpack.c.l.b16 %v60
  %v463 = vunpack.c.l.b16 %v61
  %v464 = vunpack.c.l.b16 %v62
  %v465 = vunpack.c.l.b16 %v63
  %v466 = vunpack.c.l.b16 %v64
  %v467 = vunpack.c.l.b16 %v65
  %v468 = vunpack.c.l.b16 %v66
  %v469 = vunpack.c.l.b16 %v67
  %v470 = vunpack.c.l.b16 %v68
  %v471 = vunpack.c.l.b16 %v69
  %v472 = vunpack.c.l.b16 %v70
  %v473 = vunpack.c.l.b16 %v71
  %v474 = vunpack.c.l.b16 %v72
  %v475 = vunpack.c.l.b16 %v73
  %v476 = vunpack.c.l.b16 %v74
  %v477 = vunpack.c.l.b16 %v75
  %v478 = vunpack.c.l.b16 %v76
  %v479 = vunpack.c.l.b16 %v77
  %v480 = vunpack.c.l.b16 %v78
  %v481 = vunpack.c.l.b16 %v79
  %v482 = vunpack.c.l.b16 %v80
  %v483 = vunpack.c.l.b16 %v81
  %v484 = vunpack.c.l.b16 %v82
  %v485 = vunpack.c.l.b16 %v83
  %v486 = vunpack.c.l.b16 %v84
  %v487 = vunpack.c.l.b16 %v85
  %v488 = vunpack.c.l.b16 %v86
  %v489 = vunpack.c.l.b16 %v87
  %v490 = vunpack.c.l.b16 %v88
  %v491 = vunpack.c.l.b16 %v89
  %v492 = vunpack.c.l.b16 %v90
  %v493 = vunpack.c.l.b16 %v91
  %v494 = vunpack.c.l.b16 %v92
  %v495 = vunpack.c.l.b16 %v93
  %v496 = vunpack.c.l.b16 %v94
  %v497 = vunpack.c.l.b16 %v95
  %v498 = vunpack.c.l.b16 %v96
  %v499 = vunpack.c.l.b16 %v97
  %v500 = vunpack.c.l.b16 %v98
  %v501 = vunpack.c.l.b16 %v99
  %v502 = vunpack.c.l.b16 %v100
  %v503 = vunpack.c.l.b16 %v101
  %v504 = vunpack.c.l.b16 %v102
  %v505 = vunpack.c.l.b16 %v103
  %v506 = vunpack.c.l.b16 %v104
  %v507 = vunpack.c.l.b16 %v105
  %v508 = vunpack.c.l.b16 %v106
  %v509 = vunpack.c.l.b16 %v107
  %v510 = vunpack.c.l.b16 %v108
  %v511 = vunpack.c.l.b16 %v109
  %v512 = vunpack.c.l.b16 %v110
  %v513 = vunpack.c.l.b16 %v111
  %v514 = vunpack.c.l.b16 %v112
  %v515 = vunpack.c.l.b16 %v113
  %v516 = vunpack.c.l.b16 %v114
  %v517 = vunpack.c.l.b16 %v115
  %v518 = vunpack.c.l.b16 %v116
  %v519 = vunpack.c.l.b16 %v117
  %v520 = vunpack.c.l.b16 %v118
  %v521 = vunpack.c.l.b16 %v119
  %v522 = vunpack.c.l.b16 %v120
  %v523 = vunpack.c.l.b16 %v121
  %v524 = vunpack.c.l.b16 %v122
  %v525 = vunpack.c.l.b16 %v123
  %v526 = vunpack.c.l.b16 %v124
  %v527 = vunpack.c.l.b16 %v125
  %v528 = vunpack.c.l.b16 %v126
  %v529 = vunpack.c.l.b16 %v127
  %v530 = vunpack.c.l.b16 %v128
  %v531 = vunpack.c.l.b16 %v129
  %v532 = vunpack.c.l.b16 %v130
  %v533 = vunpack.c.l.b16 %v131
  %v534 = vunpack.c.l.b16 %v132
  %v535 = vunpack.c.l.b16 %v133
  %v536 = vunpack.c.l.b16 %v134
  %v537 = vunpack.c.l.b16 %v135
  %v538 = vunpack.c.l.b16 %v136
  %v539 = vunpack.c.l.b16 %v137
  %v540 = vunpack.c.l.b16 %v138
  %v541 = vunpack.c.l.b16 %v139
  %v542 = vunpack.c.l.b16 %v140
  %v543 = vunpack.c.l.b16 %v141
  %v544 = vunpack.c.l.b16 %v142
  %v545 = vunpack.c.l.b16 %v143
  %v546 = vunpack.c.l.b16 %v144
  %v547 = vunpack.c.l.b16 %v145
  %v548 = vunpack.c.l.b16 %v146
  %v549 = vunpack.c.l.b16 %v147
  %v550 = vunpack.c.l.b16 %v148
  %v551 = vunpack.c.l.b16 %v149
  %v552 = vunpack.c.l.b16 %v150
  %v553 = vunpack.c.l.b16 %v151
  %v554 = vunpack.c.l.b16 %v152
  %v555 = vunpack.c.l.b16 %v153
  %v556 = vunpack.c.l.b16 %v154
  %v557 = vunpack.c.l.b16 %v155
  %v558 = vunpack.c.l.b16 %v156
  %v559 = vunpack.c.l.b16 %v157
  %v560 = vunpack.c.l.b16 %v158
  %v561 = vunpack.c.l.b16 %v159
  %v562 = vunpack.c.l.b16 %v160
  %v563 = vunpack.c.l.b16 %v161
  %v564 = vpack.c.b16 %v421, %v420
  %v565 = vpack.c.b16 %v423, %v422
  %v566 = vpack.c.b16 %v425, %v424
  %v567 = vpack.c.b16 %v427, %v426
  %v568 = vpack.c.b16 %v429, %v428
  %v569 = vpack.c.b16 %v431, %v430
  %v570 = vpack.c.b16 %v433, %v432
  %v571 = vpack.c.b16 %v435, %v434
  %v572 = vpack.c.b16 %v437, %v436
  %v573 = vpack.c.b16 %v439, %v438
  %v574 = vpack.c.b16 %v441, %v440
  %v575 = vpack.c.b16 %v443, %v442
  %v576 = vpack.c.b16 %v445, %v444
  %v577 = vpack.c.b16 %v447, %v446
  %v578 = vpack.c.b16 %v449, %v448
  %v579 = vpack.c.b16 %v451, %v450
  %v580 = vpack.c.b16 %v453, %v452
  %v581 = vpack.c.b16 %v455, %v454
  %v582 = vpack.c.b16 %v457, %v456
  %v583 = vpack.c.b16 %v459, %v458
  %v584 = vpack.c.b16 %v461, %v460
  %v585 = vpack.c.b16 %v463, %v462
  %v586 = vpack.c.b16 %v465, %v464
  %v587 = vpack.c.b16 %v467, %v466
  %v588 = vpack.c.b16 %v469, %v468
  %v589 = vpack.c.b16 %v471, %v470
  %v590 = vpack.c.b16 %v473, %v472
  %v591 = vpack.c.b16 %v475, %v474
  %v592 = vpack.c.b16 %v477, %v476
  %v593 = vpack.c.b16 %v479, %v478
  %v594 = vpack.c.b16 %v481, %v480
  %v595 = vpack.c.b16 %v483, %v482
  %v596 = vpack.c.b16 %v485, %v484
  %v597 = vpack.c.b16 %v487, %v486
  %v598 = vpack.c.b16 %v489, %v488
  %v599 = vpack.c.b16 %v491, %v490
  %v600 = vpack.c.b16 %v493, %v492
  %v601 = vpack.c.b16 %v495, %v494
  %v602 = vpack.c.b16 %v497, %v496
  %v603 = vpack.c.b16 %v499, %v498
  %v604 = vpack.c.b16 %v501, %v500
  %v605 = vpack.c.b16 %v503, %v502
  %v606 = vpack.c.b16 %v505, %v504
  %v607 = vpack.c.b16 %v507, %v506
  %v608 = vpack.c.b16 %v509, %v508
  %v609 = vpack.c.b16 %v511, %v510
  %v610 = vpack.c.b16 %v513, %v512
  %v611 = vpack.c.b16 %v515, %v514
  %v612 = vpack.c.b16 %v517, %v516
  %v613 = vpack.c.b16 %v519, %v518
  %v614 = vpack.c.b16 %v521, %v520
  %v615 = vpack.c.b16 %v523, %v522
  %v616 = vpack.c.b16 %v525, %v524
  %v617 = vpack.c.b16 %v527, %v526
  %v618 = vpack.c.b16 %v529, %v528
  %v619 = vpack.c.b16 %v531, %v530
  %v620 = vpack.c.b16 %v533, %v532
  %v621 = vpack.c.b16 %v535, %v534
  %v622 = vpack.c.b16 %v537, %v536
  %v623 = vpack.c.b16 %v539, %v538
  %v624 = vpack.c.b16 %v541, %v540
  %v625 = vpack.c.b16 %v543, %v542
  %v626 = vpack.c.b16 %v545, %v544
  %v627 = vpack.c.b16 %v547, %v546
  %v628 = vpack.c.b16 %v549, %v548
  %v629 = vpack.c.b16 %v551, %v550
  %v630 = vpack.c.b16 %v553, %v552
  %v631 = vpack.c.b16 %v555, %v554
  %v632 = vpack.c.b16 %v557, %v556
  %v633 = vpack.c.b16 %v559, %v558
  %v634 = vpack.c.b16 %v561, %v560
  %v635 = vpack.c.b16 %v563, %v562
  %708 = vmatprep.subr.bf16.mxu0 0
  %709 = vmatpush1.bf16.msra.mxu0 %v564
  %710 = vmatprep.subr.bf16.mxu0 0
  %711 = vmatpush1.bf16.msra.mxu0 %v565
  %712 = vmatprep.subr.bf16.mxu0 0
  %713 = vmatpush1.bf16.msra.mxu0 %v566
  %714 = vmatprep.subr.bf16.mxu0 0
  %715 = vmatpush1.bf16.msra.mxu0 %v567
  %716 = vmatprep.subr.bf16.mxu0 0
  %717 = vmatpush1.bf16.msra.mxu0 %v568
  %718 = vmatprep.subr.bf16.mxu0 0
  %719 = vmatpush1.bf16.msra.mxu0 %v569
  %720 = vmatprep.subr.bf16.mxu0 0
  %721 = vmatpush1.bf16.msra.mxu0 %v570
  %722 = vmatprep.subr.bf16.mxu0 0
  %723 = vmatpush1.bf16.msra.mxu0 %v571
  %724 = vmatprep.subr.bf16.mxu0 0
  %725 = vmatpush1.bf16.msra.mxu0 %v572
  %726 = vmatprep.subr.bf16.mxu0 0
  %727 = vmatpush1.bf16.msra.mxu0 %v573
  %728 = vmatprep.subr.bf16.mxu0 0
  %729 = vmatpush1.bf16.msra.mxu0 %v574
  %730 = vmatprep.subr.bf16.mxu0 0
  %731 = vmatpush1.bf16.msra.mxu0 %v575
  %732 = vmatprep.subr.bf16.mxu0 0
  %733 = vmatpush1.bf16.msra.mxu0 %v576
  %734 = vmatprep.subr.bf16.mxu0 0
  %735 = vmatpush1.bf16.msra.mxu0 %v577
  %736 = vmatprep.subr.bf16.mxu0 0
  %737 = vmatpush1.bf16.msra.mxu0 %v578
  %738 = vmatprep.subr.bf16.mxu0 0
  %739 = vmatpush1.bf16.msra.mxu0 %v579
  %740 = vmatprep.mubr.bf16.mxu0 %v241
  %741 = vmatmul.mubr.bf16.gmra.mrb[0].mxu0 %v240
  %v742 = vpop.f32.mrb[0].mxu0
  %v743 = vadd.f32 0.0, %v742
  %v744 = vpop.f32.mrb[0].mxu0
  %v745 = vpop.f32.mrb[0].mxu0
  %v746 = vadd.f32 0.0, %v745
  %v747 = vpop.f32.mrb[0].mxu0
  %748 = vmatprep.mubr.bf16.mxu0 %v250
  %749 = vmatmul.mubr.bf16.gmra.mrb[0].mxu0 %v249
  %v750 = vpop.f32.mrb[0].mxu0
  %v751 = vadd.f32 0.0, %v750
  %v752 = vpop.f32.mrb[0].mxu0
  %v753 = vpop.f32.mrb[0].mxu0
  %v754 = vadd.f32 0.0, %v753
  %v755 = vpop.f32.mrb[0].mxu0
  %756 = vdwg.mxu0
  %757 = vmatprep.subr.bf16.mxu0 0
  %758 = vmatpush1.bf16.msra.mxu0 %v580
  %759 = vmatprep.subr.bf16.mxu0 0
  %760 = vmatpush1.bf16.msra.mxu0 %v581
  %761 = vmatprep.subr.bf16.mxu0 0
  %762 = vmatpush1.bf16.msra.mxu0 %v582
  %763 = vmatprep.subr.bf16.mxu0 0
  %764 = vmatpush1.bf16.msra.mxu0 %v583
  %765 = vmatprep.subr.bf16.mxu0 0
  %766 = vmatpush1.bf16.msra.mxu0 %v584
  %767 = vmatprep.subr.bf16.mxu0 0
  %768 = vmatpush1.bf16.msra.mxu0 %v585
  %769 = vmatprep.subr.bf16.mxu0 0
  %770 = vmatpush1.bf16.msra.mxu0 %v586
  %771 = vmatprep.subr.bf16.mxu0 0
  %772 = vmatpush1.bf16.msra.mxu0 %v587
  %773 = vmatprep.subr.bf16.mxu0 0
  %774 = vmatpush1.bf16.msra.mxu0 %v588
  %775 = vmatprep.subr.bf16.mxu0 0
  %776 = vmatpush1.bf16.msra.mxu0 %v589
  %777 = vmatprep.subr.bf16.mxu0 0
  %778 = vmatpush1.bf16.msra.mxu0 %v590
  %779 = vmatprep.subr.bf16.mxu0 0
  %780 = vmatpush1.bf16.msra.mxu0 %v591
  %781 = vmatprep.subr.bf16.mxu0 0
  %782 = vmatpush1.bf16.msra.mxu0 %v592
  %783 = vmatprep.subr.bf16.mxu0 0
  %784 = vmatpush1.bf16.msra.mxu0 %v593
  %785 = vmatprep.subr.bf16.mxu0 0
  %786 = vmatpush1.bf16.msra.mxu0 %v594
  %787 = vmatprep.subr.bf16.mxu0 0
  %788 = vmatpush1.bf16.msra.mxu0 %v595
  %789 = vmatprep.mubr.bf16.mxu0 %v243
  %790 = vmatmul.mubr.bf16.gmra.mrb[0].mxu0 %v242
  %v791 = vpop.f32.mrb[0].mxu0
  %v792 = vadd.f32 %v743, %v791
  %v793 = vpop.f32.mrb[0].mxu0
  %v794 = vpop.f32.mrb[0].mxu0
  %v795 = vadd.f32 %v746, %v794
  %v796 = vpop.f32.mrb[0].mxu0
  %797 = vmatprep.mubr.bf16.mxu0 %v252
  %798 = vmatmul.mubr.bf16.gmra.mrb[0].mxu0 %v251
  %v799 = vpop.f32.mrb[0].mxu0
  %v800 = vadd.f32 %v751, %v799
  %v801 = vpop.f32.mrb[0].mxu0
  %v802 = vpop.f32.mrb[0].mxu0
  %v803 = vadd.f32 %v754, %v802
  %v804 = vpop.f32.mrb[0].mxu0
  %805 = vdwg.mxu0
  %806 = vmatprep.subr.bf16.mxu0 0
  %807 = vmatpush1.bf16.msra.mxu0 %v596
  %808 = vmatprep.subr.bf16.mxu0 0
  %809 = vmatpush1.bf16.msra.mxu0 %v597
  %810 = vmatprep.subr.bf16.mxu0 0
  %811 = vmatpush1.bf16.msra.mxu0 %v598
  %812 = vmatprep.subr.bf16.mxu0 0
  %813 = vmatpush1.bf16.msra.mxu0 %v599
  %814 = vmatprep.subr.bf16.mxu0 0
  %815 = vmatpush1.bf16.msra.mxu0 %v600
  %816 = vmatprep.subr.bf16.mxu0 0
  %817 = vmatpush1.bf16.msra.mxu0 %v601
  %818 = vmatprep.subr.bf16.mxu0 0
  %819 = vmatpush1.bf16.msra.mxu0 %v602
  %820 = vmatprep.subr.bf16.mxu0 0
  %821 = vmatpush1.bf16.msra.mxu0 %v603
  %822 = vmatprep.subr.bf16.mxu0 0
  %823 = vmatpush1.bf16.msra.mxu0 %v604
  %824 = vmatprep.subr.bf16.mxu0 0
  %825 = vmatpush1.bf16.msra.mxu0 %v605
  %826 = vmatprep.subr.bf16.mxu0 0
  %827 = vmatpush1.bf16.msra.mxu0 %v606
  %828 = vmatprep.subr.bf16.mxu0 0
  %829 = vmatpush1.bf16.msra.mxu0 %v607
  %830 = vmatprep.subr.bf16.mxu0 0
  %831 = vmatpush1.bf16.msra.mxu0 %v608
  %832 = vmatprep.subr.bf16.mxu0 0
  %833 = vmatpush1.bf16.msra.mxu0 %v609
  %834 = vmatprep.subr.bf16.mxu0 0
  %835 = vmatpush1.bf16.msra.mxu0 %v610
  %836 = vmatprep.subr.bf16.mxu0 0
  %837 = vmatpush1.bf16.msra.mxu0 %v611
  %838 = vmatprep.mubr.bf16.mxu0 %v245
  %839 = vmatmul.mubr.bf16.gmra.mrb[0].mxu0 %v244
  %v840 = vpop.f32.mrb[0].mxu0
  %v841 = vadd.f32 %v792, %v840
  %v842 = vpop.f32.mrb[0].mxu0
  %v843 = vpop.f32.mrb[0].mxu0
  %v844 = vadd.f32 %v795, %v843
  %v845 = vpop.f32.mrb[0].mxu0
  %846 = vmatprep.mubr.bf16.mxu0 %v254
  %847 = vmatmul.mubr.bf16.gmra.mrb[0].mxu0 %v253
  %v848 = vpop.f32.mrb[0].mxu0
  %v849 = vadd.f32 %v800, %v848
  %v850 = vpop.f32.mrb[0].mxu0
  %v851 = vpop.f32.mrb[0].mxu0
  %v852 = vadd.f32 %v803, %v851
  %v853 = vpop.f32.mrb[0].mxu0
  %854 = vdwg.mxu0
  %855 = vmatprep.subr.bf16.mxu0 0
  %856 = vmatpush1.bf16.msra.mxu0 %v612
  %857 = vmatprep.subr.bf16.mxu0 0
  %858 = vmatpush1.bf16.msra.mxu0 %v613
  %859 = vmatprep.subr.bf16.mxu0 0
  %860 = vmatpush1.bf16.msra.mxu0 %v614
  %861 = vmatprep.subr.bf16.mxu0 0
  %862 = vmatpush1.bf16.msra.mxu0 %v615
  %863 = vmatprep.subr.bf16.mxu0 0
  %864 = vmatpush1.bf16.msra.mxu0 %v616
  %865 = vmatprep.subr.bf16.mxu0 0
  %866 = vmatpush1.bf16.msra.mxu0 %v617
  %867 = vmatprep.subr.bf16.mxu0 0
  %868 = vmatpush1.bf16.msra.mxu0 %v618
  %869 = vmatprep.subr.bf16.mxu0 0
  %870 = vmatpush1.bf16.msra.mxu0 %v619
  %871 = vmatprep.subr.bf16.mxu0 0
  %872 = vmatpush1.bf16.msra.mxu0 %v620
  %873 = vmatprep.subr.bf16.mxu0 0
  %874 = vmatpush1.bf16.msra.mxu0 %v621
  %875 = vmatprep.subr.bf16.mxu0 0
  %876 = vmatpush1.bf16.msra.mxu0 %v622
  %877 = vmatprep.subr.bf16.mxu0 0
  %878 = vmatpush1.bf16.msra.mxu0 %v623
  %879 = vmatprep.subr.bf16.mxu0 0
  %880 = vmatpush1.bf16.msra.mxu0 %v624
  %881 = vmatprep.subr.bf16.mxu0 0
  %882 = vmatpush1.bf16.msra.mxu0 %v625
  %883 = vmatprep.subr.bf16.mxu0 0
  %884 = vmatpush1.bf16.msra.mxu0 %v626
  %885 = vmatprep.subr.bf16.mxu0 0
  %886 = vmatpush1.bf16.msra.mxu0 %v627
  %887 = vmatprep.mubr.bf16.mxu0 %v247
  %888 = vmatmul.mubr.bf16.gmra.mrb[0].mxu0 %v246
  %v889 = vpop.f32.mrb[0].mxu0
  %v890 = vadd.f32 %v841, %v889
  %v891 = vpop.f32.mrb[0].mxu0
  %v892 = vpop.f32.mrb[0].mxu0
  %v893 = vadd.f32 %v844, %v892
  %v894 = vpop.f32.mrb[0].mxu0
  %895 = vmatprep.mubr.bf16.mxu0 %v256
  %896 = vmatmul.mubr.bf16.gmra.mrb[0].mxu0 %v255
  %v897 = vpop.f32.mrb[0].mxu0
  %v898 = vadd.f32 %v849, %v897
  %v899 = vpop.f32.mrb[0].mxu0
  %v900 = vpop.f32.mrb[0].mxu0
  %v901 = vadd.f32 %v852, %v900
  %v902 = vpop.f32.mrb[0].mxu0
  %903 = vdwg.mxu0
  %904 = vmatprep.subr.bf16.mxu0 0
  %905 = vmatpush1.bf16.msra.mxu0 %v628
  %906 = vmatprep.subr.bf16.mxu0 0
  %907 = vmatpush1.bf16.msra.mxu0 %v629
  %908 = vmatprep.subr.bf16.mxu0 0
  %909 = vmatpush1.bf16.msra.mxu0 %v630
  %910 = vmatprep.subr.bf16.mxu0 0
  %911 = vmatpush1.bf16.msra.mxu0 %v631
  %912 = vmatprep.subr.bf16.mxu0 0
  %913 = vmatpush1.bf16.msra.mxu0 %v632
  %914 = vmatprep.subr.bf16.mxu0 0
  %915 = vmatpush1.bf16.msra.mxu0 %v633
  %916 = vmatprep.subr.bf16.mxu0 0
  %917 = vmatpush1.bf16.msra.mxu0 %v634
  %918 = vmatprep.subr.bf16.mxu0 0
  %919 = vmatpush1.bf16.msra.mxu0 %v635
  %920 = vmatprep.subr.bf16.mxu0 0
  %921 = vmatpush1.bf16.msra.mxu0 0
  %922 = vmatprep.subr.bf16.mxu0 0
  %923 = vmatpush1.bf16.msra.mxu0 0
  %924 = vmatprep.subr.bf16.mxu0 0
  %925 = vmatpush1.bf16.msra.mxu0 0
  %926 = vmatprep.subr.bf16.mxu0 0
  %927 = vmatpush1.bf16.msra.mxu0 0
  %928 = vmatprep.subr.bf16.mxu0 0
  %929 = vmatpush1.bf16.msra.mxu0 0
  %930 = vmatprep.subr.bf16.mxu0 0
  %931 = vmatpush1.bf16.msra.mxu0 0
  %932 = vmatprep.subr.bf16.mxu0 0
  %933 = vmatpush1.bf16.msra.mxu0 0
  %934 = vmatprep.subr.bf16.mxu0 0
  %935 = vmatpush1.bf16.msra.mxu0 0
  %936 = vmatprep.mubr.bf16.mxu0 0
  %937 = vmatmul.mubr.bf16.gmra.mrb[0].mxu0 %v248
  %v938 = vpop.f32.mrb[0].mxu0
  %v939 = vadd.f32 %v890, %v938
  %v940 = vpop.f32.mrb[0].mxu0
  %v941 = vpop.f32.mrb[0].mxu0
  %v942 = vadd.f32 %v893, %v941
  %v943 = vpop.f32.mrb[0].mxu0
  %944 = vmatprep.mubr.bf16.mxu0 0
  %945 = vmatmul.mubr.bf16.gmra.mrb[0].mxu0 %v257
  %v946 = vpop.f32.mrb[0].mxu0
  %v947 = vadd.f32 %v898, %v946
  %v948 = vpop.f32.mrb[0].mxu0
  %v949 = vpop.f32.mrb[0].mxu0
  %v950 = vadd.f32 %v901, %v949
  %v951 = vpop.f32.mrb[0].mxu0
  %952 = vdwg.mxu0
  %v954 = vlaneseq
  %v955 = vshrl.u32 %v954, 7
  %v956 = vsub.s32 0, %v955
  %v957 = vrot.slane %v162, %v956
  %v959 = vmul.f32 %v939, %v957
  %v960 = vmul.f32 %v942, %v957
  %v961 = vmul.f32 %v947, %v957
  %v962 = vmul.f32 %v950, %v957
  %v964 = vlaneseq
  %v965 = vshrl.u32 %v964, 7
  %v966 = vsub.s32 0, %v965
  %v967 = vrot.slane %v163, %v966
  %v969 = vadd.f32 %v959, %v967
  %v970 = vadd.f32 %v960, %v967
  %v971 = vadd.f32 %v961, %v967
  %v972 = vadd.f32 %v962, %v967
  %v973 = vmax.f32 %v969, 0.0
  %v974 = vmax.f32 %v970, 0.0
  %v975 = vmax.f32 %v971, 0.0
  %v976 = vmax.f32 %v972, 0.0
  %s977 = scalar_lea.vmem %s0, 144
  %v978 = vld [vmem:[%s977] sm:$0xff]
  %v979 = vld [vmem:[%s977 + $0x8] sm:$0xff]
  %v980 = vld [vmem:[%s977 + $0x10] sm:$0xff]
  %v981 = vld [vmem:[%s977 + $0x18] sm:$0xff]
  %v982 = vld [vmem:[%s977 + $0x20] sm:$0xf]
  %v983 = vld [vmem:[%s977 + $0x24] sm:$0xff]
  %v984 = vld [vmem:[%s977 + $0x2c] sm:$0xff]
  %v985 = vld [vmem:[%s977 + $0x34] sm:$0xff]
  %v986 = vld [vmem:[%s977 + $0x3c] sm:$0xff]
  %v987 = vld [vmem:[%s977 + $0x44] sm:$0xf]
  %v988 = vld [vmem:[%s977 + $0x48] sm:$0xff]
  %v989 = vld [vmem:[%s977 + $0x50] sm:$0xff]
  %v990 = vld [vmem:[%s977 + $0x58] sm:$0xff]
  %v991 = vld [vmem:[%s977 + $0x60] sm:$0xff]
  %v992 = vld [vmem:[%s977 + $0x68] sm:$0xf]
  %v993 = vld [vmem:[%s977 + $0x6c] sm:$0xff]
  %v994 = vld [vmem:[%s977 + $0x74] sm:$0xff]
  %v995 = vld [vmem:[%s977 + $0x7c] sm:$0xff]
  %v996 = vld [vmem:[%s977 + $0x84] sm:$0xff]
  %v997 = vld [vmem:[%s977 + $0x8c] sm:$0xf]
  %v1018 = vunpack.c.l.b16 %v978
  %v1019 = vunpack.c.h.b16 %v978
  %v1020 = vunpack.c.l.b16 %v979
  %v1021 = vunpack.c.h.b16 %v979
  %v1022 = vunpack.c.l.b16 %v980
  %v1023 = vunpack.c.h.b16 %v980
  %v1024 = vunpack.c.l.b16 %v981
  %v1025 = vunpack.c.h.b16 %v981
  %v1026 = vunpack.c.l.b16 %v982
  %v1027 = vunpack.c.l.b16 %v983
  %v1028 = vunpack.c.h.b16 %v983
  %v1029 = vunpack.c.l.b16 %v984
  %v1030 = vunpack.c.h.b16 %v984
  %v1031 = vunpack.c.l.b16 %v985
  %v1032 = vunpack.c.h.b16 %v985
  %v1033 = vunpack.c.l.b16 %v986
  %v1034 = vunpack.c.h.b16 %v986
  %v1035 = vunpack.c.l.b16 %v987
  %v1036 = vunpack.c.l.b16 %v988
  %v1037 = vunpack.c.h.b16 %v988
  %v1038 = vunpack.c.l.b16 %v989
  %v1039 = vunpack.c.h.b16 %v989
  %v1040 = vunpack.c.l.b16 %v990
  %v1041 = vunpack.c.h.b16 %v990
  %v1042 = vunpack.c.l.b16 %v991
  %v1043 = vunpack.c.h.b16 %v991
  %v1044 = vunpack.c.l.b16 %v992
  %v1045 = vunpack.c.l.b16 %v993
  %v1046 = vunpack.c.h.b16 %v993
  %v1047 = vunpack.c.l.b16 %v994
  %v1048 = vunpack.c.h.b16 %v994
  %v1049 = vunpack.c.l.b16 %v995
  %v1050 = vunpack.c.h.b16 %v995
  %v1051 = vunpack.c.l.b16 %v996
  %v1052 = vunpack.c.h.b16 %v996
  %v1053 = vunpack.c.l.b16 %v997
  %v1054 = vpack.c.b16 %v1027, %v1018
  %v1055 = vpack.c.b16 %v1028, %v1019
  %v1056 = vpack.c.b16 %v1029, %v1020
  %v1057 = vpack.c.b16 %v1030, %v1021
  %v1058 = vpack.c.b16 %v1031, %v1022
  %v1059 = vpack.c.b16 %v1032, %v1023
  %v1060 = vpack.c.b16 %v1033, %v1024
  %v1061 = vpack.c.b16 %v1034, %v1025
  %v1062 = vpack.c.b16 %v1035, %v1026
  %v1063 = vpack.c.b16 %v1045, %v1036
  %v1064 = vpack.c.b16 %v1046, %v1037
  %v1065 = vpack.c.b16 %v1047, %v1038
  %v1066 = vpack.c.b16 %v1048, %v1039
  %v1067 = vpack.c.b16 %v1049, %v1040
  %v1068 = vpack.c.b16 %v1050, %v1041
  %v1069 = vpack.c.b16 %v1051, %v1042
  %v1070 = vpack.c.b16 %v1052, %v1043
  %v1071 = vpack.c.b16 %v1053, %v1044
  %1090 = vmatprep.subr.bf16.mxu0 0
  %1091 = vmatpush1.bf16.msra.mxu0 %v564
  %1092 = vmatprep.subr.bf16.mxu0 0
  %1093 = vmatpush1.bf16.msra.mxu0 %v565
  %1094 = vmatprep.subr.bf16.mxu0 0
  %1095 = vmatpush1.bf16.msra.mxu0 %v566
  %1096 = vmatprep.subr.bf16.mxu0 0
  %1097 = vmatpush1.bf16.msra.mxu0 %v567
  %1098 = vmatprep.subr.bf16.mxu0 0
  %1099 = vmatpush1.bf16.msra.mxu0 %v568
  %1100 = vmatprep.subr.bf16.mxu0 0
  %1101 = vmatpush1.bf16.msra.mxu0 %v569
  %1102 = vmatprep.subr.bf16.mxu0 0
  %1103 = vmatpush1.bf16.msra.mxu0 %v570
  %1104 = vmatprep.subr.bf16.mxu0 0
  %1105 = vmatpush1.bf16.msra.mxu0 %v571
  %1106 = vmatprep.subr.bf16.mxu0 0
  %1107 = vmatpush1.bf16.msra.mxu0 %v572
  %1108 = vmatprep.subr.bf16.mxu0 0
  %1109 = vmatpush1.bf16.msra.mxu0 %v573
  %1110 = vmatprep.subr.bf16.mxu0 0
  %1111 = vmatpush1.bf16.msra.mxu0 %v574
  %1112 = vmatprep.subr.bf16.mxu0 0
  %1113 = vmatpush1.bf16.msra.mxu0 %v575
  %1114 = vmatprep.subr.bf16.mxu0 0
  %1115 = vmatpush1.bf16.msra.mxu0 %v576
  %1116 = vmatprep.subr.bf16.mxu0 0
  %1117 = vmatpush1.bf16.msra.mxu0 %v577
  %1118 = vmatprep.subr.bf16.mxu0 0
  %1119 = vmatpush1.bf16.msra.mxu0 %v578
  %1120 = vmatprep.subr.bf16.mxu0 0
  %1121 = vmatpush1.bf16.msra.mxu0 %v579
  %1122 = vmatprep.mubr.bf16.mxu0 %v1055
  %1123 = vmatmul.mubr.bf16.gmra.mrb[0].mxu0 %v1054
  %v1124 = vpop.f32.mrb[0].mxu0
  %v1125 = vadd.f32 0.0, %v1124
  %v1126 = vpop.f32.mrb[0].mxu0
  %v1127 = vpop.f32.mrb[0].mxu0
  %v1128 = vadd.f32 0.0, %v1127
  %v1129 = vpop.f32.mrb[0].mxu0
  %1130 = vmatprep.mubr.bf16.mxu0 %v1064
  %1131 = vmatmul.mubr.bf16.gmra.mrb[0].mxu0 %v1063
  %v1132 = vpop.f32.mrb[0].mxu0
  %v1133 = vadd.f32 0.0, %v1132
  %v1134 = vpop.f32.mrb[0].mxu0
  %v1135 = vpop.f32.mrb[0].mxu0
  %v1136 = vadd.f32 0.0, %v1135
  %v1137 = vpop.f32.mrb[0].mxu0
  %1138 = vdwg.mxu0
  %1139 = vmatprep.subr.bf16.mxu0 0
  %1140 = vmatpush1.bf16.msra.mxu0 %v580
  %1141 = vmatprep.subr.bf16.mxu0 0
  %1142 = vmatpush1.bf16.msra.mxu0 %v581
  %1143 = vmatprep.subr.bf16.mxu0 0
  %1144 = vmatpush1.bf16.msra.mxu0 %v582
  %1145 = vmatprep.subr.bf16.mxu0 0
  %1146 = vmatpush1.bf16.msra.mxu0 %v583
  %1147 = vmatprep.subr.bf16.mxu0 0
  %1148 = vmatpush1.bf16.msra.mxu0 %v584
  %1149 = vmatprep.subr.bf16.mxu0 0
  %1150 = vmatpush1.bf16.msra.mxu0 %v585
  %1151 = vmatprep.subr.bf16.mxu0 0
  %1152 = vmatpush1.bf16.msra.mxu0 %v586
  %1153 = vmatprep.subr.bf16.mxu0 0
  %1154 = vmatpush1.bf16.msra.mxu0 %v587
  %1155 = vmatprep.subr.bf16.mxu0 0
  %1156 = vmatpush1.bf16.msra.mxu0 %v588
  %1157 = vmatprep.subr.bf16.mxu0 0
  %1158 = vmatpush1.bf16.msra.mxu0 %v589
  %1159 = vmatprep.subr.bf16.mxu0 0
  %1160 = vmatpush1.bf16.msra.mxu0 %v590
  %1161 = vmatprep.subr.bf16.mxu0 0
  %1162 = vmatpush1.bf16.msra.mxu0 %v591
  %1163 = vmatprep.subr.bf16.mxu0 0
  %1164 = vmatpush1.bf16.msra.mxu0 %v592
  %1165 = vmatprep.subr.bf16.mxu0 0
  %1166 = vmatpush1.bf16.msra.mxu0 %v593
  %1167 = vmatprep.subr.bf16.mxu0 0
  %1168 = vmatpush1.bf16.msra.mxu0 %v594
  %1169 = vmatprep.subr.bf16.mxu0 0
  %1170 = vmatpush1.bf16.msra.mxu0 %v595
  %1171 = vmatprep.mubr.bf16.mxu0 %v1057
  %1172 = vmatmul.mubr.bf16.gmra.mrb[0].mxu0 %v1056
  %v1173 = vpop.f32.mrb[0].mxu0
  %v1174 = vadd.f32 %v1125, %v1173
  %v1175 = vpop.f32.mrb[0].mxu0
  %v1176 = vpop.f32.mrb[0].mxu0
  %v1177 = vadd.f32 %v1128, %v1176
  %v1178 = vpop.f32.mrb[0].mxu0
  %1179 = vmatprep.mubr.bf16.mxu0 %v1066
  %1180 = vmatmul.mubr.bf16.gmra.mrb[0].mxu0 %v1065
  %v1181 = vpop.f32.mrb[0].mxu0
  %v1182 = vadd.f32 %v1133, %v1181
  %v1183 = vpop.f32.mrb[0].mxu0
  %v1184 = vpop.f32.mrb[0].mxu0
  %v1185 = vadd.f32 %v1136, %v1184
  %v1186 = vpop.f32.mrb[0].mxu0
  %1187 = vdwg.mxu0
  %1188 = vmatprep.subr.bf16.mxu0 0
  %1189 = vmatpush1.bf16.msra.mxu0 %v596
  %1190 = vmatprep.subr.bf16.mxu0 0
  %1191 = vmatpush1.bf16.msra.mxu0 %v597
  %1192 = vmatprep.subr.bf16.mxu0 0
  %1193 = vmatpush1.bf16.msra.mxu0 %v598
  %1194 = vmatprep.subr.bf16.mxu0 0
  %1195 = vmatpush1.bf16.msra.mxu0 %v599
  %1196 = vmatprep.subr.bf16.mxu0 0
  %1197 = vmatpush1.bf16.msra.mxu0 %v600
  %1198 = vmatprep.subr.bf16.mxu0 0
  %1199 = vmatpush1.bf16.msra.mxu0 %v601
  %1200 = vmatprep.subr.bf16.mxu0 0
  %1201 = vmatpush1.bf16.msra.mxu0 %v602
  %1202 = vmatprep.subr.bf16.mxu0 0
  %1203 = vmatpush1.bf16.msra.mxu0 %v603
  %1204 = vmatprep.subr.bf16.mxu0 0
  %1205 = vmatpush1.bf16.msra.mxu0 %v604
  %1206 = vmatprep.subr.bf16.mxu0 0
  %1207 = vmatpush1.bf16.msra.mxu0 %v605
  %1208 = vmatprep.subr.bf16.mxu0 0
  %1209 = vmatpush1.bf16.msra.mxu0 %v606
  %1210 = vmatprep.subr.bf16.mxu0 0
  %1211 = vmatpush1.bf16.msra.mxu0 %v607
  %1212 = vmatprep.subr.bf16.mxu0 0
  %1213 = vmatpush1.bf16.msra.mxu0 %v608
  %1214 = vmatprep.subr.bf16.mxu0 0
  %1215 = vmatpush1.bf16.msra.mxu0 %v609
  %1216 = vmatprep.subr.bf16.mxu0 0
  %1217 = vmatpush1.bf16.msra.mxu0 %v610
  %1218 = vmatprep.subr.bf16.mxu0 0
  %1219 = vmatpush1.bf16.msra.mxu0 %v611
  %1220 = vmatprep.mubr.bf16.mxu0 %v1059
  %1221 = vmatmul.mubr.bf16.gmra.mrb[0].mxu0 %v1058
  %v1222 = vpop.f32.mrb[0].mxu0
  %v1223 = vadd.f32 %v1174, %v1222
  %v1224 = vpop.f32.mrb[0].mxu0
  %v1225 = vpop.f32.mrb[0].mxu0
  %v1226 = vadd.f32 %v1177, %v1225
  %v1227 = vpop.f32.mrb[0].mxu0
  %1228 = vmatprep.mubr.bf16.mxu0 %v1068
  %1229 = vmatmul.mubr.bf16.gmra.mrb[0].mxu0 %v1067
  %v1230 = vpop.f32.mrb[0].mxu0
  %v1231 = vadd.f32 %v1182, %v1230
  %v1232 = vpop.f32.mrb[0].mxu0
  %v1233 = vpop.f32.mrb[0].mxu0
  %v1234 = vadd.f32 %v1185, %v1233
  %v1235 = vpop.f32.mrb[0].mxu0
  %1236 = vdwg.mxu0
  %1237 = vmatprep.subr.bf16.mxu0 0
  %1238 = vmatpush1.bf16.msra.mxu0 %v612
  %1239 = vmatprep.subr.bf16.mxu0 0
  %1240 = vmatpush1.bf16.msra.mxu0 %v613
  %1241 = vmatprep.subr.bf16.mxu0 0
  %1242 = vmatpush1.bf16.msra.mxu0 %v614
  %1243 = vmatprep.subr.bf16.mxu0 0
  %1244 = vmatpush1.bf16.msra.mxu0 %v615
  %1245 = vmatprep.subr.bf16.mxu0 0
  %1246 = vmatpush1.bf16.msra.mxu0 %v616
  %1247 = vmatprep.subr.bf16.mxu0 0
  %1248 = vmatpush1.bf16.msra.mxu0 %v617
  %1249 = vmatprep.subr.bf16.mxu0 0
  %1250 = vmatpush1.bf16.msra.mxu0 %v618
  %1251 = vmatprep.subr.bf16.mxu0 0
  %1252 = vmatpush1.bf16.msra.mxu0 %v619
  %1253 = vmatprep.subr.bf16.mxu0 0
  %1254 = vmatpush1.bf16.msra.mxu0 %v620
  %1255 = vmatprep.subr.bf16.mxu0 0
  %1256 = vmatpush1.bf16.msra.mxu0 %v621
  %1257 = vmatprep.subr.bf16.mxu0 0
  %1258 = vmatpush1.bf16.msra.mxu0 %v622
  %1259 = vmatprep.subr.bf16.mxu0 0
  %1260 = vmatpush1.bf16.msra.mxu0 %v623
  %1261 = vmatprep.subr.bf16.mxu0 0
  %1262 = vmatpush1.bf16.msra.mxu0 %v624
  %1263 = vmatprep.subr.bf16.mxu0 0
  %1264 = vmatpush1.bf16.msra.mxu0 %v625
  %1265 = vmatprep.subr.bf16.mxu0 0
  %1266 = vmatpush1.bf16.msra.mxu0 %v626
  %1267 = vmatprep.subr.bf16.mxu0 0
  %1268 = vmatpush1.bf16.msra.mxu0 %v627
  %1269 = vmatprep.mubr.bf16.mxu0 %v1061
  %1270 = vmatmul.mubr.bf16.gmra.mrb[0].mxu0 %v1060
  %v1271 = vpop.f32.mrb[0].mxu0
  %v1272 = vadd.f32 %v1223, %v1271
  %v1273 = vpop.f32.mrb[0].mxu0
  %v1274 = vpop.f32.mrb[0].mxu0
  %v1275 = vadd.f32 %v1226, %v1274
  %v1276 = vpop.f32.mrb[0].mxu0
  %1277 = vmatprep.mubr.bf16.mxu0 %v1070
  %1278 = vmatmul.mubr.bf16.gmra.mrb[0].mxu0 %v1069
  %v1279 = vpop.f32.mrb[0].mxu0
  %v1280 = vadd.f32 %v1231, %v1279
  %v1281 = vpop.f32.mrb[0].mxu0
  %v1282 = vpop.f32.mrb[0].mxu0
  %v1283 = vadd.f32 %v1234, %v1282
  %v1284 = vpop.f32.mrb[0].mxu0
  %1285 = vdwg.mxu0
  %1286 = vmatprep.subr.bf16.mxu0 0
  %1287 = vmatpush1.bf16.msra.mxu0 %v628
  %1288 = vmatprep.subr.bf16.mxu0 0
  %1289 = vmatpush1.bf16.msra.mxu0 %v629
  %1290 = vmatprep.subr.bf16.mxu0 0
  %1291 = vmatpush1.bf16.msra.mxu0 %v630
  %1292 = vmatprep.subr.bf16.mxu0 0
  %1293 = vmatpush1.bf16.msra.mxu0 %v631
  %1294 = vmatprep.subr.bf16.mxu0 0
  %1295 = vmatpush1.bf16.msra.mxu0 %v632
  %1296 = vmatprep.subr.bf16.mxu0 0
  %1297 = vmatpush1.bf16.msra.mxu0 %v633
  %1298 = vmatprep.subr.bf16.mxu0 0
  %1299 = vmatpush1.bf16.msra.mxu0 %v634
  %1300 = vmatprep.subr.bf16.mxu0 0
  %1301 = vmatpush1.bf16.msra.mxu0 %v635
  %1302 = vmatprep.subr.bf16.mxu0 0
  %1303 = vmatpush1.bf16.msra.mxu0 0
  %1304 = vmatprep.subr.bf16.mxu0 0
  %1305 = vmatpush1.bf16.msra.mxu0 0
  %1306 = vmatprep.subr.bf16.mxu0 0
  %1307 = vmatpush1.bf16.msra.mxu0 0
  %1308 = vmatprep.subr.bf16.mxu0 0
  %1309 = vmatpush1.bf16.msra.mxu0 0
  %1310 = vmatprep.subr.bf16.mxu0 0
  %1311 = vmatpush1.bf16.msra.mxu0 0
  %1312 = vmatprep.subr.bf16.mxu0 0
  %1313 = vmatpush1.bf16.msra.mxu0 0
  %1314 = vmatprep.subr.bf16.mxu0 0
  %1315 = vmatpush1.bf16.msra.mxu0 0
  %1316 = vmatprep.subr.bf16.mxu0 0
  %1317 = vmatpush1.bf16.msra.mxu0 0
  %1318 = vmatprep.mubr.bf16.mxu0 0
  %1319 = vmatmul.mubr.bf16.gmra.mrb[0].mxu0 %v1062
  %v1320 = vpop.f32.mrb[0].mxu0
  %v1321 = vadd.f32 %v1272, %v1320
  %v1322 = vpop.f32.mrb[0].mxu0
  %v1323 = vpop.f32.mrb[0].mxu0
  %v1324 = vadd.f32 %v1275, %v1323
  %v1325 = vpop.f32.mrb[0].mxu0
  %1326 = vmatprep.mubr.bf16.mxu0 0
  %1327 = vmatmul.mubr.bf16.gmra.mrb[0].mxu0 %v1071
  %v1328 = vpop.f32.mrb[0].mxu0
  %v1329 = vadd.f32 %v1280, %v1328
  %v1330 = vpop.f32.mrb[0].mxu0
  %v1331 = vpop.f32.mrb[0].mxu0
  %v1332 = vadd.f32 %v1283, %v1331
  %v1333 = vpop.f32.mrb[0].mxu0
  %1334 = vdwg.mxu0
  %v1335 = vmul.f32 %v1321, %v957
  %v1336 = vmul.f32 %v1324, %v957
  %v1337 = vmul.f32 %v1329, %v957
  %v1338 = vmul.f32 %v1332, %v957
  %v1339 = vadd.f32 %v1335, %v967
  %v1340 = vadd.f32 %v1336, %v967
  %v1341 = vadd.f32 %v1337, %v967
  %v1342 = vadd.f32 %v1338, %v967
  %v1343 = vmax.f32 %v1339, 0.0
  %v1344 = vmax.f32 %v1340, 0.0
  %v1345 = vmax.f32 %v1341, 0.0
  %v1346 = vmax.f32 %v1342, 0.0
  %v1347 = vmax.f32 %v973, %v1343
  %v1348 = vmax.f32 %v974, %v1344
  %v1349 = vmax.f32 %v975, %v1345
  %v1350 = vmax.f32 %v976, %v1346
  %s1351 = scalar_lea.vmem %s0, 288
  %v1352 = vld [vmem:[%s1351] sm:$0xff]
  %v1353 = vld [vmem:[%s1351 + $0x8] sm:$0xff]
  %v1354 = vld [vmem:[%s1351 + $0x10] sm:$0xff]
  %v1355 = vld [vmem:[%s1351 + $0x18] sm:$0xff]
  %v1356 = vld [vmem:[%s1351 + $0x20] sm:$0xf]
  %v1357 = vld [vmem:[%s1351 + $0x24] sm:$0xff]
  %v1358 = vld [vmem:[%s1351 + $0x2c] sm:$0xff]
  %v1359 = vld [vmem:[%s1351 + $0x34] sm:$0xff]
  %v1360 = vld [vmem:[%s1351 + $0x3c] sm:$0xff]
  %v1361 = vld [vmem:[%s1351 + $0x44] sm:$0xf]
  %v1362 = vld [vmem:[%s1351 + $0x48] sm:$0xff]
  %v1363 = vld [vmem:[%s1351 + $0x50] sm:$0xff]
  %v1364 = vld [vmem:[%s1351 + $0x58] sm:$0xff]
  %v1365 = vld [vmem:[%s1351 + $0x60] sm:$0xff]
  %v1366 = vld [vmem:[%s1351 + $0x68] sm:$0xf]
  %v1367 = vld [vmem:[%s1351 + $0x6c] sm:$0xff]
  %v1368 = vld [vmem:[%s1351 + $0x74] sm:$0xff]
  %v1369 = vld [vmem:[%s1351 + $0x7c] sm:$0xff]
  %v1370 = vld [vmem:[%s1351 + $0x84] sm:$0xff]
  %v1371 = vld [vmem:[%s1351 + $0x8c] sm:$0xf]
  %v1392 = vunpack.c.l.b16 %v1352
  %v1393 = vunpack.c.h.b16 %v1352
  %v1394 = vunpack.c.l.b16 %v1353
  %v1395 = vunpack.c.h.b16 %v1353
  %v1396 = vunpack.c.l.b16 %v1354
  %v1397 = vunpack.c.h.b16 %v1354
  %v1398 = vunpack.c.l.b16 %v1355
  %v1399 = vunpack.c.h.b16 %v1355
  %v1400 = vunpack.c.l.b16 %v1356
  %v1401 = vunpack.c.l.b16 %v1357
  %v1402 = vunpack.c.h.b16 %v1357
  %v1403 = vunpack.c.l.b16 %v1358
  %v1404 = vunpack.c.h.b16 %v1358
  %v1405 = vunpack.c.l.b16 %v1359
  %v1406 = vunpack.c.h.b16 %v1359
  %v1407 = vunpack.c.l.b16 %v1360
  %v1408 = vunpack.c.h.b16 %v1360
  %v1409 = vunpack.c.l.b16 %v1361
  %v1410 = vunpack.c.l.b16 %v1362
  %v1411 = vunpack.c.h.b16 %v1362
  %v1412 = vunpack.c.l.b16 %v1363
  %v1413 = vunpack.c.h.b16 %v1363
  %v1414 = vunpack.c.l.b16 %v1364
  %v1415 = vunpack.c.h.b16 %v1364
  %v1416 = vunpack.c.l.b16 %v1365
  %v1417 = vunpack.c.h.b16 %v1365
  %v1418 = vunpack.c.l.b16 %v1366
  %v1419 = vunpack.c.l.b16 %v1367
  %v1420 = vunpack.c.h.b16 %v1367
  %v1421 = vunpack.c.l.b16 %v1368
  %v1422 = vunpack.c.h.b16 %v1368
  %v1423 = vunpack.c.l.b16 %v1369
  %v1424 = vunpack.c.h.b16 %v1369
  %v1425 = vunpack.c.l.b16 %v1370
  %v1426 = vunpack.c.h.b16 %v1370
  %v1427 = vunpack.c.l.b16 %v1371
  %v1428 = vpack.c.b16 %v1401, %v1392
  %v1429 = vpack.c.b16 %v1402, %v1393
  %v1430 = vpack.c.b16 %v1403, %v1394
  %v1431 = vpack.c.b16 %v1404, %v1395
  %v1432 = vpack.c.b16 %v1405, %v1396
  %v1433 = vpack.c.b16 %v1406, %v1397
  %v1434 = vpack.c.b16 %v1407, %v1398
  %v1435 = vpack.c.b16 %v1408, %v1399
  %v1436 = vpack.c.b16 %v1409, %v1400
  %v1437 = vpack.c.b16 %v1419, %v1410
  %v1438 = vpack.c.b16 %v1420, %v1411
  %v1439 = vpack.c.b16 %v1421, %v1412
  %v1440 = vpack.c.b16 %v1422, %v1413
  %v1441 = vpack.c.b16 %v1423, %v1414
  %v1442 = vpack.c.b16 %v1424, %v1415
  %v1443 = vpack.c.b16 %v1425, %v1416
  %v1444 = vpack.c.b16 %v1426, %v1417
  %v1445 = vpack.c.b16 %v1427, %v1418
  %1464 = vmatprep.subr.bf16.mxu0 0
  %1465 = vmatpush1.bf16.msra.mxu0 %v564
  %1466 = vmatprep.subr.bf16.mxu0 0
  %1467 = vmatpush1.bf16.msra.mxu0 %v565
  %1468 = vmatprep.subr.bf16.mxu0 0
  %1469 = vmatpush1.bf16.msra.mxu0 %v566
  %1470 = vmatprep.subr.bf16.mxu0 0
  %1471 = vmatpush1.bf16.msra.mxu0 %v567
  %1472 = vmatprep.subr.bf16.mxu0 0
  %1473 = vmatpush1.bf16.msra.mxu0 %v568
  %1474 = vmatprep.subr.bf16.mxu0 0
  %1475 = vmatpush1.bf16.msra.mxu0 %v569
  %1476 = vmatprep.subr.bf16.mxu0 0
  %1477 = vmatpush1.bf16.msra.mxu0 %v570
  %1478 = vmatprep.subr.bf16.mxu0 0
  %1479 = vmatpush1.bf16.msra.mxu0 %v571
  %1480 = vmatprep.subr.bf16.mxu0 0
  %1481 = vmatpush1.bf16.msra.mxu0 %v572
  %1482 = vmatprep.subr.bf16.mxu0 0
  %1483 = vmatpush1.bf16.msra.mxu0 %v573
  %1484 = vmatprep.subr.bf16.mxu0 0
  %1485 = vmatpush1.bf16.msra.mxu0 %v574
  %1486 = vmatprep.subr.bf16.mxu0 0
  %1487 = vmatpush1.bf16.msra.mxu0 %v575
  %1488 = vmatprep.subr.bf16.mxu0 0
  %1489 = vmatpush1.bf16.msra.mxu0 %v576
  %1490 = vmatprep.subr.bf16.mxu0 0
  %1491 = vmatpush1.bf16.msra.mxu0 %v577
  %1492 = vmatprep.subr.bf16.mxu0 0
  %1493 = vmatpush1.bf16.msra.mxu0 %v578
  %1494 = vmatprep.subr.bf16.mxu0 0
  %1495 = vmatpush1.bf16.msra.mxu0 %v579
  %1496 = vmatprep.mubr.bf16.mxu0 %v1429
  %1497 = vmatmul.mubr.bf16.gmra.mrb[0].mxu0 %v1428
  %v1498 = vpop.f32.mrb[0].mxu0
  %v1499 = vadd.f32 0.0, %v1498
  %v1500 = vpop.f32.mrb[0].mxu0
  %v1501 = vpop.f32.mrb[0].mxu0
  %v1502 = vadd.f32 0.0, %v1501
  %v1503 = vpop.f32.mrb[0].mxu0
  %1504 = vmatprep.mubr.bf16.mxu0 %v1438
  %1505 = vmatmul.mubr.bf16.gmra.mrb[0].mxu0 %v1437
  %v1506 = vpop.f32.mrb[0].mxu0
  %v1507 = vadd.f32 0.0, %v1506
  %v1508 = vpop.f32.mrb[0].mxu0
  %v1509 = vpop.f32.mrb[0].mxu0
  %v1510 = vadd.f32 0.0, %v1509
  %v1511 = vpop.f32.mrb[0].mxu0
  %1512 = vdwg.mxu0
  %1513 = vmatprep.subr.bf16.mxu0 0
  %1514 = vmatpush1.bf16.msra.mxu0 %v580
  %1515 = vmatprep.subr.bf16.mxu0 0
  %1516 = vmatpush1.bf16.msra.mxu0 %v581
  %1517 = vmatprep.subr.bf16.mxu0 0
  %1518 = vmatpush1.bf16.msra.mxu0 %v582
  %1519 = vmatprep.subr.bf16.mxu0 0
  %1520 = vmatpush1.bf16.msra.mxu0 %v583
  %1521 = vmatprep.subr.bf16.mxu0 0
  %1522 = vmatpush1.bf16.msra.mxu0 %v584
  %1523 = vmatprep.subr.bf16.mxu0 0
  %1524 = vmatpush1.bf16.msra.mxu0 %v585
  %1525 = vmatprep.subr.bf16.mxu0 0
  %1526 = vmatpush1.bf16.msra.mxu0 %v586
  %1527 = vmatprep.subr.bf16.mxu0 0
  %1528 = vmatpush1.bf16.msra.mxu0 %v587
  %1529 = vmatprep.subr.bf16.mxu0 0
  %1530 = vmatpush1.bf16.msra.mxu0 %v588
  %1531 = vmatprep.subr.bf16.mxu0 0
  %1532 = vmatpush1.bf16.msra.mxu0 %v589
  %1533 = vmatprep.subr.bf16.mxu0 0
  %1534 = vmatpush1.bf16.msra.mxu0 %v590
  %1535 = vmatprep.subr.bf16.mxu0 0
  %1536 = vmatpush1.bf16.msra.mxu0 %v591
  %1537 = vmatprep.subr.bf16.mxu0 0
  %1538 = vmatpush1.bf16.msra.mxu0 %v592
  %1539 = vmatprep.subr.bf16.mxu0 0
  %1540 = vmatpush1.bf16.msra.mxu0 %v593
  %1541 = vmatprep.subr.bf16.mxu0 0
  %1542 = vmatpush1.bf16.msra.mxu0 %v594
  %1543 = vmatprep.subr.bf16.mxu0 0
  %1544 = vmatpush1.bf16.msra.mxu0 %v595
  %1545 = vmatprep.mubr.bf16.mxu0 %v1431
  %1546 = vmatmul.mubr.bf16.gmra.mrb[0].mxu0 %v1430
  %v1547 = vpop.f32.mrb[0].mxu0
  %v1548 = vadd.f32 %v1499, %v1547
  %v1549 = vpop.f32.mrb[0].mxu0
  %v1550 = vpop.f32.mrb[0].mxu0
  %v1551 = vadd.f32 %v1502, %v1550
  %v1552 = vpop.f32.mrb[0].mxu0
  %1553 = vmatprep.mubr.bf16.mxu0 %v1440
  %1554 = vmatmul.mubr.bf16.gmra.mrb[0].mxu0 %v1439
  %v1555 = vpop.f32.mrb[0].mxu0
  %v1556 = vadd.f32 %v1507, %v1555
  %v1557 = vpop.f32.mrb[0].mxu0
  %v1558 = vpop.f32.mrb[0].mxu0
  %v1559 = vadd.f32 %v1510, %v1558
  %v1560 = vpop.f32.mrb[0].mxu0
  %1561 = vdwg.mxu0
  %1562 = vmatprep.subr.bf16.mxu0 0
  %1563 = vmatpush1.bf16.msra.mxu0 %v596
  %1564 = vmatprep.subr.bf16.mxu0 0
  %1565 = vmatpush1.bf16.msra.mxu0 %v597
  %1566 = vmatprep.subr.bf16.mxu0 0
  %1567 = vmatpush1.bf16.msra.mxu0 %v598
  %1568 = vmatprep.subr.bf16.mxu0 0
  %1569 = vmatpush1.bf16.msra.mxu0 %v599
  %1570 = vmatprep.subr.bf16.mxu0 0
  %1571 = vmatpush1.bf16.msra.mxu0 %v600
  %1572 = vmatprep.subr.bf16.mxu0 0
  %1573 = vmatpush1.bf16.msra.mxu0 %v601
  %1574 = vmatprep.subr.bf16.mxu0 0
  %1575 = vmatpush1.bf16.msra.mxu0 %v602
  %1576 = vmatprep.subr.bf16.mxu0 0
  %1577 = vmatpush1.bf16.msra.mxu0 %v603
  %1578 = vmatprep.subr.bf16.mxu0 0
  %1579 = vmatpush1.bf16.msra.mxu0 %v604
  %1580 = vmatprep.subr.bf16.mxu0 0
  %1581 = vmatpush1.bf16.msra.mxu0 %v605
  %1582 = vmatprep.subr.bf16.mxu0 0
  %1583 = vmatpush1.bf16.msra.mxu0 %v606
  %1584 = vmatprep.subr.bf16.mxu0 0
  %1585 = vmatpush1.bf16.msra.mxu0 %v607
  %1586 = vmatprep.subr.bf16.mxu0 0
  %1587 = vmatpush1.bf16.msra.mxu0 %v608
  %1588 = vmatprep.subr.bf16.mxu0 0
  %1589 = vmatpush1.bf16.msra.mxu0 %v609
  %1590 = vmatprep.subr.bf16.mxu0 0
  %1591 = vmatpush1.bf16.msra.mxu0 %v610
  %1592 = vmatprep.subr.bf16.mxu0 0
  %1593 = vmatpush1.bf16.msra.mxu0 %v611
  %1594 = vmatprep.mubr.bf16.mxu0 %v1433
  %1595 = vmatmul.mubr.bf16.gmra.mrb[0].mxu0 %v1432
  %v1596 = vpop.f32.mrb[0].mxu0
  %v1597 = vadd.f32 %v1548, %v1596
  %v1598 = vpop.f32.mrb[0].mxu0
  %v1599 = vpop.f32.mrb[0].mxu0
  %v1600 = vadd.f32 %v1551, %v1599
  %v1601 = vpop.f32.mrb[0].mxu0
  %1602 = vmatprep.mubr.bf16.mxu0 %v1442
  %1603 = vmatmul.mubr.bf16.gmra.mrb[0].mxu0 %v1441
  %v1604 = vpop.f32.mrb[0].mxu0
  %v1605 = vadd.f32 %v1556, %v1604
  %v1606 = vpop.f32.mrb[0].mxu0
  %v1607 = vpop.f32.mrb[0].mxu0
  %v1608 = vadd.f32 %v1559, %v1607
  %v1609 = vpop.f32.mrb[0].mxu0
  %1610 = vdwg.mxu0
  %1611 = vmatprep.subr.bf16.mxu0 0
  %1612 = vmatpush1.bf16.msra.mxu0 %v612
  %1613 = vmatprep.subr.bf16.mxu0 0
  %1614 = vmatpush1.bf16.msra.mxu0 %v613
  %1615 = vmatprep.subr.bf16.mxu0 0
  %1616 = vmatpush1.bf16.msra.mxu0 %v614
  %1617 = vmatprep.subr.bf16.mxu0 0
  %1618 = vmatpush1.bf16.msra.mxu0 %v615
  %1619 = vmatprep.subr.bf16.mxu0 0
  %1620 = vmatpush1.bf16.msra.mxu0 %v616
  %1621 = vmatprep.subr.bf16.mxu0 0
  %1622 = vmatpush1.bf16.msra.mxu0 %v617
  %1623 = vmatprep.subr.bf16.mxu0 0
  %1624 = vmatpush1.bf16.msra.mxu0 %v618
  %1625 = vmatprep.subr.bf16.mxu0 0
  %1626 = vmatpush1.bf16.msra.mxu0 %v619
  %1627 = vmatprep.subr.bf16.mxu0 0
  %1628 = vmatpush1.bf16.msra.mxu0 %v620
  %1629 = vmatprep.subr.bf16.mxu0 0
  %1630 = vmatpush1.bf16.msra.mxu0 %v621
  %1631 = vmatprep.subr.bf16.mxu0 0
  %1632 = vmatpush1.bf16.msra.mxu0 %v622
  %1633 = vmatprep.subr.bf16.mxu0 0
  %1634 = vmatpush1.bf16.msra.mxu0 %v623
  %1635 = vmatprep.subr.bf16.mxu0 0
  %1636 = vmatpush1.bf16.msra.mxu0 %v624
  %1637 = vmatprep.subr.bf16.mxu0 0
  %1638 = vmatpush1.bf16.msra.mxu0 %v625
  %1639 = vmatprep.subr.bf16.mxu0 0
  %1640 = vmatpush1.bf16.msra.mxu0 %v626
  %1641 = vmatprep.subr.bf16.mxu0 0
  %1642 = vmatpush1.bf16.msra.mxu0 %v627
  %1643 = vmatprep.mubr.bf16.mxu0 %v1435
  %1644 = vmatmul.mubr.bf16.gmra.mrb[0].mxu0 %v1434
  %v1645 = vpop.f32.mrb[0].mxu0
  %v1646 = vadd.f32 %v1597, %v1645
  %v1647 = vpop.f32.mrb[0].mxu0
  %v1648 = vpop.f32.mrb[0].mxu0
  %v1649 = vadd.f32 %v1600, %v1648
  %v1650 = vpop.f32.mrb[0].mxu0
  %1651 = vmatprep.mubr.bf16.mxu0 %v1444
  %1652 = vmatmul.mubr.bf16.gmra.mrb[0].mxu0 %v1443
  %v1653 = vpop.f32.mrb[0].mxu0
  %v1654 = vadd.f32 %v1605, %v1653
  %v1655 = vpop.f32.mrb[0].mxu0
  %v1656 = vpop.f32.mrb[0].mxu0
  %v1657 = vadd.f32 %v1608, %v1656
  %v1658 = vpop.f32.mrb[0].mxu0
  %1659 = vdwg.mxu0
  %1660 = vmatprep.subr.bf16.mxu0 0
  %1661 = vmatpush1.bf16.msra.mxu0 %v628
  %1662 = vmatprep.subr.bf16.mxu0 0
  %1663 = vmatpush1.bf16.msra.mxu0 %v629
  %1664 = vmatprep.subr.bf16.mxu0 0
  %1665 = vmatpush1.bf16.msra.mxu0 %v630
  %1666 = vmatprep.subr.bf16.mxu0 0
  %1667 = vmatpush1.bf16.msra.mxu0 %v631
  %1668 = vmatprep.subr.bf16.mxu0 0
  %1669 = vmatpush1.bf16.msra.mxu0 %v632
  %1670 = vmatprep.subr.bf16.mxu0 0
  %1671 = vmatpush1.bf16.msra.mxu0 %v633
  %1672 = vmatprep.subr.bf16.mxu0 0
  %1673 = vmatpush1.bf16.msra.mxu0 %v634
  %1674 = vmatprep.subr.bf16.mxu0 0
  %1675 = vmatpush1.bf16.msra.mxu0 %v635
  %1676 = vmatprep.subr.bf16.mxu0 0
  %1677 = vmatpush1.bf16.msra.mxu0 0
  %1678 = vmatprep.subr.bf16.mxu0 0
  %1679 = vmatpush1.bf16.msra.mxu0 0
  %1680 = vmatprep.subr.bf16.mxu0 0
  %1681 = vmatpush1.bf16.msra.mxu0 0
  %1682 = vmatprep.subr.bf16.mxu0 0
  %1683 = vmatpush1.bf16.msra.mxu0 0
  %1684 = vmatprep.subr.bf16.mxu0 0
  %1685 = vmatpush1.bf16.msra.mxu0 0
  %1686 = vmatprep.subr.bf16.mxu0 0
  %1687 = vmatpush1.bf16.msra.mxu0 0
  %1688 = vmatprep.subr.bf16.mxu0 0
  %1689 = vmatpush1.bf16.msra.mxu0 0
  %1690 = vmatprep.subr.bf16.mxu0 0
  %1691 = vmatpush1.bf16.msra.mxu0 0
  %1692 = vmatprep.mubr.bf16.mxu0 0
  %1693 = vmatmul.mubr.bf16.gmra.mrb[0].mxu0 %v1436
  %v1694 = vpop.f32.mrb[0].mxu0
  %v1695 = vadd.f32 %v1646, %v1694
  %v1696 = vpop.f32.mrb[0].mxu0
  %v1697 = vpop.f32.mrb[0].mxu0
  %v1698 = vadd.f32 %v1649, %v1697
  %v1699 = vpop.f32.mrb[0].mxu0
  %1700 = vmatprep.mubr.bf16.mxu0 0
  %1701 = vmatmul.mubr.bf16.gmra.mrb[0].mxu0 %v1445
  %v1702 = vpop.f32.mrb[0].mxu0
  %v1703 = vadd.f32 %v1654, %v1702
  %v1704 = vpop.f32.mrb[0].mxu0
  %v1705 = vpop.f32.mrb[0].mxu0
  %v1706 = vadd.f32 %v1657, %v1705
  %v1707 = vpop.f32.mrb[0].mxu0
  %1708 = vdwg.mxu0
  %v1709 = vmul.f32 %v1695, %v957
  %v1710 = vmul.f32 %v1698, %v957
  %v1711 = vmul.f32 %v1703, %v957
  %v1712 = vmul.f32 %v1706, %v957
  %v1713 = vadd.f32 %v1709, %v967
  %v1714 = vadd.f32 %v1710, %v967
  %v1715 = vadd.f32 %v1711, %v967
  %v1716 = vadd.f32 %v1712, %v967
  %v1717 = vmax.f32 %v1713, 0.0
  %v1718 = vmax.f32 %v1714, 0.0
  %v1719 = vmax.f32 %v1715, 0.0
  %v1720 = vmax.f32 %v1716, 0.0
  %s1721 = scalar_lea.vmem %s0, 432
  %v1722 = vld [vmem:[%s1721] sm:$0xff]
  %v1723 = vld [vmem:[%s1721 + $0x8] sm:$0xff]
  %v1724 = vld [vmem:[%s1721 + $0x10] sm:$0xff]
  %v1725 = vld [vmem:[%s1721 + $0x18] sm:$0xff]
  %v1726 = vld [vmem:[%s1721 + $0x20] sm:$0xf]
  %v1727 = vld [vmem:[%s1721 + $0x24] sm:$0xff]
  %v1728 = vld [vmem:[%s1721 + $0x2c] sm:$0xff]
  %v1729 = vld [vmem:[%s1721 + $0x34] sm:$0xff]
  %v1730 = vld [vmem:[%s1721 + $0x3c] sm:$0xff]
  %v1731 = vld [vmem:[%s1721 + $0x44] sm:$0xf]
  %v1732 = vld [vmem:[%s1721 + $0x48] sm:$0xff]
  %v1733 = vld [vmem:[%s1721 + $0x50] sm:$0xff]
  %v1734 = vld [vmem:[%s1721 + $0x58] sm:$0xff]
  %v1735 = vld [vmem:[%s1721 + $0x60] sm:$0xff]
  %v1736 = vld [vmem:[%s1721 + $0x68] sm:$0xf]
  %v1737 = vld [vmem:[%s1721 + $0x6c] sm:$0xff]
  %v1738 = vld [vmem:[%s1721 + $0x74] sm:$0xff]
  %v1739 = vld [vmem:[%s1721 + $0x7c] sm:$0xff]
  %v1740 = vld [vmem:[%s1721 + $0x84] sm:$0xff]
  %v1741 = vld [vmem:[%s1721 + $0x8c] sm:$0xf]
  %v1762 = vunpack.c.l.b16 %v1722
  %v1763 = vunpack.c.h.b16 %v1722
  %v1764 = vunpack.c.l.b16 %v1723
  %v1765 = vunpack.c.h.b16 %v1723
  %v1766 = vunpack.c.l.b16 %v1724
  %v1767 = vunpack.c.h.b16 %v1724
  %v1768 = vunpack.c.l.b16 %v1725
  %v1769 = vunpack.c.h.b16 %v1725
  %v1770 = vunpack.c.l.b16 %v1726
  %v1771 = vunpack.c.l.b16 %v1727
  %v1772 = vunpack.c.h.b16 %v1727
  %v1773 = vunpack.c.l.b16 %v1728
  %v1774 = vunpack.c.h.b16 %v1728
  %v1775 = vunpack.c.l.b16 %v1729
  %v1776 = vunpack.c.h.b16 %v1729
  %v1777 = vunpack.c.l.b16 %v1730
  %v1778 = vunpack.c.h.b16 %v1730
  %v1779 = vunpack.c.l.b16 %v1731
  %v1780 = vunpack.c.l.b16 %v1732
  %v1781 = vunpack.c.h.b16 %v1732
  %v1782 = vunpack.c.l.b16 %v1733
  %v1783 = vunpack.c.h.b16 %v1733
  %v1784 = vunpack.c.l.b16 %v1734
  %v1785 = vunpack.c.h.b16 %v1734
  %v1786 = vunpack.c.l.b16 %v1735
  %v1787 = vunpack.c.h.b16 %v1735
  %v1788 = vunpack.c.l.b16 %v1736
  %v1789 = vunpack.c.l.b16 %v1737
  %v1790 = vunpack.c.h.b16 %v1737
  %v1791 = vunpack.c.l.b16 %v1738
  %v1792 = vunpack.c.h.b16 %v1738
  %v1793 = vunpack.c.l.b16 %v1739
  %v1794 = vunpack.c.h.b16 %v1739
  %v1795 = vunpack.c.l.b16 %v1740
  %v1796 = vunpack.c.h.b16 %v1740
  %v1797 = vunpack.c.l.b16 %v1741
  %v1798 = vpack.c.b16 %v1771, %v1762
  %v1799 = vpack.c.b16 %v1772, %v1763
  %v1800 = vpack.c.b16 %v1773, %v1764
  %v1801 = vpack.c.b16 %v1774, %v1765
  %v1802 = vpack.c.b16 %v1775, %v1766
  %v1803 = vpack.c.b16 %v1776, %v1767
  %v1804 = vpack.c.b16 %v1777, %v1768
  %v1805 = vpack.c.b16 %v1778, %v1769
  %v1806 = vpack.c.b16 %v1779, %v1770
  %v1807 = vpack.c.b16 %v1789, %v1780
  %v1808 = vpack.c.b16 %v1790, %v1781
  %v1809 = vpack.c.b16 %v1791, %v1782
  %v1810 = vpack.c.b16 %v1792, %v1783
  %v1811 = vpack.c.b16 %v1793, %v1784
  %v1812 = vpack.c.b16 %v1794, %v1785
  %v1813 = vpack.c.b16 %v1795, %v1786
  %v1814 = vpack.c.b16 %v1796, %v1787
  %v1815 = vpack.c.b16 %v1797, %v1788
  %1834 = vmatprep.subr.bf16.mxu0 0
  %1835 = vmatpush1.bf16.msra.mxu0 %v564
  %1836 = vmatprep.subr.bf16.mxu0 0
  %1837 = vmatpush1.bf16.msra.mxu0 %v565
  %1838 = vmatprep.subr.bf16.mxu0 0
  %1839 = vmatpush1.bf16.msra.mxu0 %v566
  %1840 = vmatprep.subr.bf16.mxu0 0
  %1841 = vmatpush1.bf16.msra.mxu0 %v567
  %1842 = vmatprep.subr.bf16.mxu0 0
  %1843 = vmatpush1.bf16.msra.mxu0 %v568
  %1844 = vmatprep.subr.bf16.mxu0 0
  %1845 = vmatpush1.bf16.msra.mxu0 %v569
  %1846 = vmatprep.subr.bf16.mxu0 0
  %1847 = vmatpush1.bf16.msra.mxu0 %v570
  %1848 = vmatprep.subr.bf16.mxu0 0
  %1849 = vmatpush1.bf16.msra.mxu0 %v571
  %1850 = vmatprep.subr.bf16.mxu0 0
  %1851 = vmatpush1.bf16.msra.mxu0 %v572
  %1852 = vmatprep.subr.bf16.mxu0 0
  %1853 = vmatpush1.bf16.msra.mxu0 %v573
  %1854 = vmatprep.subr.bf16.mxu0 0
  %1855 = vmatpush1.bf16.msra.mxu0 %v574
  %1856 = vmatprep.subr.bf16.mxu0 0
  %1857 = vmatpush1.bf16.msra.mxu0 %v575
  %1858 = vmatprep.subr.bf16.mxu0 0
  %1859 = vmatpush1.bf16.msra.mxu0 %v576
  %1860 = vmatprep.subr.bf16.mxu0 0
  %1861 = vmatpush1.bf16.msra.mxu0 %v577
  %1862 = vmatprep.subr.bf16.mxu0 0
  %1863 = vmatpush1.bf16.msra.mxu0 %v578
  %1864 = vmatprep.subr.bf16.mxu0 0
  %1865 = vmatpush1.bf16.msra.mxu0 %v579
  %1866 = vmatprep.mubr.bf16.mxu0 %v1799
  %1867 = vmatmul.mubr.bf16.gmra.mrb[0].mxu0 %v1798
  %v1868 = vpop.f32.mrb[0].mxu0
  %v1869 = vadd.f32 0.0, %v1868
  %v1870 = vpop.f32.mrb[0].mxu0
  %v1871 = vpop.f32.mrb[0].mxu0
  %v1872 = vadd.f32 0.0, %v1871
  %v1873 = vpop.f32.mrb[0].mxu0
  %1874 = vmatprep.mubr.bf16.mxu0 %v1808
  %1875 = vmatmul.mubr.bf16.gmra.mrb[0].mxu0 %v1807
  %v1876 = vpop.f32.mrb[0].mxu0
  %v1877 = vadd.f32 0.0, %v1876
  %v1878 = vpop.f32.mrb[0].mxu0
  %v1879 = vpop.f32.mrb[0].mxu0
  %v1880 = vadd.f32 0.0, %v1879
  %v1881 = vpop.f32.mrb[0].mxu0
  %1882 = vdwg.mxu0
  %1883 = vmatprep.subr.bf16.mxu0 0
  %1884 = vmatpush1.bf16.msra.mxu0 %v580
  %1885 = vmatprep.subr.bf16.mxu0 0
  %1886 = vmatpush1.bf16.msra.mxu0 %v581
  %1887 = vmatprep.subr.bf16.mxu0 0
  %1888 = vmatpush1.bf16.msra.mxu0 %v582
  %1889 = vmatprep.subr.bf16.mxu0 0
  %1890 = vmatpush1.bf16.msra.mxu0 %v583
  %1891 = vmatprep.subr.bf16.mxu0 0
  %1892 = vmatpush1.bf16.msra.mxu0 %v584
  %1893 = vmatprep.subr.bf16.mxu0 0
  %1894 = vmatpush1.bf16.msra.mxu0 %v585
  %1895 = vmatprep.subr.bf16.mxu0 0
  %1896 = vmatpush1.bf16.msra.mxu0 %v586
  %1897 = vmatprep.subr.bf16.mxu0 0
  %1898 = vmatpush1.bf16.msra.mxu0 %v587
  %1899 = vmatprep.subr.bf16.mxu0 0
  %1900 = vmatpush1.bf16.msra.mxu0 %v588
  %1901 = vmatprep.subr.bf16.mxu0 0
  %1902 = vmatpush1.bf16.msra.mxu0 %v589
  %1903 = vmatprep.subr.bf16.mxu0 0
  %1904 = vmatpush1.bf16.msra.mxu0 %v590
  %1905 = vmatprep.subr.bf16.mxu0 0
  %1906 = vmatpush1.bf16.msra.mxu0 %v591
  %1907 = vmatprep.subr.bf16.mxu0 0
  %1908 = vmatpush1.bf16.msra.mxu0 %v592
  %1909 = vmatprep.subr.bf16.mxu0 0
  %1910 = vmatpush1.bf16.msra.mxu0 %v593
  %1911 = vmatprep.subr.bf16.mxu0 0
  %1912 = vmatpush1.bf16.msra.mxu0 %v594
  %1913 = vmatprep.subr.bf16.mxu0 0
  %1914 = vmatpush1.bf16.msra.mxu0 %v595
  %1915 = vmatprep.mubr.bf16.mxu0 %v1801
  %1916 = vmatmul.mubr.bf16.gmra.mrb[0].mxu0 %v1800
  %v1917 = vpop.f32.mrb[0].mxu0
  %v1918 = vadd.f32 %v1869, %v1917
  %v1919 = vpop.f32.mrb[0].mxu0
  %v1920 = vpop.f32.mrb[0].mxu0
  %v1921 = vadd.f32 %v1872, %v1920
  %v1922 = vpop.f32.mrb[0].mxu0
  %1923 = vmatprep.mubr.bf16.mxu0 %v1810
  %1924 = vmatmul.mubr.bf16.gmra.mrb[0].mxu0 %v1809
  %v1925 = vpop.f32.mrb[0].mxu0
  %v1926 = vadd.f32 %v1877, %v1925
  %v1927 = vpop.f32.mrb[0].mxu0
  %v1928 = vpop.f32.mrb[0].mxu0
  %v1929 = vadd.f32 %v1880, %v1928
  %v1930 = vpop.f32.mrb[0].mxu0
  %1931 = vdwg.mxu0
  %1932 = vmatprep.subr.bf16.mxu0 0
  %1933 = vmatpush1.bf16.msra.mxu0 %v596
  %1934 = vmatprep.subr.bf16.mxu0 0
  %1935 = vmatpush1.bf16.msra.mxu0 %v597
  %1936 = vmatprep.subr.bf16.mxu0 0
  %1937 = vmatpush1.bf16.msra.mxu0 %v598
  %1938 = vmatprep.subr.bf16.mxu0 0
  %1939 = vmatpush1.bf16.msra.mxu0 %v599
  %1940 = vmatprep.subr.bf16.mxu0 0
  %1941 = vmatpush1.bf16.msra.mxu0 %v600
  %1942 = vmatprep.subr.bf16.mxu0 0
  %1943 = vmatpush1.bf16.msra.mxu0 %v601
  %1944 = vmatprep.subr.bf16.mxu0 0
  %1945 = vmatpush1.bf16.msra.mxu0 %v602
  %1946 = vmatprep.subr.bf16.mxu0 0
  %1947 = vmatpush1.bf16.msra.mxu0 %v603
  %1948 = vmatprep.subr.bf16.mxu0 0
  %1949 = vmatpush1.bf16.msra.mxu0 %v604
  %1950 = vmatprep.subr.bf16.mxu0 0
  %1951 = vmatpush1.bf16.msra.mxu0 %v605
  %1952 = vmatprep.subr.bf16.mxu0 0
  %1953 = vmatpush1.bf16.msra.mxu0 %v606
  %1954 = vmatprep.subr.bf16.mxu0 0
  %1955 = vmatpush1.bf16.msra.mxu0 %v607
  %1956 = vmatprep.subr.bf16.mxu0 0
  %1957 = vmatpush1.bf16.msra.mxu0 %v608
  %1958 = vmatprep.subr.bf16.mxu0 0
  %1959 = vmatpush1.bf16.msra.mxu0 %v609
  %1960 = vmatprep.subr.bf16.mxu0 0
  %1961 = vmatpush1.bf16.msra.mxu0 %v610
  %1962 = vmatprep.subr.bf16.mxu0 0
  %1963 = vmatpush1.bf16.msra.mxu0 %v611
  %1964 = vmatprep.mubr.bf16.mxu0 %v1803
  %1965 = vmatmul.mubr.bf16.gmra.mrb[0].mxu0 %v1802
  %v1966 = vpop.f32.mrb[0].mxu0
  %v1967 = vadd.f32 %v1918, %v1966
  %v1968 = vpop.f32.mrb[0].mxu0
  %v1969 = vpop.f32.mrb[0].mxu0
  %v1970 = vadd.f32 %v1921, %v1969
  %v1971 = vpop.f32.mrb[0].mxu0
  %1972 = vmatprep.mubr.bf16.mxu0 %v1812
  %1973 = vmatmul.mubr.bf16.gmra.mrb[0].mxu0 %v1811
  %v1974 = vpop.f32.mrb[0].mxu0
  %v1975 = vadd.f32 %v1926, %v1974
  %v1976 = vpop.f32.mrb[0].mxu0
  %v1977 = vpop.f32.mrb[0].mxu0
  %v1978 = vadd.f32 %v1929, %v1977
  %v1979 = vpop.f32.mrb[0].mxu0
  %1980 = vdwg.mxu0
  %1981 = vmatprep.subr.bf16.mxu0 0
  %1982 = vmatpush1.bf16.msra.mxu0 %v612
  %1983 = vmatprep.subr.bf16.mxu0 0
  %1984 = vmatpush1.bf16.msra.mxu0 %v613
  %1985 = vmatprep.subr.bf16.mxu0 0
  %1986 = vmatpush1.bf16.msra.mxu0 %v614
  %1987 = vmatprep.subr.bf16.mxu0 0
  %1988 = vmatpush1.bf16.msra.mxu0 %v615
  %1989 = vmatprep.subr.bf16.mxu0 0
  %1990 = vmatpush1.bf16.msra.mxu0 %v616
  %1991 = vmatprep.subr.bf16.mxu0 0
  %1992 = vmatpush1.bf16.msra.mxu0 %v617
  %1993 = vmatprep.subr.bf16.mxu0 0
  %1994 = vmatpush1.bf16.msra.mxu0 %v618
  %1995 = vmatprep.subr.bf16.mxu0 0
  %1996 = vmatpush1.bf16.msra.mxu0 %v619
  %1997 = vmatprep.subr.bf16.mxu0 0
  %1998 = vmatpush1.bf16.msra.mxu0 %v620
  %1999 = vmatprep.subr.bf16.mxu0 0
  %2000 = vmatpush1.bf16.msra.mxu0 %v621
  %2001 = vmatprep.subr.bf16.mxu0 0
  %2002 = vmatpush1.bf16.msra.mxu0 %v622
  %2003 = vmatprep.subr.bf16.mxu0 0
  %2004 = vmatpush1.bf16.msra.mxu0 %v623
  %2005 = vmatprep.subr.bf16.mxu0 0
  %2006 = vmatpush1.bf16.msra.mxu0 %v624
  %2007 = vmatprep.subr.bf16.mxu0 0
  %2008 = vmatpush1.bf16.msra.mxu0 %v625
  %2009 = vmatprep.subr.bf16.mxu0 0
  %2010 = vmatpush1.bf16.msra.mxu0 %v626
  %2011 = vmatprep.subr.bf16.mxu0 0
  %2012 = vmatpush1.bf16.msra.mxu0 %v627
  %2013 = vmatprep.mubr.bf16.mxu0 %v1805
  %2014 = vmatmul.mubr.bf16.gmra.mrb[0].mxu0 %v1804
  %v2015 = vpop.f32.mrb[0].mxu0
  %v2016 = vadd.f32 %v1967, %v2015
  %v2017 = vpop.f32.mrb[0].mxu0
  %v2018 = vpop.f32.mrb[0].mxu0
  %v2019 = vadd.f32 %v1970, %v2018
  %v2020 = vpop.f32.mrb[0].mxu0
  %2021 = vmatprep.mubr.bf16.mxu0 %v1814
  %2022 = vmatmul.mubr.bf16.gmra.mrb[0].mxu0 %v1813
  %v2023 = vpop.f32.mrb[0].mxu0
  %v2024 = vadd.f32 %v1975, %v2023
  %v2025 = vpop.f32.mrb[0].mxu0
  %v2026 = vpop.f32.mrb[0].mxu0
  %v2027 = vadd.f32 %v1978, %v2026
  %v2028 = vpop.f32.mrb[0].mxu0
  %2029 = vdwg.mxu0
  %2030 = vmatprep.subr.bf16.mxu0 0
  %2031 = vmatpush1.bf16.msra.mxu0 %v628
  %2032 = vmatprep.subr.bf16.mxu0 0
  %2033 = vmatpush1.bf16.msra.mxu0 %v629
  %2034 = vmatprep.subr.bf16.mxu0 0
  %2035 = vmatpush1.bf16.msra.mxu0 %v630
  %2036 = vmatprep.subr.bf16.mxu0 0
  %2037 = vmatpush1.bf16.msra.mxu0 %v631
  %2038 = vmatprep.subr.bf16.mxu0 0
  %2039 = vmatpush1.bf16.msra.mxu0 %v632
  %2040 = vmatprep.subr.bf16.mxu0 0
  %2041 = vmatpush1.bf16.msra.mxu0 %v633
  %2042 = vmatprep.subr.bf16.mxu0 0
  %2043 = vmatpush1.bf16.msra.mxu0 %v634
  %2044 = vmatprep.subr.bf16.mxu0 0
  %2045 = vmatpush1.bf16.msra.mxu0 %v635
  %2046 = vmatprep.subr.bf16.mxu0 0
  %2047 = vmatpush1.bf16.msra.mxu0 0
  %2048 = vmatprep.subr.bf16.mxu0 0
  %2049 = vmatpush1.bf16.msra.mxu0 0
  %2050 = vmatprep.subr.bf16.mxu0 0
  %2051 = vmatpush1.bf16.msra.mxu0 0
  %2052 = vmatprep.subr.bf16.mxu0 0
  %2053 = vmatpush1.bf16.msra.mxu0 0
  %2054 = vmatprep.subr.bf16.mxu0 0
  %2055 = vmatpush1.bf16.msra.mxu0 0
  %2056 = vmatprep.subr.bf16.mxu0 0
  %2057 = vmatpush1.bf16.msra.mxu0 0
  %2058 = vmatprep.subr.bf16.mxu0 0
  %2059 = vmatpush1.bf16.msra.mxu0 0
  %2060 = vmatprep.subr.bf16.mxu0 0
  %2061 = vmatpush1.bf16.msra.mxu0 0
  %2062 = vmatprep.mubr.bf16.mxu0 0
  %2063 = vmatmul.mubr.bf16.gmra.mrb[0].mxu0 %v1806
  %v2064 = vpop.f32.mrb[0].mxu0
  %v2065 = vadd.f32 %v2016, %v2064
  %v2066 = vpop.f32.mrb[0].mxu0
  %v2067 = vpop.f32.mrb[0].mxu0
  %v2068 = vadd.f32 %v2019, %v2067
  %v2069 = vpop.f32.mrb[0].mxu0
  %2070 = vmatprep.mubr.bf16.mxu0 0
  %2071 = vmatmul.mubr.bf16.gmra.mrb[0].mxu0 %v1815
  %v2072 = vpop.f32.mrb[0].mxu0
  %v2073 = vadd.f32 %v2024, %v2072
  %v2074 = vpop.f32.mrb[0].mxu0
  %v2075 = vpop.f32.mrb[0].mxu0
  %v2076 = vadd.f32 %v2027, %v2075
  %v2077 = vpop.f32.mrb[0].mxu0
  %2078 = vdwg.mxu0
  %v2079 = vmul.f32 %v2065, %v957
  %v2080 = vmul.f32 %v2068, %v957
  %v2081 = vmul.f32 %v2073, %v957
  %v2082 = vmul.f32 %v2076, %v957
  %v2083 = vadd.f32 %v2079, %v967
  %v2084 = vadd.f32 %v2080, %v967
  %v2085 = vadd.f32 %v2081, %v967
  %v2086 = vadd.f32 %v2082, %v967
  %v2087 = vmax.f32 %v2083, 0.0
  %v2088 = vmax.f32 %v2084, 0.0
  %v2089 = vmax.f32 %v2085, 0.0
  %v2090 = vmax.f32 %v2086, 0.0
  %v2091 = vmax.f32 %v1717, %v2087
  %v2092 = vmax.f32 %v1718, %v2088
  %v2093 = vmax.f32 %v1719, %v2089
  %v2094 = vmax.f32 %v1720, %v2090
  %v2095 = vmax.f32 %v1347, %v2091
  %v2096 = vmax.f32 %v1348, %v2092
  %v2097 = vmax.f32 %v1349, %v2093
  %v2098 = vmax.f32 %v1350, %v2094
  %2099 = vst [vmem:[%s4] sm:$0xff] %v2095
  %2100 = vst [vmem:[%s4 + $0x8] sm:$0xff] %v2096
  %2101 = vst [vmem:[%s4 + $0x10] sm:$0xff] %v2097
  %2102 = vst [vmem:[%s4 + $0x18] sm:$0xff] %v2098
  // Predicated region
  $region18: #{cnn_forward.11} parent=0 // pred_check
    _
  $region19: #{cnn_forward.11} parent=0 // pred_check_branch
    %2104 = sbr.rel (0) target = $region21
  $region20: #{cnn_forward.11} parent=0 // pred_region
    _
  $region21: #{cnn_forward.11} parent=0 // pred_fallthru
    _
  // Predicated region
  $region22: #{cnn_forward.11} parent=0 // pred_check
    _
  $region23: #{cnn_forward.11} parent=0 // pred_check_branch
    %2106 = sbr.rel (0) target = $region25
  $region24: #{cnn_forward.11} parent=0 // pred_region
    _
  $region25: #{cnn_forward.11} parent=0 // pred_fallthru
    _

// kernel: cnn_forward.12
$region0: #{cnn_forward.12}
  #allocation0 [shape = 'u32[]', space=smem, size = 0x4, offset = 0x4, fixed_abs, tag = 'smem constant byte address 0x4 - core index']
  #allocation1 [shape = 'u32[144,128]{1,0:T(1,128)}', space=vmem, size = 0x12000, scoped, tag = 'internal scratch']
  %s0 = inlined_call_operand.vmem [shape: bf16[32,1152], index: 0, kind: input, shape index: {}]
  %s1 = inlined_call_operand.vmem [shape: bf16[1152,256], index: 1, kind: input, shape index: {}]
  %s2 = inlined_call_operand.vmem [shape: f32[1,256], index: 2, kind: input, shape index: {}]
  %s3 = inlined_call_operand.vmem [shape: f32[1,256], index: 3, kind: input, shape index: {}]
  %s4 = inlined_call_operand.vmem [shape: f32[32,256], index: 4, kind: output, shape index: {}]
  %s5 = sld [smem:[#allocation0]]
  $region26: #{cnn_forward.12} parent=0
    _
  %s7 = ssub.s32 1, %s5
  %s8 = scalar_select 0, %s7, %s5
  // Predicated region
  $region2: #{cnn_forward.12} parent=0 // pred_check
    _
  $region3: #{cnn_forward.12} parent=0 // pred_check_branch
    %10 = sbr.rel (0) target = $region5
  $region4: #{cnn_forward.12} parent=0 // pred_region
    _
  $region5: #{cnn_forward.12} parent=0 // pred_fallthru
    _
  // Predicated region
  $region6: #{cnn_forward.12} parent=0 // pred_check
    _
  $region7: #{cnn_forward.12} parent=0 // pred_check_branch
    %12 = sbr.rel (0) target = $region9
  $region8: #{cnn_forward.12} parent=0 // pred_region
    _
  $region9: #{cnn_forward.12} parent=0 // pred_fallthru
    _
  // Predicated region
  $region10: #{cnn_forward.12} parent=0 // pred_check
    _
  $region11: #{cnn_forward.12} parent=0 // pred_check_branch
    %14 = sbr.rel (0) target = $region13
  $region12: #{cnn_forward.12} parent=0 // pred_region
    _
  $region13: #{cnn_forward.12} parent=0 // pred_fallthru
    _
  // Predicated region
  $region14: #{cnn_forward.12} parent=0 // pred_check
    _
  $region15: #{cnn_forward.12} parent=0 // pred_check_branch
    %16 = sbr.rel (0) target = $region17
  $region16: #{cnn_forward.12} parent=0 // pred_region
    _
  $region17: #{cnn_forward.12} parent=0 // pred_fallthru
    _
  %v18 = vld [vmem:[%s0] sm:$0xff]
  %v19 = vld [vmem:[%s0 + $0x8] sm:$0xff]
  %v20 = vld [vmem:[%s0 + $0x10] sm:$0xff]
  %v21 = vld [vmem:[%s0 + $0x18] sm:$0xff]
  %v22 = vld [vmem:[%s0 + $0x20] sm:$0xf]
  %v23 = vld [vmem:[%s0 + $0x24] sm:$0xff]
  %v24 = vld [vmem:[%s0 + $0x2c] sm:$0xff]
  %v25 = vld [vmem:[%s0 + $0x34] sm:$0xff]
  %v26 = vld [vmem:[%s0 + $0x3c] sm:$0xff]
  %v27 = vld [vmem:[%s0 + $0x44] sm:$0xf]
  %v28 = vld [vmem:[%s0 + $0x48] sm:$0xff]
  %v29 = vld [vmem:[%s0 + $0x50] sm:$0xff]
  %v30 = vld [vmem:[%s0 + $0x58] sm:$0xff]
  %v31 = vld [vmem:[%s0 + $0x60] sm:$0xff]
  %v32 = vld [vmem:[%s0 + $0x68] sm:$0xf]
  %v33 = vld [vmem:[%s0 + $0x6c] sm:$0xff]
  %v34 = vld [vmem:[%s0 + $0x74] sm:$0xff]
  %v35 = vld [vmem:[%s0 + $0x7c] sm:$0xff]
  %v36 = vld [vmem:[%s0 + $0x84] sm:$0xff]
  %v37 = vld [vmem:[%s0 + $0x8c] sm:$0xf]
  %v38 = vld [vmem:[%s1] sm:$0xff]
  %v39 = vld [vmem:[%s1 + $0x8] sm:$0xff]
  %v40 = vld [vmem:[%s1 + $0x10] sm:$0xff]
  %v41 = vld [vmem:[%s1 + $0x18] sm:$0xff]
  %v42 = vld [vmem:[%s1 + $0x20] sm:$0xff]
  %v43 = vld [vmem:[%s1 + $0x28] sm:$0xff]
  %v44 = vld [vmem:[%s1 + $0x30] sm:$0xff]
  %v45 = vld [vmem:[%s1 + $0x38] sm:$0xff]
  %v46 = vld [vmem:[%s1 + $0x40] sm:$0xff]
  %v47 = vld [vmem:[%s1 + $0x48] sm:$0xff]
  %v48 = vld [vmem:[%s1 + $0x50] sm:$0xff]
  %v49 = vld [vmem:[%s1 + $0x58] sm:$0xff]
  %v50 = vld [vmem:[%s1 + $0x60] sm:$0xff]
  %v51 = vld [vmem:[%s1 + $0x68] sm:$0xff]
  %v52 = vld [vmem:[%s1 + $0x70] sm:$0xff]
  %v53 = vld [vmem:[%s1 + $0x78] sm:$0xff]
  %v54 = vld [vmem:[%s1 + $0x80] sm:$0xff]
  %v55 = vld [vmem:[%s1 + $0x88] sm:$0xff]
  %v56 = vld [vmem:[%s1 + $0x90] sm:$0xff]
  %v57 = vld [vmem:[%s1 + $0x98] sm:$0xff]
  %v58 = vld [vmem:[%s1 + $0xa0] sm:$0xff]
  %v59 = vld [vmem:[%s1 + $0xa8] sm:$0xff]
  %v60 = vld [vmem:[%s1 + $0xb0] sm:$0xff]
  %v61 = vld [vmem:[%s1 + $0xb8] sm:$0xff]
  %v62 = vld [vmem:[%s1 + $0xc0] sm:$0xff]
  %v63 = vld [vmem:[%s1 + $0xc8] sm:$0xff]
  %v64 = vld [vmem:[%s1 + $0xd0] sm:$0xff]
  %v65 = vld [vmem:[%s1 + $0xd8] sm:$0xff]
  %v66 = vld [vmem:[%s1 + $0xe0] sm:$0xff]
  %v67 = vld [vmem:[%s1 + $0xe8] sm:$0xff]
  %v68 = vld [vmem:[%s1 + $0xf0] sm:$0xff]
  %v69 = vld [vmem:[%s1 + $0xf8] sm:$0xff]
  %v70 = vld [vmem:[%s1 + $0x100] sm:$0xff]
  %v71 = vld [vmem:[%s1 + $0x108] sm:$0xff]
  %v72 = vld [vmem:[%s1 + $0x110] sm:$0xff]
  %v73 = vld [vmem:[%s1 + $0x118] sm:$0xff]
  %v74 = vld [vmem:[%s1 + $0x120] sm:$0xff]
  %v75 = vld [vmem:[%s1 + $0x128] sm:$0xff]
  %v76 = vld [vmem:[%s1 + $0x130] sm:$0xff]
  %v77 = vld [vmem:[%s1 + $0x138] sm:$0xff]
  %v78 = vld [vmem:[%s1 + $0x140] sm:$0xff]
  %v79 = vld [vmem:[%s1 + $0x148] sm:$0xff]
  %v80 = vld [vmem:[%s1 + $0x150] sm:$0xff]
  %v81 = vld [vmem:[%s1 + $0x158] sm:$0xff]
  %v82 = vld [vmem:[%s1 + $0x160] sm:$0xff]
  %v83 = vld [vmem:[%s1 + $0x168] sm:$0xff]
  %v84 = vld [vmem:[%s1 + $0x170] sm:$0xff]
  %v85 = vld [vmem:[%s1 + $0x178] sm:$0xff]
  %v86 = vld [vmem:[%s1 + $0x180] sm:$0xff]
  %v87 = vld [vmem:[%s1 + $0x188] sm:$0xff]
  %v88 = vld [vmem:[%s1 + $0x190] sm:$0xff]
  %v89 = vld [vmem:[%s1 + $0x198] sm:$0xff]
  %v90 = vld [vmem:[%s1 + $0x1a0] sm:$0xff]
  %v91 = vld [vmem:[%s1 + $0x1a8] sm:$0xff]
  %v92 = vld [vmem:[%s1 + $0x1b0] sm:$0xff]
  %v93 = vld [vmem:[%s1 + $0x1b8] sm:$0xff]
  %v94 = vld [vmem:[%s1 + $0x1c0] sm:$0xff]
  %v95 = vld [vmem:[%s1 + $0x1c8] sm:$0xff]
  %v96 = vld [vmem:[%s1 + $0x1d0] sm:$0xff]
  %v97 = vld [vmem:[%s1 + $0x1d8] sm:$0xff]
  %v98 = vld [vmem:[%s1 + $0x1e0] sm:$0xff]
  %v99 = vld [vmem:[%s1 + $0x1e8] sm:$0xff]
  %v100 = vld [vmem:[%s1 + $0x1f0] sm:$0xff]
  %v101 = vld [vmem:[%s1 + $0x1f8] sm:$0xff]
  %v102 = vld [vmem:[%s1 + $0x200] sm:$0xff]
  %v103 = vld [vmem:[%s1 + $0x208] sm:$0xff]
  %v104 = vld [vmem:[%s1 + $0x210] sm:$0xff]
  %v105 = vld [vmem:[%s1 + $0x218] sm:$0xff]
  %v106 = vld [vmem:[%s1 + $0x220] sm:$0xff]
  %v107 = vld [vmem:[%s1 + $0x228] sm:$0xff]
  %v108 = vld [vmem:[%s1 + $0x230] sm:$0xff]
  %v109 = vld [vmem:[%s1 + $0x238] sm:$0xff]
  %v110 = vld [vmem:[%s1 + $0x240] sm:$0xff]
  %v111 = vld [vmem:[%s1 + $0x248] sm:$0xff]
  %v112 = vld [vmem:[%s1 + $0x250] sm:$0xff]
  %v113 = vld [vmem:[%s1 + $0x258] sm:$0xff]
  %v114 = vld [vmem:[%s1 + $0x260] sm:$0xff]
  %v115 = vld [vmem:[%s1 + $0x268] sm:$0xff]
  %v116 = vld [vmem:[%s1 + $0x270] sm:$0xff]
  %v117 = vld [vmem:[%s1 + $0x278] sm:$0xff]
  %v118 = vld [vmem:[%s1 + $0x280] sm:$0xff]
  %v119 = vld [vmem:[%s1 + $0x288] sm:$0xff]
  %v120 = vld [vmem:[%s1 + $0x290] sm:$0xff]
  %v121 = vld [vmem:[%s1 + $0x298] sm:$0xff]
  %v122 = vld [vmem:[%s1 + $0x2a0] sm:$0xff]
  %v123 = vld [vmem:[%s1 + $0x2a8] sm:$0xff]
  %v124 = vld [vmem:[%s1 + $0x2b0] sm:$0xff]
  %v125 = vld [vmem:[%s1 + $0x2b8] sm:$0xff]
  %v126 = vld [vmem:[%s1 + $0x2c0] sm:$0xff]
  %v127 = vld [vmem:[%s1 + $0x2c8] sm:$0xff]
  %v128 = vld [vmem:[%s1 + $0x2d0] sm:$0xff]
  %v129 = vld [vmem:[%s1 + $0x2d8] sm:$0xff]
  %v130 = vld [vmem:[%s1 + $0x2e0] sm:$0xff]
  %v131 = vld [vmem:[%s1 + $0x2e8] sm:$0xff]
  %v132 = vld [vmem:[%s1 + $0x2f0] sm:$0xff]
  %v133 = vld [vmem:[%s1 + $0x2f8] sm:$0xff]
  %v134 = vld [vmem:[%s1 + $0x300] sm:$0xff]
  %v135 = vld [vmem:[%s1 + $0x308] sm:$0xff]
  %v136 = vld [vmem:[%s1 + $0x310] sm:$0xff]
  %v137 = vld [vmem:[%s1 + $0x318] sm:$0xff]
  %v138 = vld [vmem:[%s1 + $0x320] sm:$0xff]
  %v139 = vld [vmem:[%s1 + $0x328] sm:$0xff]
  %v140 = vld [vmem:[%s1 + $0x330] sm:$0xff]
  %v141 = vld [vmem:[%s1 + $0x338] sm:$0xff]
  %v142 = vld [vmem:[%s1 + $0x340] sm:$0xff]
  %v143 = vld [vmem:[%s1 + $0x348] sm:$0xff]
  %v144 = vld [vmem:[%s1 + $0x350] sm:$0xff]
  %v145 = vld [vmem:[%s1 + $0x358] sm:$0xff]
  %v146 = vld [vmem:[%s1 + $0x360] sm:$0xff]
  %v147 = vld [vmem:[%s1 + $0x368] sm:$0xff]
  %v148 = vld [vmem:[%s1 + $0x370] sm:$0xff]
  %v149 = vld [vmem:[%s1 + $0x378] sm:$0xff]
  %v150 = vld [vmem:[%s1 + $0x380] sm:$0xff]
  %v151 = vld [vmem:[%s1 + $0x388] sm:$0xff]
  %v152 = vld [vmem:[%s1 + $0x390] sm:$0xff]
  %v153 = vld [vmem:[%s1 + $0x398] sm:$0xff]
  %v154 = vld [vmem:[%s1 + $0x3a0] sm:$0xff]
  %v155 = vld [vmem:[%s1 + $0x3a8] sm:$0xff]
  %v156 = vld [vmem:[%s1 + $0x3b0] sm:$0xff]
  %v157 = vld [vmem:[%s1 + $0x3b8] sm:$0xff]
  %v158 = vld [vmem:[%s1 + $0x3c0] sm:$0xff]
  %v159 = vld [vmem:[%s1 + $0x3c8] sm:$0xff]
  %v160 = vld [vmem:[%s1 + $0x3d0] sm:$0xff]
  %v161 = vld [vmem:[%s1 + $0x3d8] sm:$0xff]
  %v162 = vld [vmem:[%s1 + $0x3e0] sm:$0xff]
  %v163 = vld [vmem:[%s1 + $0x3e8] sm:$0xff]
  %v164 = vld [vmem:[%s1 + $0x3f0] sm:$0xff]
  %v165 = vld [vmem:[%s1 + $0x3f8] sm:$0xff]
  %v166 = vld [vmem:[%s1 + $0x400] sm:$0xff]
  %v167 = vld [vmem:[%s1 + $0x408] sm:$0xff]
  %v168 = vld [vmem:[%s1 + $0x410] sm:$0xff]
  %v169 = vld [vmem:[%s1 + $0x418] sm:$0xff]
  %v170 = vld [vmem:[%s1 + $0x420] sm:$0xff]
  %v171 = vld [vmem:[%s1 + $0x428] sm:$0xff]
  %v172 = vld [vmem:[%s1 + $0x430] sm:$0xff]
  %v173 = vld [vmem:[%s1 + $0x438] sm:$0xff]
  %v174 = vld [vmem:[%s1 + $0x440] sm:$0xff]
  %v175 = vld [vmem:[%s1 + $0x448] sm:$0xff]
  %v176 = vld [vmem:[%s1 + $0x450] sm:$0xff]
  %v177 = vld [vmem:[%s1 + $0x458] sm:$0xff]
  %v178 = vld [vmem:[%s1 + $0x460] sm:$0xff]
  %v179 = vld [vmem:[%s1 + $0x468] sm:$0xff]
  %v180 = vld [vmem:[%s1 + $0x470] sm:$0xff]
  %v181 = vld [vmem:[%s1 + $0x478] sm:$0xff]
  %v202 = vunpack.c.l.b16 %v18
  %v203 = vunpack.c.h.b16 %v18
  %v204 = vunpack.c.l.b16 %v19
  %v205 = vunpack.c.h.b16 %v19
  %v206 = vunpack.c.l.b16 %v20
  %v207 = vunpack.c.h.b16 %v20
  %v208 = vunpack.c.l.b16 %v21
  %v209 = vunpack.c.h.b16 %v21
  %v210 = vunpack.c.l.b16 %v22
  %v211 = vunpack.c.l.b16 %v23
  %v212 = vunpack.c.h.b16 %v23
  %v213 = vunpack.c.l.b16 %v24
  %v214 = vunpack.c.h.b16 %v24
  %v215 = vunpack.c.l.b16 %v25
  %v216 = vunpack.c.h.b16 %v25
  %v217 = vunpack.c.l.b16 %v26
  %v218 = vunpack.c.h.b16 %v26
  %v219 = vunpack.c.l.b16 %v27
  %v220 = vunpack.c.l.b16 %v28
  %v221 = vunpack.c.h.b16 %v28
  %v222 = vunpack.c.l.b16 %v29
  %v223 = vunpack.c.h.b16 %v29
  %v224 = vunpack.c.l.b16 %v30
  %v225 = vunpack.c.h.b16 %v30
  %v226 = vunpack.c.l.b16 %v31
  %v227 = vunpack.c.h.b16 %v31
  %v228 = vunpack.c.l.b16 %v32
  %v229 = vunpack.c.l.b16 %v33
  %v230 = vunpack.c.h.b16 %v33
  %v231 = vunpack.c.l.b16 %v34
  %v232 = vunpack.c.h.b16 %v34
  %v233 = vunpack.c.l.b16 %v35
  %v234 = vunpack.c.h.b16 %v35
  %v235 = vunpack.c.l.b16 %v36
  %v236 = vunpack.c.h.b16 %v36
  %v237 = vunpack.c.l.b16 %v37
  %v238 = vpack.c.b16 %v211, %v202
  %v239 = vpack.c.b16 %v212, %v203
  %v240 = vpack.c.b16 %v213, %v204
  %v241 = vpack.c.b16 %v214, %v205
  %v242 = vpack.c.b16 %v215, %v206
  %v243 = vpack.c.b16 %v216, %v207
  %v244 = vpack.c.b16 %v217, %v208
  %v245 = vpack.c.b16 %v218, %v209
  %v246 = vpack.c.b16 %v219, %v210
  %v247 = vpack.c.b16 %v229, %v220
  %v248 = vpack.c.b16 %v230, %v221
  %v249 = vpack.c.b16 %v231, %v222
  %v250 = vpack.c.b16 %v232, %v223
  %v251 = vpack.c.b16 %v233, %v224
  %v252 = vpack.c.b16 %v234, %v225
  %v253 = vpack.c.b16 %v235, %v226
  %v254 = vpack.c.b16 %v236, %v227
  %v255 = vpack.c.b16 %v237, %v228
  %v418 = vunpack.c.l.b16 %v38
  %v419 = vunpack.c.h.b16 %v38
  %v420 = vunpack.c.l.b16 %v39
  %v421 = vunpack.c.h.b16 %v39
  %v422 = vunpack.c.l.b16 %v40
  %v423 = vunpack.c.h.b16 %v40
  %v424 = vunpack.c.l.b16 %v41
  %v425 = vunpack.c.h.b16 %v41
  %v426 = vunpack.c.l.b16 %v42
  %v427 = vunpack.c.h.b16 %v42
  %v428 = vunpack.c.l.b16 %v43
  %v429 = vunpack.c.h.b16 %v43
  %v430 = vunpack.c.l.b16 %v44
  %v431 = vunpack.c.h.b16 %v44
  %v432 = vunpack.c.l.b16 %v45
  %v433 = vunpack.c.h.b16 %v45
  %v434 = vunpack.c.l.b16 %v46
  %v435 = vunpack.c.h.b16 %v46
  %v436 = vunpack.c.l.b16 %v47
  %v437 = vunpack.c.h.b16 %v47
  %v438 = vunpack.c.l.b16 %v48
  %v439 = vunpack.c.h.b16 %v48
  %v440 = vunpack.c.l.b16 %v49
  %v441 = vunpack.c.h.b16 %v49
  %v442 = vunpack.c.l.b16 %v50
  %v443 = vunpack.c.h.b16 %v50
  %v444 = vunpack.c.l.b16 %v51
  %v445 = vunpack.c.h.b16 %v51
  %v446 = vunpack.c.l.b16 %v52
  %v447 = vunpack.c.h.b16 %v52
  %v448 = vunpack.c.l.b16 %v53
  %v449 = vunpack.c.h.b16 %v53
  %v450 = vunpack.c.l.b16 %v54
  %v451 = vunpack.c.h.b16 %v54
  %v452 = vunpack.c.l.b16 %v55
  %v453 = vunpack.c.h.b16 %v55
  %v454 = vunpack.c.l.b16 %v56
  %v455 = vunpack.c.h.b16 %v56
  %v456 = vunpack.c.l.b16 %v57
  %v457 = vunpack.c.h.b16 %v57
  %v458 = vunpack.c.l.b16 %v58
  %v459 = vunpack.c.h.b16 %v58
  %v460 = vunpack.c.l.b16 %v59
  %v461 = vunpack.c.h.b16 %v59
  %v462 = vunpack.c.l.b16 %v60
  %v463 = vunpack.c.h.b16 %v60
  %v464 = vunpack.c.l.b16 %v61
  %v465 = vunpack.c.h.b16 %v61
  %v466 = vunpack.c.l.b16 %v62
  %v467 = vunpack.c.h.b16 %v62
  %v468 = vunpack.c.l.b16 %v63
  %v469 = vunpack.c.h.b16 %v63
  %v470 = vunpack.c.l.b16 %v64
  %v471 = vunpack.c.h.b16 %v64
  %v472 = vunpack.c.l.b16 %v65
  %v473 = vunpack.c.h.b16 %v65
  %v474 = vunpack.c.l.b16 %v66
  %v475 = vunpack.c.h.b16 %v66
  %v476 = vunpack.c.l.b16 %v67
  %v477 = vunpack.c.h.b16 %v67
  %v478 = vunpack.c.l.b16 %v68
  %v479 = vunpack.c.h.b16 %v68
  %v480 = vunpack.c.l.b16 %v69
  %v481 = vunpack.c.h.b16 %v69
  %v482 = vunpack.c.l.b16 %v70
  %v483 = vunpack.c.h.b16 %v70
  %v484 = vunpack.c.l.b16 %v71
  %v485 = vunpack.c.h.b16 %v71
  %v486 = vunpack.c.l.b16 %v72
  %v487 = vunpack.c.h.b16 %v72
  %v488 = vunpack.c.l.b16 %v73
  %v489 = vunpack.c.h.b16 %v73
  %v490 = vunpack.c.l.b16 %v74
  %v491 = vunpack.c.h.b16 %v74
  %v492 = vunpack.c.l.b16 %v75
  %v493 = vunpack.c.h.b16 %v75
  %v494 = vunpack.c.l.b16 %v76
  %v495 = vunpack.c.h.b16 %v76
  %v496 = vunpack.c.l.b16 %v77
  %v497 = vunpack.c.h.b16 %v77
  %v498 = vunpack.c.l.b16 %v78
  %v499 = vunpack.c.h.b16 %v78
  %v500 = vunpack.c.l.b16 %v79
  %v501 = vunpack.c.h.b16 %v79
  %v502 = vunpack.c.l.b16 %v80
  %v503 = vunpack.c.h.b16 %v80
  %v504 = vunpack.c.l.b16 %v81
  %v505 = vunpack.c.h.b16 %v81
  %v506 = vunpack.c.l.b16 %v82
  %v507 = vunpack.c.h.b16 %v82
  %v508 = vunpack.c.l.b16 %v83
  %v509 = vunpack.c.h.b16 %v83
  %v510 = vunpack.c.l.b16 %v84
  %v511 = vunpack.c.h.b16 %v84
  %v512 = vunpack.c.l.b16 %v85
  %v513 = vunpack.c.h.b16 %v85
  %v514 = vunpack.c.l.b16 %v86
  %v515 = vunpack.c.h.b16 %v86
  %v516 = vunpack.c.l.b16 %v87
  %v517 = vunpack.c.h.b16 %v87
  %v518 = vunpack.c.l.b16 %v88
  %v519 = vunpack.c.h.b16 %v88
  %v520 = vunpack.c.l.b16 %v89
  %v521 = vunpack.c.h.b16 %v89
  %v522 = vunpack.c.l.b16 %v90
  %v523 = vunpack.c.h.b16 %v90
  %v524 = vunpack.c.l.b16 %v91
  %v525 = vunpack.c.h.b16 %v91
  %v526 = vunpack.c.l.b16 %v92
  %v527 = vunpack.c.h.b16 %v92
  %v528 = vunpack.c.l.b16 %v93
  %v529 = vunpack.c.h.b16 %v93
  %v530 = vunpack.c.l.b16 %v94
  %v531 = vunpack.c.h.b16 %v94
  %v532 = vunpack.c.l.b16 %v95
  %v533 = vunpack.c.h.b16 %v95
  %v534 = vunpack.c.l.b16 %v96
  %v535 = vunpack.c.h.b16 %v96
  %v536 = vunpack.c.l.b16 %v97
  %v537 = vunpack.c.h.b16 %v97
  %v538 = vunpack.c.l.b16 %v98
  %v539 = vunpack.c.h.b16 %v98
  %v540 = vunpack.c.l.b16 %v99
  %v541 = vunpack.c.h.b16 %v99
  %v542 = vunpack.c.l.b16 %v100
  %v543 = vunpack.c.h.b16 %v100
  %v544 = vunpack.c.l.b16 %v101
  %v545 = vunpack.c.h.b16 %v101
  %v546 = vunpack.c.l.b16 %v102
  %v547 = vunpack.c.h.b16 %v102
  %v548 = vunpack.c.l.b16 %v103
  %v549 = vunpack.c.h.b16 %v103
  %v550 = vunpack.c.l.b16 %v104
  %v551 = vunpack.c.h.b16 %v104
  %v552 = vunpack.c.l.b16 %v105
  %v553 = vunpack.c.h.b16 %v105
  %v554 = vunpack.c.l.b16 %v106
  %v555 = vunpack.c.h.b16 %v106
  %v556 = vunpack.c.l.b16 %v107
  %v557 = vunpack.c.h.b16 %v107
  %v558 = vunpack.c.l.b16 %v108
  %v559 = vunpack.c.h.b16 %v108
  %v560 = vunpack.c.l.b16 %v109
  %v561 = vunpack.c.h.b16 %v109
  %v562 = vunpack.c.l.b16 %v110
  %v563 = vunpack.c.h.b16 %v110
  %v564 = vunpack.c.l.b16 %v111
  %v565 = vunpack.c.h.b16 %v111
  %v566 = vunpack.c.l.b16 %v112
  %v567 = vunpack.c.h.b16 %v112
  %v568 = vunpack.c.l.b16 %v113
  %v569 = vunpack.c.h.b16 %v113
  %v570 = vunpack.c.l.b16 %v114
  %v571 = vunpack.c.h.b16 %v114
  %v572 = vunpack.c.l.b16 %v115
  %v573 = vunpack.c.h.b16 %v115
  %v574 = vunpack.c.l.b16 %v116
  %v575 = vunpack.c.h.b16 %v116
  %v576 = vunpack.c.l.b16 %v117
  %v577 = vunpack.c.h.b16 %v117
  %v578 = vunpack.c.l.b16 %v118
  %v579 = vunpack.c.h.b16 %v118
  %v580 = vunpack.c.l.b16 %v119
  %v581 = vunpack.c.h.b16 %v119
  %v582 = vunpack.c.l.b16 %v120
  %v583 = vunpack.c.h.b16 %v120
  %v584 = vunpack.c.l.b16 %v121
  %v585 = vunpack.c.h.b16 %v121
  %v586 = vunpack.c.l.b16 %v122
  %v587 = vunpack.c.h.b16 %v122
  %v588 = vunpack.c.l.b16 %v123
  %v589 = vunpack.c.h.b16 %v123
  %v590 = vunpack.c.l.b16 %v124
  %v591 = vunpack.c.h.b16 %v124
  %v592 = vunpack.c.l.b16 %v125
  %v593 = vunpack.c.h.b16 %v125
  %v594 = vunpack.c.l.b16 %v126
  %v595 = vunpack.c.h.b16 %v126
  %v596 = vunpack.c.l.b16 %v127
  %v597 = vunpack.c.h.b16 %v127
  %v598 = vunpack.c.l.b16 %v128
  %v599 = vunpack.c.h.b16 %v128
  %v600 = vunpack.c.l.b16 %v129
  %v601 = vunpack.c.h.b16 %v129
  %v602 = vunpack.c.l.b16 %v130
  %v603 = vunpack.c.h.b16 %v130
  %v604 = vunpack.c.l.b16 %v131
  %v605 = vunpack.c.h.b16 %v131
  %v606 = vunpack.c.l.b16 %v132
  %v607 = vunpack.c.h.b16 %v132
  %v608 = vunpack.c.l.b16 %v133
  %v609 = vunpack.c.h.b16 %v133
  %v610 = vunpack.c.l.b16 %v134
  %v611 = vunpack.c.h.b16 %v134
  %v612 = vunpack.c.l.b16 %v135
  %v613 = vunpack.c.h.b16 %v135
  %v614 = vunpack.c.l.b16 %v136
  %v615 = vunpack.c.h.b16 %v136
  %v616 = vunpack.c.l.b16 %v137
  %v617 = vunpack.c.h.b16 %v137
  %v618 = vunpack.c.l.b16 %v138
  %v619 = vunpack.c.h.b16 %v138
  %v620 = vunpack.c.l.b16 %v139
  %v621 = vunpack.c.h.b16 %v139
  %v622 = vunpack.c.l.b16 %v140
  %v623 = vunpack.c.h.b16 %v140
  %v624 = vunpack.c.l.b16 %v141
  %v625 = vunpack.c.h.b16 %v141
  %v626 = vunpack.c.l.b16 %v142
  %v627 = vunpack.c.h.b16 %v142
  %v628 = vunpack.c.l.b16 %v143
  %v629 = vunpack.c.h.b16 %v143
  %v630 = vunpack.c.l.b16 %v144
  %v631 = vunpack.c.h.b16 %v144
  %v632 = vunpack.c.l.b16 %v145
  %v633 = vunpack.c.h.b16 %v145
  %v634 = vunpack.c.l.b16 %v146
  %v635 = vunpack.c.h.b16 %v146
  %v636 = vunpack.c.l.b16 %v147
  %v637 = vunpack.c.h.b16 %v147
  %v638 = vunpack.c.l.b16 %v148
  %v639 = vunpack.c.h.b16 %v148
  %v640 = vunpack.c.l.b16 %v149
  %v641 = vunpack.c.h.b16 %v149
  %v642 = vunpack.c.l.b16 %v150
  %v643 = vunpack.c.h.b16 %v150
  %v644 = vunpack.c.l.b16 %v151
  %v645 = vunpack.c.h.b16 %v151
  %v646 = vunpack.c.l.b16 %v152
  %v647 = vunpack.c.h.b16 %v152
  %v648 = vunpack.c.l.b16 %v153
  %v649 = vunpack.c.h.b16 %v153
  %v650 = vunpack.c.l.b16 %v154
  %v651 = vunpack.c.h.b16 %v154
  %v652 = vunpack.c.l.b16 %v155
  %v653 = vunpack.c.h.b16 %v155
  %v654 = vunpack.c.l.b16 %v156
  %v655 = vunpack.c.h.b16 %v156
  %v656 = vunpack.c.l.b16 %v157
  %v657 = vunpack.c.h.b16 %v157
  %v658 = vunpack.c.l.b16 %v158
  %v659 = vunpack.c.h.b16 %v158
  %v660 = vunpack.c.l.b16 %v159
  %v661 = vunpack.c.h.b16 %v159
  %v662 = vunpack.c.l.b16 %v160
  %v663 = vunpack.c.h.b16 %v160
  %v664 = vunpack.c.l.b16 %v161
  %v665 = vunpack.c.h.b16 %v161
  %v666 = vunpack.c.l.b16 %v162
  %v667 = vunpack.c.h.b16 %v162
  %v668 = vunpack.c.l.b16 %v163
  %v669 = vunpack.c.h.b16 %v163
  %v670 = vunpack.c.l.b16 %v164
  %v671 = vunpack.c.h.b16 %v164
  %v672 = vunpack.c.l.b16 %v165
  %v673 = vunpack.c.h.b16 %v165
  %v674 = vunpack.c.l.b16 %v166
  %v675 = vunpack.c.h.b16 %v166
  %v676 = vunpack.c.l.b16 %v167
  %v677 = vunpack.c.h.b16 %v167
  %v678 = vunpack.c.l.b16 %v168
  %v679 = vunpack.c.h.b16 %v168
  %v680 = vunpack.c.l.b16 %v169
  %v681 = vunpack.c.h.b16 %v169
  %v682 = vunpack.c.l.b16 %v170
  %v683 = vunpack.c.h.b16 %v170
  %v684 = vunpack.c.l.b16 %v171
  %v685 = vunpack.c.h.b16 %v171
  %v686 = vunpack.c.l.b16 %v172
  %v687 = vunpack.c.h.b16 %v172
  %v688 = vunpack.c.l.b16 %v173
  %v689 = vunpack.c.h.b16 %v173
  %v690 = vunpack.c.l.b16 %v174
  %v691 = vunpack.c.h.b16 %v174
  %v692 = vunpack.c.l.b16 %v175
  %v693 = vunpack.c.h.b16 %v175
  %v694 = vunpack.c.l.b16 %v176
  %v695 = vunpack.c.h.b16 %v176
  %v696 = vunpack.c.l.b16 %v177
  %v697 = vunpack.c.h.b16 %v177
  %v698 = vunpack.c.l.b16 %v178
  %v699 = vunpack.c.h.b16 %v178
  %v700 = vunpack.c.l.b16 %v179
  %v701 = vunpack.c.h.b16 %v179
  %v702 = vunpack.c.l.b16 %v180
  %v703 = vunpack.c.h.b16 %v180
  %v704 = vunpack.c.l.b16 %v181
  %v705 = vunpack.c.h.b16 %v181
  %v706 = vpack.c.b16 %v420, %v418
  %v707 = vpack.c.b16 %v421, %v419
  %v708 = vpack.c.b16 %v424, %v422
  %v709 = vpack.c.b16 %v425, %v423
  %v710 = vpack.c.b16 %v428, %v426
  %v711 = vpack.c.b16 %v429, %v427
  %v712 = vpack.c.b16 %v432, %v430
  %v713 = vpack.c.b16 %v433, %v431
  %v714 = vpack.c.b16 %v436, %v434
  %v715 = vpack.c.b16 %v437, %v435
  %v716 = vpack.c.b16 %v440, %v438
  %v717 = vpack.c.b16 %v441, %v439
  %v718 = vpack.c.b16 %v444, %v442
  %v719 = vpack.c.b16 %v445, %v443
  %v720 = vpack.c.b16 %v448, %v446
  %v721 = vpack.c.b16 %v449, %v447
  %v722 = vpack.c.b16 %v452, %v450
  %v723 = vpack.c.b16 %v453, %v451
  %v724 = vpack.c.b16 %v456, %v454
  %v725 = vpack.c.b16 %v457, %v455
  %v726 = vpack.c.b16 %v460, %v458
  %v727 = vpack.c.b16 %v461, %v459
  %v728 = vpack.c.b16 %v464, %v462
  %v729 = vpack.c.b16 %v465, %v463
  %v730 = vpack.c.b16 %v468, %v466
  %v731 = vpack.c.b16 %v469, %v467
  %v732 = vpack.c.b16 %v472, %v470
  %v733 = vpack.c.b16 %v473, %v471
  %v734 = vpack.c.b16 %v476, %v474
  %v735 = vpack.c.b16 %v477, %v475
  %v736 = vpack.c.b16 %v480, %v478
  %v737 = vpack.c.b16 %v481, %v479
  %v738 = vpack.c.b16 %v484, %v482
  %v739 = vpack.c.b16 %v485, %v483
  %v740 = vpack.c.b16 %v488, %v486
  %v741 = vpack.c.b16 %v489, %v487
  %v742 = vpack.c.b16 %v492, %v490
  %v743 = vpack.c.b16 %v493, %v491
  %v744 = vpack.c.b16 %v496, %v494
  %v745 = vpack.c.b16 %v497, %v495
  %v746 = vpack.c.b16 %v500, %v498
  %v747 = vpack.c.b16 %v501, %v499
  %v748 = vpack.c.b16 %v504, %v502
  %v749 = vpack.c.b16 %v505, %v503
  %v750 = vpack.c.b16 %v508, %v506
  %v751 = vpack.c.b16 %v509, %v507
  %v752 = vpack.c.b16 %v512, %v510
  %v753 = vpack.c.b16 %v513, %v511
  %v754 = vpack.c.b16 %v516, %v514
  %v755 = vpack.c.b16 %v517, %v515
  %v756 = vpack.c.b16 %v520, %v518
  %v757 = vpack.c.b16 %v521, %v519
  %v758 = vpack.c.b16 %v524, %v522
  %v759 = vpack.c.b16 %v525, %v523
  %v760 = vpack.c.b16 %v528, %v526
  %v761 = vpack.c.b16 %v529, %v527
  %v762 = vpack.c.b16 %v532, %v530
  %v763 = vpack.c.b16 %v533, %v531
  %v764 = vpack.c.b16 %v536, %v534
  %v765 = vpack.c.b16 %v537, %v535
  %v766 = vpack.c.b16 %v540, %v538
  %v767 = vpack.c.b16 %v541, %v539
  %v768 = vpack.c.b16 %v544, %v542
  %v769 = vpack.c.b16 %v545, %v543
  %v770 = vpack.c.b16 %v548, %v546
  %v771 = vpack.c.b16 %v549, %v547
  %v772 = vpack.c.b16 %v552, %v550
  %v773 = vpack.c.b16 %v553, %v551
  %v774 = vpack.c.b16 %v556, %v554
  %v775 = vpack.c.b16 %v557, %v555
  %v776 = vpack.c.b16 %v560, %v558
  %v777 = vpack.c.b16 %v561, %v559
  %v778 = vpack.c.b16 %v564, %v562
  %v779 = vpack.c.b16 %v565, %v563
  %v780 = vpack.c.b16 %v568, %v566
  %v781 = vpack.c.b16 %v569, %v567
  %v782 = vpack.c.b16 %v572, %v570
  %v783 = vpack.c.b16 %v573, %v571
  %v784 = vpack.c.b16 %v576, %v574
  %v785 = vpack.c.b16 %v577, %v575
  %v786 = vpack.c.b16 %v580, %v578
  %v787 = vpack.c.b16 %v581, %v579
  %v788 = vpack.c.b16 %v584, %v582
  %v789 = vpack.c.b16 %v585, %v583
  %v790 = vpack.c.b16 %v588, %v586
  %v791 = vpack.c.b16 %v589, %v587
  %v792 = vpack.c.b16 %v592, %v590
  %v793 = vpack.c.b16 %v593, %v591
  %v794 = vpack.c.b16 %v596, %v594
  %v795 = vpack.c.b16 %v597, %v595
  %v796 = vpack.c.b16 %v600, %v598
  %v797 = vpack.c.b16 %v601, %v599
  %v798 = vpack.c.b16 %v604, %v602
  %v799 = vpack.c.b16 %v605, %v603
  %v800 = vpack.c.b16 %v608, %v606
  %v801 = vpack.c.b16 %v609, %v607
  %v802 = vpack.c.b16 %v612, %v610
  %v803 = vpack.c.b16 %v613, %v611
  %v804 = vpack.c.b16 %v616, %v614
  %v805 = vpack.c.b16 %v617, %v615
  %v806 = vpack.c.b16 %v620, %v618
  %v807 = vpack.c.b16 %v621, %v619
  %v808 = vpack.c.b16 %v624, %v622
  %v809 = vpack.c.b16 %v625, %v623
  %v810 = vpack.c.b16 %v628, %v626
  %v811 = vpack.c.b16 %v629, %v627
  %v812 = vpack.c.b16 %v632, %v630
  %v813 = vpack.c.b16 %v633, %v631
  %v814 = vpack.c.b16 %v636, %v634
  %v815 = vpack.c.b16 %v637, %v635
  %v816 = vpack.c.b16 %v640, %v638
  %v817 = vpack.c.b16 %v641, %v639
  %v818 = vpack.c.b16 %v644, %v642
  %v819 = vpack.c.b16 %v645, %v643
  %v820 = vpack.c.b16 %v648, %v646
  %v821 = vpack.c.b16 %v649, %v647
  %v822 = vpack.c.b16 %v652, %v650
  %v823 = vpack.c.b16 %v653, %v651
  %v824 = vpack.c.b16 %v656, %v654
  %v825 = vpack.c.b16 %v657, %v655
  %v826 = vpack.c.b16 %v660, %v658
  %v827 = vpack.c.b16 %v661, %v659
  %v828 = vpack.c.b16 %v664, %v662
  %v829 = vpack.c.b16 %v665, %v663
  %v830 = vpack.c.b16 %v668, %v666
  %v831 = vpack.c.b16 %v669, %v667
  %v832 = vpack.c.b16 %v672, %v670
  %v833 = vpack.c.b16 %v673, %v671
  %v834 = vpack.c.b16 %v676, %v674
  %v835 = vpack.c.b16 %v677, %v675
  %v836 = vpack.c.b16 %v680, %v678
  %v837 = vpack.c.b16 %v681, %v679
  %v838 = vpack.c.b16 %v684, %v682
  %v839 = vpack.c.b16 %v685, %v683
  %v840 = vpack.c.b16 %v688, %v686
  %v841 = vpack.c.b16 %v689, %v687
  %v842 = vpack.c.b16 %v692, %v690
  %v843 = vpack.c.b16 %v693, %v691
  %v844 = vpack.c.b16 %v696, %v694
  %v845 = vpack.c.b16 %v697, %v695
  %v846 = vpack.c.b16 %v700, %v698
  %v847 = vpack.c.b16 %v701, %v699
  %v848 = vpack.c.b16 %v704, %v702
  %v849 = vpack.c.b16 %v705, %v703
  %994 = vmatprep.subr.bf16.mxu0 %v707
  %995 = vmatpush1.bf16.msra.mxu0 %v706
  %996 = vmatprep.subr.bf16.mxu0 %v709
  %997 = vmatpush1.bf16.msra.mxu0 %v708
  %998 = vmatprep.subr.bf16.mxu0 %v711
  %999 = vmatpush1.bf16.msra.mxu0 %v710
  %1000 = vmatprep.subr.bf16.mxu0 %v713
  %1001 = vmatpush1.bf16.msra.mxu0 %v712
  %1002 = vmatprep.subr.bf16.mxu0 %v715
  %1003 = vmatpush1.bf16.msra.mxu0 %v714
  %1004 = vmatprep.subr.bf16.mxu0 %v717
  %1005 = vmatpush1.bf16.msra.mxu0 %v716
  %1006 = vmatprep.subr.bf16.mxu0 %v719
  %1007 = vmatpush1.bf16.msra.mxu0 %v718
  %1008 = vmatprep.subr.bf16.mxu0 %v721
  %1009 = vmatpush1.bf16.msra.mxu0 %v720
  %1010 = vmatprep.subr.bf16.mxu0 %v723
  %1011 = vmatpush1.bf16.msra.mxu0 %v722
  %1012 = vmatprep.subr.bf16.mxu0 %v725
  %1013 = vmatpush1.bf16.msra.mxu0 %v724
  %1014 = vmatprep.subr.bf16.mxu0 %v727
  %1015 = vmatpush1.bf16.msra.mxu0 %v726
  %1016 = vmatprep.subr.bf16.mxu0 %v729
  %1017 = vmatpush1.bf16.msra.mxu0 %v728
  %1018 = vmatprep.subr.bf16.mxu0 %v731
  %1019 = vmatpush1.bf16.msra.mxu0 %v730
  %1020 = vmatprep.subr.bf16.mxu0 %v733
  %1021 = vmatpush1.bf16.msra.mxu0 %v732
  %1022 = vmatprep.subr.bf16.mxu0 %v735
  %1023 = vmatpush1.bf16.msra.mxu0 %v734
  %1024 = vmatprep.subr.bf16.mxu0 %v737
  %1025 = vmatpush1.bf16.msra.mxu0 %v736
  %1026 = vmatprep.mubr.bf16.mxu0 %v239
  %1027 = vmatmul.mubr.bf16.gmra.mrb[0].mxu0 %v238
  %v1028 = vpop.f32.mrb[0].mxu0
  %v1029 = vadd.f32 0.0, %v1028
  %v1030 = vpop.f32.mrb[0].mxu0
  %v1031 = vadd.f32 0.0, %v1030
  %v1032 = vpop.f32.mrb[0].mxu0
  %v1033 = vadd.f32 0.0, %v1032
  %v1034 = vpop.f32.mrb[0].mxu0
  %v1035 = vadd.f32 0.0, %v1034
  %1036 = vmatprep.mubr.bf16.mxu0 %v248
  %1037 = vmatmul.mubr.bf16.gmra.mrb[0].mxu0 %v247
  %v1038 = vpop.f32.mrb[0].mxu0
  %v1039 = vadd.f32 0.0, %v1038
  %v1040 = vpop.f32.mrb[0].mxu0
  %v1041 = vadd.f32 0.0, %v1040
  %v1042 = vpop.f32.mrb[0].mxu0
  %v1043 = vadd.f32 0.0, %v1042
  %v1044 = vpop.f32.mrb[0].mxu0
  %v1045 = vadd.f32 0.0, %v1044
  %1046 = vdwg.mxu0
  %1047 = vmatprep.subr.bf16.mxu0 %v739
  %1048 = vmatpush1.bf16.msra.mxu0 %v738
  %1049 = vmatprep.subr.bf16.mxu0 %v741
  %1050 = vmatpush1.bf16.msra.mxu0 %v740
  %1051 = vmatprep.subr.bf16.mxu0 %v743
  %1052 = vmatpush1.bf16.msra.mxu0 %v742
  %1053 = vmatprep.subr.bf16.mxu0 %v745
  %1054 = vmatpush1.bf16.msra.mxu0 %v744
  %1055 = vmatprep.subr.bf16.mxu0 %v747
  %1056 = vmatpush1.bf16.msra.mxu0 %v746
  %1057 = vmatprep.subr.bf16.mxu0 %v749
  %1058 = vmatpush1.bf16.msra.mxu0 %v748
  %1059 = vmatprep.subr.bf16.mxu0 %v751
  %1060 = vmatpush1.bf16.msra.mxu0 %v750
  %1061 = vmatprep.subr.bf16.mxu0 %v753
  %1062 = vmatpush1.bf16.msra.mxu0 %v752
  %1063 = vmatprep.subr.bf16.mxu0 %v755
  %1064 = vmatpush1.bf16.msra.mxu0 %v754
  %1065 = vmatprep.subr.bf16.mxu0 %v757
  %1066 = vmatpush1.bf16.msra.mxu0 %v756
  %1067 = vmatprep.subr.bf16.mxu0 %v759
  %1068 = vmatpush1.bf16.msra.mxu0 %v758
  %1069 = vmatprep.subr.bf16.mxu0 %v761
  %1070 = vmatpush1.bf16.msra.mxu0 %v760
  %1071 = vmatprep.subr.bf16.mxu0 %v763
  %1072 = vmatpush1.bf16.msra.mxu0 %v762
  %1073 = vmatprep.subr.bf16.mxu0 %v765
  %1074 = vmatpush1.bf16.msra.mxu0 %v764
  %1075 = vmatprep.subr.bf16.mxu0 %v767
  %1076 = vmatpush1.bf16.msra.mxu0 %v766
  %1077 = vmatprep.subr.bf16.mxu0 %v769
  %1078 = vmatpush1.bf16.msra.mxu0 %v768
  %1079 = vmatprep.mubr.bf16.mxu0 %v241
  %1080 = vmatmul.mubr.bf16.gmra.mrb[0].mxu0 %v240
  %v1081 = vpop.f32.mrb[0].mxu0
  %v1082 = vadd.f32 %v1029, %v1081
  %v1083 = vpop.f32.mrb[0].mxu0
  %v1084 = vadd.f32 %v1031, %v1083
  %v1085 = vpop.f32.mrb[0].mxu0
  %v1086 = vadd.f32 %v1033, %v1085
  %v1087 = vpop.f32.mrb[0].mxu0
  %v1088 = vadd.f32 %v1035, %v1087
  %1089 = vmatprep.mubr.bf16.mxu0 %v250
  %1090 = vmatmul.mubr.bf16.gmra.mrb[0].mxu0 %v249
  %v1091 = vpop.f32.mrb[0].mxu0
  %v1092 = vadd.f32 %v1039, %v1091
  %v1093 = vpop.f32.mrb[0].mxu0
  %v1094 = vadd.f32 %v1041, %v1093
  %v1095 = vpop.f32.mrb[0].mxu0
  %v1096 = vadd.f32 %v1043, %v1095
  %v1097 = vpop.f32.mrb[0].mxu0
  %v1098 = vadd.f32 %v1045, %v1097
  %1099 = vdwg.mxu0
  %1100 = vmatprep.subr.bf16.mxu0 %v771
  %1101 = vmatpush1.bf16.msra.mxu0 %v770
  %1102 = vmatprep.subr.bf16.mxu0 %v773
  %1103 = vmatpush1.bf16.msra.mxu0 %v772
  %1104 = vmatprep.subr.bf16.mxu0 %v775
  %1105 = vmatpush1.bf16.msra.mxu0 %v774
  %1106 = vmatprep.subr.bf16.mxu0 %v777
  %1107 = vmatpush1.bf16.msra.mxu0 %v776
  %1108 = vmatprep.subr.bf16.mxu0 %v779
  %1109 = vmatpush1.bf16.msra.mxu0 %v778
  %1110 = vmatprep.subr.bf16.mxu0 %v781
  %1111 = vmatpush1.bf16.msra.mxu0 %v780
  %1112 = vmatprep.subr.bf16.mxu0 %v783
  %1113 = vmatpush1.bf16.msra.mxu0 %v782
  %1114 = vmatprep.subr.bf16.mxu0 %v785
  %1115 = vmatpush1.bf16.msra.mxu0 %v784
  %1116 = vmatprep.subr.bf16.mxu0 %v787
  %1117 = vmatpush1.bf16.msra.mxu0 %v786
  %1118 = vmatprep.subr.bf16.mxu0 %v789
  %1119 = vmatpush1.bf16.msra.mxu0 %v788
  %1120 = vmatprep.subr.bf16.mxu0 %v791
  %1121 = vmatpush1.bf16.msra.mxu0 %v790
  %1122 = vmatprep.subr.bf16.mxu0 %v793
  %1123 = vmatpush1.bf16.msra.mxu0 %v792
  %1124 = vmatprep.subr.bf16.mxu0 %v795
  %1125 = vmatpush1.bf16.msra.mxu0 %v794
  %1126 = vmatprep.subr.bf16.mxu0 %v797
  %1127 = vmatpush1.bf16.msra.mxu0 %v796
  %1128 = vmatprep.subr.bf16.mxu0 %v799
  %1129 = vmatpush1.bf16.msra.mxu0 %v798
  %1130 = vmatprep.subr.bf16.mxu0 %v801
  %1131 = vmatpush1.bf16.msra.mxu0 %v800
  %1132 = vmatprep.mubr.bf16.mxu0 %v243
  %1133 = vmatmul.mubr.bf16.gmra.mrb[0].mxu0 %v242
  %v1134 = vpop.f32.mrb[0].mxu0
  %v1135 = vadd.f32 %v1082, %v1134
  %v1136 = vpop.f32.mrb[0].mxu0
  %v1137 = vadd.f32 %v1084, %v1136
  %v1138 = vpop.f32.mrb[0].mxu0
  %v1139 = vadd.f32 %v1086, %v1138
  %v1140 = vpop.f32.mrb[0].mxu0
  %v1141 = vadd.f32 %v1088, %v1140
  %1142 = vmatprep.mubr.bf16.mxu0 %v252
  %1143 = vmatmul.mubr.bf16.gmra.mrb[0].mxu0 %v251
  %v1144 = vpop.f32.mrb[0].mxu0
  %v1145 = vadd.f32 %v1092, %v1144
  %v1146 = vpop.f32.mrb[0].mxu0
  %v1147 = vadd.f32 %v1094, %v1146
  %v1148 = vpop.f32.mrb[0].mxu0
  %v1149 = vadd.f32 %v1096, %v1148
  %v1150 = vpop.f32.mrb[0].mxu0
  %v1151 = vadd.f32 %v1098, %v1150
  %1152 = vdwg.mxu0
  %1153 = vmatprep.subr.bf16.mxu0 %v803
  %1154 = vmatpush1.bf16.msra.mxu0 %v802
  %1155 = vmatprep.subr.bf16.mxu0 %v805
  %1156 = vmatpush1.bf16.msra.mxu0 %v804
  %1157 = vmatprep.subr.bf16.mxu0 %v807
  %1158 = vmatpush1.bf16.msra.mxu0 %v806
  %1159 = vmatprep.subr.bf16.mxu0 %v809
  %1160 = vmatpush1.bf16.msra.mxu0 %v808
  %1161 = vmatprep.subr.bf16.mxu0 %v811
  %1162 = vmatpush1.bf16.msra.mxu0 %v810
  %1163 = vmatprep.subr.bf16.mxu0 %v813
  %1164 = vmatpush1.bf16.msra.mxu0 %v812
  %1165 = vmatprep.subr.bf16.mxu0 %v815
  %1166 = vmatpush1.bf16.msra.mxu0 %v814
  %1167 = vmatprep.subr.bf16.mxu0 %v817
  %1168 = vmatpush1.bf16.msra.mxu0 %v816
  %1169 = vmatprep.subr.bf16.mxu0 %v819
  %1170 = vmatpush1.bf16.msra.mxu0 %v818
  %1171 = vmatprep.subr.bf16.mxu0 %v821
  %1172 = vmatpush1.bf16.msra.mxu0 %v820
  %1173 = vmatprep.subr.bf16.mxu0 %v823
  %1174 = vmatpush1.bf16.msra.mxu0 %v822
  %1175 = vmatprep.subr.bf16.mxu0 %v825
  %1176 = vmatpush1.bf16.msra.mxu0 %v824
  %1177 = vmatprep.subr.bf16.mxu0 %v827
  %1178 = vmatpush1.bf16.msra.mxu0 %v826
  %1179 = vmatprep.subr.bf16.mxu0 %v829
  %1180 = vmatpush1.bf16.msra.mxu0 %v828
  %1181 = vmatprep.subr.bf16.mxu0 %v831
  %1182 = vmatpush1.bf16.msra.mxu0 %v830
  %1183 = vmatprep.subr.bf16.mxu0 %v833
  %1184 = vmatpush1.bf16.msra.mxu0 %v832
  %1185 = vmatprep.mubr.bf16.mxu0 %v245
  %1186 = vmatmul.mubr.bf16.gmra.mrb[0].mxu0 %v244
  %v1187 = vpop.f32.mrb[0].mxu0
  %v1188 = vadd.f32 %v1135, %v1187
  %v1189 = vpop.f32.mrb[0].mxu0
  %v1190 = vadd.f32 %v1137, %v1189
  %v1191 = vpop.f32.mrb[0].mxu0
  %v1192 = vadd.f32 %v1139, %v1191
  %v1193 = vpop.f32.mrb[0].mxu0
  %v1194 = vadd.f32 %v1141, %v1193
  %1195 = vmatprep.mubr.bf16.mxu0 %v254
  %1196 = vmatmul.mubr.bf16.gmra.mrb[0].mxu0 %v253
  %v1197 = vpop.f32.mrb[0].mxu0
  %v1198 = vadd.f32 %v1145, %v1197
  %v1199 = vpop.f32.mrb[0].mxu0
  %v1200 = vadd.f32 %v1147, %v1199
  %v1201 = vpop.f32.mrb[0].mxu0
  %v1202 = vadd.f32 %v1149, %v1201
  %v1203 = vpop.f32.mrb[0].mxu0
  %v1204 = vadd.f32 %v1151, %v1203
  %1205 = vdwg.mxu0
  %1206 = vmatprep.subr.bf16.mxu0 %v835
  %1207 = vmatpush1.bf16.msra.mxu0 %v834
  %1208 = vmatprep.subr.bf16.mxu0 %v837
  %1209 = vmatpush1.bf16.msra.mxu0 %v836
  %1210 = vmatprep.subr.bf16.mxu0 %v839
  %1211 = vmatpush1.bf16.msra.mxu0 %v838
  %1212 = vmatprep.subr.bf16.mxu0 %v841
  %1213 = vmatpush1.bf16.msra.mxu0 %v840
  %1214 = vmatprep.subr.bf16.mxu0 %v843
  %1215 = vmatpush1.bf16.msra.mxu0 %v842
  %1216 = vmatprep.subr.bf16.mxu0 %v845
  %1217 = vmatpush1.bf16.msra.mxu0 %v844
  %1218 = vmatprep.subr.bf16.mxu0 %v847
  %1219 = vmatpush1.bf16.msra.mxu0 %v846
  %1220 = vmatprep.subr.bf16.mxu0 %v849
  %1221 = vmatpush1.bf16.msra.mxu0 %v848
  %1222 = vmatprep.subr.bf16.mxu0 0
  %1223 = vmatpush1.bf16.msra.mxu0 0
  %1224 = vmatprep.subr.bf16.mxu0 0
  %1225 = vmatpush1.bf16.msra.mxu0 0
  %1226 = vmatprep.subr.bf16.mxu0 0
  %1227 = vmatpush1.bf16.msra.mxu0 0
  %1228 = vmatprep.subr.bf16.mxu0 0
  %1229 = vmatpush1.bf16.msra.mxu0 0
  %1230 = vmatprep.subr.bf16.mxu0 0
  %1231 = vmatpush1.bf16.msra.mxu0 0
  %1232 = vmatprep.subr.bf16.mxu0 0
  %1233 = vmatpush1.bf16.msra.mxu0 0
  %1234 = vmatprep.subr.bf16.mxu0 0
  %1235 = vmatpush1.bf16.msra.mxu0 0
  %1236 = vmatprep.subr.bf16.mxu0 0
  %1237 = vmatpush1.bf16.msra.mxu0 0
  %1238 = vmatprep.mubr.bf16.mxu0 0
  %1239 = vmatmul.mubr.bf16.gmra.mrb[0].mxu0 %v246
  %v1240 = vpop.f32.mrb[0].mxu0
  %v1241 = vadd.f32 %v1188, %v1240
  %v1242 = vpop.f32.mrb[0].mxu0
  %v1243 = vadd.f32 %v1190, %v1242
  %v1244 = vpop.f32.mrb[0].mxu0
  %v1245 = vadd.f32 %v1192, %v1244
  %v1246 = vpop.f32.mrb[0].mxu0
  %v1247 = vadd.f32 %v1194, %v1246
  %1248 = vmatprep.mubr.bf16.mxu0 0
  %1249 = vmatmul.mubr.bf16.gmra.mrb[0].mxu0 %v255
  %v1250 = vpop.f32.mrb[0].mxu0
  %v1251 = vadd.f32 %v1198, %v1250
  %v1252 = vpop.f32.mrb[0].mxu0
  %v1253 = vadd.f32 %v1200, %v1252
  %v1254 = vpop.f32.mrb[0].mxu0
  %v1255 = vadd.f32 %v1202, %v1254
  %v1256 = vpop.f32.mrb[0].mxu0
  %v1257 = vadd.f32 %v1204, %v1256
  %1258 = vdwg.mxu0
  %v1259 = vld [vmem:[%s2] sm:$0x3]
  %v1261 = vlaneseq
  %v1262 = vshrl.u32 %v1261, 7
  %v1263 = vsub.s32 0, %v1262
  %v1264 = vrot.slane %v1259, %v1263
  %v1265 = vlaneseq
  %v1266 = vshrl.u32 %v1265, 7
  %v1267 = vsub.s32 1, %v1266
  %v1268 = vrot.slane %v1259, %v1267
  %v1271 = vmul.f32 %v1241, %v1264
  %v1272 = vmul.f32 %v1243, %v1268
  %v1273 = vmul.f32 %v1245, %v1264
  %v1274 = vmul.f32 %v1247, %v1268
  %v1275 = vmul.f32 %v1251, %v1264
  %v1276 = vmul.f32 %v1253, %v1268
  %v1277 = vmul.f32 %v1255, %v1264
  %v1278 = vmul.f32 %v1257, %v1268
  %v1279 = vld [vmem:[%s3] sm:$0x3]
  %v1281 = vlaneseq
  %v1282 = vshrl.u32 %v1281, 7
  %v1283 = vsub.s32 0, %v1282
  %v1284 = vrot.slane %v1279, %v1283
  %v1285 = vlaneseq
  %v1286 = vshrl.u32 %v1285, 7
  %v1287 = vsub.s32 1, %v1286
  %v1288 = vrot.slane %v1279, %v1287
  %v1291 = vadd.f32 %v1271, %v1284
  %v1292 = vadd.f32 %v1272, %v1288
  %v1293 = vadd.f32 %v1273, %v1284
  %v1294 = vadd.f32 %v1274, %v1288
  %v1295 = vadd.f32 %v1275, %v1284
  %v1296 = vadd.f32 %v1276, %v1288
  %v1297 = vadd.f32 %v1277, %v1284
  %v1298 = vadd.f32 %v1278, %v1288
  %v1299 = vmax.f32 %v1291, 0.0
  %v1300 = vmax.f32 %v1292, 0.0
  %v1301 = vmax.f32 %v1293, 0.0
  %v1302 = vmax.f32 %v1294, 0.0
  %v1303 = vmax.f32 %v1295, 0.0
  %v1304 = vmax.f32 %v1296, 0.0
  %v1305 = vmax.f32 %v1297, 0.0
  %v1306 = vmax.f32 %v1298, 0.0
  %1307 = vst [vmem:[%s4] sm:$0xff] %v1299
  %1308 = vst [vmem:[%s4 + $0x8] sm:$0xff] %v1300
  %1309 = vst [vmem:[%s4 + $0x10] sm:$0xff] %v1301
  %1310 = vst [vmem:[%s4 + $0x18] sm:$0xff] %v1302
  %1311 = vst [vmem:[%s4 + $0x20] sm:$0xff] %v1303
  %1312 = vst [vmem:[%s4 + $0x28] sm:$0xff] %v1304
  %1313 = vst [vmem:[%s4 + $0x30] sm:$0xff] %v1305
  %1314 = vst [vmem:[%s4 + $0x38] sm:$0xff] %v1306
  // Predicated region
  $region18: #{cnn_forward.12} parent=0 // pred_check
    _
  $region19: #{cnn_forward.12} parent=0 // pred_check_branch
    %1316 = sbr.rel (0) target = $region21
  $region20: #{cnn_forward.12} parent=0 // pred_region
    _
  $region21: #{cnn_forward.12} parent=0 // pred_fallthru
    _
  // Predicated region
  $region22: #{cnn_forward.12} parent=0 // pred_check
    _
  $region23: #{cnn_forward.12} parent=0 // pred_check_branch
    %1318 = sbr.rel (0) target = $region25
  $region24: #{cnn_forward.12} parent=0 // pred_region
    _
  $region25: #{cnn_forward.12} parent=0 // pred_fallthru
    _

// kernel: cnn_forward.14
$region0: #{cnn_forward.14}
  #allocation0 [shape = 'u32[]', space=smem, size = 0x4, offset = 0x4, fixed_abs, tag = 'smem constant byte address 0x4 - core index']
  #allocation1 [shape = 'u32[144,128]{1,0:T(1,128)}', space=vmem, size = 0x12000, scoped, tag = 'internal scratch']
  %s0 = inlined_call_operand.vmem [shape: bf16[2,1024], index: 0, kind: input, shape index: {}]
  %s1 = inlined_call_operand.vmem [shape: bf16[1024,256], index: 1, kind: input, shape index: {}]
  %s2 = inlined_call_operand.vmem [shape: f32[1,256], index: 2, kind: input, shape index: {}]
  %s3 = inlined_call_operand.vmem [shape: f32[1,256], index: 3, kind: input, shape index: {}]
  %s4 = inlined_call_operand.vmem [shape: f32[2,256], index: 4, kind: output, shape index: {}]
  %s5 = sld [smem:[#allocation0]]
  $region26: #{cnn_forward.14} parent=0
    _
  %s7 = ssub.s32 1, %s5
  %s8 = scalar_select 0, %s7, %s5
  // Predicated region
  $region2: #{cnn_forward.14} parent=0 // pred_check
    _
  $region3: #{cnn_forward.14} parent=0 // pred_check_branch
    %10 = sbr.rel (0) target = $region5
  $region4: #{cnn_forward.14} parent=0 // pred_region
    _
  $region5: #{cnn_forward.14} parent=0 // pred_fallthru
    _
  // Predicated region
  $region6: #{cnn_forward.14} parent=0 // pred_check
    _
  $region7: #{cnn_forward.14} parent=0 // pred_check_branch
    %12 = sbr.rel (0) target = $region9
  $region8: #{cnn_forward.14} parent=0 // pred_region
    _
  $region9: #{cnn_forward.14} parent=0 // pred_fallthru
    _
  // Predicated region
  $region10: #{cnn_forward.14} parent=0 // pred_check
    _
  $region11: #{cnn_forward.14} parent=0 // pred_check_branch
    %14 = sbr.rel (0) target = $region13
  $region12: #{cnn_forward.14} parent=0 // pred_region
    _
  $region13: #{cnn_forward.14} parent=0 // pred_fallthru
    _
  // Predicated region
  $region14: #{cnn_forward.14} parent=0 // pred_check
    _
  $region15: #{cnn_forward.14} parent=0 // pred_check_branch
    %16 = sbr.rel (0) target = $region17
  $region16: #{cnn_forward.14} parent=0 // pred_region
    _
  $region17: #{cnn_forward.14} parent=0 // pred_fallthru
    _
  %v17 = vld [vmem:[%s0] sm:$0xff]
  %v18 = vld [vmem:[%s1] sm:$0xff]
  %v19 = vld [vmem:[%s1 + $0x8] sm:$0xff]
  %v20 = vld [vmem:[%s1 + $0x10] sm:$0xff]
  %v21 = vld [vmem:[%s1 + $0x18] sm:$0xff]
  %v22 = vld [vmem:[%s1 + $0x20] sm:$0xff]
  %v23 = vld [vmem:[%s1 + $0x28] sm:$0xff]
  %v24 = vld [vmem:[%s1 + $0x30] sm:$0xff]
  %v25 = vld [vmem:[%s1 + $0x38] sm:$0xff]
  %v26 = vld [vmem:[%s1 + $0x40] sm:$0xff]
  %v27 = vld [vmem:[%s1 + $0x48] sm:$0xff]
  %v28 = vld [vmem:[%s1 + $0x50] sm:$0xff]
  %v29 = vld [vmem:[%s1 + $0x58] sm:$0xff]
  %v30 = vld [vmem:[%s1 + $0x60] sm:$0xff]
  %v31 = vld [vmem:[%s1 + $0x68] sm:$0xff]
  %v32 = vld [vmem:[%s1 + $0x70] sm:$0xff]
  %v33 = vld [vmem:[%s1 + $0x78] sm:$0xff]
  %v34 = vld [vmem:[%s1 + $0x80] sm:$0xff]
  %v35 = vld [vmem:[%s1 + $0x88] sm:$0xff]
  %v36 = vld [vmem:[%s1 + $0x90] sm:$0xff]
  %v37 = vld [vmem:[%s1 + $0x98] sm:$0xff]
  %v38 = vld [vmem:[%s1 + $0xa0] sm:$0xff]
  %v39 = vld [vmem:[%s1 + $0xa8] sm:$0xff]
  %v40 = vld [vmem:[%s1 + $0xb0] sm:$0xff]
  %v41 = vld [vmem:[%s1 + $0xb8] sm:$0xff]
  %v42 = vld [vmem:[%s1 + $0xc0] sm:$0xff]
  %v43 = vld [vmem:[%s1 + $0xc8] sm:$0xff]
  %v44 = vld [vmem:[%s1 + $0xd0] sm:$0xff]
  %v45 = vld [vmem:[%s1 + $0xd8] sm:$0xff]
  %v46 = vld [vmem:[%s1 + $0xe0] sm:$0xff]
  %v47 = vld [vmem:[%s1 + $0xe8] sm:$0xff]
  %v48 = vld [vmem:[%s1 + $0xf0] sm:$0xff]
  %v49 = vld [vmem:[%s1 + $0xf8] sm:$0xff]
  %v50 = vld [vmem:[%s1 + $0x100] sm:$0xff]
  %v51 = vld [vmem:[%s1 + $0x108] sm:$0xff]
  %v52 = vld [vmem:[%s1 + $0x110] sm:$0xff]
  %v53 = vld [vmem:[%s1 + $0x118] sm:$0xff]
  %v54 = vld [vmem:[%s1 + $0x120] sm:$0xff]
  %v55 = vld [vmem:[%s1 + $0x128] sm:$0xff]
  %v56 = vld [vmem:[%s1 + $0x130] sm:$0xff]
  %v57 = vld [vmem:[%s1 + $0x138] sm:$0xff]
  %v58 = vld [vmem:[%s1 + $0x140] sm:$0xff]
  %v59 = vld [vmem:[%s1 + $0x148] sm:$0xff]
  %v60 = vld [vmem:[%s1 + $0x150] sm:$0xff]
  %v61 = vld [vmem:[%s1 + $0x158] sm:$0xff]
  %v62 = vld [vmem:[%s1 + $0x160] sm:$0xff]
  %v63 = vld [vmem:[%s1 + $0x168] sm:$0xff]
  %v64 = vld [vmem:[%s1 + $0x170] sm:$0xff]
  %v65 = vld [vmem:[%s1 + $0x178] sm:$0xff]
  %v66 = vld [vmem:[%s1 + $0x180] sm:$0xff]
  %v67 = vld [vmem:[%s1 + $0x188] sm:$0xff]
  %v68 = vld [vmem:[%s1 + $0x190] sm:$0xff]
  %v69 = vld [vmem:[%s1 + $0x198] sm:$0xff]
  %v70 = vld [vmem:[%s1 + $0x1a0] sm:$0xff]
  %v71 = vld [vmem:[%s1 + $0x1a8] sm:$0xff]
  %v72 = vld [vmem:[%s1 + $0x1b0] sm:$0xff]
  %v73 = vld [vmem:[%s1 + $0x1b8] sm:$0xff]
  %v74 = vld [vmem:[%s1 + $0x1c0] sm:$0xff]
  %v75 = vld [vmem:[%s1 + $0x1c8] sm:$0xff]
  %v76 = vld [vmem:[%s1 + $0x1d0] sm:$0xff]
  %v77 = vld [vmem:[%s1 + $0x1d8] sm:$0xff]
  %v78 = vld [vmem:[%s1 + $0x1e0] sm:$0xff]
  %v79 = vld [vmem:[%s1 + $0x1e8] sm:$0xff]
  %v80 = vld [vmem:[%s1 + $0x1f0] sm:$0xff]
  %v81 = vld [vmem:[%s1 + $0x1f8] sm:$0xff]
  %v82 = vld [vmem:[%s1 + $0x200] sm:$0xff]
  %v83 = vld [vmem:[%s1 + $0x208] sm:$0xff]
  %v84 = vld [vmem:[%s1 + $0x210] sm:$0xff]
  %v85 = vld [vmem:[%s1 + $0x218] sm:$0xff]
  %v86 = vld [vmem:[%s1 + $0x220] sm:$0xff]
  %v87 = vld [vmem:[%s1 + $0x228] sm:$0xff]
  %v88 = vld [vmem:[%s1 + $0x230] sm:$0xff]
  %v89 = vld [vmem:[%s1 + $0x238] sm:$0xff]
  %v90 = vld [vmem:[%s1 + $0x240] sm:$0xff]
  %v91 = vld [vmem:[%s1 + $0x248] sm:$0xff]
  %v92 = vld [vmem:[%s1 + $0x250] sm:$0xff]
  %v93 = vld [vmem:[%s1 + $0x258] sm:$0xff]
  %v94 = vld [vmem:[%s1 + $0x260] sm:$0xff]
  %v95 = vld [vmem:[%s1 + $0x268] sm:$0xff]
  %v96 = vld [vmem:[%s1 + $0x270] sm:$0xff]
  %v97 = vld [vmem:[%s1 + $0x278] sm:$0xff]
  %v98 = vld [vmem:[%s1 + $0x280] sm:$0xff]
  %v99 = vld [vmem:[%s1 + $0x288] sm:$0xff]
  %v100 = vld [vmem:[%s1 + $0x290] sm:$0xff]
  %v101 = vld [vmem:[%s1 + $0x298] sm:$0xff]
  %v102 = vld [vmem:[%s1 + $0x2a0] sm:$0xff]
  %v103 = vld [vmem:[%s1 + $0x2a8] sm:$0xff]
  %v104 = vld [vmem:[%s1 + $0x2b0] sm:$0xff]
  %v105 = vld [vmem:[%s1 + $0x2b8] sm:$0xff]
  %v106 = vld [vmem:[%s1 + $0x2c0] sm:$0xff]
  %v107 = vld [vmem:[%s1 + $0x2c8] sm:$0xff]
  %v108 = vld [vmem:[%s1 + $0x2d0] sm:$0xff]
  %v109 = vld [vmem:[%s1 + $0x2d8] sm:$0xff]
  %v110 = vld [vmem:[%s1 + $0x2e0] sm:$0xff]
  %v111 = vld [vmem:[%s1 + $0x2e8] sm:$0xff]
  %v112 = vld [vmem:[%s1 + $0x2f0] sm:$0xff]
  %v113 = vld [vmem:[%s1 + $0x2f8] sm:$0xff]
  %v114 = vld [vmem:[%s1 + $0x300] sm:$0xff]
  %v115 = vld [vmem:[%s1 + $0x308] sm:$0xff]
  %v116 = vld [vmem:[%s1 + $0x310] sm:$0xff]
  %v117 = vld [vmem:[%s1 + $0x318] sm:$0xff]
  %v118 = vld [vmem:[%s1 + $0x320] sm:$0xff]
  %v119 = vld [vmem:[%s1 + $0x328] sm:$0xff]
  %v120 = vld [vmem:[%s1 + $0x330] sm:$0xff]
  %v121 = vld [vmem:[%s1 + $0x338] sm:$0xff]
  %v122 = vld [vmem:[%s1 + $0x340] sm:$0xff]
  %v123 = vld [vmem:[%s1 + $0x348] sm:$0xff]
  %v124 = vld [vmem:[%s1 + $0x350] sm:$0xff]
  %v125 = vld [vmem:[%s1 + $0x358] sm:$0xff]
  %v126 = vld [vmem:[%s1 + $0x360] sm:$0xff]
  %v127 = vld [vmem:[%s1 + $0x368] sm:$0xff]
  %v128 = vld [vmem:[%s1 + $0x370] sm:$0xff]
  %v129 = vld [vmem:[%s1 + $0x378] sm:$0xff]
  %v130 = vld [vmem:[%s1 + $0x380] sm:$0xff]
  %v131 = vld [vmem:[%s1 + $0x388] sm:$0xff]
  %v132 = vld [vmem:[%s1 + $0x390] sm:$0xff]
  %v133 = vld [vmem:[%s1 + $0x398] sm:$0xff]
  %v134 = vld [vmem:[%s1 + $0x3a0] sm:$0xff]
  %v135 = vld [vmem:[%s1 + $0x3a8] sm:$0xff]
  %v136 = vld [vmem:[%s1 + $0x3b0] sm:$0xff]
  %v137 = vld [vmem:[%s1 + $0x3b8] sm:$0xff]
  %v138 = vld [vmem:[%s1 + $0x3c0] sm:$0xff]
  %v139 = vld [vmem:[%s1 + $0x3c8] sm:$0xff]
  %v140 = vld [vmem:[%s1 + $0x3d0] sm:$0xff]
  %v141 = vld [vmem:[%s1 + $0x3d8] sm:$0xff]
  %v142 = vld [vmem:[%s1 + $0x3e0] sm:$0xff]
  %v143 = vld [vmem:[%s1 + $0x3e8] sm:$0xff]
  %v144 = vld [vmem:[%s1 + $0x3f0] sm:$0xff]
  %v145 = vld [vmem:[%s1 + $0x3f8] sm:$0xff]
  %v147 = vcombine.high %v17, %v17
  %v149 = vunpack.c.l.s4 1966171168
  %v150 = vunpack.c.0.s8 %v149
  %v151 = vlaneseq
  %v152 = vshrl.u32 %v151, 7
  %v153 = vsub.s32 %v150, %v152
  %v154 = vrot.slane %v17, %v153
  %v156 = vunpack.c.l.s4 1966171168
  %v157 = vunpack.c.0.s8 %v156
  %v158 = vlaneseq
  %v159 = vshrl.u32 %v158, 7
  %v160 = vsub.s32 %v157, %v159
  %v161 = vrot.slane %v147, %v160
  %v162 = vcombine.high %v154, %v154
  %v163 = vcombine.high %v161, %v161
  %v165 = vunpack.c.l.s4 1966171168
  %v166 = vunpack.c.0.s8 %v165
  %v167 = vlaneseq
  %v168 = vshrl.u32 %v167, 7
  %v169 = vsub.s32 %v166, %v168
  %v170 = vrot.slane %v154, %v169
  %v172 = vunpack.c.l.s4 1966171168
  %v173 = vunpack.c.0.s8 %v172
  %v174 = vlaneseq
  %v175 = vshrl.u32 %v174, 7
  %v176 = vsub.s32 %v173, %v175
  %v177 = vrot.slane %v161, %v176
  %v179 = vunpack.c.l.s4 1966171168
  %v180 = vunpack.c.0.s8 %v179
  %v181 = vlaneseq
  %v182 = vshrl.u32 %v181, 7
  %v183 = vsub.s32 %v180, %v182
  %v184 = vrot.slane %v162, %v183
  %v186 = vunpack.c.l.s4 1966171168
  %v187 = vunpack.c.0.s8 %v186
  %v188 = vlaneseq
  %v189 = vshrl.u32 %v188, 7
  %v190 = vsub.s32 %v187, %v189
  %v191 = vrot.slane %v163, %v190
  %v192 = vcombine.high %v170, %v170
  %v193 = vcombine.high %v177, %v177
  %v194 = vcombine.high %v184, %v184
  %v195 = vcombine.high %v191, %v191
  %v332 = vunpack.c.l.b16 %v18
  %v333 = vunpack.c.h.b16 %v18
  %v334 = vunpack.c.l.b16 %v19
  %v335 = vunpack.c.h.b16 %v19
  %v336 = vunpack.c.l.b16 %v20
  %v337 = vunpack.c.h.b16 %v20
  %v338 = vunpack.c.l.b16 %v21
  %v339 = vunpack.c.h.b16 %v21
  %v340 = vunpack.c.l.b16 %v22
  %v341 = vunpack.c.h.b16 %v22
  %v342 = vunpack.c.l.b16 %v23
  %v343 = vunpack.c.h.b16 %v23
  %v344 = vunpack.c.l.b16 %v24
  %v345 = vunpack.c.h.b16 %v24
  %v346 = vunpack.c.l.b16 %v25
  %v347 = vunpack.c.h.b16 %v25
  %v348 = vunpack.c.l.b16 %v26
  %v349 = vunpack.c.h.b16 %v26
  %v350 = vunpack.c.l.b16 %v27
  %v351 = vunpack.c.h.b16 %v27
  %v352 = vunpack.c.l.b16 %v28
  %v353 = vunpack.c.h.b16 %v28
  %v354 = vunpack.c.l.b16 %v29
  %v355 = vunpack.c.h.b16 %v29
  %v356 = vunpack.c.l.b16 %v30
  %v357 = vunpack.c.h.b16 %v30
  %v358 = vunpack.c.l.b16 %v31
  %v359 = vunpack.c.h.b16 %v31
  %v360 = vunpack.c.l.b16 %v32
  %v361 = vunpack.c.h.b16 %v32
  %v362 = vunpack.c.l.b16 %v33
  %v363 = vunpack.c.h.b16 %v33
  %v364 = vunpack.c.l.b16 %v34
  %v365 = vunpack.c.h.b16 %v34
  %v366 = vunpack.c.l.b16 %v35
  %v367 = vunpack.c.h.b16 %v35
  %v368 = vunpack.c.l.b16 %v36
  %v369 = vunpack.c.h.b16 %v36
  %v370 = vunpack.c.l.b16 %v37
  %v371 = vunpack.c.h.b16 %v37
  %v372 = vunpack.c.l.b16 %v38
  %v373 = vunpack.c.h.b16 %v38
  %v374 = vunpack.c.l.b16 %v39
  %v375 = vunpack.c.h.b16 %v39
  %v376 = vunpack.c.l.b16 %v40
  %v377 = vunpack.c.h.b16 %v40
  %v378 = vunpack.c.l.b16 %v41
  %v379 = vunpack.c.h.b16 %v41
  %v380 = vunpack.c.l.b16 %v42
  %v381 = vunpack.c.h.b16 %v42
  %v382 = vunpack.c.l.b16 %v43
  %v383 = vunpack.c.h.b16 %v43
  %v384 = vunpack.c.l.b16 %v44
  %v385 = vunpack.c.h.b16 %v44
  %v386 = vunpack.c.l.b16 %v45
  %v387 = vunpack.c.h.b16 %v45
  %v388 = vunpack.c.l.b16 %v46
  %v389 = vunpack.c.h.b16 %v46
  %v390 = vunpack.c.l.b16 %v47
  %v391 = vunpack.c.h.b16 %v47
  %v392 = vunpack.c.l.b16 %v48
  %v393 = vunpack.c.h.b16 %v48
  %v394 = vunpack.c.l.b16 %v49
  %v395 = vunpack.c.h.b16 %v49
  %v396 = vunpack.c.l.b16 %v50
  %v397 = vunpack.c.h.b16 %v50
  %v398 = vunpack.c.l.b16 %v51
  %v399 = vunpack.c.h.b16 %v51
  %v400 = vunpack.c.l.b16 %v52
  %v401 = vunpack.c.h.b16 %v52
  %v402 = vunpack.c.l.b16 %v53
  %v403 = vunpack.c.h.b16 %v53
  %v404 = vunpack.c.l.b16 %v54
  %v405 = vunpack.c.h.b16 %v54
  %v406 = vunpack.c.l.b16 %v55
  %v407 = vunpack.c.h.b16 %v55
  %v408 = vunpack.c.l.b16 %v56
  %v409 = vunpack.c.h.b16 %v56
  %v410 = vunpack.c.l.b16 %v57
  %v411 = vunpack.c.h.b16 %v57
  %v412 = vunpack.c.l.b16 %v58
  %v413 = vunpack.c.h.b16 %v58
  %v414 = vunpack.c.l.b16 %v59
  %v415 = vunpack.c.h.b16 %v59
  %v416 = vunpack.c.l.b16 %v60
  %v417 = vunpack.c.h.b16 %v60
  %v418 = vunpack.c.l.b16 %v61
  %v419 = vunpack.c.h.b16 %v61
  %v420 = vunpack.c.l.b16 %v62
  %v421 = vunpack.c.h.b16 %v62
  %v422 = vunpack.c.l.b16 %v63
  %v423 = vunpack.c.h.b16 %v63
  %v424 = vunpack.c.l.b16 %v64
  %v425 = vunpack.c.h.b16 %v64
  %v426 = vunpack.c.l.b16 %v65
  %v427 = vunpack.c.h.b16 %v65
  %v428 = vunpack.c.l.b16 %v66
  %v429 = vunpack.c.h.b16 %v66
  %v430 = vunpack.c.l.b16 %v67
  %v431 = vunpack.c.h.b16 %v67
  %v432 = vunpack.c.l.b16 %v68
  %v433 = vunpack.c.h.b16 %v68
  %v434 = vunpack.c.l.b16 %v69
  %v435 = vunpack.c.h.b16 %v69
  %v436 = vunpack.c.l.b16 %v70
  %v437 = vunpack.c.h.b16 %v70
  %v438 = vunpack.c.l.b16 %v71
  %v439 = vunpack.c.h.b16 %v71
  %v440 = vunpack.c.l.b16 %v72
  %v441 = vunpack.c.h.b16 %v72
  %v442 = vunpack.c.l.b16 %v73
  %v443 = vunpack.c.h.b16 %v73
  %v444 = vunpack.c.l.b16 %v74
  %v445 = vunpack.c.h.b16 %v74
  %v446 = vunpack.c.l.b16 %v75
  %v447 = vunpack.c.h.b16 %v75
  %v448 = vunpack.c.l.b16 %v76
  %v449 = vunpack.c.h.b16 %v76
  %v450 = vunpack.c.l.b16 %v77
  %v451 = vunpack.c.h.b16 %v77
  %v452 = vunpack.c.l.b16 %v78
  %v453 = vunpack.c.h.b16 %v78
  %v454 = vunpack.c.l.b16 %v79
  %v455 = vunpack.c.h.b16 %v79
  %v456 = vunpack.c.l.b16 %v80
  %v457 = vunpack.c.h.b16 %v80
  %v458 = vunpack.c.l.b16 %v81
  %v459 = vunpack.c.h.b16 %v81
  %v460 = vunpack.c.l.b16 %v82
  %v461 = vunpack.c.h.b16 %v82
  %v462 = vunpack.c.l.b16 %v83
  %v463 = vunpack.c.h.b16 %v83
  %v464 = vunpack.c.l.b16 %v84
  %v465 = vunpack.c.h.b16 %v84
  %v466 = vunpack.c.l.b16 %v85
  %v467 = vunpack.c.h.b16 %v85
  %v468 = vunpack.c.l.b16 %v86
  %v469 = vunpack.c.h.b16 %v86
  %v470 = vunpack.c.l.b16 %v87
  %v471 = vunpack.c.h.b16 %v87
  %v472 = vunpack.c.l.b16 %v88
  %v473 = vunpack.c.h.b16 %v88
  %v474 = vunpack.c.l.b16 %v89
  %v475 = vunpack.c.h.b16 %v89
  %v476 = vunpack.c.l.b16 %v90
  %v477 = vunpack.c.h.b16 %v90
  %v478 = vunpack.c.l.b16 %v91
  %v479 = vunpack.c.h.b16 %v91
  %v480 = vunpack.c.l.b16 %v92
  %v481 = vunpack.c.h.b16 %v92
  %v482 = vunpack.c.l.b16 %v93
  %v483 = vunpack.c.h.b16 %v93
  %v484 = vunpack.c.l.b16 %v94
  %v485 = vunpack.c.h.b16 %v94
  %v486 = vunpack.c.l.b16 %v95
  %v487 = vunpack.c.h.b16 %v95
  %v488 = vunpack.c.l.b16 %v96
  %v489 = vunpack.c.h.b16 %v96
  %v490 = vunpack.c.l.b16 %v97
  %v491 = vunpack.c.h.b16 %v97
  %v492 = vunpack.c.l.b16 %v98
  %v493 = vunpack.c.h.b16 %v98
  %v494 = vunpack.c.l.b16 %v99
  %v495 = vunpack.c.h.b16 %v99
  %v496 = vunpack.c.l.b16 %v100
  %v497 = vunpack.c.h.b16 %v100
  %v498 = vunpack.c.l.b16 %v101
  %v499 = vunpack.c.h.b16 %v101
  %v500 = vunpack.c.l.b16 %v102
  %v501 = vunpack.c.h.b16 %v102
  %v502 = vunpack.c.l.b16 %v103
  %v503 = vunpack.c.h.b16 %v103
  %v504 = vunpack.c.l.b16 %v104
  %v505 = vunpack.c.h.b16 %v104
  %v506 = vunpack.c.l.b16 %v105
  %v507 = vunpack.c.h.b16 %v105
  %v508 = vunpack.c.l.b16 %v106
  %v509 = vunpack.c.h.b16 %v106
  %v510 = vunpack.c.l.b16 %v107
  %v511 = vunpack.c.h.b16 %v107
  %v512 = vunpack.c.l.b16 %v108
  %v513 = vunpack.c.h.b16 %v108
  %v514 = vunpack.c.l.b16 %v109
  %v515 = vunpack.c.h.b16 %v109
  %v516 = vunpack.c.l.b16 %v110
  %v517 = vunpack.c.h.b16 %v110
  %v518 = vunpack.c.l.b16 %v111
  %v519 = vunpack.c.h.b16 %v111
  %v520 = vunpack.c.l.b16 %v112
  %v521 = vunpack.c.h.b16 %v112
  %v522 = vunpack.c.l.b16 %v113
  %v523 = vunpack.c.h.b16 %v113
  %v524 = vunpack.c.l.b16 %v114
  %v525 = vunpack.c.h.b16 %v114
  %v526 = vunpack.c.l.b16 %v115
  %v527 = vunpack.c.h.b16 %v115
  %v528 = vunpack.c.l.b16 %v116
  %v529 = vunpack.c.h.b16 %v116
  %v530 = vunpack.c.l.b16 %v117
  %v531 = vunpack.c.h.b16 %v117
  %v532 = vunpack.c.l.b16 %v118
  %v533 = vunpack.c.h.b16 %v118
  %v534 = vunpack.c.l.b16 %v119
  %v535 = vunpack.c.h.b16 %v119
  %v536 = vunpack.c.l.b16 %v120
  %v537 = vunpack.c.h.b16 %v120
  %v538 = vunpack.c.l.b16 %v121
  %v539 = vunpack.c.h.b16 %v121
  %v540 = vunpack.c.l.b16 %v122
  %v541 = vunpack.c.h.b16 %v122
  %v542 = vunpack.c.l.b16 %v123
  %v543 = vunpack.c.h.b16 %v123
  %v544 = vunpack.c.l.b16 %v124
  %v545 = vunpack.c.h.b16 %v124
  %v546 = vunpack.c.l.b16 %v125
  %v547 = vunpack.c.h.b16 %v125
  %v548 = vunpack.c.l.b16 %v126
  %v549 = vunpack.c.h.b16 %v126
  %v550 = vunpack.c.l.b16 %v127
  %v551 = vunpack.c.h.b16 %v127
  %v552 = vunpack.c.l.b16 %v128
  %v553 = vunpack.c.h.b16 %v128
  %v554 = vunpack.c.l.b16 %v129
  %v555 = vunpack.c.h.b16 %v129
  %v556 = vunpack.c.l.b16 %v130
  %v557 = vunpack.c.h.b16 %v130
  %v558 = vunpack.c.l.b16 %v131
  %v559 = vunpack.c.h.b16 %v131
  %v560 = vunpack.c.l.b16 %v132
  %v561 = vunpack.c.h.b16 %v132
  %v562 = vunpack.c.l.b16 %v133
  %v563 = vunpack.c.h.b16 %v133
  %v564 = vunpack.c.l.b16 %v134
  %v565 = vunpack.c.h.b16 %v134
  %v566 = vunpack.c.l.b16 %v135
  %v567 = vunpack.c.h.b16 %v135
  %v568 = vunpack.c.l.b16 %v136
  %v569 = vunpack.c.h.b16 %v136
  %v570 = vunpack.c.l.b16 %v137
  %v571 = vunpack.c.h.b16 %v137
  %v572 = vunpack.c.l.b16 %v138
  %v573 = vunpack.c.h.b16 %v138
  %v574 = vunpack.c.l.b16 %v139
  %v575 = vunpack.c.h.b16 %v139
  %v576 = vunpack.c.l.b16 %v140
  %v577 = vunpack.c.h.b16 %v140
  %v578 = vunpack.c.l.b16 %v141
  %v579 = vunpack.c.h.b16 %v141
  %v580 = vunpack.c.l.b16 %v142
  %v581 = vunpack.c.h.b16 %v142
  %v582 = vunpack.c.l.b16 %v143
  %v583 = vunpack.c.h.b16 %v143
  %v584 = vunpack.c.l.b16 %v144
  %v585 = vunpack.c.h.b16 %v144
  %v586 = vunpack.c.l.b16 %v145
  %v587 = vunpack.c.h.b16 %v145
  %v588 = vpack.c.b16 %v334, %v332
  %v589 = vpack.c.b16 %v335, %v333
  %v590 = vpack.c.b16 %v338, %v336
  %v591 = vpack.c.b16 %v339, %v337
  %v592 = vpack.c.b16 %v342, %v340
  %v593 = vpack.c.b16 %v343, %v341
  %v594 = vpack.c.b16 %v346, %v344
  %v595 = vpack.c.b16 %v347, %v345
  %v596 = vpack.c.b16 %v350, %v348
  %v597 = vpack.c.b16 %v351, %v349
  %v598 = vpack.c.b16 %v354, %v352
  %v599 = vpack.c.b16 %v355, %v353
  %v600 = vpack.c.b16 %v358, %v356
  %v601 = vpack.c.b16 %v359, %v357
  %v602 = vpack.c.b16 %v362, %v360
  %v603 = vpack.c.b16 %v363, %v361
  %v604 = vpack.c.b16 %v366, %v364
  %v605 = vpack.c.b16 %v367, %v365
  %v606 = vpack.c.b16 %v370, %v368
  %v607 = vpack.c.b16 %v371, %v369
  %v608 = vpack.c.b16 %v374, %v372
  %v609 = vpack.c.b16 %v375, %v373
  %v610 = vpack.c.b16 %v378, %v376
  %v611 = vpack.c.b16 %v379, %v377
  %v612 = vpack.c.b16 %v382, %v380
  %v613 = vpack.c.b16 %v383, %v381
  %v614 = vpack.c.b16 %v386, %v384
  %v615 = vpack.c.b16 %v387, %v385
  %v616 = vpack.c.b16 %v390, %v388
  %v617 = vpack.c.b16 %v391, %v389
  %v618 = vpack.c.b16 %v394, %v392
  %v619 = vpack.c.b16 %v395, %v393
  %v620 = vpack.c.b16 %v398, %v396
  %v621 = vpack.c.b16 %v399, %v397
  %v622 = vpack.c.b16 %v402, %v400
  %v623 = vpack.c.b16 %v403, %v401
  %v624 = vpack.c.b16 %v406, %v404
  %v625 = vpack.c.b16 %v407, %v405
  %v626 = vpack.c.b16 %v410, %v408
  %v627 = vpack.c.b16 %v411, %v409
  %v628 = vpack.c.b16 %v414, %v412
  %v629 = vpack.c.b16 %v415, %v413
  %v630 = vpack.c.b16 %v418, %v416
  %v631 = vpack.c.b16 %v419, %v417
  %v632 = vpack.c.b16 %v422, %v420
  %v633 = vpack.c.b16 %v423, %v421
  %v634 = vpack.c.b16 %v426, %v424
  %v635 = vpack.c.b16 %v427, %v425
  %v636 = vpack.c.b16 %v430, %v428
  %v637 = vpack.c.b16 %v431, %v429
  %v638 = vpack.c.b16 %v434, %v432
  %v639 = vpack.c.b16 %v435, %v433
  %v640 = vpack.c.b16 %v438, %v436
  %v641 = vpack.c.b16 %v439, %v437
  %v642 = vpack.c.b16 %v442, %v440
  %v643 = vpack.c.b16 %v443, %v441
  %v644 = vpack.c.b16 %v446, %v444
  %v645 = vpack.c.b16 %v447, %v445
  %v646 = vpack.c.b16 %v450, %v448
  %v647 = vpack.c.b16 %v451, %v449
  %v648 = vpack.c.b16 %v454, %v452
  %v649 = vpack.c.b16 %v455, %v453
  %v650 = vpack.c.b16 %v458, %v456
  %v651 = vpack.c.b16 %v459, %v457
  %v652 = vpack.c.b16 %v462, %v460
  %v653 = vpack.c.b16 %v463, %v461
  %v654 = vpack.c.b16 %v466, %v464
  %v655 = vpack.c.b16 %v467, %v465
  %v656 = vpack.c.b16 %v470, %v468
  %v657 = vpack.c.b16 %v471, %v469
  %v658 = vpack.c.b16 %v474, %v472
  %v659 = vpack.c.b16 %v475, %v473
  %v660 = vpack.c.b16 %v478, %v476
  %v661 = vpack.c.b16 %v479, %v477
  %v662 = vpack.c.b16 %v482, %v480
  %v663 = vpack.c.b16 %v483, %v481
  %v664 = vpack.c.b16 %v486, %v484
  %v665 = vpack.c.b16 %v487, %v485
  %v666 = vpack.c.b16 %v490, %v488
  %v667 = vpack.c.b16 %v491, %v489
  %v668 = vpack.c.b16 %v494, %v492
  %v669 = vpack.c.b16 %v495, %v493
  %v670 = vpack.c.b16 %v498, %v496
  %v671 = vpack.c.b16 %v499, %v497
  %v672 = vpack.c.b16 %v502, %v500
  %v673 = vpack.c.b16 %v503, %v501
  %v674 = vpack.c.b16 %v506, %v504
  %v675 = vpack.c.b16 %v507, %v505
  %v676 = vpack.c.b16 %v510, %v508
  %v677 = vpack.c.b16 %v511, %v509
  %v678 = vpack.c.b16 %v514, %v512
  %v679 = vpack.c.b16 %v515, %v513
  %v680 = vpack.c.b16 %v518, %v516
  %v681 = vpack.c.b16 %v519, %v517
  %v682 = vpack.c.b16 %v522, %v520
  %v683 = vpack.c.b16 %v523, %v521
  %v684 = vpack.c.b16 %v526, %v524
  %v685 = vpack.c.b16 %v527, %v525
  %v686 = vpack.c.b16 %v530, %v528
  %v687 = vpack.c.b16 %v531, %v529
  %v688 = vpack.c.b16 %v534, %v532
  %v689 = vpack.c.b16 %v535, %v533
  %v690 = vpack.c.b16 %v538, %v536
  %v691 = vpack.c.b16 %v539, %v537
  %v692 = vpack.c.b16 %v542, %v540
  %v693 = vpack.c.b16 %v543, %v541
  %v694 = vpack.c.b16 %v546, %v544
  %v695 = vpack.c.b16 %v547, %v545
  %v696 = vpack.c.b16 %v550, %v548
  %v697 = vpack.c.b16 %v551, %v549
  %v698 = vpack.c.b16 %v554, %v552
  %v699 = vpack.c.b16 %v555, %v553
  %v700 = vpack.c.b16 %v558, %v556
  %v701 = vpack.c.b16 %v559, %v557
  %v702 = vpack.c.b16 %v562, %v560
  %v703 = vpack.c.b16 %v563, %v561
  %v704 = vpack.c.b16 %v566, %v564
  %v705 = vpack.c.b16 %v567, %v565
  %v706 = vpack.c.b16 %v570, %v568
  %v707 = vpack.c.b16 %v571, %v569
  %v708 = vpack.c.b16 %v574, %v572
  %v709 = vpack.c.b16 %v575, %v573
  %v710 = vpack.c.b16 %v578, %v576
  %v711 = vpack.c.b16 %v579, %v577
  %v712 = vpack.c.b16 %v582, %v580
  %v713 = vpack.c.b16 %v583, %v581
  %v714 = vpack.c.b16 %v586, %v584
  %v715 = vpack.c.b16 %v587, %v585
  %844 = vmatprep.subr.bf16.mxu0 %v589
  %845 = vmatpush1.bf16.msra.mxu0 %v588
  %846 = vmatprep.subr.bf16.mxu0 %v591
  %847 = vmatpush1.bf16.msra.mxu0 %v590
  %848 = vmatprep.subr.bf16.mxu0 %v593
  %849 = vmatpush1.bf16.msra.mxu0 %v592
  %850 = vmatprep.subr.bf16.mxu0 %v595
  %851 = vmatpush1.bf16.msra.mxu0 %v594
  %852 = vmatprep.subr.bf16.mxu0 %v597
  %853 = vmatpush1.bf16.msra.mxu0 %v596
  %854 = vmatprep.subr.bf16.mxu0 %v599
  %855 = vmatpush1.bf16.msra.mxu0 %v598
  %856 = vmatprep.subr.bf16.mxu0 %v601
  %857 = vmatpush1.bf16.msra.mxu0 %v600
  %858 = vmatprep.subr.bf16.mxu0 %v603
  %859 = vmatpush1.bf16.msra.mxu0 %v602
  %860 = vmatprep.subr.bf16.mxu0 %v605
  %861 = vmatpush1.bf16.msra.mxu0 %v604
  %862 = vmatprep.subr.bf16.mxu0 %v607
  %863 = vmatpush1.bf16.msra.mxu0 %v606
  %864 = vmatprep.subr.bf16.mxu0 %v609
  %865 = vmatpush1.bf16.msra.mxu0 %v608
  %866 = vmatprep.subr.bf16.mxu0 %v611
  %867 = vmatpush1.bf16.msra.mxu0 %v610
  %868 = vmatprep.subr.bf16.mxu0 %v613
  %869 = vmatpush1.bf16.msra.mxu0 %v612
  %870 = vmatprep.subr.bf16.mxu0 %v615
  %871 = vmatpush1.bf16.msra.mxu0 %v614
  %872 = vmatprep.subr.bf16.mxu0 %v617
  %873 = vmatpush1.bf16.msra.mxu0 %v616
  %874 = vmatprep.subr.bf16.mxu0 %v619
  %875 = vmatpush1.bf16.msra.mxu0 %v618
  %876 = vmatprep.mubr.bf16.mxu0 %v184
  %877 = vmatmul.mubr.bf16.gmra.mrb[0].mxu0 %v170
  %v878 = vpop.f32.mrb[0].mxu0
  %v879 = vadd.f32 0.0, %v878
  %v880 = vpop.f32.mrb[0].mxu0
  %v881 = vadd.f32 0.0, %v880
  %v882 = vpop.f32.mrb[0].mxu0
  %v883 = vpop.f32.mrb[0].mxu0
  %884 = vdwg.mxu0
  %885 = vmatprep.subr.bf16.mxu0 %v621
  %886 = vmatpush1.bf16.msra.mxu0 %v620
  %887 = vmatprep.subr.bf16.mxu0 %v623
  %888 = vmatpush1.bf16.msra.mxu0 %v622
  %889 = vmatprep.subr.bf16.mxu0 %v625
  %890 = vmatpush1.bf16.msra.mxu0 %v624
  %891 = vmatprep.subr.bf16.mxu0 %v627
  %892 = vmatpush1.bf16.msra.mxu0 %v626
  %893 = vmatprep.subr.bf16.mxu0 %v629
  %894 = vmatpush1.bf16.msra.mxu0 %v628
  %895 = vmatprep.subr.bf16.mxu0 %v631
  %896 = vmatpush1.bf16.msra.mxu0 %v630
  %897 = vmatprep.subr.bf16.mxu0 %v633
  %898 = vmatpush1.bf16.msra.mxu0 %v632
  %899 = vmatprep.subr.bf16.mxu0 %v635
  %900 = vmatpush1.bf16.msra.mxu0 %v634
  %901 = vmatprep.subr.bf16.mxu0 %v637
  %902 = vmatpush1.bf16.msra.mxu0 %v636
  %903 = vmatprep.subr.bf16.mxu0 %v639
  %904 = vmatpush1.bf16.msra.mxu0 %v638
  %905 = vmatprep.subr.bf16.mxu0 %v641
  %906 = vmatpush1.bf16.msra.mxu0 %v640
  %907 = vmatprep.subr.bf16.mxu0 %v643
  %908 = vmatpush1.bf16.msra.mxu0 %v642
  %909 = vmatprep.subr.bf16.mxu0 %v645
  %910 = vmatpush1.bf16.msra.mxu0 %v644
  %911 = vmatprep.subr.bf16.mxu0 %v647
  %912 = vmatpush1.bf16.msra.mxu0 %v646
  %913 = vmatprep.subr.bf16.mxu0 %v649
  %914 = vmatpush1.bf16.msra.mxu0 %v648
  %915 = vmatprep.subr.bf16.mxu0 %v651
  %916 = vmatpush1.bf16.msra.mxu0 %v650
  %917 = vmatprep.mubr.bf16.mxu0 %v194
  %918 = vmatmul.mubr.bf16.gmra.mrb[0].mxu0 %v192
  %v919 = vpop.f32.mrb[0].mxu0
  %v920 = vadd.f32 %v879, %v919
  %v921 = vpop.f32.mrb[0].mxu0
  %v922 = vadd.f32 %v881, %v921
  %v923 = vpop.f32.mrb[0].mxu0
  %v924 = vpop.f32.mrb[0].mxu0
  %925 = vdwg.mxu0
  %926 = vmatprep.subr.bf16.mxu0 %v653
  %927 = vmatpush1.bf16.msra.mxu0 %v652
  %928 = vmatprep.subr.bf16.mxu0 %v655
  %929 = vmatpush1.bf16.msra.mxu0 %v654
  %930 = vmatprep.subr.bf16.mxu0 %v657
  %931 = vmatpush1.bf16.msra.mxu0 %v656
  %932 = vmatprep.subr.bf16.mxu0 %v659
  %933 = vmatpush1.bf16.msra.mxu0 %v658
  %934 = vmatprep.subr.bf16.mxu0 %v661
  %935 = vmatpush1.bf16.msra.mxu0 %v660
  %936 = vmatprep.subr.bf16.mxu0 %v663
  %937 = vmatpush1.bf16.msra.mxu0 %v662
  %938 = vmatprep.subr.bf16.mxu0 %v665
  %939 = vmatpush1.bf16.msra.mxu0 %v664
  %940 = vmatprep.subr.bf16.mxu0 %v667
  %941 = vmatpush1.bf16.msra.mxu0 %v666
  %942 = vmatprep.subr.bf16.mxu0 %v669
  %943 = vmatpush1.bf16.msra.mxu0 %v668
  %944 = vmatprep.subr.bf16.mxu0 %v671
  %945 = vmatpush1.bf16.msra.mxu0 %v670
  %946 = vmatprep.subr.bf16.mxu0 %v673
  %947 = vmatpush1.bf16.msra.mxu0 %v672
  %948 = vmatprep.subr.bf16.mxu0 %v675
  %949 = vmatpush1.bf16.msra.mxu0 %v674
  %950 = vmatprep.subr.bf16.mxu0 %v677
  %951 = vmatpush1.bf16.msra.mxu0 %v676
  %952 = vmatprep.subr.bf16.mxu0 %v679
  %953 = vmatpush1.bf16.msra.mxu0 %v678
  %954 = vmatprep.subr.bf16.mxu0 %v681
  %955 = vmatpush1.bf16.msra.mxu0 %v680
  %956 = vmatprep.subr.bf16.mxu0 %v683
  %957 = vmatpush1.bf16.msra.mxu0 %v682
  %958 = vmatprep.mubr.bf16.mxu0 %v191
  %959 = vmatmul.mubr.bf16.gmra.mrb[0].mxu0 %v177
  %v960 = vpop.f32.mrb[0].mxu0
  %v961 = vadd.f32 %v920, %v960
  %v962 = vpop.f32.mrb[0].mxu0
  %v963 = vadd.f32 %v922, %v962
  %v964 = vpop.f32.mrb[0].mxu0
  %v965 = vpop.f32.mrb[0].mxu0
  %966 = vdwg.mxu0
  %967 = vmatprep.subr.bf16.mxu0 %v685
  %968 = vmatpush1.bf16.msra.mxu0 %v684
  %969 = vmatprep.subr.bf16.mxu0 %v687
  %970 = vmatpush1.bf16.msra.mxu0 %v686
  %971 = vmatprep.subr.bf16.mxu0 %v689
  %972 = vmatpush1.bf16.msra.mxu0 %v688
  %973 = vmatprep.subr.bf16.mxu0 %v691
  %974 = vmatpush1.bf16.msra.mxu0 %v690
  %975 = vmatprep.subr.bf16.mxu0 %v693
  %976 = vmatpush1.bf16.msra.mxu0 %v692
  %977 = vmatprep.subr.bf16.mxu0 %v695
  %978 = vmatpush1.bf16.msra.mxu0 %v694
  %979 = vmatprep.subr.bf16.mxu0 %v697
  %980 = vmatpush1.bf16.msra.mxu0 %v696
  %981 = vmatprep.subr.bf16.mxu0 %v699
  %982 = vmatpush1.bf16.msra.mxu0 %v698
  %983 = vmatprep.subr.bf16.mxu0 %v701
  %984 = vmatpush1.bf16.msra.mxu0 %v700
  %985 = vmatprep.subr.bf16.mxu0 %v703
  %986 = vmatpush1.bf16.msra.mxu0 %v702
  %987 = vmatprep.subr.bf16.mxu0 %v705
  %988 = vmatpush1.bf16.msra.mxu0 %v704
  %989 = vmatprep.subr.bf16.mxu0 %v707
  %990 = vmatpush1.bf16.msra.mxu0 %v706
  %991 = vmatprep.subr.bf16.mxu0 %v709
  %992 = vmatpush1.bf16.msra.mxu0 %v708
  %993 = vmatprep.subr.bf16.mxu0 %v711
  %994 = vmatpush1.bf16.msra.mxu0 %v710
  %995 = vmatprep.subr.bf16.mxu0 %v713
  %996 = vmatpush1.bf16.msra.mxu0 %v712
  %997 = vmatprep.subr.bf16.mxu0 %v715
  %998 = vmatpush1.bf16.msra.mxu0 %v714
  %999 = vmatprep.mubr.bf16.mxu0 %v195
  %1000 = vmatmul.mubr.bf16.gmra.mrb[0].mxu0 %v193
  %v1001 = vpop.f32.mrb[0].mxu0
  %v1002 = vadd.f32 %v961, %v1001
  %v1003 = vpop.f32.mrb[0].mxu0
  %v1004 = vadd.f32 %v963, %v1003
  %v1005 = vpop.f32.mrb[0].mxu0
  %v1006 = vpop.f32.mrb[0].mxu0
  %1007 = vdwg.mxu0
  %v1008 = vld [vmem:[%s2] sm:$0x3]
  %v1010 = vlaneseq
  %v1011 = vshrl.u32 %v1010, 7
  %v1012 = vsub.s32 0, %v1011
  %v1013 = vrot.slane %v1008, %v1012
  %v1014 = vlaneseq
  %v1015 = vshrl.u32 %v1014, 7
  %v1016 = vsub.s32 1, %v1015
  %v1017 = vrot.slane %v1008, %v1016
  %v1020 = vmul.f32 %v1002, %v1013
  %v1021 = vmul.f32 %v1004, %v1017
  %v1022 = vld [vmem:[%s3] sm:$0x3]
  %v1024 = vlaneseq
  %v1025 = vshrl.u32 %v1024, 7
  %v1026 = vsub.s32 0, %v1025
  %v1027 = vrot.slane %v1022, %v1026
  %v1028 = vlaneseq
  %v1029 = vshrl.u32 %v1028, 7
  %v1030 = vsub.s32 1, %v1029
  %v1031 = vrot.slane %v1022, %v1030
  %v1034 = vadd.f32 %v1020, %v1027
  %v1035 = vadd.f32 %v1021, %v1031
  %v1036 = vmax.f32 %v1034, 0.0
  %v1037 = vmax.f32 %v1035, 0.0
  %v1040 = vcombine.low %v1036, %v1037
  %v1042 = vunpack.c.l.s4 1983009808
  %v1043 = vunpack.c.0.s8 %v1042
  %v1044 = vlaneseq
  %v1045 = vshrl.u32 %v1044, 7
  %v1046 = vsub.s32 %v1043, %v1045
  %v1047 = vrot.slane %v1040, %v1046
  %1049 = vst [vmem:[%s4] sm:$0xf] %v1047
  // Predicated region
  $region18: #{cnn_forward.14} parent=0 // pred_check
    _
  $region19: #{cnn_forward.14} parent=0 // pred_check_branch
    %1051 = sbr.rel (0) target = $region21
  $region20: #{cnn_forward.14} parent=0 // pred_region
    _
  $region21: #{cnn_forward.14} parent=0 // pred_fallthru
    _
  // Predicated region
  $region22: #{cnn_forward.14} parent=0 // pred_check
    _
  $region23: #{cnn_forward.14} parent=0 // pred_check_branch
    %1053 = sbr.rel (0) target = $region25
  $region24: #{cnn_forward.14} parent=0 // pred_region
    _
  $region25: #{cnn_forward.14} parent=0 // pred_fallthru
    _

// kernel: cnn_forward.13
$region0: #{cnn_forward.13}
  #allocation0 [shape = 'u32[]', space=smem, size = 0x4, offset = 0x4, fixed_abs, tag = 'smem constant byte address 0x4 - core index']
  #allocation1 [shape = 'u32[144,128]{1,0:T(1,128)}', space=vmem, size = 0x12000, scoped, tag = 'internal scratch']
  %s0 = inlined_call_operand.vmem [shape: bf16[4,8,2304], index: 0, kind: input, shape index: {}]
  %s1 = inlined_call_operand.vmem [shape: bf16[2304,256], index: 1, kind: input, shape index: {}]
  %s2 = inlined_call_operand.vmem [shape: f32[1,256], index: 2, kind: input, shape index: {}]
  %s3 = inlined_call_operand.vmem [shape: f32[1,256], index: 3, kind: input, shape index: {}]
  %s4 = inlined_call_operand.vmem [shape: f32[8,256], index: 4, kind: output, shape index: {}]
  %s5 = sld [smem:[#allocation0]]
  $region26: #{cnn_forward.13} parent=0
    _
  %s7 = ssub.s32 1, %s5
  %s8 = scalar_select 0, %s7, %s5
  // Predicated region
  $region2: #{cnn_forward.13} parent=0 // pred_check
    _
  $region3: #{cnn_forward.13} parent=0 // pred_check_branch
    %10 = sbr.rel (0) target = $region5
  $region4: #{cnn_forward.13} parent=0 // pred_region
    _
  $region5: #{cnn_forward.13} parent=0 // pred_fallthru
    _
  // Predicated region
  $region6: #{cnn_forward.13} parent=0 // pred_check
    _
  $region7: #{cnn_forward.13} parent=0 // pred_check_branch
    %12 = sbr.rel (0) target = $region9
  $region8: #{cnn_forward.13} parent=0 // pred_region
    _
  $region9: #{cnn_forward.13} parent=0 // pred_fallthru
    _
  // Predicated region
  $region10: #{cnn_forward.13} parent=0 // pred_check
    _
  $region11: #{cnn_forward.13} parent=0 // pred_check_branch
    %14 = sbr.rel (0) target = $region13
  $region12: #{cnn_forward.13} parent=0 // pred_region
    _
  $region13: #{cnn_forward.13} parent=0 // pred_fallthru
    _
  // Predicated region
  $region14: #{cnn_forward.13} parent=0 // pred_check
    _
  $region15: #{cnn_forward.13} parent=0 // pred_check_branch
    %16 = sbr.rel (0) target = $region17
  $region16: #{cnn_forward.13} parent=0 // pred_region
    _
  $region17: #{cnn_forward.13} parent=0 // pred_fallthru
    _
  %v17 = vld [vmem:[%s1] sm:$0xff]
  %v18 = vld [vmem:[%s1 + $0x8] sm:$0xff]
  %v19 = vld [vmem:[%s1 + $0x10] sm:$0xff]
  %v20 = vld [vmem:[%s1 + $0x18] sm:$0xff]
  %v21 = vld [vmem:[%s1 + $0x20] sm:$0xff]
  %v22 = vld [vmem:[%s1 + $0x28] sm:$0xff]
  %v23 = vld [vmem:[%s1 + $0x30] sm:$0xff]
  %v24 = vld [vmem:[%s1 + $0x38] sm:$0xff]
  %v25 = vld [vmem:[%s1 + $0x40] sm:$0xff]
  %v26 = vld [vmem:[%s1 + $0x48] sm:$0xff]
  %v27 = vld [vmem:[%s1 + $0x50] sm:$0xff]
  %v28 = vld [vmem:[%s1 + $0x58] sm:$0xff]
  %v29 = vld [vmem:[%s1 + $0x60] sm:$0xff]
  %v30 = vld [vmem:[%s1 + $0x68] sm:$0xff]
  %v31 = vld [vmem:[%s1 + $0x70] sm:$0xff]
  %v32 = vld [vmem:[%s1 + $0x78] sm:$0xff]
  %v33 = vld [vmem:[%s1 + $0x80] sm:$0xff]
  %v34 = vld [vmem:[%s1 + $0x88] sm:$0xff]
  %v35 = vld [vmem:[%s1 + $0x90] sm:$0xff]
  %v36 = vld [vmem:[%s1 + $0x98] sm:$0xff]
  %v37 = vld [vmem:[%s1 + $0xa0] sm:$0xff]
  %v38 = vld [vmem:[%s1 + $0xa8] sm:$0xff]
  %v39 = vld [vmem:[%s1 + $0xb0] sm:$0xff]
  %v40 = vld [vmem:[%s1 + $0xb8] sm:$0xff]
  %v41 = vld [vmem:[%s1 + $0xc0] sm:$0xff]
  %v42 = vld [vmem:[%s1 + $0xc8] sm:$0xff]
  %v43 = vld [vmem:[%s1 + $0xd0] sm:$0xff]
  %v44 = vld [vmem:[%s1 + $0xd8] sm:$0xff]
  %v45 = vld [vmem:[%s1 + $0xe0] sm:$0xff]
  %v46 = vld [vmem:[%s1 + $0xe8] sm:$0xff]
  %v47 = vld [vmem:[%s1 + $0xf0] sm:$0xff]
  %v48 = vld [vmem:[%s1 + $0xf8] sm:$0xff]
  %v49 = vld [vmem:[%s1 + $0x100] sm:$0xff]
  %v50 = vld [vmem:[%s1 + $0x108] sm:$0xff]
  %v51 = vld [vmem:[%s1 + $0x110] sm:$0xff]
  %v52 = vld [vmem:[%s1 + $0x118] sm:$0xff]
  %v53 = vld [vmem:[%s1 + $0x120] sm:$0xff]
  %v54 = vld [vmem:[%s1 + $0x128] sm:$0xff]
  %v55 = vld [vmem:[%s1 + $0x130] sm:$0xff]
  %v56 = vld [vmem:[%s1 + $0x138] sm:$0xff]
  %v57 = vld [vmem:[%s1 + $0x140] sm:$0xff]
  %v58 = vld [vmem:[%s1 + $0x148] sm:$0xff]
  %v59 = vld [vmem:[%s1 + $0x150] sm:$0xff]
  %v60 = vld [vmem:[%s1 + $0x158] sm:$0xff]
  %v61 = vld [vmem:[%s1 + $0x160] sm:$0xff]
  %v62 = vld [vmem:[%s1 + $0x168] sm:$0xff]
  %v63 = vld [vmem:[%s1 + $0x170] sm:$0xff]
  %v64 = vld [vmem:[%s1 + $0x178] sm:$0xff]
  %v65 = vld [vmem:[%s1 + $0x180] sm:$0xff]
  %v66 = vld [vmem:[%s1 + $0x188] sm:$0xff]
  %v67 = vld [vmem:[%s1 + $0x190] sm:$0xff]
  %v68 = vld [vmem:[%s1 + $0x198] sm:$0xff]
  %v69 = vld [vmem:[%s1 + $0x1a0] sm:$0xff]
  %v70 = vld [vmem:[%s1 + $0x1a8] sm:$0xff]
  %v71 = vld [vmem:[%s1 + $0x1b0] sm:$0xff]
  %v72 = vld [vmem:[%s1 + $0x1b8] sm:$0xff]
  %v73 = vld [vmem:[%s1 + $0x1c0] sm:$0xff]
  %v74 = vld [vmem:[%s1 + $0x1c8] sm:$0xff]
  %v75 = vld [vmem:[%s1 + $0x1d0] sm:$0xff]
  %v76 = vld [vmem:[%s1 + $0x1d8] sm:$0xff]
  %v77 = vld [vmem:[%s1 + $0x1e0] sm:$0xff]
  %v78 = vld [vmem:[%s1 + $0x1e8] sm:$0xff]
  %v79 = vld [vmem:[%s1 + $0x1f0] sm:$0xff]
  %v80 = vld [vmem:[%s1 + $0x1f8] sm:$0xff]
  %v81 = vld [vmem:[%s1 + $0x200] sm:$0xff]
  %v82 = vld [vmem:[%s1 + $0x208] sm:$0xff]
  %v83 = vld [vmem:[%s1 + $0x210] sm:$0xff]
  %v84 = vld [vmem:[%s1 + $0x218] sm:$0xff]
  %v85 = vld [vmem:[%s1 + $0x220] sm:$0xff]
  %v86 = vld [vmem:[%s1 + $0x228] sm:$0xff]
  %v87 = vld [vmem:[%s1 + $0x230] sm:$0xff]
  %v88 = vld [vmem:[%s1 + $0x238] sm:$0xff]
  %v89 = vld [vmem:[%s1 + $0x240] sm:$0xff]
  %v90 = vld [vmem:[%s1 + $0x248] sm:$0xff]
  %v91 = vld [vmem:[%s1 + $0x250] sm:$0xff]
  %v92 = vld [vmem:[%s1 + $0x258] sm:$0xff]
  %v93 = vld [vmem:[%s1 + $0x260] sm:$0xff]
  %v94 = vld [vmem:[%s1 + $0x268] sm:$0xff]
  %v95 = vld [vmem:[%s1 + $0x270] sm:$0xff]
  %v96 = vld [vmem:[%s1 + $0x278] sm:$0xff]
  %v97 = vld [vmem:[%s1 + $0x280] sm:$0xff]
  %v98 = vld [vmem:[%s1 + $0x288] sm:$0xff]
  %v99 = vld [vmem:[%s1 + $0x290] sm:$0xff]
  %v100 = vld [vmem:[%s1 + $0x298] sm:$0xff]
  %v101 = vld [vmem:[%s1 + $0x2a0] sm:$0xff]
  %v102 = vld [vmem:[%s1 + $0x2a8] sm:$0xff]
  %v103 = vld [vmem:[%s1 + $0x2b0] sm:$0xff]
  %v104 = vld [vmem:[%s1 + $0x2b8] sm:$0xff]
  %v105 = vld [vmem:[%s1 + $0x2c0] sm:$0xff]
  %v106 = vld [vmem:[%s1 + $0x2c8] sm:$0xff]
  %v107 = vld [vmem:[%s1 + $0x2d0] sm:$0xff]
  %v108 = vld [vmem:[%s1 + $0x2d8] sm:$0xff]
  %v109 = vld [vmem:[%s1 + $0x2e0] sm:$0xff]
  %v110 = vld [vmem:[%s1 + $0x2e8] sm:$0xff]
  %v111 = vld [vmem:[%s1 + $0x2f0] sm:$0xff]
  %v112 = vld [vmem:[%s1 + $0x2f8] sm:$0xff]
  %v113 = vld [vmem:[%s1 + $0x300] sm:$0xff]
  %v114 = vld [vmem:[%s1 + $0x308] sm:$0xff]
  %v115 = vld [vmem:[%s1 + $0x310] sm:$0xff]
  %v116 = vld [vmem:[%s1 + $0x318] sm:$0xff]
  %v117 = vld [vmem:[%s1 + $0x320] sm:$0xff]
  %v118 = vld [vmem:[%s1 + $0x328] sm:$0xff]
  %v119 = vld [vmem:[%s1 + $0x330] sm:$0xff]
  %v120 = vld [vmem:[%s1 + $0x338] sm:$0xff]
  %v121 = vld [vmem:[%s1 + $0x340] sm:$0xff]
  %v122 = vld [vmem:[%s1 + $0x348] sm:$0xff]
  %v123 = vld [vmem:[%s1 + $0x350] sm:$0xff]
  %v124 = vld [vmem:[%s1 + $0x358] sm:$0xff]
  %v125 = vld [vmem:[%s1 + $0x360] sm:$0xff]
  %v126 = vld [vmem:[%s1 + $0x368] sm:$0xff]
  %v127 = vld [vmem:[%s1 + $0x370] sm:$0xff]
  %v128 = vld [vmem:[%s1 + $0x378] sm:$0xff]
  %v129 = vld [vmem:[%s1 + $0x380] sm:$0xff]
  %v130 = vld [vmem:[%s1 + $0x388] sm:$0xff]
  %v131 = vld [vmem:[%s1 + $0x390] sm:$0xff]
  %v132 = vld [vmem:[%s1 + $0x398] sm:$0xff]
  %v133 = vld [vmem:[%s1 + $0x3a0] sm:$0xff]
  %v134 = vld [vmem:[%s1 + $0x3a8] sm:$0xff]
  %v135 = vld [vmem:[%s1 + $0x3b0] sm:$0xff]
  %v136 = vld [vmem:[%s1 + $0x3b8] sm:$0xff]
  %v137 = vld [vmem:[%s1 + $0x3c0] sm:$0xff]
  %v138 = vld [vmem:[%s1 + $0x3c8] sm:$0xff]
  %v139 = vld [vmem:[%s1 + $0x3d0] sm:$0xff]
  %v140 = vld [vmem:[%s1 + $0x3d8] sm:$0xff]
  %v141 = vld [vmem:[%s1 + $0x3e0] sm:$0xff]
  %v142 = vld [vmem:[%s1 + $0x3e8] sm:$0xff]
  %v143 = vld [vmem:[%s1 + $0x3f0] sm:$0xff]
  %v144 = vld [vmem:[%s1 + $0x3f8] sm:$0xff]
  %v145 = vld [vmem:[%s1 + $0x400] sm:$0xff]
  %v146 = vld [vmem:[%s1 + $0x408] sm:$0xff]
  %v147 = vld [vmem:[%s1 + $0x410] sm:$0xff]
  %v148 = vld [vmem:[%s1 + $0x418] sm:$0xff]
  %v149 = vld [vmem:[%s1 + $0x420] sm:$0xff]
  %v150 = vld [vmem:[%s1 + $0x428] sm:$0xff]
  %v151 = vld [vmem:[%s1 + $0x430] sm:$0xff]
  %v152 = vld [vmem:[%s1 + $0x438] sm:$0xff]
  %v153 = vld [vmem:[%s1 + $0x440] sm:$0xff]
  %v154 = vld [vmem:[%s1 + $0x448] sm:$0xff]
  %v155 = vld [vmem:[%s1 + $0x450] sm:$0xff]
  %v156 = vld [vmem:[%s1 + $0x458] sm:$0xff]
  %v157 = vld [vmem:[%s1 + $0x460] sm:$0xff]
  %v158 = vld [vmem:[%s1 + $0x468] sm:$0xff]
  %v159 = vld [vmem:[%s1 + $0x470] sm:$0xff]
  %v160 = vld [vmem:[%s1 + $0x478] sm:$0xff]
  %v161 = vld [vmem:[%s1 + $0x480] sm:$0xff]
  %v162 = vld [vmem:[%s1 + $0x488] sm:$0xff]
  %v163 = vld [vmem:[%s1 + $0x490] sm:$0xff]
  %v164 = vld [vmem:[%s1 + $0x498] sm:$0xff]
  %v165 = vld [vmem:[%s1 + $0x4a0] sm:$0xff]
  %v166 = vld [vmem:[%s1 + $0x4a8] sm:$0xff]
  %v167 = vld [vmem:[%s1 + $0x4b0] sm:$0xff]
  %v168 = vld [vmem:[%s1 + $0x4b8] sm:$0xff]
  %v169 = vld [vmem:[%s1 + $0x4c0] sm:$0xff]
  %v170 = vld [vmem:[%s1 + $0x4c8] sm:$0xff]
  %v171 = vld [vmem:[%s1 + $0x4d0] sm:$0xff]
  %v172 = vld [vmem:[%s1 + $0x4d8] sm:$0xff]
  %v173 = vld [vmem:[%s1 + $0x4e0] sm:$0xff]
  %v174 = vld [vmem:[%s1 + $0x4e8] sm:$0xff]
  %v175 = vld [vmem:[%s1 + $0x4f0] sm:$0xff]
  %v176 = vld [vmem:[%s1 + $0x4f8] sm:$0xff]
  %v177 = vld [vmem:[%s1 + $0x500] sm:$0xff]
  %v178 = vld [vmem:[%s1 + $0x508] sm:$0xff]
  %v179 = vld [vmem:[%s1 + $0x510] sm:$0xff]
  %v180 = vld [vmem:[%s1 + $0x518] sm:$0xff]
  %v181 = vld [vmem:[%s1 + $0x520] sm:$0xff]
  %v182 = vld [vmem:[%s1 + $0x528] sm:$0xff]
  %v183 = vld [vmem:[%s1 + $0x530] sm:$0xff]
  %v184 = vld [vmem:[%s1 + $0x538] sm:$0xff]
  %v185 = vld [vmem:[%s1 + $0x540] sm:$0xff]
  %v186 = vld [vmem:[%s1 + $0x548] sm:$0xff]
  %v187 = vld [vmem:[%s1 + $0x550] sm:$0xff]
  %v188 = vld [vmem:[%s1 + $0x558] sm:$0xff]
  %v189 = vld [vmem:[%s1 + $0x560] sm:$0xff]
  %v190 = vld [vmem:[%s1 + $0x568] sm:$0xff]
  %v191 = vld [vmem:[%s1 + $0x570] sm:$0xff]
  %v192 = vld [vmem:[%s1 + $0x578] sm:$0xff]
  %v193 = vld [vmem:[%s1 + $0x580] sm:$0xff]
  %v194 = vld [vmem:[%s1 + $0x588] sm:$0xff]
  %v195 = vld [vmem:[%s1 + $0x590] sm:$0xff]
  %v196 = vld [vmem:[%s1 + $0x598] sm:$0xff]
  %v197 = vld [vmem:[%s1 + $0x5a0] sm:$0xff]
  %v198 = vld [vmem:[%s1 + $0x5a8] sm:$0xff]
  %v199 = vld [vmem:[%s1 + $0x5b0] sm:$0xff]
  %v200 = vld [vmem:[%s1 + $0x5b8] sm:$0xff]
  %v201 = vld [vmem:[%s1 + $0x5c0] sm:$0xff]
  %v202 = vld [vmem:[%s1 + $0x5c8] sm:$0xff]
  %v203 = vld [vmem:[%s1 + $0x5d0] sm:$0xff]
  %v204 = vld [vmem:[%s1 + $0x5d8] sm:$0xff]
  %v205 = vld [vmem:[%s1 + $0x5e0] sm:$0xff]
  %v206 = vld [vmem:[%s1 + $0x5e8] sm:$0xff]
  %v207 = vld [vmem:[%s1 + $0x5f0] sm:$0xff]
  %v208 = vld [vmem:[%s1 + $0x5f8] sm:$0xff]
  %v209 = vld [vmem:[%s1 + $0x600] sm:$0xff]
  %v210 = vld [vmem:[%s1 + $0x608] sm:$0xff]
  %v211 = vld [vmem:[%s1 + $0x610] sm:$0xff]
  %v212 = vld [vmem:[%s1 + $0x618] sm:$0xff]
  %v213 = vld [vmem:[%s1 + $0x620] sm:$0xff]
  %v214 = vld [vmem:[%s1 + $0x628] sm:$0xff]
  %v215 = vld [vmem:[%s1 + $0x630] sm:$0xff]
  %v216 = vld [vmem:[%s1 + $0x638] sm:$0xff]
  %v217 = vld [vmem:[%s1 + $0x640] sm:$0xff]
  %v218 = vld [vmem:[%s1 + $0x648] sm:$0xff]
  %v219 = vld [vmem:[%s1 + $0x650] sm:$0xff]
  %v220 = vld [vmem:[%s1 + $0x658] sm:$0xff]
  %v221 = vld [vmem:[%s1 + $0x660] sm:$0xff]
  %v222 = vld [vmem:[%s1 + $0x668] sm:$0xff]
  %v223 = vld [vmem:[%s1 + $0x670] sm:$0xff]
  %v224 = vld [vmem:[%s1 + $0x678] sm:$0xff]
  %v225 = vld [vmem:[%s1 + $0x680] sm:$0xff]
  %v226 = vld [vmem:[%s1 + $0x688] sm:$0xff]
  %v227 = vld [vmem:[%s1 + $0x690] sm:$0xff]
  %v228 = vld [vmem:[%s1 + $0x698] sm:$0xff]
  %v229 = vld [vmem:[%s1 + $0x6a0] sm:$0xff]
  %v230 = vld [vmem:[%s1 + $0x6a8] sm:$0xff]
  %v231 = vld [vmem:[%s1 + $0x6b0] sm:$0xff]
  %v232 = vld [vmem:[%s1 + $0x6b8] sm:$0xff]
  %v233 = vld [vmem:[%s1 + $0x6c0] sm:$0xff]
  %v234 = vld [vmem:[%s1 + $0x6c8] sm:$0xff]
  %v235 = vld [vmem:[%s1 + $0x6d0] sm:$0xff]
  %v236 = vld [vmem:[%s1 + $0x6d8] sm:$0xff]
  %v237 = vld [vmem:[%s1 + $0x6e0] sm:$0xff]
  %v238 = vld [vmem:[%s1 + $0x6e8] sm:$0xff]
  %v239 = vld [vmem:[%s1 + $0x6f0] sm:$0xff]
  %v240 = vld [vmem:[%s1 + $0x6f8] sm:$0xff]
  %v241 = vld [vmem:[%s1 + $0x700] sm:$0xff]
  %v242 = vld [vmem:[%s1 + $0x708] sm:$0xff]
  %v243 = vld [vmem:[%s1 + $0x710] sm:$0xff]
  %v244 = vld [vmem:[%s1 + $0x718] sm:$0xff]
  %v245 = vld [vmem:[%s1 + $0x720] sm:$0xff]
  %v246 = vld [vmem:[%s1 + $0x728] sm:$0xff]
  %v247 = vld [vmem:[%s1 + $0x730] sm:$0xff]
  %v248 = vld [vmem:[%s1 + $0x738] sm:$0xff]
  %v249 = vld [vmem:[%s1 + $0x740] sm:$0xff]
  %v250 = vld [vmem:[%s1 + $0x748] sm:$0xff]
  %v251 = vld [vmem:[%s1 + $0x750] sm:$0xff]
  %v252 = vld [vmem:[%s1 + $0x758] sm:$0xff]
  %v253 = vld [vmem:[%s1 + $0x760] sm:$0xff]
  %v254 = vld [vmem:[%s1 + $0x768] sm:$0xff]
  %v255 = vld [vmem:[%s1 + $0x770] sm:$0xff]
  %v256 = vld [vmem:[%s1 + $0x778] sm:$0xff]
  %v257 = vld [vmem:[%s1 + $0x780] sm:$0xff]
  %v258 = vld [vmem:[%s1 + $0x788] sm:$0xff]
  %v259 = vld [vmem:[%s1 + $0x790] sm:$0xff]
  %v260 = vld [vmem:[%s1 + $0x798] sm:$0xff]
  %v261 = vld [vmem:[%s1 + $0x7a0] sm:$0xff]
  %v262 = vld [vmem:[%s1 + $0x7a8] sm:$0xff]
  %v263 = vld [vmem:[%s1 + $0x7b0] sm:$0xff]
  %v264 = vld [vmem:[%s1 + $0x7b8] sm:$0xff]
  %v265 = vld [vmem:[%s1 + $0x7c0] sm:$0xff]
  %v266 = vld [vmem:[%s1 + $0x7c8] sm:$0xff]
  %v267 = vld [vmem:[%s1 + $0x7d0] sm:$0xff]
  %v268 = vld [vmem:[%s1 + $0x7d8] sm:$0xff]
  %v269 = vld [vmem:[%s1 + $0x7e0] sm:$0xff]
  %v270 = vld [vmem:[%s1 + $0x7e8] sm:$0xff]
  %v271 = vld [vmem:[%s1 + $0x7f0] sm:$0xff]
  %v272 = vld [vmem:[%s1 + $0x7f8] sm:$0xff]
  %v273 = vld [vmem:[%s1 + $0x800] sm:$0xff]
  %v274 = vld [vmem:[%s1 + $0x808] sm:$0xff]
  %v275 = vld [vmem:[%s1 + $0x810] sm:$0xff]
  %v276 = vld [vmem:[%s1 + $0x818] sm:$0xff]
  %v277 = vld [vmem:[%s1 + $0x820] sm:$0xff]
  %v278 = vld [vmem:[%s1 + $0x828] sm:$0xff]
  %v279 = vld [vmem:[%s1 + $0x830] sm:$0xff]
  %v280 = vld [vmem:[%s1 + $0x838] sm:$0xff]
  %v281 = vld [vmem:[%s1 + $0x840] sm:$0xff]
  %v282 = vld [vmem:[%s1 + $0x848] sm:$0xff]
  %v283 = vld [vmem:[%s1 + $0x850] sm:$0xff]
  %v284 = vld [vmem:[%s1 + $0x858] sm:$0xff]
  %v285 = vld [vmem:[%s1 + $0x860] sm:$0xff]
  %v286 = vld [vmem:[%s1 + $0x868] sm:$0xff]
  %v287 = vld [vmem:[%s1 + $0x870] sm:$0xff]
  %v288 = vld [vmem:[%s1 + $0x878] sm:$0xff]
  %v289 = vld [vmem:[%s1 + $0x880] sm:$0xff]
  %v290 = vld [vmem:[%s1 + $0x888] sm:$0xff]
  %v291 = vld [vmem:[%s1 + $0x890] sm:$0xff]
  %v292 = vld [vmem:[%s1 + $0x898] sm:$0xff]
  %v293 = vld [vmem:[%s1 + $0x8a0] sm:$0xff]
  %v294 = vld [vmem:[%s1 + $0x8a8] sm:$0xff]
  %v295 = vld [vmem:[%s1 + $0x8b0] sm:$0xff]
  %v296 = vld [vmem:[%s1 + $0x8b8] sm:$0xff]
  %v297 = vld [vmem:[%s1 + $0x8c0] sm:$0xff]
  %v298 = vld [vmem:[%s1 + $0x8c8] sm:$0xff]
  %v299 = vld [vmem:[%s1 + $0x8d0] sm:$0xff]
  %v300 = vld [vmem:[%s1 + $0x8d8] sm:$0xff]
  %v301 = vld [vmem:[%s1 + $0x8e0] sm:$0xff]
  %v302 = vld [vmem:[%s1 + $0x8e8] sm:$0xff]
  %v303 = vld [vmem:[%s1 + $0x8f0] sm:$0xff]
  %v304 = vld [vmem:[%s1 + $0x8f8] sm:$0xff]
  %v305 = vld [vmem:[%s2] sm:$0x3]
  %v306 = vld [vmem:[%s3] sm:$0x3]
  %v307 = vld [vmem:[%s0] sm:$0xff]
  %v308 = vld [vmem:[%s0 + $0x8] sm:$0xff]
  %v309 = vld [vmem:[%s0 + $0x10] sm:$0xff]
  %v310 = vld [vmem:[%s0 + $0x18] sm:$0xff]
  %v311 = vld [vmem:[%s0 + $0x20] sm:$0xff]
  %v312 = vld [vmem:[%s0 + $0x28] sm:$0xff]
  %v313 = vld [vmem:[%s0 + $0x30] sm:$0xff]
  %v314 = vld [vmem:[%s0 + $0x38] sm:$0xff]
  %v315 = vld [vmem:[%s0 + $0x40] sm:$0xff]
  %v325 = vunpack.c.l.b16 %v307
  %v326 = vunpack.c.h.b16 %v307
  %v327 = vunpack.c.l.b16 %v308
  %v328 = vunpack.c.h.b16 %v308
  %v329 = vunpack.c.l.b16 %v309
  %v330 = vunpack.c.h.b16 %v309
  %v331 = vunpack.c.l.b16 %v310
  %v332 = vunpack.c.h.b16 %v310
  %v333 = vunpack.c.l.b16 %v311
  %v334 = vunpack.c.h.b16 %v311
  %v335 = vunpack.c.l.b16 %v312
  %v336 = vunpack.c.h.b16 %v312
  %v337 = vunpack.c.l.b16 %v313
  %v338 = vunpack.c.h.b16 %v313
  %v339 = vunpack.c.l.b16 %v314
  %v340 = vunpack.c.h.b16 %v314
  %v341 = vunpack.c.l.b16 %v315
  %v342 = vunpack.c.h.b16 %v315
  %v343 = vpack.c.b16 %v325, %v325
  %v344 = vpack.c.b16 %v326, %v326
  %v345 = vpack.c.b16 %v327, %v327
  %v346 = vpack.c.b16 %v328, %v328
  %v347 = vpack.c.b16 %v329, %v329
  %v348 = vpack.c.b16 %v330, %v330
  %v349 = vpack.c.b16 %v331, %v331
  %v350 = vpack.c.b16 %v332, %v332
  %v351 = vpack.c.b16 %v333, %v333
  %v352 = vpack.c.b16 %v334, %v334
  %v353 = vpack.c.b16 %v335, %v335
  %v354 = vpack.c.b16 %v336, %v336
  %v355 = vpack.c.b16 %v337, %v337
  %v356 = vpack.c.b16 %v338, %v338
  %v357 = vpack.c.b16 %v339, %v339
  %v358 = vpack.c.b16 %v340, %v340
  %v359 = vpack.c.b16 %v341, %v341
  %v360 = vpack.c.b16 %v342, %v342
  %v667 = vunpack.c.l.b16 %v17
  %v668 = vunpack.c.h.b16 %v17
  %v669 = vunpack.c.l.b16 %v18
  %v670 = vunpack.c.h.b16 %v18
  %v671 = vunpack.c.l.b16 %v19
  %v672 = vunpack.c.h.b16 %v19
  %v673 = vunpack.c.l.b16 %v20
  %v674 = vunpack.c.h.b16 %v20
  %v675 = vunpack.c.l.b16 %v21
  %v676 = vunpack.c.h.b16 %v21
  %v677 = vunpack.c.l.b16 %v22
  %v678 = vunpack.c.h.b16 %v22
  %v679 = vunpack.c.l.b16 %v23
  %v680 = vunpack.c.h.b16 %v23
  %v681 = vunpack.c.l.b16 %v24
  %v682 = vunpack.c.h.b16 %v24
  %v683 = vunpack.c.l.b16 %v25
  %v684 = vunpack.c.h.b16 %v25
  %v685 = vunpack.c.l.b16 %v26
  %v686 = vunpack.c.h.b16 %v26
  %v687 = vunpack.c.l.b16 %v27
  %v688 = vunpack.c.h.b16 %v27
  %v689 = vunpack.c.l.b16 %v28
  %v690 = vunpack.c.h.b16 %v28
  %v691 = vunpack.c.l.b16 %v29
  %v692 = vunpack.c.h.b16 %v29
  %v693 = vunpack.c.l.b16 %v30
  %v694 = vunpack.c.h.b16 %v30
  %v695 = vunpack.c.l.b16 %v31
  %v696 = vunpack.c.h.b16 %v31
  %v697 = vunpack.c.l.b16 %v32
  %v698 = vunpack.c.h.b16 %v32
  %v699 = vunpack.c.l.b16 %v33
  %v700 = vunpack.c.h.b16 %v33
  %v701 = vunpack.c.l.b16 %v34
  %v702 = vunpack.c.h.b16 %v34
  %v703 = vunpack.c.l.b16 %v35
  %v704 = vunpack.c.h.b16 %v35
  %v705 = vunpack.c.l.b16 %v36
  %v706 = vunpack.c.h.b16 %v36
  %v707 = vunpack.c.l.b16 %v37
  %v708 = vunpack.c.h.b16 %v37
  %v709 = vunpack.c.l.b16 %v38
  %v710 = vunpack.c.h.b16 %v38
  %v711 = vunpack.c.l.b16 %v39
  %v712 = vunpack.c.h.b16 %v39
  %v713 = vunpack.c.l.b16 %v40
  %v714 = vunpack.c.h.b16 %v40
  %v715 = vunpack.c.l.b16 %v41
  %v716 = vunpack.c.h.b16 %v41
  %v717 = vunpack.c.l.b16 %v42
  %v718 = vunpack.c.h.b16 %v42
  %v719 = vunpack.c.l.b16 %v43
  %v720 = vunpack.c.h.b16 %v43
  %v721 = vunpack.c.l.b16 %v44
  %v722 = vunpack.c.h.b16 %v44
  %v723 = vunpack.c.l.b16 %v45
  %v724 = vunpack.c.h.b16 %v45
  %v725 = vunpack.c.l.b16 %v46
  %v726 = vunpack.c.h.b16 %v46
  %v727 = vunpack.c.l.b16 %v47
  %v728 = vunpack.c.h.b16 %v47
  %v729 = vunpack.c.l.b16 %v48
  %v730 = vunpack.c.h.b16 %v48
  %v731 = vunpack.c.l.b16 %v49
  %v732 = vunpack.c.h.b16 %v49
  %v733 = vunpack.c.l.b16 %v50
  %v734 = vunpack.c.h.b16 %v50
  %v735 = vunpack.c.l.b16 %v51
  %v736 = vunpack.c.h.b16 %v51
  %v737 = vunpack.c.l.b16 %v52
  %v738 = vunpack.c.h.b16 %v52
  %v739 = vunpack.c.l.b16 %v53
  %v740 = vunpack.c.h.b16 %v53
  %v741 = vunpack.c.l.b16 %v54
  %v742 = vunpack.c.h.b16 %v54
  %v743 = vunpack.c.l.b16 %v55
  %v744 = vunpack.c.h.b16 %v55
  %v745 = vunpack.c.l.b16 %v56
  %v746 = vunpack.c.h.b16 %v56
  %v747 = vunpack.c.l.b16 %v57
  %v748 = vunpack.c.h.b16 %v57
  %v749 = vunpack.c.l.b16 %v58
  %v750 = vunpack.c.h.b16 %v58
  %v751 = vunpack.c.l.b16 %v59
  %v752 = vunpack.c.h.b16 %v59
  %v753 = vunpack.c.l.b16 %v60
  %v754 = vunpack.c.h.b16 %v60
  %v755 = vunpack.c.l.b16 %v61
  %v756 = vunpack.c.h.b16 %v61
  %v757 = vunpack.c.l.b16 %v62
  %v758 = vunpack.c.h.b16 %v62
  %v759 = vunpack.c.l.b16 %v63
  %v760 = vunpack.c.h.b16 %v63
  %v761 = vunpack.c.l.b16 %v64
  %v762 = vunpack.c.h.b16 %v64
  %v763 = vunpack.c.l.b16 %v65
  %v764 = vunpack.c.h.b16 %v65
  %v765 = vunpack.c.l.b16 %v66
  %v766 = vunpack.c.h.b16 %v66
  %v767 = vunpack.c.l.b16 %v67
  %v768 = vunpack.c.h.b16 %v67
  %v769 = vunpack.c.l.b16 %v68
  %v770 = vunpack.c.h.b16 %v68
  %v771 = vunpack.c.l.b16 %v69
  %v772 = vunpack.c.h.b16 %v69
  %v773 = vunpack.c.l.b16 %v70
  %v774 = vunpack.c.h.b16 %v70
  %v775 = vunpack.c.l.b16 %v71
  %v776 = vunpack.c.h.b16 %v71
  %v777 = vunpack.c.l.b16 %v72
  %v778 = vunpack.c.h.b16 %v72
  %v779 = vunpack.c.l.b16 %v73
  %v780 = vunpack.c.h.b16 %v73
  %v781 = vunpack.c.l.b16 %v74
  %v782 = vunpack.c.h.b16 %v74
  %v783 = vunpack.c.l.b16 %v75
  %v784 = vunpack.c.h.b16 %v75
  %v785 = vunpack.c.l.b16 %v76
  %v786 = vunpack.c.h.b16 %v76
  %v787 = vunpack.c.l.b16 %v77
  %v788 = vunpack.c.h.b16 %v77
  %v789 = vunpack.c.l.b16 %v78
  %v790 = vunpack.c.h.b16 %v78
  %v791 = vunpack.c.l.b16 %v79
  %v792 = vunpack.c.h.b16 %v79
  %v793 = vunpack.c.l.b16 %v80
  %v794 = vunpack.c.h.b16 %v80
  %v795 = vunpack.c.l.b16 %v81
  %v796 = vunpack.c.h.b16 %v81
  %v797 = vunpack.c.l.b16 %v82
  %v798 = vunpack.c.h.b16 %v82
  %v799 = vunpack.c.l.b16 %v83
  %v800 = vunpack.c.h.b16 %v83
  %v801 = vunpack.c.l.b16 %v84
  %v802 = vunpack.c.h.b16 %v84
  %v803 = vunpack.c.l.b16 %v85
  %v804 = vunpack.c.h.b16 %v85
  %v805 = vunpack.c.l.b16 %v86
  %v806 = vunpack.c.h.b16 %v86
  %v807 = vunpack.c.l.b16 %v87
  %v808 = vunpack.c.h.b16 %v87
  %v809 = vunpack.c.l.b16 %v88
  %v810 = vunpack.c.h.b16 %v88
  %v811 = vunpack.c.l.b16 %v89
  %v812 = vunpack.c.h.b16 %v89
  %v813 = vunpack.c.l.b16 %v90
  %v814 = vunpack.c.h.b16 %v90
  %v815 = vunpack.c.l.b16 %v91
  %v816 = vunpack.c.h.b16 %v91
  %v817 = vunpack.c.l.b16 %v92
  %v818 = vunpack.c.h.b16 %v92
  %v819 = vunpack.c.l.b16 %v93
  %v820 = vunpack.c.h.b16 %v93
  %v821 = vunpack.c.l.b16 %v94
  %v822 = vunpack.c.h.b16 %v94
  %v823 = vunpack.c.l.b16 %v95
  %v824 = vunpack.c.h.b16 %v95
  %v825 = vunpack.c.l.b16 %v96
  %v826 = vunpack.c.h.b16 %v96
  %v827 = vunpack.c.l.b16 %v97
  %v828 = vunpack.c.h.b16 %v97
  %v829 = vunpack.c.l.b16 %v98
  %v830 = vunpack.c.h.b16 %v98
  %v831 = vunpack.c.l.b16 %v99
  %v832 = vunpack.c.h.b16 %v99
  %v833 = vunpack.c.l.b16 %v100
  %v834 = vunpack.c.h.b16 %v100
  %v835 = vunpack.c.l.b16 %v101
  %v836 = vunpack.c.h.b16 %v101
  %v837 = vunpack.c.l.b16 %v102
  %v838 = vunpack.c.h.b16 %v102
  %v839 = vunpack.c.l.b16 %v103
  %v840 = vunpack.c.h.b16 %v103
  %v841 = vunpack.c.l.b16 %v104
  %v842 = vunpack.c.h.b16 %v104
  %v843 = vunpack.c.l.b16 %v105
  %v844 = vunpack.c.h.b16 %v105
  %v845 = vunpack.c.l.b16 %v106
  %v846 = vunpack.c.h.b16 %v106
  %v847 = vunpack.c.l.b16 %v107
  %v848 = vunpack.c.h.b16 %v107
  %v849 = vunpack.c.l.b16 %v108
  %v850 = vunpack.c.h.b16 %v108
  %v851 = vunpack.c.l.b16 %v109
  %v852 = vunpack.c.h.b16 %v109
  %v853 = vunpack.c.l.b16 %v110
  %v854 = vunpack.c.h.b16 %v110
  %v855 = vunpack.c.l.b16 %v111
  %v856 = vunpack.c.h.b16 %v111
  %v857 = vunpack.c.l.b16 %v112
  %v858 = vunpack.c.h.b16 %v112
  %v859 = vunpack.c.l.b16 %v113
  %v860 = vunpack.c.h.b16 %v113
  %v861 = vunpack.c.l.b16 %v114
  %v862 = vunpack.c.h.b16 %v114
  %v863 = vunpack.c.l.b16 %v115
  %v864 = vunpack.c.h.b16 %v115
  %v865 = vunpack.c.l.b16 %v116
  %v866 = vunpack.c.h.b16 %v116
  %v867 = vunpack.c.l.b16 %v117
  %v868 = vunpack.c.h.b16 %v117
  %v869 = vunpack.c.l.b16 %v118
  %v870 = vunpack.c.h.b16 %v118
  %v871 = vunpack.c.l.b16 %v119
  %v872 = vunpack.c.h.b16 %v119
  %v873 = vunpack.c.l.b16 %v120
  %v874 = vunpack.c.h.b16 %v120
  %v875 = vunpack.c.l.b16 %v121
  %v876 = vunpack.c.h.b16 %v121
  %v877 = vunpack.c.l.b16 %v122
  %v878 = vunpack.c.h.b16 %v122
  %v879 = vunpack.c.l.b16 %v123
  %v880 = vunpack.c.h.b16 %v123
  %v881 = vunpack.c.l.b16 %v124
  %v882 = vunpack.c.h.b16 %v124
  %v883 = vunpack.c.l.b16 %v125
  %v884 = vunpack.c.h.b16 %v125
  %v885 = vunpack.c.l.b16 %v126
  %v886 = vunpack.c.h.b16 %v126
  %v887 = vunpack.c.l.b16 %v127
  %v888 = vunpack.c.h.b16 %v127
  %v889 = vunpack.c.l.b16 %v128
  %v890 = vunpack.c.h.b16 %v128
  %v891 = vunpack.c.l.b16 %v129
  %v892 = vunpack.c.h.b16 %v129
  %v893 = vunpack.c.l.b16 %v130
  %v894 = vunpack.c.h.b16 %v130
  %v895 = vunpack.c.l.b16 %v131
  %v896 = vunpack.c.h.b16 %v131
  %v897 = vunpack.c.l.b16 %v132
  %v898 = vunpack.c.h.b16 %v132
  %v899 = vunpack.c.l.b16 %v133
  %v900 = vunpack.c.h.b16 %v133
  %v901 = vunpack.c.l.b16 %v134
  %v902 = vunpack.c.h.b16 %v134
  %v903 = vunpack.c.l.b16 %v135
  %v904 = vunpack.c.h.b16 %v135
  %v905 = vunpack.c.l.b16 %v136
  %v906 = vunpack.c.h.b16 %v136
  %v907 = vunpack.c.l.b16 %v137
  %v908 = vunpack.c.h.b16 %v137
  %v909 = vunpack.c.l.b16 %v138
  %v910 = vunpack.c.h.b16 %v138
  %v911 = vunpack.c.l.b16 %v139
  %v912 = vunpack.c.h.b16 %v139
  %v913 = vunpack.c.l.b16 %v140
  %v914 = vunpack.c.h.b16 %v140
  %v915 = vunpack.c.l.b16 %v141
  %v916 = vunpack.c.h.b16 %v141
  %v917 = vunpack.c.l.b16 %v142
  %v918 = vunpack.c.h.b16 %v142
  %v919 = vunpack.c.l.b16 %v143
  %v920 = vunpack.c.h.b16 %v143
  %v921 = vunpack.c.l.b16 %v144
  %v922 = vunpack.c.h.b16 %v144
  %v923 = vunpack.c.l.b16 %v145
  %v924 = vunpack.c.h.b16 %v145
  %v925 = vunpack.c.l.b16 %v146
  %v926 = vunpack.c.h.b16 %v146
  %v927 = vunpack.c.l.b16 %v147
  %v928 = vunpack.c.h.b16 %v147
  %v929 = vunpack.c.l.b16 %v148
  %v930 = vunpack.c.h.b16 %v148
  %v931 = vunpack.c.l.b16 %v149
  %v932 = vunpack.c.h.b16 %v149
  %v933 = vunpack.c.l.b16 %v150
  %v934 = vunpack.c.h.b16 %v150
  %v935 = vunpack.c.l.b16 %v151
  %v936 = vunpack.c.h.b16 %v151
  %v937 = vunpack.c.l.b16 %v152
  %v938 = vunpack.c.h.b16 %v152
  %v939 = vunpack.c.l.b16 %v153
  %v940 = vunpack.c.h.b16 %v153
  %v941 = vunpack.c.l.b16 %v154
  %v942 = vunpack.c.h.b16 %v154
  %v943 = vunpack.c.l.b16 %v155
  %v944 = vunpack.c.h.b16 %v155
  %v945 = vunpack.c.l.b16 %v156
  %v946 = vunpack.c.h.b16 %v156
  %v947 = vunpack.c.l.b16 %v157
  %v948 = vunpack.c.h.b16 %v157
  %v949 = vunpack.c.l.b16 %v158
  %v950 = vunpack.c.h.b16 %v158
  %v951 = vunpack.c.l.b16 %v159
  %v952 = vunpack.c.h.b16 %v159
  %v953 = vunpack.c.l.b16 %v160
  %v954 = vunpack.c.h.b16 %v160
  %v955 = vunpack.c.l.b16 %v161
  %v956 = vunpack.c.h.b16 %v161
  %v957 = vunpack.c.l.b16 %v162
  %v958 = vunpack.c.h.b16 %v162
  %v959 = vunpack.c.l.b16 %v163
  %v960 = vunpack.c.h.b16 %v163
  %v961 = vunpack.c.l.b16 %v164
  %v962 = vunpack.c.h.b16 %v164
  %v963 = vunpack.c.l.b16 %v165
  %v964 = vunpack.c.h.b16 %v165
  %v965 = vunpack.c.l.b16 %v166
  %v966 = vunpack.c.h.b16 %v166
  %v967 = vunpack.c.l.b16 %v167
  %v968 = vunpack.c.h.b16 %v167
  %v969 = vunpack.c.l.b16 %v168
  %v970 = vunpack.c.h.b16 %v168
  %v971 = vunpack.c.l.b16 %v169
  %v972 = vunpack.c.h.b16 %v169
  %v973 = vunpack.c.l.b16 %v170
  %v974 = vunpack.c.h.b16 %v170
  %v975 = vunpack.c.l.b16 %v171
  %v976 = vunpack.c.h.b16 %v171
  %v977 = vunpack.c.l.b16 %v172
  %v978 = vunpack.c.h.b16 %v172
  %v979 = vunpack.c.l.b16 %v173
  %v980 = vunpack.c.h.b16 %v173
  %v981 = vunpack.c.l.b16 %v174
  %v982 = vunpack.c.h.b16 %v174
  %v983 = vunpack.c.l.b16 %v175
  %v984 = vunpack.c.h.b16 %v175
  %v985 = vunpack.c.l.b16 %v176
  %v986 = vunpack.c.h.b16 %v176
  %v987 = vunpack.c.l.b16 %v177
  %v988 = vunpack.c.h.b16 %v177
  %v989 = vunpack.c.l.b16 %v178
  %v990 = vunpack.c.h.b16 %v178
  %v991 = vunpack.c.l.b16 %v179
  %v992 = vunpack.c.h.b16 %v179
  %v993 = vunpack.c.l.b16 %v180
  %v994 = vunpack.c.h.b16 %v180
  %v995 = vunpack.c.l.b16 %v181
  %v996 = vunpack.c.h.b16 %v181
  %v997 = vunpack.c.l.b16 %v182
  %v998 = vunpack.c.h.b16 %v182
  %v999 = vunpack.c.l.b16 %v183
  %v1000 = vunpack.c.h.b16 %v183
  %v1001 = vunpack.c.l.b16 %v184
  %v1002 = vunpack.c.h.b16 %v184
  %v1003 = vunpack.c.l.b16 %v185
  %v1004 = vunpack.c.h.b16 %v185
  %v1005 = vunpack.c.l.b16 %v186
  %v1006 = vunpack.c.h.b16 %v186
  %v1007 = vunpack.c.l.b16 %v187
  %v1008 = vunpack.c.h.b16 %v187
  %v1009 = vunpack.c.l.b16 %v188
  %v1010 = vunpack.c.h.b16 %v188
  %v1011 = vunpack.c.l.b16 %v189
  %v1012 = vunpack.c.h.b16 %v189
  %v1013 = vunpack.c.l.b16 %v190
  %v1014 = vunpack.c.h.b16 %v190
  %v1015 = vunpack.c.l.b16 %v191
  %v1016 = vunpack.c.h.b16 %v191
  %v1017 = vunpack.c.l.b16 %v192
  %v1018 = vunpack.c.h.b16 %v192
  %v1019 = vunpack.c.l.b16 %v193
  %v1020 = vunpack.c.h.b16 %v193
  %v1021 = vunpack.c.l.b16 %v194
  %v1022 = vunpack.c.h.b16 %v194
  %v1023 = vunpack.c.l.b16 %v195
  %v1024 = vunpack.c.h.b16 %v195
  %v1025 = vunpack.c.l.b16 %v196
  %v1026 = vunpack.c.h.b16 %v196
  %v1027 = vunpack.c.l.b16 %v197
  %v1028 = vunpack.c.h.b16 %v197
  %v1029 = vunpack.c.l.b16 %v198
  %v1030 = vunpack.c.h.b16 %v198
  %v1031 = vunpack.c.l.b16 %v199
  %v1032 = vunpack.c.h.b16 %v199
  %v1033 = vunpack.c.l.b16 %v200
  %v1034 = vunpack.c.h.b16 %v200
  %v1035 = vunpack.c.l.b16 %v201
  %v1036 = vunpack.c.h.b16 %v201
  %v1037 = vunpack.c.l.b16 %v202
  %v1038 = vunpack.c.h.b16 %v202
  %v1039 = vunpack.c.l.b16 %v203
  %v1040 = vunpack.c.h.b16 %v203
  %v1041 = vunpack.c.l.b16 %v204
  %v1042 = vunpack.c.h.b16 %v204
  %v1043 = vunpack.c.l.b16 %v205
  %v1044 = vunpack.c.h.b16 %v205
  %v1045 = vunpack.c.l.b16 %v206
  %v1046 = vunpack.c.h.b16 %v206
  %v1047 = vunpack.c.l.b16 %v207
  %v1048 = vunpack.c.h.b16 %v207
  %v1049 = vunpack.c.l.b16 %v208
  %v1050 = vunpack.c.h.b16 %v208
  %v1051 = vunpack.c.l.b16 %v209
  %v1052 = vunpack.c.h.b16 %v209
  %v1053 = vunpack.c.l.b16 %v210
  %v1054 = vunpack.c.h.b16 %v210
  %v1055 = vunpack.c.l.b16 %v211
  %v1056 = vunpack.c.h.b16 %v211
  %v1057 = vunpack.c.l.b16 %v212
  %v1058 = vunpack.c.h.b16 %v212
  %v1059 = vunpack.c.l.b16 %v213
  %v1060 = vunpack.c.h.b16 %v213
  %v1061 = vunpack.c.l.b16 %v214
  %v1062 = vunpack.c.h.b16 %v214
  %v1063 = vunpack.c.l.b16 %v215
  %v1064 = vunpack.c.h.b16 %v215
  %v1065 = vunpack.c.l.b16 %v216
  %v1066 = vunpack.c.h.b16 %v216
  %v1067 = vunpack.c.l.b16 %v217
  %v1068 = vunpack.c.h.b16 %v217
  %v1069 = vunpack.c.l.b16 %v218
  %v1070 = vunpack.c.h.b16 %v218
  %v1071 = vunpack.c.l.b16 %v219
  %v1072 = vunpack.c.h.b16 %v219
  %v1073 = vunpack.c.l.b16 %v220
  %v1074 = vunpack.c.h.b16 %v220
  %v1075 = vunpack.c.l.b16 %v221
  %v1076 = vunpack.c.h.b16 %v221
  %v1077 = vunpack.c.l.b16 %v222
  %v1078 = vunpack.c.h.b16 %v222
  %v1079 = vunpack.c.l.b16 %v223
  %v1080 = vunpack.c.h.b16 %v223
  %v1081 = vunpack.c.l.b16 %v224
  %v1082 = vunpack.c.h.b16 %v224
  %v1083 = vunpack.c.l.b16 %v225
  %v1084 = vunpack.c.h.b16 %v225
  %v1085 = vunpack.c.l.b16 %v226
  %v1086 = vunpack.c.h.b16 %v226
  %v1087 = vunpack.c.l.b16 %v227
  %v1088 = vunpack.c.h.b16 %v227
  %v1089 = vunpack.c.l.b16 %v228
  %v1090 = vunpack.c.h.b16 %v228
  %v1091 = vunpack.c.l.b16 %v229
  %v1092 = vunpack.c.h.b16 %v229
  %v1093 = vunpack.c.l.b16 %v230
  %v1094 = vunpack.c.h.b16 %v230
  %v1095 = vunpack.c.l.b16 %v231
  %v1096 = vunpack.c.h.b16 %v231
  %v1097 = vunpack.c.l.b16 %v232
  %v1098 = vunpack.c.h.b16 %v232
  %v1099 = vunpack.c.l.b16 %v233
  %v1100 = vunpack.c.h.b16 %v233
  %v1101 = vunpack.c.l.b16 %v234
  %v1102 = vunpack.c.h.b16 %v234
  %v1103 = vunpack.c.l.b16 %v235
  %v1104 = vunpack.c.h.b16 %v235
  %v1105 = vunpack.c.l.b16 %v236
  %v1106 = vunpack.c.h.b16 %v236
  %v1107 = vunpack.c.l.b16 %v237
  %v1108 = vunpack.c.h.b16 %v237
  %v1109 = vunpack.c.l.b16 %v238
  %v1110 = vunpack.c.h.b16 %v238
  %v1111 = vunpack.c.l.b16 %v239
  %v1112 = vunpack.c.h.b16 %v239
  %v1113 = vunpack.c.l.b16 %v240
  %v1114 = vunpack.c.h.b16 %v240
  %v1115 = vunpack.c.l.b16 %v241
  %v1116 = vunpack.c.h.b16 %v241
  %v1117 = vunpack.c.l.b16 %v242
  %v1118 = vunpack.c.h.b16 %v242
  %v1119 = vunpack.c.l.b16 %v243
  %v1120 = vunpack.c.h.b16 %v243
  %v1121 = vunpack.c.l.b16 %v244
  %v1122 = vunpack.c.h.b16 %v244
  %v1123 = vunpack.c.l.b16 %v245
  %v1124 = vunpack.c.h.b16 %v245
  %v1125 = vunpack.c.l.b16 %v246
  %v1126 = vunpack.c.h.b16 %v246
  %v1127 = vunpack.c.l.b16 %v247
  %v1128 = vunpack.c.h.b16 %v247
  %v1129 = vunpack.c.l.b16 %v248
  %v1130 = vunpack.c.h.b16 %v248
  %v1131 = vunpack.c.l.b16 %v249
  %v1132 = vunpack.c.h.b16 %v249
  %v1133 = vunpack.c.l.b16 %v250
  %v1134 = vunpack.c.h.b16 %v250
  %v1135 = vunpack.c.l.b16 %v251
  %v1136 = vunpack.c.h.b16 %v251
  %v1137 = vunpack.c.l.b16 %v252
  %v1138 = vunpack.c.h.b16 %v252
  %v1139 = vunpack.c.l.b16 %v253
  %v1140 = vunpack.c.h.b16 %v253
  %v1141 = vunpack.c.l.b16 %v254
  %v1142 = vunpack.c.h.b16 %v254
  %v1143 = vunpack.c.l.b16 %v255
  %v1144 = vunpack.c.h.b16 %v255
  %v1145 = vunpack.c.l.b16 %v256
  %v1146 = vunpack.c.h.b16 %v256
  %v1147 = vunpack.c.l.b16 %v257
  %v1148 = vunpack.c.h.b16 %v257
  %v1149 = vunpack.c.l.b16 %v258
  %v1150 = vunpack.c.h.b16 %v258
  %v1151 = vunpack.c.l.b16 %v259
  %v1152 = vunpack.c.h.b16 %v259
  %v1153 = vunpack.c.l.b16 %v260
  %v1154 = vunpack.c.h.b16 %v260
  %v1155 = vunpack.c.l.b16 %v261
  %v1156 = vunpack.c.h.b16 %v261
  %v1157 = vunpack.c.l.b16 %v262
  %v1158 = vunpack.c.h.b16 %v262
  %v1159 = vunpack.c.l.b16 %v263
  %v1160 = vunpack.c.h.b16 %v263
  %v1161 = vunpack.c.l.b16 %v264
  %v1162 = vunpack.c.h.b16 %v264
  %v1163 = vunpack.c.l.b16 %v265
  %v1164 = vunpack.c.h.b16 %v265
  %v1165 = vunpack.c.l.b16 %v266
  %v1166 = vunpack.c.h.b16 %v266
  %v1167 = vunpack.c.l.b16 %v267
  %v1168 = vunpack.c.h.b16 %v267
  %v1169 = vunpack.c.l.b16 %v268
  %v1170 = vunpack.c.h.b16 %v268
  %v1171 = vunpack.c.l.b16 %v269
  %v1172 = vunpack.c.h.b16 %v269
  %v1173 = vunpack.c.l.b16 %v270
  %v1174 = vunpack.c.h.b16 %v270
  %v1175 = vunpack.c.l.b16 %v271
  %v1176 = vunpack.c.h.b16 %v271
  %v1177 = vunpack.c.l.b16 %v272
  %v1178 = vunpack.c.h.b16 %v272
  %v1179 = vunpack.c.l.b16 %v273
  %v1180 = vunpack.c.h.b16 %v273
  %v1181 = vunpack.c.l.b16 %v274
  %v1182 = vunpack.c.h.b16 %v274
  %v1183 = vunpack.c.l.b16 %v275
  %v1184 = vunpack.c.h.b16 %v275
  %v1185 = vunpack.c.l.b16 %v276
  %v1186 = vunpack.c.h.b16 %v276
  %v1187 = vunpack.c.l.b16 %v277
  %v1188 = vunpack.c.h.b16 %v277
  %v1189 = vunpack.c.l.b16 %v278
  %v1190 = vunpack.c.h.b16 %v278
  %v1191 = vunpack.c.l.b16 %v279
  %v1192 = vunpack.c.h.b16 %v279
  %v1193 = vunpack.c.l.b16 %v280
  %v1194 = vunpack.c.h.b16 %v280
  %v1195 = vunpack.c.l.b16 %v281
  %v1196 = vunpack.c.h.b16 %v281
  %v1197 = vunpack.c.l.b16 %v282
  %v1198 = vunpack.c.h.b16 %v282
  %v1199 = vunpack.c.l.b16 %v283
  %v1200 = vunpack.c.h.b16 %v283
  %v1201 = vunpack.c.l.b16 %v284
  %v1202 = vunpack.c.h.b16 %v284
  %v1203 = vunpack.c.l.b16 %v285
  %v1204 = vunpack.c.h.b16 %v285
  %v1205 = vunpack.c.l.b16 %v286
  %v1206 = vunpack.c.h.b16 %v286
  %v1207 = vunpack.c.l.b16 %v287
  %v1208 = vunpack.c.h.b16 %v287
  %v1209 = vunpack.c.l.b16 %v288
  %v1210 = vunpack.c.h.b16 %v288
  %v1211 = vunpack.c.l.b16 %v289
  %v1212 = vunpack.c.h.b16 %v289
  %v1213 = vunpack.c.l.b16 %v290
  %v1214 = vunpack.c.h.b16 %v290
  %v1215 = vunpack.c.l.b16 %v291
  %v1216 = vunpack.c.h.b16 %v291
  %v1217 = vunpack.c.l.b16 %v292
  %v1218 = vunpack.c.h.b16 %v292
  %v1219 = vunpack.c.l.b16 %v293
  %v1220 = vunpack.c.h.b16 %v293
  %v1221 = vunpack.c.l.b16 %v294
  %v1222 = vunpack.c.h.b16 %v294
  %v1223 = vunpack.c.l.b16 %v295
  %v1224 = vunpack.c.h.b16 %v295
  %v1225 = vunpack.c.l.b16 %v296
  %v1226 = vunpack.c.h.b16 %v296
  %v1227 = vunpack.c.l.b16 %v297
  %v1228 = vunpack.c.h.b16 %v297
  %v1229 = vunpack.c.l.b16 %v298
  %v1230 = vunpack.c.h.b16 %v298
  %v1231 = vunpack.c.l.b16 %v299
  %v1232 = vunpack.c.h.b16 %v299
  %v1233 = vunpack.c.l.b16 %v300
  %v1234 = vunpack.c.h.b16 %v300
  %v1235 = vunpack.c.l.b16 %v301
  %v1236 = vunpack.c.h.b16 %v301
  %v1237 = vunpack.c.l.b16 %v302
  %v1238 = vunpack.c.h.b16 %v302
  %v1239 = vunpack.c.l.b16 %v303
  %v1240 = vunpack.c.h.b16 %v303
  %v1241 = vunpack.c.l.b16 %v304
  %v1242 = vunpack.c.h.b16 %v304
  %v1243 = vpack.c.b16 %v669, %v667
  %v1244 = vpack.c.b16 %v670, %v668
  %v1245 = vpack.c.b16 %v673, %v671
  %v1246 = vpack.c.b16 %v674, %v672
  %v1247 = vpack.c.b16 %v677, %v675
  %v1248 = vpack.c.b16 %v678, %v676
  %v1249 = vpack.c.b16 %v681, %v679
  %v1250 = vpack.c.b16 %v682, %v680
  %v1251 = vpack.c.b16 %v685, %v683
  %v1252 = vpack.c.b16 %v686, %v684
  %v1253 = vpack.c.b16 %v689, %v687
  %v1254 = vpack.c.b16 %v690, %v688
  %v1255 = vpack.c.b16 %v693, %v691
  %v1256 = vpack.c.b16 %v694, %v692
  %v1257 = vpack.c.b16 %v697, %v695
  %v1258 = vpack.c.b16 %v698, %v696
  %v1259 = vpack.c.b16 %v701, %v699
  %v1260 = vpack.c.b16 %v702, %v700
  %v1261 = vpack.c.b16 %v705, %v703
  %v1262 = vpack.c.b16 %v706, %v704
  %v1263 = vpack.c.b16 %v709, %v707
  %v1264 = vpack.c.b16 %v710, %v708
  %v1265 = vpack.c.b16 %v713, %v711
  %v1266 = vpack.c.b16 %v714, %v712
  %v1267 = vpack.c.b16 %v717, %v715
  %v1268 = vpack.c.b16 %v718, %v716
  %v1269 = vpack.c.b16 %v721, %v719
  %v1270 = vpack.c.b16 %v722, %v720
  %v1271 = vpack.c.b16 %v725, %v723
  %v1272 = vpack.c.b16 %v726, %v724
  %v1273 = vpack.c.b16 %v729, %v727
  %v1274 = vpack.c.b16 %v730, %v728
  %v1275 = vpack.c.b16 %v733, %v731
  %v1276 = vpack.c.b16 %v734, %v732
  %v1277 = vpack.c.b16 %v737, %v735
  %v1278 = vpack.c.b16 %v738, %v736
  %v1279 = vpack.c.b16 %v741, %v739
  %v1280 = vpack.c.b16 %v742, %v740
  %v1281 = vpack.c.b16 %v745, %v743
  %v1282 = vpack.c.b16 %v746, %v744
  %v1283 = vpack.c.b16 %v749, %v747
  %v1284 = vpack.c.b16 %v750, %v748
  %v1285 = vpack.c.b16 %v753, %v751
  %v1286 = vpack.c.b16 %v754, %v752
  %v1287 = vpack.c.b16 %v757, %v755
  %v1288 = vpack.c.b16 %v758, %v756
  %v1289 = vpack.c.b16 %v761, %v759
  %v1290 = vpack.c.b16 %v762, %v760
  %v1291 = vpack.c.b16 %v765, %v763
  %v1292 = vpack.c.b16 %v766, %v764
  %v1293 = vpack.c.b16 %v769, %v767
  %v1294 = vpack.c.b16 %v770, %v768
  %v1295 = vpack.c.b16 %v773, %v771
  %v1296 = vpack.c.b16 %v774, %v772
  %v1297 = vpack.c.b16 %v777, %v775
  %v1298 = vpack.c.b16 %v778, %v776
  %v1299 = vpack.c.b16 %v781, %v779
  %v1300 = vpack.c.b16 %v782, %v780
  %v1301 = vpack.c.b16 %v785, %v783
  %v1302 = vpack.c.b16 %v786, %v784
  %v1303 = vpack.c.b16 %v789, %v787
  %v1304 = vpack.c.b16 %v790, %v788
  %v1305 = vpack.c.b16 %v793, %v791
  %v1306 = vpack.c.b16 %v794, %v792
  %v1307 = vpack.c.b16 %v797, %v795
  %v1308 = vpack.c.b16 %v798, %v796
  %v1309 = vpack.c.b16 %v801, %v799
  %v1310 = vpack.c.b16 %v802, %v800
  %v1311 = vpack.c.b16 %v805, %v803
  %v1312 = vpack.c.b16 %v806, %v804
  %v1313 = vpack.c.b16 %v809, %v807
  %v1314 = vpack.c.b16 %v810, %v808
  %v1315 = vpack.c.b16 %v813, %v811
  %v1316 = vpack.c.b16 %v814, %v812
  %v1317 = vpack.c.b16 %v817, %v815
  %v1318 = vpack.c.b16 %v818, %v816
  %v1319 = vpack.c.b16 %v821, %v819
  %v1320 = vpack.c.b16 %v822, %v820
  %v1321 = vpack.c.b16 %v825, %v823
  %v1322 = vpack.c.b16 %v826, %v824
  %v1323 = vpack.c.b16 %v829, %v827
  %v1324 = vpack.c.b16 %v830, %v828
  %v1325 = vpack.c.b16 %v833, %v831
  %v1326 = vpack.c.b16 %v834, %v832
  %v1327 = vpack.c.b16 %v837, %v835
  %v1328 = vpack.c.b16 %v838, %v836
  %v1329 = vpack.c.b16 %v841, %v839
  %v1330 = vpack.c.b16 %v842, %v840
  %v1331 = vpack.c.b16 %v845, %v843
  %v1332 = vpack.c.b16 %v846, %v844
  %v1333 = vpack.c.b16 %v849, %v847
  %v1334 = vpack.c.b16 %v850, %v848
  %v1335 = vpack.c.b16 %v853, %v851
  %v1336 = vpack.c.b16 %v854, %v852
  %v1337 = vpack.c.b16 %v857, %v855
  %v1338 = vpack.c.b16 %v858, %v856
  %v1339 = vpack.c.b16 %v861, %v859
  %v1340 = vpack.c.b16 %v862, %v860
  %v1341 = vpack.c.b16 %v865, %v863
  %v1342 = vpack.c.b16 %v866, %v864
  %v1343 = vpack.c.b16 %v869, %v867
  %v1344 = vpack.c.b16 %v870, %v868
  %v1345 = vpack.c.b16 %v873, %v871
  %v1346 = vpack.c.b16 %v874, %v872
  %v1347 = vpack.c.b16 %v877, %v875
  %v1348 = vpack.c.b16 %v878, %v876
  %v1349 = vpack.c.b16 %v881, %v879
  %v1350 = vpack.c.b16 %v882, %v880
  %v1351 = vpack.c.b16 %v885, %v883
  %v1352 = vpack.c.b16 %v886, %v884
  %v1353 = vpack.c.b16 %v889, %v887
  %v1354 = vpack.c.b16 %v890, %v888
  %v1355 = vpack.c.b16 %v893, %v891
  %v1356 = vpack.c.b16 %v894, %v892
  %v1357 = vpack.c.b16 %v897, %v895
  %v1358 = vpack.c.b16 %v898, %v896
  %v1359 = vpack.c.b16 %v901, %v899
  %v1360 = vpack.c.b16 %v902, %v900
  %v1361 = vpack.c.b16 %v905, %v903
  %v1362 = vpack.c.b16 %v906, %v904
  %v1363 = vpack.c.b16 %v909, %v907
  %v1364 = vpack.c.b16 %v910, %v908
  %v1365 = vpack.c.b16 %v913, %v911
  %v1366 = vpack.c.b16 %v914, %v912
  %v1367 = vpack.c.b16 %v917, %v915
  %v1368 = vpack.c.b16 %v918, %v916
  %v1369 = vpack.c.b16 %v921, %v919
  %v1370 = vpack.c.b16 %v922, %v920
  %v1371 = vpack.c.b16 %v925, %v923
  %v1372 = vpack.c.b16 %v926, %v924
  %v1373 = vpack.c.b16 %v929, %v927
  %v1374 = vpack.c.b16 %v930, %v928
  %v1375 = vpack.c.b16 %v933, %v931
  %v1376 = vpack.c.b16 %v934, %v932
  %v1377 = vpack.c.b16 %v937, %v935
  %v1378 = vpack.c.b16 %v938, %v936
  %v1379 = vpack.c.b16 %v941, %v939
  %v1380 = vpack.c.b16 %v942, %v940
  %v1381 = vpack.c.b16 %v945, %v943
  %v1382 = vpack.c.b16 %v946, %v944
  %v1383 = vpack.c.b16 %v949, %v947
  %v1384 = vpack.c.b16 %v950, %v948
  %v1385 = vpack.c.b16 %v953, %v951
  %v1386 = vpack.c.b16 %v954, %v952
  %v1387 = vpack.c.b16 %v957, %v955
  %v1388 = vpack.c.b16 %v958, %v956
  %v1389 = vpack.c.b16 %v961, %v959
  %v1390 = vpack.c.b16 %v962, %v960
  %v1391 = vpack.c.b16 %v965, %v963
  %v1392 = vpack.c.b16 %v966, %v964
  %v1393 = vpack.c.b16 %v969, %v967
  %v1394 = vpack.c.b16 %v970, %v968
  %v1395 = vpack.c.b16 %v973, %v971
  %v1396 = vpack.c.b16 %v974, %v972
  %v1397 = vpack.c.b16 %v977, %v975
  %v1398 = vpack.c.b16 %v978, %v976
  %v1399 = vpack.c.b16 %v981, %v979
  %v1400 = vpack.c.b16 %v982, %v980
  %v1401 = vpack.c.b16 %v985, %v983
  %v1402 = vpack.c.b16 %v986, %v984
  %v1403 = vpack.c.b16 %v989, %v987
  %v1404 = vpack.c.b16 %v990, %v988
  %v1405 = vpack.c.b16 %v993, %v991
  %v1406 = vpack.c.b16 %v994, %v992
  %v1407 = vpack.c.b16 %v997, %v995
  %v1408 = vpack.c.b16 %v998, %v996
  %v1409 = vpack.c.b16 %v1001, %v999
  %v1410 = vpack.c.b16 %v1002, %v1000
  %v1411 = vpack.c.b16 %v1005, %v1003
  %v1412 = vpack.c.b16 %v1006, %v1004
  %v1413 = vpack.c.b16 %v1009, %v1007
  %v1414 = vpack.c.b16 %v1010, %v1008
  %v1415 = vpack.c.b16 %v1013, %v1011
  %v1416 = vpack.c.b16 %v1014, %v1012
  %v1417 = vpack.c.b16 %v1017, %v1015
  %v1418 = vpack.c.b16 %v1018, %v1016
  %v1419 = vpack.c.b16 %v1021, %v1019
  %v1420 = vpack.c.b16 %v1022, %v1020
  %v1421 = vpack.c.b16 %v1025, %v1023
  %v1422 = vpack.c.b16 %v1026, %v1024
  %v1423 = vpack.c.b16 %v1029, %v1027
  %v1424 = vpack.c.b16 %v1030, %v1028
  %v1425 = vpack.c.b16 %v1033, %v1031
  %v1426 = vpack.c.b16 %v1034, %v1032
  %v1427 = vpack.c.b16 %v1037, %v1035
  %v1428 = vpack.c.b16 %v1038, %v1036
  %v1429 = vpack.c.b16 %v1041, %v1039
  %v1430 = vpack.c.b16 %v1042, %v1040
  %v1431 = vpack.c.b16 %v1045, %v1043
  %v1432 = vpack.c.b16 %v1046, %v1044
  %v1433 = vpack.c.b16 %v1049, %v1047
  %v1434 = vpack.c.b16 %v1050, %v1048
  %v1435 = vpack.c.b16 %v1053, %v1051
  %v1436 = vpack.c.b16 %v1054, %v1052
  %v1437 = vpack.c.b16 %v1057, %v1055
  %v1438 = vpack.c.b16 %v1058, %v1056
  %v1439 = vpack.c.b16 %v1061, %v1059
  %v1440 = vpack.c.b16 %v1062, %v1060
  %v1441 = vpack.c.b16 %v1065, %v1063
  %v1442 = vpack.c.b16 %v1066, %v1064
  %v1443 = vpack.c.b16 %v1069, %v1067
  %v1444 = vpack.c.b16 %v1070, %v1068
  %v1445 = vpack.c.b16 %v1073, %v1071
  %v1446 = vpack.c.b16 %v1074, %v1072
  %v1447 = vpack.c.b16 %v1077, %v1075
  %v1448 = vpack.c.b16 %v1078, %v1076
  %v1449 = vpack.c.b16 %v1081, %v1079
  %v1450 = vpack.c.b16 %v1082, %v1080
  %v1451 = vpack.c.b16 %v1085, %v1083
  %v1452 = vpack.c.b16 %v1086, %v1084
  %v1453 = vpack.c.b16 %v1089, %v1087
  %v1454 = vpack.c.b16 %v1090, %v1088
  %v1455 = vpack.c.b16 %v1093, %v1091
  %v1456 = vpack.c.b16 %v1094, %v1092
  %v1457 = vpack.c.b16 %v1097, %v1095
  %v1458 = vpack.c.b16 %v1098, %v1096
  %v1459 = vpack.c.b16 %v1101, %v1099
  %v1460 = vpack.c.b16 %v1102, %v1100
  %v1461 = vpack.c.b16 %v1105, %v1103
  %v1462 = vpack.c.b16 %v1106, %v1104
  %v1463 = vpack.c.b16 %v1109, %v1107
  %v1464 = vpack.c.b16 %v1110, %v1108
  %v1465 = vpack.c.b16 %v1113, %v1111
  %v1466 = vpack.c.b16 %v1114, %v1112
  %v1467 = vpack.c.b16 %v1117, %v1115
  %v1468 = vpack.c.b16 %v1118, %v1116
  %v1469 = vpack.c.b16 %v1121, %v1119
  %v1470 = vpack.c.b16 %v1122, %v1120
  %v1471 = vpack.c.b16 %v1125, %v1123
  %v1472 = vpack.c.b16 %v1126, %v1124
  %v1473 = vpack.c.b16 %v1129, %v1127
  %v1474 = vpack.c.b16 %v1130, %v1128
  %v1475 = vpack.c.b16 %v1133, %v1131
  %v1476 = vpack.c.b16 %v1134, %v1132
  %v1477 = vpack.c.b16 %v1137, %v1135
  %v1478 = vpack.c.b16 %v1138, %v1136
  %v1479 = vpack.c.b16 %v1141, %v1139
  %v1480 = vpack.c.b16 %v1142, %v1140
  %v1481 = vpack.c.b16 %v1145, %v1143
  %v1482 = vpack.c.b16 %v1146, %v1144
  %v1483 = vpack.c.b16 %v1149, %v1147
  %v1484 = vpack.c.b16 %v1150, %v1148
  %v1485 = vpack.c.b16 %v1153, %v1151
  %v1486 = vpack.c.b16 %v1154, %v1152
  %v1487 = vpack.c.b16 %v1157, %v1155
  %v1488 = vpack.c.b16 %v1158, %v1156
  %v1489 = vpack.c.b16 %v1161, %v1159
  %v1490 = vpack.c.b16 %v1162, %v1160
  %v1491 = vpack.c.b16 %v1165, %v1163
  %v1492 = vpack.c.b16 %v1166, %v1164
  %v1493 = vpack.c.b16 %v1169, %v1167
  %v1494 = vpack.c.b16 %v1170, %v1168
  %v1495 = vpack.c.b16 %v1173, %v1171
  %v1496 = vpack.c.b16 %v1174, %v1172
  %v1497 = vpack.c.b16 %v1177, %v1175
  %v1498 = vpack.c.b16 %v1178, %v1176
  %v1499 = vpack.c.b16 %v1181, %v1179
  %v1500 = vpack.c.b16 %v1182, %v1180
  %v1501 = vpack.c.b16 %v1185, %v1183
  %v1502 = vpack.c.b16 %v1186, %v1184
  %v1503 = vpack.c.b16 %v1189, %v1187
  %v1504 = vpack.c.b16 %v1190, %v1188
  %v1505 = vpack.c.b16 %v1193, %v1191
  %v1506 = vpack.c.b16 %v1194, %v1192
  %v1507 = vpack.c.b16 %v1197, %v1195
  %v1508 = vpack.c.b16 %v1198, %v1196
  %v1509 = vpack.c.b16 %v1201, %v1199
  %v1510 = vpack.c.b16 %v1202, %v1200
  %v1511 = vpack.c.b16 %v1205, %v1203
  %v1512 = vpack.c.b16 %v1206, %v1204
  %v1513 = vpack.c.b16 %v1209, %v1207
  %v1514 = vpack.c.b16 %v1210, %v1208
  %v1515 = vpack.c.b16 %v1213, %v1211
  %v1516 = vpack.c.b16 %v1214, %v1212
  %v1517 = vpack.c.b16 %v1217, %v1215
  %v1518 = vpack.c.b16 %v1218, %v1216
  %v1519 = vpack.c.b16 %v1221, %v1219
  %v1520 = vpack.c.b16 %v1222, %v1220
  %v1521 = vpack.c.b16 %v1225, %v1223
  %v1522 = vpack.c.b16 %v1226, %v1224
  %v1523 = vpack.c.b16 %v1229, %v1227
  %v1524 = vpack.c.b16 %v1230, %v1228
  %v1525 = vpack.c.b16 %v1233, %v1231
  %v1526 = vpack.c.b16 %v1234, %v1232
  %v1527 = vpack.c.b16 %v1237, %v1235
  %v1528 = vpack.c.b16 %v1238, %v1236
  %v1529 = vpack.c.b16 %v1241, %v1239
  %v1530 = vpack.c.b16 %v1242, %v1240
  %1819 = vmatprep.subr.bf16.mxu0 %v1244
  %1820 = vmatpush1.bf16.msra.mxu0 %v1243
  %1821 = vmatprep.subr.bf16.mxu0 %v1246
  %1822 = vmatpush1.bf16.msra.mxu0 %v1245
  %1823 = vmatprep.subr.bf16.mxu0 %v1248
  %1824 = vmatpush1.bf16.msra.mxu0 %v1247
  %1825 = vmatprep.subr.bf16.mxu0 %v1250
  %1826 = vmatpush1.bf16.msra.mxu0 %v1249
  %1827 = vmatprep.subr.bf16.mxu0 %v1252
  %1828 = vmatpush1.bf16.msra.mxu0 %v1251
  %1829 = vmatprep.subr.bf16.mxu0 %v1254
  %1830 = vmatpush1.bf16.msra.mxu0 %v1253
  %1831 = vmatprep.subr.bf16.mxu0 %v1256
  %1832 = vmatpush1.bf16.msra.mxu0 %v1255
  %1833 = vmatprep.subr.bf16.mxu0 %v1258
  %1834 = vmatpush1.bf16.msra.mxu0 %v1257
  %1835 = vmatprep.subr.bf16.mxu0 %v1260
  %1836 = vmatpush1.bf16.msra.mxu0 %v1259
  %1837 = vmatprep.subr.bf16.mxu0 %v1262
  %1838 = vmatpush1.bf16.msra.mxu0 %v1261
  %1839 = vmatprep.subr.bf16.mxu0 %v1264
  %1840 = vmatpush1.bf16.msra.mxu0 %v1263
  %1841 = vmatprep.subr.bf16.mxu0 %v1266
  %1842 = vmatpush1.bf16.msra.mxu0 %v1265
  %1843 = vmatprep.subr.bf16.mxu0 %v1268
  %1844 = vmatpush1.bf16.msra.mxu0 %v1267
  %1845 = vmatprep.subr.bf16.mxu0 %v1270
  %1846 = vmatpush1.bf16.msra.mxu0 %v1269
  %1847 = vmatprep.subr.bf16.mxu0 %v1272
  %1848 = vmatpush1.bf16.msra.mxu0 %v1271
  %1849 = vmatprep.subr.bf16.mxu0 %v1274
  %1850 = vmatpush1.bf16.msra.mxu0 %v1273
  %1851 = vmatprep.mubr.bf16.mxu0 %v344
  %1852 = vmatmul.mubr.bf16.gmra.mrb[0].mxu0 %v343
  %v1853 = vpop.f32.mrb[0].mxu0
  %v1854 = vadd.f32 0.0, %v1853
  %v1855 = vpop.f32.mrb[0].mxu0
  %v1856 = vadd.f32 0.0, %v1855
  %v1857 = vpop.f32.mrb[0].mxu0
  %v1858 = vpop.f32.mrb[0].mxu0
  %1859 = vdwg.mxu0
  %1860 = vmatprep.subr.bf16.mxu0 %v1276
  %1861 = vmatpush1.bf16.msra.mxu0 %v1275
  %1862 = vmatprep.subr.bf16.mxu0 %v1278
  %1863 = vmatpush1.bf16.msra.mxu0 %v1277
  %1864 = vmatprep.subr.bf16.mxu0 %v1280
  %1865 = vmatpush1.bf16.msra.mxu0 %v1279
  %1866 = vmatprep.subr.bf16.mxu0 %v1282
  %1867 = vmatpush1.bf16.msra.mxu0 %v1281
  %1868 = vmatprep.subr.bf16.mxu0 %v1284
  %1869 = vmatpush1.bf16.msra.mxu0 %v1283
  %1870 = vmatprep.subr.bf16.mxu0 %v1286
  %1871 = vmatpush1.bf16.msra.mxu0 %v1285
  %1872 = vmatprep.subr.bf16.mxu0 %v1288
  %1873 = vmatpush1.bf16.msra.mxu0 %v1287
  %1874 = vmatprep.subr.bf16.mxu0 %v1290
  %1875 = vmatpush1.bf16.msra.mxu0 %v1289
  %1876 = vmatprep.subr.bf16.mxu0 %v1292
  %1877 = vmatpush1.bf16.msra.mxu0 %v1291
  %1878 = vmatprep.subr.bf16.mxu0 %v1294
  %1879 = vmatpush1.bf16.msra.mxu0 %v1293
  %1880 = vmatprep.subr.bf16.mxu0 %v1296
  %1881 = vmatpush1.bf16.msra.mxu0 %v1295
  %1882 = vmatprep.subr.bf16.mxu0 %v1298
  %1883 = vmatpush1.bf16.msra.mxu0 %v1297
  %1884 = vmatprep.subr.bf16.mxu0 %v1300
  %1885 = vmatpush1.bf16.msra.mxu0 %v1299
  %1886 = vmatprep.subr.bf16.mxu0 %v1302
  %1887 = vmatpush1.bf16.msra.mxu0 %v1301
  %1888 = vmatprep.subr.bf16.mxu0 %v1304
  %1889 = vmatpush1.bf16.msra.mxu0 %v1303
  %1890 = vmatprep.subr.bf16.mxu0 %v1306
  %1891 = vmatpush1.bf16.msra.mxu0 %v1305
  %1892 = vmatprep.mubr.bf16.mxu0 %v346
  %1893 = vmatmul.mubr.bf16.gmra.mrb[0].mxu0 %v345
  %v1894 = vpop.f32.mrb[0].mxu0
  %v1895 = vadd.f32 %v1854, %v1894
  %v1896 = vpop.f32.mrb[0].mxu0
  %v1897 = vadd.f32 %v1856, %v1896
  %v1898 = vpop.f32.mrb[0].mxu0
  %v1899 = vpop.f32.mrb[0].mxu0
  %1900 = vdwg.mxu0
  %1901 = vmatprep.subr.bf16.mxu0 %v1308
  %1902 = vmatpush1.bf16.msra.mxu0 %v1307
  %1903 = vmatprep.subr.bf16.mxu0 %v1310
  %1904 = vmatpush1.bf16.msra.mxu0 %v1309
  %1905 = vmatprep.subr.bf16.mxu0 %v1312
  %1906 = vmatpush1.bf16.msra.mxu0 %v1311
  %1907 = vmatprep.subr.bf16.mxu0 %v1314
  %1908 = vmatpush1.bf16.msra.mxu0 %v1313
  %1909 = vmatprep.subr.bf16.mxu0 %v1316
  %1910 = vmatpush1.bf16.msra.mxu0 %v1315
  %1911 = vmatprep.subr.bf16.mxu0 %v1318
  %1912 = vmatpush1.bf16.msra.mxu0 %v1317
  %1913 = vmatprep.subr.bf16.mxu0 %v1320
  %1914 = vmatpush1.bf16.msra.mxu0 %v1319
  %1915 = vmatprep.subr.bf16.mxu0 %v1322
  %1916 = vmatpush1.bf16.msra.mxu0 %v1321
  %1917 = vmatprep.subr.bf16.mxu0 %v1324
  %1918 = vmatpush1.bf16.msra.mxu0 %v1323
  %1919 = vmatprep.subr.bf16.mxu0 %v1326
  %1920 = vmatpush1.bf16.msra.mxu0 %v1325
  %1921 = vmatprep.subr.bf16.mxu0 %v1328
  %1922 = vmatpush1.bf16.msra.mxu0 %v1327
  %1923 = vmatprep.subr.bf16.mxu0 %v1330
  %1924 = vmatpush1.bf16.msra.mxu0 %v1329
  %1925 = vmatprep.subr.bf16.mxu0 %v1332
  %1926 = vmatpush1.bf16.msra.mxu0 %v1331
  %1927 = vmatprep.subr.bf16.mxu0 %v1334
  %1928 = vmatpush1.bf16.msra.mxu0 %v1333
  %1929 = vmatprep.subr.bf16.mxu0 %v1336
  %1930 = vmatpush1.bf16.msra.mxu0 %v1335
  %1931 = vmatprep.subr.bf16.mxu0 %v1338
  %1932 = vmatpush1.bf16.msra.mxu0 %v1337
  %1933 = vmatprep.mubr.bf16.mxu0 %v348
  %1934 = vmatmul.mubr.bf16.gmra.mrb[0].mxu0 %v347
  %v1935 = vpop.f32.mrb[0].mxu0
  %v1936 = vadd.f32 %v1895, %v1935
  %v1937 = vpop.f32.mrb[0].mxu0
  %v1938 = vadd.f32 %v1897, %v1937
  %v1939 = vpop.f32.mrb[0].mxu0
  %v1940 = vpop.f32.mrb[0].mxu0
  %1941 = vdwg.mxu0
  %1942 = vmatprep.subr.bf16.mxu0 %v1340
  %1943 = vmatpush1.bf16.msra.mxu0 %v1339
  %1944 = vmatprep.subr.bf16.mxu0 %v1342
  %1945 = vmatpush1.bf16.msra.mxu0 %v1341
  %1946 = vmatprep.subr.bf16.mxu0 %v1344
  %1947 = vmatpush1.bf16.msra.mxu0 %v1343
  %1948 = vmatprep.subr.bf16.mxu0 %v1346
  %1949 = vmatpush1.bf16.msra.mxu0 %v1345
  %1950 = vmatprep.subr.bf16.mxu0 %v1348
  %1951 = vmatpush1.bf16.msra.mxu0 %v1347
  %1952 = vmatprep.subr.bf16.mxu0 %v1350
  %1953 = vmatpush1.bf16.msra.mxu0 %v1349
  %1954 = vmatprep.subr.bf16.mxu0 %v1352
  %1955 = vmatpush1.bf16.msra.mxu0 %v1351
  %1956 = vmatprep.subr.bf16.mxu0 %v1354
  %1957 = vmatpush1.bf16.msra.mxu0 %v1353
  %1958 = vmatprep.subr.bf16.mxu0 %v1356
  %1959 = vmatpush1.bf16.msra.mxu0 %v1355
  %1960 = vmatprep.subr.bf16.mxu0 %v1358
  %1961 = vmatpush1.bf16.msra.mxu0 %v1357
  %1962 = vmatprep.subr.bf16.mxu0 %v1360
  %1963 = vmatpush1.bf16.msra.mxu0 %v1359
  %1964 = vmatprep.subr.bf16.mxu0 %v1362
  %1965 = vmatpush1.bf16.msra.mxu0 %v1361
  %1966 = vmatprep.subr.bf16.mxu0 %v1364
  %1967 = vmatpush1.bf16.msra.mxu0 %v1363
  %1968 = vmatprep.subr.bf16.mxu0 %v1366
  %1969 = vmatpush1.bf16.msra.mxu0 %v1365
  %1970 = vmatprep.subr.bf16.mxu0 %v1368
  %1971 = vmatpush1.bf16.msra.mxu0 %v1367
  %1972 = vmatprep.subr.bf16.mxu0 %v1370
  %1973 = vmatpush1.bf16.msra.mxu0 %v1369
  %1974 = vmatprep.mubr.bf16.mxu0 %v350
  %1975 = vmatmul.mubr.bf16.gmra.mrb[0].mxu0 %v349
  %v1976 = vpop.f32.mrb[0].mxu0
  %v1977 = vadd.f32 %v1936, %v1976
  %v1978 = vpop.f32.mrb[0].mxu0
  %v1979 = vadd.f32 %v1938, %v1978
  %v1980 = vpop.f32.mrb[0].mxu0
  %v1981 = vpop.f32.mrb[0].mxu0
  %1982 = vdwg.mxu0
  %1983 = vmatprep.subr.bf16.mxu0 %v1372
  %1984 = vmatpush1.bf16.msra.mxu0 %v1371
  %1985 = vmatprep.subr.bf16.mxu0 %v1374
  %1986 = vmatpush1.bf16.msra.mxu0 %v1373
  %1987 = vmatprep.subr.bf16.mxu0 %v1376
  %1988 = vmatpush1.bf16.msra.mxu0 %v1375
  %1989 = vmatprep.subr.bf16.mxu0 %v1378
  %1990 = vmatpush1.bf16.msra.mxu0 %v1377
  %1991 = vmatprep.subr.bf16.mxu0 %v1380
  %1992 = vmatpush1.bf16.msra.mxu0 %v1379
  %1993 = vmatprep.subr.bf16.mxu0 %v1382
  %1994 = vmatpush1.bf16.msra.mxu0 %v1381
  %1995 = vmatprep.subr.bf16.mxu0 %v1384
  %1996 = vmatpush1.bf16.msra.mxu0 %v1383
  %1997 = vmatprep.subr.bf16.mxu0 %v1386
  %1998 = vmatpush1.bf16.msra.mxu0 %v1385
  %1999 = vmatprep.subr.bf16.mxu0 %v1388
  %2000 = vmatpush1.bf16.msra.mxu0 %v1387
  %2001 = vmatprep.subr.bf16.mxu0 %v1390
  %2002 = vmatpush1.bf16.msra.mxu0 %v1389
  %2003 = vmatprep.subr.bf16.mxu0 %v1392
  %2004 = vmatpush1.bf16.msra.mxu0 %v1391
  %2005 = vmatprep.subr.bf16.mxu0 %v1394
  %2006 = vmatpush1.bf16.msra.mxu0 %v1393
  %2007 = vmatprep.subr.bf16.mxu0 %v1396
  %2008 = vmatpush1.bf16.msra.mxu0 %v1395
  %2009 = vmatprep.subr.bf16.mxu0 %v1398
  %2010 = vmatpush1.bf16.msra.mxu0 %v1397
  %2011 = vmatprep.subr.bf16.mxu0 %v1400
  %2012 = vmatpush1.bf16.msra.mxu0 %v1399
  %2013 = vmatprep.subr.bf16.mxu0 %v1402
  %2014 = vmatpush1.bf16.msra.mxu0 %v1401
  %2015 = vmatprep.mubr.bf16.mxu0 %v352
  %2016 = vmatmul.mubr.bf16.gmra.mrb[0].mxu0 %v351
  %v2017 = vpop.f32.mrb[0].mxu0
  %v2018 = vadd.f32 %v1977, %v2017
  %v2019 = vpop.f32.mrb[0].mxu0
  %v2020 = vadd.f32 %v1979, %v2019
  %v2021 = vpop.f32.mrb[0].mxu0
  %v2022 = vpop.f32.mrb[0].mxu0
  %2023 = vdwg.mxu0
  %2024 = vmatprep.subr.bf16.mxu0 %v1404
  %2025 = vmatpush1.bf16.msra.mxu0 %v1403
  %2026 = vmatprep.subr.bf16.mxu0 %v1406
  %2027 = vmatpush1.bf16.msra.mxu0 %v1405
  %2028 = vmatprep.subr.bf16.mxu0 %v1408
  %2029 = vmatpush1.bf16.msra.mxu0 %v1407
  %2030 = vmatprep.subr.bf16.mxu0 %v1410
  %2031 = vmatpush1.bf16.msra.mxu0 %v1409
  %2032 = vmatprep.subr.bf16.mxu0 %v1412
  %2033 = vmatpush1.bf16.msra.mxu0 %v1411
  %2034 = vmatprep.subr.bf16.mxu0 %v1414
  %2035 = vmatpush1.bf16.msra.mxu0 %v1413
  %2036 = vmatprep.subr.bf16.mxu0 %v1416
  %2037 = vmatpush1.bf16.msra.mxu0 %v1415
  %2038 = vmatprep.subr.bf16.mxu0 %v1418
  %2039 = vmatpush1.bf16.msra.mxu0 %v1417
  %2040 = vmatprep.subr.bf16.mxu0 %v1420
  %2041 = vmatpush1.bf16.msra.mxu0 %v1419
  %2042 = vmatprep.subr.bf16.mxu0 %v1422
  %2043 = vmatpush1.bf16.msra.mxu0 %v1421
  %2044 = vmatprep.subr.bf16.mxu0 %v1424
  %2045 = vmatpush1.bf16.msra.mxu0 %v1423
  %2046 = vmatprep.subr.bf16.mxu0 %v1426
  %2047 = vmatpush1.bf16.msra.mxu0 %v1425
  %2048 = vmatprep.subr.bf16.mxu0 %v1428
  %2049 = vmatpush1.bf16.msra.mxu0 %v1427
  %2050 = vmatprep.subr.bf16.mxu0 %v1430
  %2051 = vmatpush1.bf16.msra.mxu0 %v1429
  %2052 = vmatprep.subr.bf16.mxu0 %v1432
  %2053 = vmatpush1.bf16.msra.mxu0 %v1431
  %2054 = vmatprep.subr.bf16.mxu0 %v1434
  %2055 = vmatpush1.bf16.msra.mxu0 %v1433
  %2056 = vmatprep.mubr.bf16.mxu0 %v354
  %2057 = vmatmul.mubr.bf16.gmra.mrb[0].mxu0 %v353
  %v2058 = vpop.f32.mrb[0].mxu0
  %v2059 = vadd.f32 %v2018, %v2058
  %v2060 = vpop.f32.mrb[0].mxu0
  %v2061 = vadd.f32 %v2020, %v2060
  %v2062 = vpop.f32.mrb[0].mxu0
  %v2063 = vpop.f32.mrb[0].mxu0
  %2064 = vdwg.mxu0
  %2065 = vmatprep.subr.bf16.mxu0 %v1436
  %2066 = vmatpush1.bf16.msra.mxu0 %v1435
  %2067 = vmatprep.subr.bf16.mxu0 %v1438
  %2068 = vmatpush1.bf16.msra.mxu0 %v1437
  %2069 = vmatprep.subr.bf16.mxu0 %v1440
  %2070 = vmatpush1.bf16.msra.mxu0 %v1439
  %2071 = vmatprep.subr.bf16.mxu0 %v1442
  %2072 = vmatpush1.bf16.msra.mxu0 %v1441
  %2073 = vmatprep.subr.bf16.mxu0 %v1444
  %2074 = vmatpush1.bf16.msra.mxu0 %v1443
  %2075 = vmatprep.subr.bf16.mxu0 %v1446
  %2076 = vmatpush1.bf16.msra.mxu0 %v1445
  %2077 = vmatprep.subr.bf16.mxu0 %v1448
  %2078 = vmatpush1.bf16.msra.mxu0 %v1447
  %2079 = vmatprep.subr.bf16.mxu0 %v1450
  %2080 = vmatpush1.bf16.msra.mxu0 %v1449
  %2081 = vmatprep.subr.bf16.mxu0 %v1452
  %2082 = vmatpush1.bf16.msra.mxu0 %v1451
  %2083 = vmatprep.subr.bf16.mxu0 %v1454
  %2084 = vmatpush1.bf16.msra.mxu0 %v1453
  %2085 = vmatprep.subr.bf16.mxu0 %v1456
  %2086 = vmatpush1.bf16.msra.mxu0 %v1455
  %2087 = vmatprep.subr.bf16.mxu0 %v1458
  %2088 = vmatpush1.bf16.msra.mxu0 %v1457
  %2089 = vmatprep.subr.bf16.mxu0 %v1460
  %2090 = vmatpush1.bf16.msra.mxu0 %v1459
  %2091 = vmatprep.subr.bf16.mxu0 %v1462
  %2092 = vmatpush1.bf16.msra.mxu0 %v1461
  %2093 = vmatprep.subr.bf16.mxu0 %v1464
  %2094 = vmatpush1.bf16.msra.mxu0 %v1463
  %2095 = vmatprep.subr.bf16.mxu0 %v1466
  %2096 = vmatpush1.bf16.msra.mxu0 %v1465
  %2097 = vmatprep.mubr.bf16.mxu0 %v356
  %2098 = vmatmul.mubr.bf16.gmra.mrb[0].mxu0 %v355
  %v2099 = vpop.f32.mrb[0].mxu0
  %v2100 = vadd.f32 %v2059, %v2099
  %v2101 = vpop.f32.mrb[0].mxu0
  %v2102 = vadd.f32 %v2061, %v2101
  %v2103 = vpop.f32.mrb[0].mxu0
  %v2104 = vpop.f32.mrb[0].mxu0
  %2105 = vdwg.mxu0
  %2106 = vmatprep.subr.bf16.mxu0 %v1468
  %2107 = vmatpush1.bf16.msra.mxu0 %v1467
  %2108 = vmatprep.subr.bf16.mxu0 %v1470
  %2109 = vmatpush1.bf16.msra.mxu0 %v1469
  %2110 = vmatprep.subr.bf16.mxu0 %v1472
  %2111 = vmatpush1.bf16.msra.mxu0 %v1471
  %2112 = vmatprep.subr.bf16.mxu0 %v1474
  %2113 = vmatpush1.bf16.msra.mxu0 %v1473
  %2114 = vmatprep.subr.bf16.mxu0 %v1476
  %2115 = vmatpush1.bf16.msra.mxu0 %v1475
  %2116 = vmatprep.subr.bf16.mxu0 %v1478
  %2117 = vmatpush1.bf16.msra.mxu0 %v1477
  %2118 = vmatprep.subr.bf16.mxu0 %v1480
  %2119 = vmatpush1.bf16.msra.mxu0 %v1479
  %2120 = vmatprep.subr.bf16.mxu0 %v1482
  %2121 = vmatpush1.bf16.msra.mxu0 %v1481
  %2122 = vmatprep.subr.bf16.mxu0 %v1484
  %2123 = vmatpush1.bf16.msra.mxu0 %v1483
  %2124 = vmatprep.subr.bf16.mxu0 %v1486
  %2125 = vmatpush1.bf16.msra.mxu0 %v1485
  %2126 = vmatprep.subr.bf16.mxu0 %v1488
  %2127 = vmatpush1.bf16.msra.mxu0 %v1487
  %2128 = vmatprep.subr.bf16.mxu0 %v1490
  %2129 = vmatpush1.bf16.msra.mxu0 %v1489
  %2130 = vmatprep.subr.bf16.mxu0 %v1492
  %2131 = vmatpush1.bf16.msra.mxu0 %v1491
  %2132 = vmatprep.subr.bf16.mxu0 %v1494
  %2133 = vmatpush1.bf16.msra.mxu0 %v1493
  %2134 = vmatprep.subr.bf16.mxu0 %v1496
  %2135 = vmatpush1.bf16.msra.mxu0 %v1495
  %2136 = vmatprep.subr.bf16.mxu0 %v1498
  %2137 = vmatpush1.bf16.msra.mxu0 %v1497
  %2138 = vmatprep.mubr.bf16.mxu0 %v358
  %2139 = vmatmul.mubr.bf16.gmra.mrb[0].mxu0 %v357
  %v2140 = vpop.f32.mrb[0].mxu0
  %v2141 = vadd.f32 %v2100, %v2140
  %v2142 = vpop.f32.mrb[0].mxu0
  %v2143 = vadd.f32 %v2102, %v2142
  %v2144 = vpop.f32.mrb[0].mxu0
  %v2145 = vpop.f32.mrb[0].mxu0
  %2146 = vdwg.mxu0
  %2147 = vmatprep.subr.bf16.mxu0 %v1500
  %2148 = vmatpush1.bf16.msra.mxu0 %v1499
  %2149 = vmatprep.subr.bf16.mxu0 %v1502
  %2150 = vmatpush1.bf16.msra.mxu0 %v1501
  %2151 = vmatprep.subr.bf16.mxu0 %v1504
  %2152 = vmatpush1.bf16.msra.mxu0 %v1503
  %2153 = vmatprep.subr.bf16.mxu0 %v1506
  %2154 = vmatpush1.bf16.msra.mxu0 %v1505
  %2155 = vmatprep.subr.bf16.mxu0 %v1508
  %2156 = vmatpush1.bf16.msra.mxu0 %v1507
  %2157 = vmatprep.subr.bf16.mxu0 %v1510
  %2158 = vmatpush1.bf16.msra.mxu0 %v1509
  %2159 = vmatprep.subr.bf16.mxu0 %v1512
  %2160 = vmatpush1.bf16.msra.mxu0 %v1511
  %2161 = vmatprep.subr.bf16.mxu0 %v1514
  %2162 = vmatpush1.bf16.msra.mxu0 %v1513
  %2163 = vmatprep.subr.bf16.mxu0 %v1516
  %2164 = vmatpush1.bf16.msra.mxu0 %v1515
  %2165 = vmatprep.subr.bf16.mxu0 %v1518
  %2166 = vmatpush1.bf16.msra.mxu0 %v1517
  %2167 = vmatprep.subr.bf16.mxu0 %v1520
  %2168 = vmatpush1.bf16.msra.mxu0 %v1519
  %2169 = vmatprep.subr.bf16.mxu0 %v1522
  %2170 = vmatpush1.bf16.msra.mxu0 %v1521
  %2171 = vmatprep.subr.bf16.mxu0 %v1524
  %2172 = vmatpush1.bf16.msra.mxu0 %v1523
  %2173 = vmatprep.subr.bf16.mxu0 %v1526
  %2174 = vmatpush1.bf16.msra.mxu0 %v1525
  %2175 = vmatprep.subr.bf16.mxu0 %v1528
  %2176 = vmatpush1.bf16.msra.mxu0 %v1527
  %2177 = vmatprep.subr.bf16.mxu0 %v1530
  %2178 = vmatpush1.bf16.msra.mxu0 %v1529
  %2179 = vmatprep.mubr.bf16.mxu0 %v360
  %2180 = vmatmul.mubr.bf16.gmra.mrb[0].mxu0 %v359
  %v2181 = vpop.f32.mrb[0].mxu0
  %v2182 = vadd.f32 %v2141, %v2181
  %v2183 = vpop.f32.mrb[0].mxu0
  %v2184 = vadd.f32 %v2143, %v2183
  %v2185 = vpop.f32.mrb[0].mxu0
  %v2186 = vpop.f32.mrb[0].mxu0
  %2187 = vdwg.mxu0
  %v2189 = vlaneseq
  %v2190 = vshrl.u32 %v2189, 7
  %v2191 = vsub.s32 0, %v2190
  %v2192 = vrot.slane %v305, %v2191
  %v2193 = vlaneseq
  %v2194 = vshrl.u32 %v2193, 7
  %v2195 = vsub.s32 1, %v2194
  %v2196 = vrot.slane %v305, %v2195
  %v2199 = vmul.f32 %v2182, %v2192
  %v2200 = vmul.f32 %v2184, %v2196
  %v2202 = vlaneseq
  %v2203 = vshrl.u32 %v2202, 7
  %v2204 = vsub.s32 0, %v2203
  %v2205 = vrot.slane %v306, %v2204
  %v2206 = vlaneseq
  %v2207 = vshrl.u32 %v2206, 7
  %v2208 = vsub.s32 1, %v2207
  %v2209 = vrot.slane %v306, %v2208
  %v2212 = vadd.f32 %v2199, %v2205
  %v2213 = vadd.f32 %v2200, %v2209
  %v2214 = vmax.f32 %v2212, 0.0
  %v2215 = vmax.f32 %v2213, 0.0
  %s2216 = scalar_lea.vmem %s0, 72
  %v2217 = vld [vmem:[%s2216] sm:$0xff]
  %v2218 = vld [vmem:[%s2216 + $0x8] sm:$0xff]
  %v2219 = vld [vmem:[%s2216 + $0x10] sm:$0xff]
  %v2220 = vld [vmem:[%s2216 + $0x18] sm:$0xff]
  %v2221 = vld [vmem:[%s2216 + $0x20] sm:$0xff]
  %v2222 = vld [vmem:[%s2216 + $0x28] sm:$0xff]
  %v2223 = vld [vmem:[%s2216 + $0x30] sm:$0xff]
  %v2224 = vld [vmem:[%s2216 + $0x38] sm:$0xff]
  %v2225 = vld [vmem:[%s2216 + $0x40] sm:$0xff]
  %v2235 = vunpack.c.l.b16 %v2217
  %v2236 = vunpack.c.h.b16 %v2217
  %v2237 = vunpack.c.l.b16 %v2218
  %v2238 = vunpack.c.h.b16 %v2218
  %v2239 = vunpack.c.l.b16 %v2219
  %v2240 = vunpack.c.h.b16 %v2219
  %v2241 = vunpack.c.l.b16 %v2220
  %v2242 = vunpack.c.h.b16 %v2220
  %v2243 = vunpack.c.l.b16 %v2221
  %v2244 = vunpack.c.h.b16 %v2221
  %v2245 = vunpack.c.l.b16 %v2222
  %v2246 = vunpack.c.h.b16 %v2222
  %v2247 = vunpack.c.l.b16 %v2223
  %v2248 = vunpack.c.h.b16 %v2223
  %v2249 = vunpack.c.l.b16 %v2224
  %v2250 = vunpack.c.h.b16 %v2224
  %v2251 = vunpack.c.l.b16 %v2225
  %v2252 = vunpack.c.h.b16 %v2225
  %v2253 = vpack.c.b16 %v2235, %v2235
  %v2254 = vpack.c.b16 %v2236, %v2236
  %v2255 = vpack.c.b16 %v2237, %v2237
  %v2256 = vpack.c.b16 %v2238, %v2238
  %v2257 = vpack.c.b16 %v2239, %v2239
  %v2258 = vpack.c.b16 %v2240, %v2240
  %v2259 = vpack.c.b16 %v2241, %v2241
  %v2260 = vpack.c.b16 %v2242, %v2242
  %v2261 = vpack.c.b16 %v2243, %v2243
  %v2262 = vpack.c.b16 %v2244, %v2244
  %v2263 = vpack.c.b16 %v2245, %v2245
  %v2264 = vpack.c.b16 %v2246, %v2246
  %v2265 = vpack.c.b16 %v2247, %v2247
  %v2266 = vpack.c.b16 %v2248, %v2248
  %v2267 = vpack.c.b16 %v2249, %v2249
  %v2268 = vpack.c.b16 %v2250, %v2250
  %v2269 = vpack.c.b16 %v2251, %v2251
  %v2270 = vpack.c.b16 %v2252, %v2252
  %2289 = vmatprep.subr.bf16.mxu0 %v1244
  %2290 = vmatpush1.bf16.msra.mxu0 %v1243
  %2291 = vmatprep.subr.bf16.mxu0 %v1246
  %2292 = vmatpush1.bf16.msra.mxu0 %v1245
  %2293 = vmatprep.subr.bf16.mxu0 %v1248
  %2294 = vmatpush1.bf16.msra.mxu0 %v1247
  %2295 = vmatprep.subr.bf16.mxu0 %v1250
  %2296 = vmatpush1.bf16.msra.mxu0 %v1249
  %2297 = vmatprep.subr.bf16.mxu0 %v1252
  %2298 = vmatpush1.bf16.msra.mxu0 %v1251
  %2299 = vmatprep.subr.bf16.mxu0 %v1254
  %2300 = vmatpush1.bf16.msra.mxu0 %v1253
  %2301 = vmatprep.subr.bf16.mxu0 %v1256
  %2302 = vmatpush1.bf16.msra.mxu0 %v1255
  %2303 = vmatprep.subr.bf16.mxu0 %v1258
  %2304 = vmatpush1.bf16.msra.mxu0 %v1257
  %2305 = vmatprep.subr.bf16.mxu0 %v1260
  %2306 = vmatpush1.bf16.msra.mxu0 %v1259
  %2307 = vmatprep.subr.bf16.mxu0 %v1262
  %2308 = vmatpush1.bf16.msra.mxu0 %v1261
  %2309 = vmatprep.subr.bf16.mxu0 %v1264
  %2310 = vmatpush1.bf16.msra.mxu0 %v1263
  %2311 = vmatprep.subr.bf16.mxu0 %v1266
  %2312 = vmatpush1.bf16.msra.mxu0 %v1265
  %2313 = vmatprep.subr.bf16.mxu0 %v1268
  %2314 = vmatpush1.bf16.msra.mxu0 %v1267
  %2315 = vmatprep.subr.bf16.mxu0 %v1270
  %2316 = vmatpush1.bf16.msra.mxu0 %v1269
  %2317 = vmatprep.subr.bf16.mxu0 %v1272
  %2318 = vmatpush1.bf16.msra.mxu0 %v1271
  %2319 = vmatprep.subr.bf16.mxu0 %v1274
  %2320 = vmatpush1.bf16.msra.mxu0 %v1273
  %2321 = vmatprep.mubr.bf16.mxu0 %v2254
  %2322 = vmatmul.mubr.bf16.gmra.mrb[0].mxu0 %v2253
  %v2323 = vpop.f32.mrb[0].mxu0
  %v2324 = vadd.f32 0.0, %v2323
  %v2325 = vpop.f32.mrb[0].mxu0
  %v2326 = vadd.f32 0.0, %v2325
  %v2327 = vpop.f32.mrb[0].mxu0
  %v2328 = vpop.f32.mrb[0].mxu0
  %2329 = vdwg.mxu0
  %2330 = vmatprep.subr.bf16.mxu0 %v1276
  %2331 = vmatpush1.bf16.msra.mxu0 %v1275
  %2332 = vmatprep.subr.bf16.mxu0 %v1278
  %2333 = vmatpush1.bf16.msra.mxu0 %v1277
  %2334 = vmatprep.subr.bf16.mxu0 %v1280
  %2335 = vmatpush1.bf16.msra.mxu0 %v1279
  %2336 = vmatprep.subr.bf16.mxu0 %v1282
  %2337 = vmatpush1.bf16.msra.mxu0 %v1281
  %2338 = vmatprep.subr.bf16.mxu0 %v1284
  %2339 = vmatpush1.bf16.msra.mxu0 %v1283
  %2340 = vmatprep.subr.bf16.mxu0 %v1286
  %2341 = vmatpush1.bf16.msra.mxu0 %v1285
  %2342 = vmatprep.subr.bf16.mxu0 %v1288
  %2343 = vmatpush1.bf16.msra.mxu0 %v1287
  %2344 = vmatprep.subr.bf16.mxu0 %v1290
  %2345 = vmatpush1.bf16.msra.mxu0 %v1289
  %2346 = vmatprep.subr.bf16.mxu0 %v1292
  %2347 = vmatpush1.bf16.msra.mxu0 %v1291
  %2348 = vmatprep.subr.bf16.mxu0 %v1294
  %2349 = vmatpush1.bf16.msra.mxu0 %v1293
  %2350 = vmatprep.subr.bf16.mxu0 %v1296
  %2351 = vmatpush1.bf16.msra.mxu0 %v1295
  %2352 = vmatprep.subr.bf16.mxu0 %v1298
  %2353 = vmatpush1.bf16.msra.mxu0 %v1297
  %2354 = vmatprep.subr.bf16.mxu0 %v1300
  %2355 = vmatpush1.bf16.msra.mxu0 %v1299
  %2356 = vmatprep.subr.bf16.mxu0 %v1302
  %2357 = vmatpush1.bf16.msra.mxu0 %v1301
  %2358 = vmatprep.subr.bf16.mxu0 %v1304
  %2359 = vmatpush1.bf16.msra.mxu0 %v1303
  %2360 = vmatprep.subr.bf16.mxu0 %v1306
  %2361 = vmatpush1.bf16.msra.mxu0 %v1305
  %2362 = vmatprep.mubr.bf16.mxu0 %v2256
  %2363 = vmatmul.mubr.bf16.gmra.mrb[0].mxu0 %v2255
  %v2364 = vpop.f32.mrb[0].mxu0
  %v2365 = vadd.f32 %v2324, %v2364
  %v2366 = vpop.f32.mrb[0].mxu0
  %v2367 = vadd.f32 %v2326, %v2366
  %v2368 = vpop.f32.mrb[0].mxu0
  %v2369 = vpop.f32.mrb[0].mxu0
  %2370 = vdwg.mxu0
  %2371 = vmatprep.subr.bf16.mxu0 %v1308
  %2372 = vmatpush1.bf16.msra.mxu0 %v1307
  %2373 = vmatprep.subr.bf16.mxu0 %v1310
  %2374 = vmatpush1.bf16.msra.mxu0 %v1309
  %2375 = vmatprep.subr.bf16.mxu0 %v1312
  %2376 = vmatpush1.bf16.msra.mxu0 %v1311
  %2377 = vmatprep.subr.bf16.mxu0 %v1314
  %2378 = vmatpush1.bf16.msra.mxu0 %v1313
  %2379 = vmatprep.subr.bf16.mxu0 %v1316
  %2380 = vmatpush1.bf16.msra.mxu0 %v1315
  %2381 = vmatprep.subr.bf16.mxu0 %v1318
  %2382 = vmatpush1.bf16.msra.mxu0 %v1317
  %2383 = vmatprep.subr.bf16.mxu0 %v1320
  %2384 = vmatpush1.bf16.msra.mxu0 %v1319
  %2385 = vmatprep.subr.bf16.mxu0 %v1322
  %2386 = vmatpush1.bf16.msra.mxu0 %v1321
  %2387 = vmatprep.subr.bf16.mxu0 %v1324
  %2388 = vmatpush1.bf16.msra.mxu0 %v1323
  %2389 = vmatprep.subr.bf16.mxu0 %v1326
  %2390 = vmatpush1.bf16.msra.mxu0 %v1325
  %2391 = vmatprep.subr.bf16.mxu0 %v1328
  %2392 = vmatpush1.bf16.msra.mxu0 %v1327
  %2393 = vmatprep.subr.bf16.mxu0 %v1330
  %2394 = vmatpush1.bf16.msra.mxu0 %v1329
  %2395 = vmatprep.subr.bf16.mxu0 %v1332
  %2396 = vmatpush1.bf16.msra.mxu0 %v1331
  %2397 = vmatprep.subr.bf16.mxu0 %v1334
  %2398 = vmatpush1.bf16.msra.mxu0 %v1333
  %2399 = vmatprep.subr.bf16.mxu0 %v1336
  %2400 = vmatpush1.bf16.msra.mxu0 %v1335
  %2401 = vmatprep.subr.bf16.mxu0 %v1338
  %2402 = vmatpush1.bf16.msra.mxu0 %v1337
  %2403 = vmatprep.mubr.bf16.mxu0 %v2258
  %2404 = vmatmul.mubr.bf16.gmra.mrb[0].mxu0 %v2257
  %v2405 = vpop.f32.mrb[0].mxu0
  %v2406 = vadd.f32 %v2365, %v2405
  %v2407 = vpop.f32.mrb[0].mxu0
  %v2408 = vadd.f32 %v2367, %v2407
  %v2409 = vpop.f32.mrb[0].mxu0
  %v2410 = vpop.f32.mrb[0].mxu0
  %2411 = vdwg.mxu0
  %2412 = vmatprep.subr.bf16.mxu0 %v1340
  %2413 = vmatpush1.bf16.msra.mxu0 %v1339
  %2414 = vmatprep.subr.bf16.mxu0 %v1342
  %2415 = vmatpush1.bf16.msra.mxu0 %v1341
  %2416 = vmatprep.subr.bf16.mxu0 %v1344
  %2417 = vmatpush1.bf16.msra.mxu0 %v1343
  %2418 = vmatprep.subr.bf16.mxu0 %v1346
  %2419 = vmatpush1.bf16.msra.mxu0 %v1345
  %2420 = vmatprep.subr.bf16.mxu0 %v1348
  %2421 = vmatpush1.bf16.msra.mxu0 %v1347
  %2422 = vmatprep.subr.bf16.mxu0 %v1350
  %2423 = vmatpush1.bf16.msra.mxu0 %v1349
  %2424 = vmatprep.subr.bf16.mxu0 %v1352
  %2425 = vmatpush1.bf16.msra.mxu0 %v1351
  %2426 = vmatprep.subr.bf16.mxu0 %v1354
  %2427 = vmatpush1.bf16.msra.mxu0 %v1353
  %2428 = vmatprep.subr.bf16.mxu0 %v1356
  %2429 = vmatpush1.bf16.msra.mxu0 %v1355
  %2430 = vmatprep.subr.bf16.mxu0 %v1358
  %2431 = vmatpush1.bf16.msra.mxu0 %v1357
  %2432 = vmatprep.subr.bf16.mxu0 %v1360
  %2433 = vmatpush1.bf16.msra.mxu0 %v1359
  %2434 = vmatprep.subr.bf16.mxu0 %v1362
  %2435 = vmatpush1.bf16.msra.mxu0 %v1361
  %2436 = vmatprep.subr.bf16.mxu0 %v1364
  %2437 = vmatpush1.bf16.msra.mxu0 %v1363
  %2438 = vmatprep.subr.bf16.mxu0 %v1366
  %2439 = vmatpush1.bf16.msra.mxu0 %v1365
  %2440 = vmatprep.subr.bf16.mxu0 %v1368
  %2441 = vmatpush1.bf16.msra.mxu0 %v1367
  %2442 = vmatprep.subr.bf16.mxu0 %v1370
  %2443 = vmatpush1.bf16.msra.mxu0 %v1369
  %2444 = vmatprep.mubr.bf16.mxu0 %v2260
  %2445 = vmatmul.mubr.bf16.gmra.mrb[0].mxu0 %v2259
  %v2446 = vpop.f32.mrb[0].mxu0
  %v2447 = vadd.f32 %v2406, %v2446
  %v2448 = vpop.f32.mrb[0].mxu0
  %v2449 = vadd.f32 %v2408, %v2448
  %v2450 = vpop.f32.mrb[0].mxu0
  %v2451 = vpop.f32.mrb[0].mxu0
  %2452 = vdwg.mxu0
  %2453 = vmatprep.subr.bf16.mxu0 %v1372
  %2454 = vmatpush1.bf16.msra.mxu0 %v1371
  %2455 = vmatprep.subr.bf16.mxu0 %v1374
  %2456 = vmatpush1.bf16.msra.mxu0 %v1373
  %2457 = vmatprep.subr.bf16.mxu0 %v1376
  %2458 = vmatpush1.bf16.msra.mxu0 %v1375
  %2459 = vmatprep.subr.bf16.mxu0 %v1378
  %2460 = vmatpush1.bf16.msra.mxu0 %v1377
  %2461 = vmatprep.subr.bf16.mxu0 %v1380
  %2462 = vmatpush1.bf16.msra.mxu0 %v1379
  %2463 = vmatprep.subr.bf16.mxu0 %v1382
  %2464 = vmatpush1.bf16.msra.mxu0 %v1381
  %2465 = vmatprep.subr.bf16.mxu0 %v1384
  %2466 = vmatpush1.bf16.msra.mxu0 %v1383
  %2467 = vmatprep.subr.bf16.mxu0 %v1386
  %2468 = vmatpush1.bf16.msra.mxu0 %v1385
  %2469 = vmatprep.subr.bf16.mxu0 %v1388
  %2470 = vmatpush1.bf16.msra.mxu0 %v1387
  %2471 = vmatprep.subr.bf16.mxu0 %v1390
  %2472 = vmatpush1.bf16.msra.mxu0 %v1389
  %2473 = vmatprep.subr.bf16.mxu0 %v1392
  %2474 = vmatpush1.bf16.msra.mxu0 %v1391
  %2475 = vmatprep.subr.bf16.mxu0 %v1394
  %2476 = vmatpush1.bf16.msra.mxu0 %v1393
  %2477 = vmatprep.subr.bf16.mxu0 %v1396
  %2478 = vmatpush1.bf16.msra.mxu0 %v1395
  %2479 = vmatprep.subr.bf16.mxu0 %v1398
  %2480 = vmatpush1.bf16.msra.mxu0 %v1397
  %2481 = vmatprep.subr.bf16.mxu0 %v1400
  %2482 = vmatpush1.bf16.msra.mxu0 %v1399
  %2483 = vmatprep.subr.bf16.mxu0 %v1402
  %2484 = vmatpush1.bf16.msra.mxu0 %v1401
  %2485 = vmatprep.mubr.bf16.mxu0 %v2262
  %2486 = vmatmul.mubr.bf16.gmra.mrb[0].mxu0 %v2261
  %v2487 = vpop.f32.mrb[0].mxu0
  %v2488 = vadd.f32 %v2447, %v2487
  %v2489 = vpop.f32.mrb[0].mxu0
  %v2490 = vadd.f32 %v2449, %v2489
  %v2491 = vpop.f32.mrb[0].mxu0
  %v2492 = vpop.f32.mrb[0].mxu0
  %2493 = vdwg.mxu0
  %2494 = vmatprep.subr.bf16.mxu0 %v1404
  %2495 = vmatpush1.bf16.msra.mxu0 %v1403
  %2496 = vmatprep.subr.bf16.mxu0 %v1406
  %2497 = vmatpush1.bf16.msra.mxu0 %v1405
  %2498 = vmatprep.subr.bf16.mxu0 %v1408
  %2499 = vmatpush1.bf16.msra.mxu0 %v1407
  %2500 = vmatprep.subr.bf16.mxu0 %v1410
  %2501 = vmatpush1.bf16.msra.mxu0 %v1409
  %2502 = vmatprep.subr.bf16.mxu0 %v1412
  %2503 = vmatpush1.bf16.msra.mxu0 %v1411
  %2504 = vmatprep.subr.bf16.mxu0 %v1414
  %2505 = vmatpush1.bf16.msra.mxu0 %v1413
  %2506 = vmatprep.subr.bf16.mxu0 %v1416
  %2507 = vmatpush1.bf16.msra.mxu0 %v1415
  %2508 = vmatprep.subr.bf16.mxu0 %v1418
  %2509 = vmatpush1.bf16.msra.mxu0 %v1417
  %2510 = vmatprep.subr.bf16.mxu0 %v1420
  %2511 = vmatpush1.bf16.msra.mxu0 %v1419
  %2512 = vmatprep.subr.bf16.mxu0 %v1422
  %2513 = vmatpush1.bf16.msra.mxu0 %v1421
  %2514 = vmatprep.subr.bf16.mxu0 %v1424
  %2515 = vmatpush1.bf16.msra.mxu0 %v1423
  %2516 = vmatprep.subr.bf16.mxu0 %v1426
  %2517 = vmatpush1.bf16.msra.mxu0 %v1425
  %2518 = vmatprep.subr.bf16.mxu0 %v1428
  %2519 = vmatpush1.bf16.msra.mxu0 %v1427
  %2520 = vmatprep.subr.bf16.mxu0 %v1430
  %2521 = vmatpush1.bf16.msra.mxu0 %v1429
  %2522 = vmatprep.subr.bf16.mxu0 %v1432
  %2523 = vmatpush1.bf16.msra.mxu0 %v1431
  %2524 = vmatprep.subr.bf16.mxu0 %v1434
  %2525 = vmatpush1.bf16.msra.mxu0 %v1433
  %2526 = vmatprep.mubr.bf16.mxu0 %v2264
  %2527 = vmatmul.mubr.bf16.gmra.mrb[0].mxu0 %v2263
  %v2528 = vpop.f32.mrb[0].mxu0
  %v2529 = vadd.f32 %v2488, %v2528
  %v2530 = vpop.f32.mrb[0].mxu0
  %v2531 = vadd.f32 %v2490, %v2530
  %v2532 = vpop.f32.mrb[0].mxu0
  %v2533 = vpop.f32.mrb[0].mxu0
  %2534 = vdwg.mxu0
  %2535 = vmatprep.subr.bf16.mxu0 %v1436
  %2536 = vmatpush1.bf16.msra.mxu0 %v1435
  %2537 = vmatprep.subr.bf16.mxu0 %v1438
  %2538 = vmatpush1.bf16.msra.mxu0 %v1437
  %2539 = vmatprep.subr.bf16.mxu0 %v1440
  %2540 = vmatpush1.bf16.msra.mxu0 %v1439
  %2541 = vmatprep.subr.bf16.mxu0 %v1442
  %2542 = vmatpush1.bf16.msra.mxu0 %v1441
  %2543 = vmatprep.subr.bf16.mxu0 %v1444
  %2544 = vmatpush1.bf16.msra.mxu0 %v1443
  %2545 = vmatprep.subr.bf16.mxu0 %v1446
  %2546 = vmatpush1.bf16.msra.mxu0 %v1445
  %2547 = vmatprep.subr.bf16.mxu0 %v1448
  %2548 = vmatpush1.bf16.msra.mxu0 %v1447
  %2549 = vmatprep.subr.bf16.mxu0 %v1450
  %2550 = vmatpush1.bf16.msra.mxu0 %v1449
  %2551 = vmatprep.subr.bf16.mxu0 %v1452
  %2552 = vmatpush1.bf16.msra.mxu0 %v1451
  %2553 = vmatprep.subr.bf16.mxu0 %v1454
  %2554 = vmatpush1.bf16.msra.mxu0 %v1453
  %2555 = vmatprep.subr.bf16.mxu0 %v1456
  %2556 = vmatpush1.bf16.msra.mxu0 %v1455
  %2557 = vmatprep.subr.bf16.mxu0 %v1458
  %2558 = vmatpush1.bf16.msra.mxu0 %v1457
  %2559 = vmatprep.subr.bf16.mxu0 %v1460
  %2560 = vmatpush1.bf16.msra.mxu0 %v1459
  %2561 = vmatprep.subr.bf16.mxu0 %v1462
  %2562 = vmatpush1.bf16.msra.mxu0 %v1461
  %2563 = vmatprep.subr.bf16.mxu0 %v1464
  %2564 = vmatpush1.bf16.msra.mxu0 %v1463
  %2565 = vmatprep.subr.bf16.mxu0 %v1466
  %2566 = vmatpush1.bf16.msra.mxu0 %v1465
  %2567 = vmatprep.mubr.bf16.mxu0 %v2266
  %2568 = vmatmul.mubr.bf16.gmra.mrb[0].mxu0 %v2265
  %v2569 = vpop.f32.mrb[0].mxu0
  %v2570 = vadd.f32 %v2529, %v2569
  %v2571 = vpop.f32.mrb[0].mxu0
  %v2572 = vadd.f32 %v2531, %v2571
  %v2573 = vpop.f32.mrb[0].mxu0
  %v2574 = vpop.f32.mrb[0].mxu0
  %2575 = vdwg.mxu0
  %2576 = vmatprep.subr.bf16.mxu0 %v1468
  %2577 = vmatpush1.bf16.msra.mxu0 %v1467
  %2578 = vmatprep.subr.bf16.mxu0 %v1470
  %2579 = vmatpush1.bf16.msra.mxu0 %v1469
  %2580 = vmatprep.subr.bf16.mxu0 %v1472
  %2581 = vmatpush1.bf16.msra.mxu0 %v1471
  %2582 = vmatprep.subr.bf16.mxu0 %v1474
  %2583 = vmatpush1.bf16.msra.mxu0 %v1473
  %2584 = vmatprep.subr.bf16.mxu0 %v1476
  %2585 = vmatpush1.bf16.msra.mxu0 %v1475
  %2586 = vmatprep.subr.bf16.mxu0 %v1478
  %2587 = vmatpush1.bf16.msra.mxu0 %v1477
  %2588 = vmatprep.subr.bf16.mxu0 %v1480
  %2589 = vmatpush1.bf16.msra.mxu0 %v1479
  %2590 = vmatprep.subr.bf16.mxu0 %v1482
  %2591 = vmatpush1.bf16.msra.mxu0 %v1481
  %2592 = vmatprep.subr.bf16.mxu0 %v1484
  %2593 = vmatpush1.bf16.msra.mxu0 %v1483
  %2594 = vmatprep.subr.bf16.mxu0 %v1486
  %2595 = vmatpush1.bf16.msra.mxu0 %v1485
  %2596 = vmatprep.subr.bf16.mxu0 %v1488
  %2597 = vmatpush1.bf16.msra.mxu0 %v1487
  %2598 = vmatprep.subr.bf16.mxu0 %v1490
  %2599 = vmatpush1.bf16.msra.mxu0 %v1489
  %2600 = vmatprep.subr.bf16.mxu0 %v1492
  %2601 = vmatpush1.bf16.msra.mxu0 %v1491
  %2602 = vmatprep.subr.bf16.mxu0 %v1494
  %2603 = vmatpush1.bf16.msra.mxu0 %v1493
  %2604 = vmatprep.subr.bf16.mxu0 %v1496
  %2605 = vmatpush1.bf16.msra.mxu0 %v1495
  %2606 = vmatprep.subr.bf16.mxu0 %v1498
  %2607 = vmatpush1.bf16.msra.mxu0 %v1497
  %2608 = vmatprep.mubr.bf16.mxu0 %v2268
  %2609 = vmatmul.mubr.bf16.gmra.mrb[0].mxu0 %v2267
  %v2610 = vpop.f32.mrb[0].mxu0
  %v2611 = vadd.f32 %v2570, %v2610
  %v2612 = vpop.f32.mrb[0].mxu0
  %v2613 = vadd.f32 %v2572, %v2612
  %v2614 = vpop.f32.mrb[0].mxu0
  %v2615 = vpop.f32.mrb[0].mxu0
  %2616 = vdwg.mxu0
  %2617 = vmatprep.subr.bf16.mxu0 %v1500
  %2618 = vmatpush1.bf16.msra.mxu0 %v1499
  %2619 = vmatprep.subr.bf16.mxu0 %v1502
  %2620 = vmatpush1.bf16.msra.mxu0 %v1501
  %2621 = vmatprep.subr.bf16.mxu0 %v1504
  %2622 = vmatpush1.bf16.msra.mxu0 %v1503
  %2623 = vmatprep.subr.bf16.mxu0 %v1506
  %2624 = vmatpush1.bf16.msra.mxu0 %v1505
  %2625 = vmatprep.subr.bf16.mxu0 %v1508
  %2626 = vmatpush1.bf16.msra.mxu0 %v1507
  %2627 = vmatprep.subr.bf16.mxu0 %v1510
  %2628 = vmatpush1.bf16.msra.mxu0 %v1509
  %2629 = vmatprep.subr.bf16.mxu0 %v1512
  %2630 = vmatpush1.bf16.msra.mxu0 %v1511
  %2631 = vmatprep.subr.bf16.mxu0 %v1514
  %2632 = vmatpush1.bf16.msra.mxu0 %v1513
  %2633 = vmatprep.subr.bf16.mxu0 %v1516
  %2634 = vmatpush1.bf16.msra.mxu0 %v1515
  %2635 = vmatprep.subr.bf16.mxu0 %v1518
  %2636 = vmatpush1.bf16.msra.mxu0 %v1517
  %2637 = vmatprep.subr.bf16.mxu0 %v1520
  %2638 = vmatpush1.bf16.msra.mxu0 %v1519
  %2639 = vmatprep.subr.bf16.mxu0 %v1522
  %2640 = vmatpush1.bf16.msra.mxu0 %v1521
  %2641 = vmatprep.subr.bf16.mxu0 %v1524
  %2642 = vmatpush1.bf16.msra.mxu0 %v1523
  %2643 = vmatprep.subr.bf16.mxu0 %v1526
  %2644 = vmatpush1.bf16.msra.mxu0 %v1525
  %2645 = vmatprep.subr.bf16.mxu0 %v1528
  %2646 = vmatpush1.bf16.msra.mxu0 %v1527
  %2647 = vmatprep.subr.bf16.mxu0 %v1530
  %2648 = vmatpush1.bf16.msra.mxu0 %v1529
  %2649 = vmatprep.mubr.bf16.mxu0 %v2270
  %2650 = vmatmul.mubr.bf16.gmra.mrb[0].mxu0 %v2269
  %v2651 = vpop.f32.mrb[0].mxu0
  %v2652 = vadd.f32 %v2611, %v2651
  %v2653 = vpop.f32.mrb[0].mxu0
  %v2654 = vadd.f32 %v2613, %v2653
  %v2655 = vpop.f32.mrb[0].mxu0
  %v2656 = vpop.f32.mrb[0].mxu0
  %2657 = vdwg.mxu0
  %v2658 = vmul.f32 %v2652, %v2192
  %v2659 = vmul.f32 %v2654, %v2196
  %v2660 = vadd.f32 %v2658, %v2205
  %v2661 = vadd.f32 %v2659, %v2209
  %v2662 = vmax.f32 %v2660, 0.0
  %v2663 = vmax.f32 %v2661, 0.0
  %v2664 = vmax.f32 %v2214, %v2662
  %v2665 = vmax.f32 %v2215, %v2663
  %s2666 = scalar_lea.vmem %s0, 144
  %v2667 = vld [vmem:[%s2666] sm:$0xff]
  %v2668 = vld [vmem:[%s2666 + $0x8] sm:$0xff]
  %v2669 = vld [vmem:[%s2666 + $0x10] sm:$0xff]
  %v2670 = vld [vmem:[%s2666 + $0x18] sm:$0xff]
  %v2671 = vld [vmem:[%s2666 + $0x20] sm:$0xff]
  %v2672 = vld [vmem:[%s2666 + $0x28] sm:$0xff]
  %v2673 = vld [vmem:[%s2666 + $0x30] sm:$0xff]
  %v2674 = vld [vmem:[%s2666 + $0x38] sm:$0xff]
  %v2675 = vld [vmem:[%s2666 + $0x40] sm:$0xff]
  %v2685 = vunpack.c.l.b16 %v2667
  %v2686 = vunpack.c.h.b16 %v2667
  %v2687 = vunpack.c.l.b16 %v2668
  %v2688 = vunpack.c.h.b16 %v2668
  %v2689 = vunpack.c.l.b16 %v2669
  %v2690 = vunpack.c.h.b16 %v2669
  %v2691 = vunpack.c.l.b16 %v2670
  %v2692 = vunpack.c.h.b16 %v2670
  %v2693 = vunpack.c.l.b16 %v2671
  %v2694 = vunpack.c.h.b16 %v2671
  %v2695 = vunpack.c.l.b16 %v2672
  %v2696 = vunpack.c.h.b16 %v2672
  %v2697 = vunpack.c.l.b16 %v2673
  %v2698 = vunpack.c.h.b16 %v2673
  %v2699 = vunpack.c.l.b16 %v2674
  %v2700 = vunpack.c.h.b16 %v2674
  %v2701 = vunpack.c.l.b16 %v2675
  %v2702 = vunpack.c.h.b16 %v2675
  %v2703 = vpack.c.b16 %v2685, %v2685
  %v2704 = vpack.c.b16 %v2686, %v2686
  %v2705 = vpack.c.b16 %v2687, %v2687
  %v2706 = vpack.c.b16 %v2688, %v2688
  %v2707 = vpack.c.b16 %v2689, %v2689
  %v2708 = vpack.c.b16 %v2690, %v2690
  %v2709 = vpack.c.b16 %v2691, %v2691
  %v2710 = vpack.c.b16 %v2692, %v2692
  %v2711 = vpack.c.b16 %v2693, %v2693
  %v2712 = vpack.c.b16 %v2694, %v2694
  %v2713 = vpack.c.b16 %v2695, %v2695
  %v2714 = vpack.c.b16 %v2696, %v2696
  %v2715 = vpack.c.b16 %v2697, %v2697
  %v2716 = vpack.c.b16 %v2698, %v2698
  %v2717 = vpack.c.b16 %v2699, %v2699
  %v2718 = vpack.c.b16 %v2700, %v2700
  %v2719 = vpack.c.b16 %v2701, %v2701
  %v2720 = vpack.c.b16 %v2702, %v2702
  %2739 = vmatprep.subr.bf16.mxu0 %v1244
  %2740 = vmatpush1.bf16.msra.mxu0 %v1243
  %2741 = vmatprep.subr.bf16.mxu0 %v1246
  %2742 = vmatpush1.bf16.msra.mxu0 %v1245
  %2743 = vmatprep.subr.bf16.mxu0 %v1248
  %2744 = vmatpush1.bf16.msra.mxu0 %v1247
  %2745 = vmatprep.subr.bf16.mxu0 %v1250
  %2746 = vmatpush1.bf16.msra.mxu0 %v1249
  %2747 = vmatprep.subr.bf16.mxu0 %v1252
  %2748 = vmatpush1.bf16.msra.mxu0 %v1251
  %2749 = vmatprep.subr.bf16.mxu0 %v1254
  %2750 = vmatpush1.bf16.msra.mxu0 %v1253
  %2751 = vmatprep.subr.bf16.mxu0 %v1256
  %2752 = vmatpush1.bf16.msra.mxu0 %v1255
  %2753 = vmatprep.subr.bf16.mxu0 %v1258
  %2754 = vmatpush1.bf16.msra.mxu0 %v1257
  %2755 = vmatprep.subr.bf16.mxu0 %v1260
  %2756 = vmatpush1.bf16.msra.mxu0 %v1259
  %2757 = vmatprep.subr.bf16.mxu0 %v1262
  %2758 = vmatpush1.bf16.msra.mxu0 %v1261
  %2759 = vmatprep.subr.bf16.mxu0 %v1264
  %2760 = vmatpush1.bf16.msra.mxu0 %v1263
  %2761 = vmatprep.subr.bf16.mxu0 %v1266
  %2762 = vmatpush1.bf16.msra.mxu0 %v1265
  %2763 = vmatprep.subr.bf16.mxu0 %v1268
  %2764 = vmatpush1.bf16.msra.mxu0 %v1267
  %2765 = vmatprep.subr.bf16.mxu0 %v1270
  %2766 = vmatpush1.bf16.msra.mxu0 %v1269
  %2767 = vmatprep.subr.bf16.mxu0 %v1272
  %2768 = vmatpush1.bf16.msra.mxu0 %v1271
  %2769 = vmatprep.subr.bf16.mxu0 %v1274
  %2770 = vmatpush1.bf16.msra.mxu0 %v1273
  %2771 = vmatprep.mubr.bf16.mxu0 %v2704
  %2772 = vmatmul.mubr.bf16.gmra.mrb[0].mxu0 %v2703
  %v2773 = vpop.f32.mrb[0].mxu0
  %v2774 = vadd.f32 0.0, %v2773
  %v2775 = vpop.f32.mrb[0].mxu0
  %v2776 = vadd.f32 0.0, %v2775
  %v2777 = vpop.f32.mrb[0].mxu0
  %v2778 = vpop.f32.mrb[0].mxu0
  %2779 = vdwg.mxu0
  %2780 = vmatprep.subr.bf16.mxu0 %v1276
  %2781 = vmatpush1.bf16.msra.mxu0 %v1275
  %2782 = vmatprep.subr.bf16.mxu0 %v1278
  %2783 = vmatpush1.bf16.msra.mxu0 %v1277
  %2784 = vmatprep.subr.bf16.mxu0 %v1280
  %2785 = vmatpush1.bf16.msra.mxu0 %v1279
  %2786 = vmatprep.subr.bf16.mxu0 %v1282
  %2787 = vmatpush1.bf16.msra.mxu0 %v1281
  %2788 = vmatprep.subr.bf16.mxu0 %v1284
  %2789 = vmatpush1.bf16.msra.mxu0 %v1283
  %2790 = vmatprep.subr.bf16.mxu0 %v1286
  %2791 = vmatpush1.bf16.msra.mxu0 %v1285
  %2792 = vmatprep.subr.bf16.mxu0 %v1288
  %2793 = vmatpush1.bf16.msra.mxu0 %v1287
  %2794 = vmatprep.subr.bf16.mxu0 %v1290
  %2795 = vmatpush1.bf16.msra.mxu0 %v1289
  %2796 = vmatprep.subr.bf16.mxu0 %v1292
  %2797 = vmatpush1.bf16.msra.mxu0 %v1291
  %2798 = vmatprep.subr.bf16.mxu0 %v1294
  %2799 = vmatpush1.bf16.msra.mxu0 %v1293
  %2800 = vmatprep.subr.bf16.mxu0 %v1296
  %2801 = vmatpush1.bf16.msra.mxu0 %v1295
  %2802 = vmatprep.subr.bf16.mxu0 %v1298
  %2803 = vmatpush1.bf16.msra.mxu0 %v1297
  %2804 = vmatprep.subr.bf16.mxu0 %v1300
  %2805 = vmatpush1.bf16.msra.mxu0 %v1299
  %2806 = vmatprep.subr.bf16.mxu0 %v1302
  %2807 = vmatpush1.bf16.msra.mxu0 %v1301
  %2808 = vmatprep.subr.bf16.mxu0 %v1304
  %2809 = vmatpush1.bf16.msra.mxu0 %v1303
  %2810 = vmatprep.subr.bf16.mxu0 %v1306
  %2811 = vmatpush1.bf16.msra.mxu0 %v1305
  %2812 = vmatprep.mubr.bf16.mxu0 %v2706
  %2813 = vmatmul.mubr.bf16.gmra.mrb[0].mxu0 %v2705
  %v2814 = vpop.f32.mrb[0].mxu0
  %v2815 = vadd.f32 %v2774, %v2814
  %v2816 = vpop.f32.mrb[0].mxu0
  %v2817 = vadd.f32 %v2776, %v2816
  %v2818 = vpop.f32.mrb[0].mxu0
  %v2819 = vpop.f32.mrb[0].mxu0
  %2820 = vdwg.mxu0
  %2821 = vmatprep.subr.bf16.mxu0 %v1308
  %2822 = vmatpush1.bf16.msra.mxu0 %v1307
  %2823 = vmatprep.subr.bf16.mxu0 %v1310
  %2824 = vmatpush1.bf16.msra.mxu0 %v1309
  %2825 = vmatprep.subr.bf16.mxu0 %v1312
  %2826 = vmatpush1.bf16.msra.mxu0 %v1311
  %2827 = vmatprep.subr.bf16.mxu0 %v1314
  %2828 = vmatpush1.bf16.msra.mxu0 %v1313
  %2829 = vmatprep.subr.bf16.mxu0 %v1316
  %2830 = vmatpush1.bf16.msra.mxu0 %v1315
  %2831 = vmatprep.subr.bf16.mxu0 %v1318
  %2832 = vmatpush1.bf16.msra.mxu0 %v1317
  %2833 = vmatprep.subr.bf16.mxu0 %v1320
  %2834 = vmatpush1.bf16.msra.mxu0 %v1319
  %2835 = vmatprep.subr.bf16.mxu0 %v1322
  %2836 = vmatpush1.bf16.msra.mxu0 %v1321
  %2837 = vmatprep.subr.bf16.mxu0 %v1324
  %2838 = vmatpush1.bf16.msra.mxu0 %v1323
  %2839 = vmatprep.subr.bf16.mxu0 %v1326
  %2840 = vmatpush1.bf16.msra.mxu0 %v1325
  %2841 = vmatprep.subr.bf16.mxu0 %v1328
  %2842 = vmatpush1.bf16.msra.mxu0 %v1327
  %2843 = vmatprep.subr.bf16.mxu0 %v1330
  %2844 = vmatpush1.bf16.msra.mxu0 %v1329
  %2845 = vmatprep.subr.bf16.mxu0 %v1332
  %2846 = vmatpush1.bf16.msra.mxu0 %v1331
  %2847 = vmatprep.subr.bf16.mxu0 %v1334
  %2848 = vmatpush1.bf16.msra.mxu0 %v1333
  %2849 = vmatprep.subr.bf16.mxu0 %v1336
  %2850 = vmatpush1.bf16.msra.mxu0 %v1335
  %2851 = vmatprep.subr.bf16.mxu0 %v1338
  %2852 = vmatpush1.bf16.msra.mxu0 %v1337
  %2853 = vmatprep.mubr.bf16.mxu0 %v2708
  %2854 = vmatmul.mubr.bf16.gmra.mrb[0].mxu0 %v2707
  %v2855 = vpop.f32.mrb[0].mxu0
  %v2856 = vadd.f32 %v2815, %v2855
  %v2857 = vpop.f32.mrb[0].mxu0
  %v2858 = vadd.f32 %v2817, %v2857
  %v2859 = vpop.f32.mrb[0].mxu0
  %v2860 = vpop.f32.mrb[0].mxu0
  %2861 = vdwg.mxu0
  %2862 = vmatprep.subr.bf16.mxu0 %v1340
  %2863 = vmatpush1.bf16.msra.mxu0 %v1339
  %2864 = vmatprep.subr.bf16.mxu0 %v1342
  %2865 = vmatpush1.bf16.msra.mxu0 %v1341
  %2866 = vmatprep.subr.bf16.mxu0 %v1344
  %2867 = vmatpush1.bf16.msra.mxu0 %v1343
  %2868 = vmatprep.subr.bf16.mxu0 %v1346
  %2869 = vmatpush1.bf16.msra.mxu0 %v1345
  %2870 = vmatprep.subr.bf16.mxu0 %v1348
  %2871 = vmatpush1.bf16.msra.mxu0 %v1347
  %2872 = vmatprep.subr.bf16.mxu0 %v1350
  %2873 = vmatpush1.bf16.msra.mxu0 %v1349
  %2874 = vmatprep.subr.bf16.mxu0 %v1352
  %2875 = vmatpush1.bf16.msra.mxu0 %v1351
  %2876 = vmatprep.subr.bf16.mxu0 %v1354
  %2877 = vmatpush1.bf16.msra.mxu0 %v1353
  %2878 = vmatprep.subr.bf16.mxu0 %v1356
  %2879 = vmatpush1.bf16.msra.mxu0 %v1355
  %2880 = vmatprep.subr.bf16.mxu0 %v1358
  %2881 = vmatpush1.bf16.msra.mxu0 %v1357
  %2882 = vmatprep.subr.bf16.mxu0 %v1360
  %2883 = vmatpush1.bf16.msra.mxu0 %v1359
  %2884 = vmatprep.subr.bf16.mxu0 %v1362
  %2885 = vmatpush1.bf16.msra.mxu0 %v1361
  %2886 = vmatprep.subr.bf16.mxu0 %v1364
  %2887 = vmatpush1.bf16.msra.mxu0 %v1363
  %2888 = vmatprep.subr.bf16.mxu0 %v1366
  %2889 = vmatpush1.bf16.msra.mxu0 %v1365
  %2890 = vmatprep.subr.bf16.mxu0 %v1368
  %2891 = vmatpush1.bf16.msra.mxu0 %v1367
  %2892 = vmatprep.subr.bf16.mxu0 %v1370
  %2893 = vmatpush1.bf16.msra.mxu0 %v1369
  %2894 = vmatprep.mubr.bf16.mxu0 %v2710
  %2895 = vmatmul.mubr.bf16.gmra.mrb[0].mxu0 %v2709
  %v2896 = vpop.f32.mrb[0].mxu0
  %v2897 = vadd.f32 %v2856, %v2896
  %v2898 = vpop.f32.mrb[0].mxu0
  %v2899 = vadd.f32 %v2858, %v2898
  %v2900 = vpop.f32.mrb[0].mxu0
  %v2901 = vpop.f32.mrb[0].mxu0
  %2902 = vdwg.mxu0
  %2903 = vmatprep.subr.bf16.mxu0 %v1372
  %2904 = vmatpush1.bf16.msra.mxu0 %v1371
  %2905 = vmatprep.subr.bf16.mxu0 %v1374
  %2906 = vmatpush1.bf16.msra.mxu0 %v1373
  %2907 = vmatprep.subr.bf16.mxu0 %v1376
  %2908 = vmatpush1.bf16.msra.mxu0 %v1375
  %2909 = vmatprep.subr.bf16.mxu0 %v1378
  %2910 = vmatpush1.bf16.msra.mxu0 %v1377
  %2911 = vmatprep.subr.bf16.mxu0 %v1380
  %2912 = vmatpush1.bf16.msra.mxu0 %v1379
  %2913 = vmatprep.subr.bf16.mxu0 %v1382
  %2914 = vmatpush1.bf16.msra.mxu0 %v1381
  %2915 = vmatprep.subr.bf16.mxu0 %v1384
  %2916 = vmatpush1.bf16.msra.mxu0 %v1383
  %2917 = vmatprep.subr.bf16.mxu0 %v1386
  %2918 = vmatpush1.bf16.msra.mxu0 %v1385
  %2919 = vmatprep.subr.bf16.mxu0 %v1388
  %2920 = vmatpush1.bf16.msra.mxu0 %v1387
  %2921 = vmatprep.subr.bf16.mxu0 %v1390
  %2922 = vmatpush1.bf16.msra.mxu0 %v1389
  %2923 = vmatprep.subr.bf16.mxu0 %v1392
  %2924 = vmatpush1.bf16.msra.mxu0 %v1391
  %2925 = vmatprep.subr.bf16.mxu0 %v1394
  %2926 = vmatpush1.bf16.msra.mxu0 %v1393
  %2927 = vmatprep.subr.bf16.mxu0 %v1396
  %2928 = vmatpush1.bf16.msra.mxu0 %v1395
  %2929 = vmatprep.subr.bf16.mxu0 %v1398
  %2930 = vmatpush1.bf16.msra.mxu0 %v1397
  %2931 = vmatprep.subr.bf16.mxu0 %v1400
  %2932 = vmatpush1.bf16.msra.mxu0 %v1399
  %2933 = vmatprep.subr.bf16.mxu0 %v1402
  %2934 = vmatpush1.bf16.msra.mxu0 %v1401
  %2935 = vmatprep.mubr.bf16.mxu0 %v2712
  %2936 = vmatmul.mubr.bf16.gmra.mrb[0].mxu0 %v2711
  %v2937 = vpop.f32.mrb[0].mxu0
  %v2938 = vadd.f32 %v2897, %v2937
  %v2939 = vpop.f32.mrb[0].mxu0
  %v2940 = vadd.f32 %v2899, %v2939
  %v2941 = vpop.f32.mrb[0].mxu0
  %v2942 = vpop.f32.mrb[0].mxu0
  %2943 = vdwg.mxu0
  %2944 = vmatprep.subr.bf16.mxu0 %v1404
  %2945 = vmatpush1.bf16.msra.mxu0 %v1403
  %2946 = vmatprep.subr.bf16.mxu0 %v1406
  %2947 = vmatpush1.bf16.msra.mxu0 %v1405
  %2948 = vmatprep.subr.bf16.mxu0 %v1408
  %2949 = vmatpush1.bf16.msra.mxu0 %v1407
  %2950 = vmatprep.subr.bf16.mxu0 %v1410
  %2951 = vmatpush1.bf16.msra.mxu0 %v1409
  %2952 = vmatprep.subr.bf16.mxu0 %v1412
  %2953 = vmatpush1.bf16.msra.mxu0 %v1411
  %2954 = vmatprep.subr.bf16.mxu0 %v1414
  %2955 = vmatpush1.bf16.msra.mxu0 %v1413
  %2956 = vmatprep.subr.bf16.mxu0 %v1416
  %2957 = vmatpush1.bf16.msra.mxu0 %v1415
  %2958 = vmatprep.subr.bf16.mxu0 %v1418
  %2959 = vmatpush1.bf16.msra.mxu0 %v1417
  %2960 = vmatprep.subr.bf16.mxu0 %v1420
  %2961 = vmatpush1.bf16.msra.mxu0 %v1419
  %2962 = vmatprep.subr.bf16.mxu0 %v1422
  %2963 = vmatpush1.bf16.msra.mxu0 %v1421
  %2964 = vmatprep.subr.bf16.mxu0 %v1424
  %2965 = vmatpush1.bf16.msra.mxu0 %v1423
  %2966 = vmatprep.subr.bf16.mxu0 %v1426
  %2967 = vmatpush1.bf16.msra.mxu0 %v1425
  %2968 = vmatprep.subr.bf16.mxu0 %v1428
  %2969 = vmatpush1.bf16.msra.mxu0 %v1427
  %2970 = vmatprep.subr.bf16.mxu0 %v1430
  %2971 = vmatpush1.bf16.msra.mxu0 %v1429
  %2972 = vmatprep.subr.bf16.mxu0 %v1432
  %2973 = vmatpush1.bf16.msra.mxu0 %v1431
  %2974 = vmatprep.subr.bf16.mxu0 %v1434
  %2975 = vmatpush1.bf16.msra.mxu0 %v1433
  %2976 = vmatprep.mubr.bf16.mxu0 %v2714
  %2977 = vmatmul.mubr.bf16.gmra.mrb[0].mxu0 %v2713
  %v2978 = vpop.f32.mrb[0].mxu0
  %v2979 = vadd.f32 %v2938, %v2978
  %v2980 = vpop.f32.mrb[0].mxu0
  %v2981 = vadd.f32 %v2940, %v2980
  %v2982 = vpop.f32.mrb[0].mxu0
  %v2983 = vpop.f32.mrb[0].mxu0
  %2984 = vdwg.mxu0
  %2985 = vmatprep.subr.bf16.mxu0 %v1436
  %2986 = vmatpush1.bf16.msra.mxu0 %v1435
  %2987 = vmatprep.subr.bf16.mxu0 %v1438
  %2988 = vmatpush1.bf16.msra.mxu0 %v1437
  %2989 = vmatprep.subr.bf16.mxu0 %v1440
  %2990 = vmatpush1.bf16.msra.mxu0 %v1439
  %2991 = vmatprep.subr.bf16.mxu0 %v1442
  %2992 = vmatpush1.bf16.msra.mxu0 %v1441
  %2993 = vmatprep.subr.bf16.mxu0 %v1444
  %2994 = vmatpush1.bf16.msra.mxu0 %v1443
  %2995 = vmatprep.subr.bf16.mxu0 %v1446
  %2996 = vmatpush1.bf16.msra.mxu0 %v1445
  %2997 = vmatprep.subr.bf16.mxu0 %v1448
  %2998 = vmatpush1.bf16.msra.mxu0 %v1447
  %2999 = vmatprep.subr.bf16.mxu0 %v1450
  %3000 = vmatpush1.bf16.msra.mxu0 %v1449
  %3001 = vmatprep.subr.bf16.mxu0 %v1452
  %3002 = vmatpush1.bf16.msra.mxu0 %v1451
  %3003 = vmatprep.subr.bf16.mxu0 %v1454
  %3004 = vmatpush1.bf16.msra.mxu0 %v1453
  %3005 = vmatprep.subr.bf16.mxu0 %v1456
  %3006 = vmatpush1.bf16.msra.mxu0 %v1455
  %3007 = vmatprep.subr.bf16.mxu0 %v1458
  %3008 = vmatpush1.bf16.msra.mxu0 %v1457
  %3009 = vmatprep.subr.bf16.mxu0 %v1460
  %3010 = vmatpush1.bf16.msra.mxu0 %v1459
  %3011 = vmatprep.subr.bf16.mxu0 %v1462
  %3012 = vmatpush1.bf16.msra.mxu0 %v1461
  %3013 = vmatprep.subr.bf16.mxu0 %v1464
  %3014 = vmatpush1.bf16.msra.mxu0 %v1463
  %3015 = vmatprep.subr.bf16.mxu0 %v1466
  %3016 = vmatpush1.bf16.msra.mxu0 %v1465
  %3017 = vmatprep.mubr.bf16.mxu0 %v2716
  %3018 = vmatmul.mubr.bf16.gmra.mrb[0].mxu0 %v2715
  %v3019 = vpop.f32.mrb[0].mxu0
  %v3020 = vadd.f32 %v2979, %v3019
  %v3021 = vpop.f32.mrb[0].mxu0
  %v3022 = vadd.f32 %v2981, %v3021
  %v3023 = vpop.f32.mrb[0].mxu0
  %v3024 = vpop.f32.mrb[0].mxu0
  %3025 = vdwg.mxu0
  %3026 = vmatprep.subr.bf16.mxu0 %v1468
  %3027 = vmatpush1.bf16.msra.mxu0 %v1467
  %3028 = vmatprep.subr.bf16.mxu0 %v1470
  %3029 = vmatpush1.bf16.msra.mxu0 %v1469
  %3030 = vmatprep.subr.bf16.mxu0 %v1472
  %3031 = vmatpush1.bf16.msra.mxu0 %v1471
  %3032 = vmatprep.subr.bf16.mxu0 %v1474
  %3033 = vmatpush1.bf16.msra.mxu0 %v1473
  %3034 = vmatprep.subr.bf16.mxu0 %v1476
  %3035 = vmatpush1.bf16.msra.mxu0 %v1475
  %3036 = vmatprep.subr.bf16.mxu0 %v1478
  %3037 = vmatpush1.bf16.msra.mxu0 %v1477
  %3038 = vmatprep.subr.bf16.mxu0 %v1480
  %3039 = vmatpush1.bf16.msra.mxu0 %v1479
  %3040 = vmatprep.subr.bf16.mxu0 %v1482
  %3041 = vmatpush1.bf16.msra.mxu0 %v1481
  %3042 = vmatprep.subr.bf16.mxu0 %v1484
  %3043 = vmatpush1.bf16.msra.mxu0 %v1483
  %3044 = vmatprep.subr.bf16.mxu0 %v1486
  %3045 = vmatpush1.bf16.msra.mxu0 %v1485
  %3046 = vmatprep.subr.bf16.mxu0 %v1488
  %3047 = vmatpush1.bf16.msra.mxu0 %v1487
  %3048 = vmatprep.subr.bf16.mxu0 %v1490
  %3049 = vmatpush1.bf16.msra.mxu0 %v1489
  %3050 = vmatprep.subr.bf16.mxu0 %v1492
  %3051 = vmatpush1.bf16.msra.mxu0 %v1491
  %3052 = vmatprep.subr.bf16.mxu0 %v1494
  %3053 = vmatpush1.bf16.msra.mxu0 %v1493
  %3054 = vmatprep.subr.bf16.mxu0 %v1496
  %3055 = vmatpush1.bf16.msra.mxu0 %v1495
  %3056 = vmatprep.subr.bf16.mxu0 %v1498
  %3057 = vmatpush1.bf16.msra.mxu0 %v1497
  %3058 = vmatprep.mubr.bf16.mxu0 %v2718
  %3059 = vmatmul.mubr.bf16.gmra.mrb[0].mxu0 %v2717
  %v3060 = vpop.f32.mrb[0].mxu0
  %v3061 = vadd.f32 %v3020, %v3060
  %v3062 = vpop.f32.mrb[0].mxu0
  %v3063 = vadd.f32 %v3022, %v3062
  %v3064 = vpop.f32.mrb[0].mxu0
  %v3065 = vpop.f32.mrb[0].mxu0
  %3066 = vdwg.mxu0
  %3067 = vmatprep.subr.bf16.mxu0 %v1500
  %3068 = vmatpush1.bf16.msra.mxu0 %v1499
  %3069 = vmatprep.subr.bf16.mxu0 %v1502
  %3070 = vmatpush1.bf16.msra.mxu0 %v1501
  %3071 = vmatprep.subr.bf16.mxu0 %v1504
  %3072 = vmatpush1.bf16.msra.mxu0 %v1503
  %3073 = vmatprep.subr.bf16.mxu0 %v1506
  %3074 = vmatpush1.bf16.msra.mxu0 %v1505
  %3075 = vmatprep.subr.bf16.mxu0 %v1508
  %3076 = vmatpush1.bf16.msra.mxu0 %v1507
  %3077 = vmatprep.subr.bf16.mxu0 %v1510
  %3078 = vmatpush1.bf16.msra.mxu0 %v1509
  %3079 = vmatprep.subr.bf16.mxu0 %v1512
  %3080 = vmatpush1.bf16.msra.mxu0 %v1511
  %3081 = vmatprep.subr.bf16.mxu0 %v1514
  %3082 = vmatpush1.bf16.msra.mxu0 %v1513
  %3083 = vmatprep.subr.bf16.mxu0 %v1516
  %3084 = vmatpush1.bf16.msra.mxu0 %v1515
  %3085 = vmatprep.subr.bf16.mxu0 %v1518
  %3086 = vmatpush1.bf16.msra.mxu0 %v1517
  %3087 = vmatprep.subr.bf16.mxu0 %v1520
  %3088 = vmatpush1.bf16.msra.mxu0 %v1519
  %3089 = vmatprep.subr.bf16.mxu0 %v1522
  %3090 = vmatpush1.bf16.msra.mxu0 %v1521
  %3091 = vmatprep.subr.bf16.mxu0 %v1524
  %3092 = vmatpush1.bf16.msra.mxu0 %v1523
  %3093 = vmatprep.subr.bf16.mxu0 %v1526
  %3094 = vmatpush1.bf16.msra.mxu0 %v1525
  %3095 = vmatprep.subr.bf16.mxu0 %v1528
  %3096 = vmatpush1.bf16.msra.mxu0 %v1527
  %3097 = vmatprep.subr.bf16.mxu0 %v1530
  %3098 = vmatpush1.bf16.msra.mxu0 %v1529
  %3099 = vmatprep.mubr.bf16.mxu0 %v2720
  %3100 = vmatmul.mubr.bf16.gmra.mrb[0].mxu0 %v2719
  %v3101 = vpop.f32.mrb[0].mxu0
  %v3102 = vadd.f32 %v3061, %v3101
  %v3103 = vpop.f32.mrb[0].mxu0
  %v3104 = vadd.f32 %v3063, %v3103
  %v3105 = vpop.f32.mrb[0].mxu0
  %v3106 = vpop.f32.mrb[0].mxu0
  %3107 = vdwg.mxu0
  %v3108 = vmul.f32 %v3102, %v2192
  %v3109 = vmul.f32 %v3104, %v2196
  %v3110 = vadd.f32 %v3108, %v2205
  %v3111 = vadd.f32 %v3109, %v2209
  %v3112 = vmax.f32 %v3110, 0.0
  %v3113 = vmax.f32 %v3111, 0.0
  %s3114 = scalar_lea.vmem %s0, 216
  %v3115 = vld [vmem:[%s3114] sm:$0xff]
  %v3116 = vld [vmem:[%s3114 + $0x8] sm:$0xff]
  %v3117 = vld [vmem:[%s3114 + $0x10] sm:$0xff]
  %v3118 = vld [vmem:[%s3114 + $0x18] sm:$0xff]
  %v3119 = vld [vmem:[%s3114 + $0x20] sm:$0xff]
  %v3120 = vld [vmem:[%s3114 + $0x28] sm:$0xff]
  %v3121 = vld [vmem:[%s3114 + $0x30] sm:$0xff]
  %v3122 = vld [vmem:[%s3114 + $0x38] sm:$0xff]
  %v3123 = vld [vmem:[%s3114 + $0x40] sm:$0xff]
  %v3133 = vunpack.c.l.b16 %v3115
  %v3134 = vunpack.c.h.b16 %v3115
  %v3135 = vunpack.c.l.b16 %v3116
  %v3136 = vunpack.c.h.b16 %v3116
  %v3137 = vunpack.c.l.b16 %v3117
  %v3138 = vunpack.c.h.b16 %v3117
  %v3139 = vunpack.c.l.b16 %v3118
  %v3140 = vunpack.c.h.b16 %v3118
  %v3141 = vunpack.c.l.b16 %v3119
  %v3142 = vunpack.c.h.b16 %v3119
  %v3143 = vunpack.c.l.b16 %v3120
  %v3144 = vunpack.c.h.b16 %v3120
  %v3145 = vunpack.c.l.b16 %v3121
  %v3146 = vunpack.c.h.b16 %v3121
  %v3147 = vunpack.c.l.b16 %v3122
  %v3148 = vunpack.c.h.b16 %v3122
  %v3149 = vunpack.c.l.b16 %v3123
  %v3150 = vunpack.c.h.b16 %v3123
  %v3151 = vpack.c.b16 %v3133, %v3133
  %v3152 = vpack.c.b16 %v3134, %v3134
  %v3153 = vpack.c.b16 %v3135, %v3135
  %v3154 = vpack.c.b16 %v3136, %v3136
  %v3155 = vpack.c.b16 %v3137, %v3137
  %v3156 = vpack.c.b16 %v3138, %v3138
  %v3157 = vpack.c.b16 %v3139, %v3139
  %v3158 = vpack.c.b16 %v3140, %v3140
  %v3159 = vpack.c.b16 %v3141, %v3141
  %v3160 = vpack.c.b16 %v3142, %v3142
  %v3161 = vpack.c.b16 %v3143, %v3143
  %v3162 = vpack.c.b16 %v3144, %v3144
  %v3163 = vpack.c.b16 %v3145, %v3145
  %v3164 = vpack.c.b16 %v3146, %v3146
  %v3165 = vpack.c.b16 %v3147, %v3147
  %v3166 = vpack.c.b16 %v3148, %v3148
  %v3167 = vpack.c.b16 %v3149, %v3149
  %v3168 = vpack.c.b16 %v3150, %v3150
  %3187 = vmatprep.subr.bf16.mxu0 %v1244
  %3188 = vmatpush1.bf16.msra.mxu0 %v1243
  %3189 = vmatprep.subr.bf16.mxu0 %v1246
  %3190 = vmatpush1.bf16.msra.mxu0 %v1245
  %3191 = vmatprep.subr.bf16.mxu0 %v1248
  %3192 = vmatpush1.bf16.msra.mxu0 %v1247
  %3193 = vmatprep.subr.bf16.mxu0 %v1250
  %3194 = vmatpush1.bf16.msra.mxu0 %v1249
  %3195 = vmatprep.subr.bf16.mxu0 %v1252
  %3196 = vmatpush1.bf16.msra.mxu0 %v1251
  %3197 = vmatprep.subr.bf16.mxu0 %v1254
  %3198 = vmatpush1.bf16.msra.mxu0 %v1253
  %3199 = vmatprep.subr.bf16.mxu0 %v1256
  %3200 = vmatpush1.bf16.msra.mxu0 %v1255
  %3201 = vmatprep.subr.bf16.mxu0 %v1258
  %3202 = vmatpush1.bf16.msra.mxu0 %v1257
  %3203 = vmatprep.subr.bf16.mxu0 %v1260
  %3204 = vmatpush1.bf16.msra.mxu0 %v1259
  %3205 = vmatprep.subr.bf16.mxu0 %v1262
  %3206 = vmatpush1.bf16.msra.mxu0 %v1261
  %3207 = vmatprep.subr.bf16.mxu0 %v1264
  %3208 = vmatpush1.bf16.msra.mxu0 %v1263
  %3209 = vmatprep.subr.bf16.mxu0 %v1266
  %3210 = vmatpush1.bf16.msra.mxu0 %v1265
  %3211 = vmatprep.subr.bf16.mxu0 %v1268
  %3212 = vmatpush1.bf16.msra.mxu0 %v1267
  %3213 = vmatprep.subr.bf16.mxu0 %v1270
  %3214 = vmatpush1.bf16.msra.mxu0 %v1269
  %3215 = vmatprep.subr.bf16.mxu0 %v1272
  %3216 = vmatpush1.bf16.msra.mxu0 %v1271
  %3217 = vmatprep.subr.bf16.mxu0 %v1274
  %3218 = vmatpush1.bf16.msra.mxu0 %v1273
  %3219 = vmatprep.mubr.bf16.mxu0 %v3152
  %3220 = vmatmul.mubr.bf16.gmra.mrb[0].mxu0 %v3151
  %v3221 = vpop.f32.mrb[0].mxu0
  %v3222 = vadd.f32 0.0, %v3221
  %v3223 = vpop.f32.mrb[0].mxu0
  %v3224 = vadd.f32 0.0, %v3223
  %v3225 = vpop.f32.mrb[0].mxu0
  %v3226 = vpop.f32.mrb[0].mxu0
  %3227 = vdwg.mxu0
  %3228 = vmatprep.subr.bf16.mxu0 %v1276
  %3229 = vmatpush1.bf16.msra.mxu0 %v1275
  %3230 = vmatprep.subr.bf16.mxu0 %v1278
  %3231 = vmatpush1.bf16.msra.mxu0 %v1277
  %3232 = vmatprep.subr.bf16.mxu0 %v1280
  %3233 = vmatpush1.bf16.msra.mxu0 %v1279
  %3234 = vmatprep.subr.bf16.mxu0 %v1282
  %3235 = vmatpush1.bf16.msra.mxu0 %v1281
  %3236 = vmatprep.subr.bf16.mxu0 %v1284
  %3237 = vmatpush1.bf16.msra.mxu0 %v1283
  %3238 = vmatprep.subr.bf16.mxu0 %v1286
  %3239 = vmatpush1.bf16.msra.mxu0 %v1285
  %3240 = vmatprep.subr.bf16.mxu0 %v1288
  %3241 = vmatpush1.bf16.msra.mxu0 %v1287
  %3242 = vmatprep.subr.bf16.mxu0 %v1290
  %3243 = vmatpush1.bf16.msra.mxu0 %v1289
  %3244 = vmatprep.subr.bf16.mxu0 %v1292
  %3245 = vmatpush1.bf16.msra.mxu0 %v1291
  %3246 = vmatprep.subr.bf16.mxu0 %v1294
  %3247 = vmatpush1.bf16.msra.mxu0 %v1293
  %3248 = vmatprep.subr.bf16.mxu0 %v1296
  %3249 = vmatpush1.bf16.msra.mxu0 %v1295
  %3250 = vmatprep.subr.bf16.mxu0 %v1298
  %3251 = vmatpush1.bf16.msra.mxu0 %v1297
  %3252 = vmatprep.subr.bf16.mxu0 %v1300
  %3253 = vmatpush1.bf16.msra.mxu0 %v1299
  %3254 = vmatprep.subr.bf16.mxu0 %v1302
  %3255 = vmatpush1.bf16.msra.mxu0 %v1301
  %3256 = vmatprep.subr.bf16.mxu0 %v1304
  %3257 = vmatpush1.bf16.msra.mxu0 %v1303
  %3258 = vmatprep.subr.bf16.mxu0 %v1306
  %3259 = vmatpush1.bf16.msra.mxu0 %v1305
  %3260 = vmatprep.mubr.bf16.mxu0 %v3154
  %3261 = vmatmul.mubr.bf16.gmra.mrb[0].mxu0 %v3153
  %v3262 = vpop.f32.mrb[0].mxu0
  %v3263 = vadd.f32 %v3222, %v3262
  %v3264 = vpop.f32.mrb[0].mxu0
  %v3265 = vadd.f32 %v3224, %v3264
  %v3266 = vpop.f32.mrb[0].mxu0
  %v3267 = vpop.f32.mrb[0].mxu0
  %3268 = vdwg.mxu0
  %3269 = vmatprep.subr.bf16.mxu0 %v1308
  %3270 = vmatpush1.bf16.msra.mxu0 %v1307
  %3271 = vmatprep.subr.bf16.mxu0 %v1310
  %3272 = vmatpush1.bf16.msra.mxu0 %v1309
  %3273 = vmatprep.subr.bf16.mxu0 %v1312
  %3274 = vmatpush1.bf16.msra.mxu0 %v1311
  %3275 = vmatprep.subr.bf16.mxu0 %v1314
  %3276 = vmatpush1.bf16.msra.mxu0 %v1313
  %3277 = vmatprep.subr.bf16.mxu0 %v1316
  %3278 = vmatpush1.bf16.msra.mxu0 %v1315
  %3279 = vmatprep.subr.bf16.mxu0 %v1318
  %3280 = vmatpush1.bf16.msra.mxu0 %v1317
  %3281 = vmatprep.subr.bf16.mxu0 %v1320
  %3282 = vmatpush1.bf16.msra.mxu0 %v1319
  %3283 = vmatprep.subr.bf16.mxu0 %v1322
  %3284 = vmatpush1.bf16.msra.mxu0 %v1321
  %3285 = vmatprep.subr.bf16.mxu0 %v1324
  %3286 = vmatpush1.bf16.msra.mxu0 %v1323
  %3287 = vmatprep.subr.bf16.mxu0 %v1326
  %3288 = vmatpush1.bf16.msra.mxu0 %v1325
  %3289 = vmatprep.subr.bf16.mxu0 %v1328
  %3290 = vmatpush1.bf16.msra.mxu0 %v1327
  %3291 = vmatprep.subr.bf16.mxu0 %v1330
  %3292 = vmatpush1.bf16.msra.mxu0 %v1329
  %3293 = vmatprep.subr.bf16.mxu0 %v1332
  %3294 = vmatpush1.bf16.msra.mxu0 %v1331
  %3295 = vmatprep.subr.bf16.mxu0 %v1334
  %3296 = vmatpush1.bf16.msra.mxu0 %v1333
  %3297 = vmatprep.subr.bf16.mxu0 %v1336
  %3298 = vmatpush1.bf16.msra.mxu0 %v1335
  %3299 = vmatprep.subr.bf16.mxu0 %v1338
  %3300 = vmatpush1.bf16.msra.mxu0 %v1337
  %3301 = vmatprep.mubr.bf16.mxu0 %v3156
  %3302 = vmatmul.mubr.bf16.gmra.mrb[0].mxu0 %v3155
  %v3303 = vpop.f32.mrb[0].mxu0
  %v3304 = vadd.f32 %v3263, %v3303
  %v3305 = vpop.f32.mrb[0].mxu0
  %v3306 = vadd.f32 %v3265, %v3305
  %v3307 = vpop.f32.mrb[0].mxu0
  %v3308 = vpop.f32.mrb[0].mxu0
  %3309 = vdwg.mxu0
  %3310 = vmatprep.subr.bf16.mxu0 %v1340
  %3311 = vmatpush1.bf16.msra.mxu0 %v1339
  %3312 = vmatprep.subr.bf16.mxu0 %v1342
  %3313 = vmatpush1.bf16.msra.mxu0 %v1341
  %3314 = vmatprep.subr.bf16.mxu0 %v1344
  %3315 = vmatpush1.bf16.msra.mxu0 %v1343
  %3316 = vmatprep.subr.bf16.mxu0 %v1346
  %3317 = vmatpush1.bf16.msra.mxu0 %v1345
  %3318 = vmatprep.subr.bf16.mxu0 %v1348
  %3319 = vmatpush1.bf16.msra.mxu0 %v1347
  %3320 = vmatprep.subr.bf16.mxu0 %v1350
  %3321 = vmatpush1.bf16.msra.mxu0 %v1349
  %3322 = vmatprep.subr.bf16.mxu0 %v1352
  %3323 = vmatpush1.bf16.msra.mxu0 %v1351
  %3324 = vmatprep.subr.bf16.mxu0 %v1354
  %3325 = vmatpush1.bf16.msra.mxu0 %v1353
  %3326 = vmatprep.subr.bf16.mxu0 %v1356
  %3327 = vmatpush1.bf16.msra.mxu0 %v1355
  %3328 = vmatprep.subr.bf16.mxu0 %v1358
  %3329 = vmatpush1.bf16.msra.mxu0 %v1357
  %3330 = vmatprep.subr.bf16.mxu0 %v1360
  %3331 = vmatpush1.bf16.msra.mxu0 %v1359
  %3332 = vmatprep.subr.bf16.mxu0 %v1362
  %3333 = vmatpush1.bf16.msra.mxu0 %v1361
  %3334 = vmatprep.subr.bf16.mxu0 %v1364
  %3335 = vmatpush1.bf16.msra.mxu0 %v1363
  %3336 = vmatprep.subr.bf16.mxu0 %v1366
  %3337 = vmatpush1.bf16.msra.mxu0 %v1365
  %3338 = vmatprep.subr.bf16.mxu0 %v1368
  %3339 = vmatpush1.bf16.msra.mxu0 %v1367
  %3340 = vmatprep.subr.bf16.mxu0 %v1370
  %3341 = vmatpush1.bf16.msra.mxu0 %v1369
  %3342 = vmatprep.mubr.bf16.mxu0 %v3158
  %3343 = vmatmul.mubr.bf16.gmra.mrb[0].mxu0 %v3157
  %v3344 = vpop.f32.mrb[0].mxu0
  %v3345 = vadd.f32 %v3304, %v3344
  %v3346 = vpop.f32.mrb[0].mxu0
  %v3347 = vadd.f32 %v3306, %v3346
  %v3348 = vpop.f32.mrb[0].mxu0
  %v3349 = vpop.f32.mrb[0].mxu0
  %3350 = vdwg.mxu0
  %3351 = vmatprep.subr.bf16.mxu0 %v1372
  %3352 = vmatpush1.bf16.msra.mxu0 %v1371
  %3353 = vmatprep.subr.bf16.mxu0 %v1374
  %3354 = vmatpush1.bf16.msra.mxu0 %v1373
  %3355 = vmatprep.subr.bf16.mxu0 %v1376
  %3356 = vmatpush1.bf16.msra.mxu0 %v1375
  %3357 = vmatprep.subr.bf16.mxu0 %v1378
  %3358 = vmatpush1.bf16.msra.mxu0 %v1377
  %3359 = vmatprep.subr.bf16.mxu0 %v1380
  %3360 = vmatpush1.bf16.msra.mxu0 %v1379
  %3361 = vmatprep.subr.bf16.mxu0 %v1382
  %3362 = vmatpush1.bf16.msra.mxu0 %v1381
  %3363 = vmatprep.subr.bf16.mxu0 %v1384
  %3364 = vmatpush1.bf16.msra.mxu0 %v1383
  %3365 = vmatprep.subr.bf16.mxu0 %v1386
  %3366 = vmatpush1.bf16.msra.mxu0 %v1385
  %3367 = vmatprep.subr.bf16.mxu0 %v1388
  %3368 = vmatpush1.bf16.msra.mxu0 %v1387
  %3369 = vmatprep.subr.bf16.mxu0 %v1390
  %3370 = vmatpush1.bf16.msra.mxu0 %v1389
  %3371 = vmatprep.subr.bf16.mxu0 %v1392
  %3372 = vmatpush1.bf16.msra.mxu0 %v1391
  %3373 = vmatprep.subr.bf16.mxu0 %v1394
  %3374 = vmatpush1.bf16.msra.mxu0 %v1393
  %3375 = vmatprep.subr.bf16.mxu0 %v1396
  %3376 = vmatpush1.bf16.msra.mxu0 %v1395
  %3377 = vmatprep.subr.bf16.mxu0 %v1398
  %3378 = vmatpush1.bf16.msra.mxu0 %v1397
  %3379 = vmatprep.subr.bf16.mxu0 %v1400
  %3380 = vmatpush1.bf16.msra.mxu0 %v1399
  %3381 = vmatprep.subr.bf16.mxu0 %v1402
  %3382 = vmatpush1.bf16.msra.mxu0 %v1401
  %3383 = vmatprep.mubr.bf16.mxu0 %v3160
  %3384 = vmatmul.mubr.bf16.gmra.mrb[0].mxu0 %v3159
  %v3385 = vpop.f32.mrb[0].mxu0
  %v3386 = vadd.f32 %v3345, %v3385
  %v3387 = vpop.f32.mrb[0].mxu0
  %v3388 = vadd.f32 %v3347, %v3387
  %v3389 = vpop.f32.mrb[0].mxu0
  %v3390 = vpop.f32.mrb[0].mxu0
  %3391 = vdwg.mxu0
  %3392 = vmatprep.subr.bf16.mxu0 %v1404
  %3393 = vmatpush1.bf16.msra.mxu0 %v1403
  %3394 = vmatprep.subr.bf16.mxu0 %v1406
  %3395 = vmatpush1.bf16.msra.mxu0 %v1405
  %3396 = vmatprep.subr.bf16.mxu0 %v1408
  %3397 = vmatpush1.bf16.msra.mxu0 %v1407
  %3398 = vmatprep.subr.bf16.mxu0 %v1410
  %3399 = vmatpush1.bf16.msra.mxu0 %v1409
  %3400 = vmatprep.subr.bf16.mxu0 %v1412
  %3401 = vmatpush1.bf16.msra.mxu0 %v1411
  %3402 = vmatprep.subr.bf16.mxu0 %v1414
  %3403 = vmatpush1.bf16.msra.mxu0 %v1413
  %3404 = vmatprep.subr.bf16.mxu0 %v1416
  %3405 = vmatpush1.bf16.msra.mxu0 %v1415
  %3406 = vmatprep.subr.bf16.mxu0 %v1418
  %3407 = vmatpush1.bf16.msra.mxu0 %v1417
  %3408 = vmatprep.subr.bf16.mxu0 %v1420
  %3409 = vmatpush1.bf16.msra.mxu0 %v1419
  %3410 = vmatprep.subr.bf16.mxu0 %v1422
  %3411 = vmatpush1.bf16.msra.mxu0 %v1421
  %3412 = vmatprep.subr.bf16.mxu0 %v1424
  %3413 = vmatpush1.bf16.msra.mxu0 %v1423
  %3414 = vmatprep.subr.bf16.mxu0 %v1426
  %3415 = vmatpush1.bf16.msra.mxu0 %v1425
  %3416 = vmatprep.subr.bf16.mxu0 %v1428
  %3417 = vmatpush1.bf16.msra.mxu0 %v1427
  %3418 = vmatprep.subr.bf16.mxu0 %v1430
  %3419 = vmatpush1.bf16.msra.mxu0 %v1429
  %3420 = vmatprep.subr.bf16.mxu0 %v1432
  %3421 = vmatpush1.bf16.msra.mxu0 %v1431
  %3422 = vmatprep.subr.bf16.mxu0 %v1434
  %3423 = vmatpush1.bf16.msra.mxu0 %v1433
  %3424 = vmatprep.mubr.bf16.mxu0 %v3162
  %3425 = vmatmul.mubr.bf16.gmra.mrb[0].mxu0 %v3161
  %v3426 = vpop.f32.mrb[0].mxu0
  %v3427 = vadd.f32 %v3386, %v3426
  %v3428 = vpop.f32.mrb[0].mxu0
  %v3429 = vadd.f32 %v3388, %v3428
  %v3430 = vpop.f32.mrb[0].mxu0
  %v3431 = vpop.f32.mrb[0].mxu0
  %3432 = vdwg.mxu0
  %3433 = vmatprep.subr.bf16.mxu0 %v1436
  %3434 = vmatpush1.bf16.msra.mxu0 %v1435
  %3435 = vmatprep.subr.bf16.mxu0 %v1438
  %3436 = vmatpush1.bf16.msra.mxu0 %v1437
  %3437 = vmatprep.subr.bf16.mxu0 %v1440
  %3438 = vmatpush1.bf16.msra.mxu0 %v1439
  %3439 = vmatprep.subr.bf16.mxu0 %v1442
  %3440 = vmatpush1.bf16.msra.mxu0 %v1441
  %3441 = vmatprep.subr.bf16.mxu0 %v1444
  %3442 = vmatpush1.bf16.msra.mxu0 %v1443
  %3443 = vmatprep.subr.bf16.mxu0 %v1446
  %3444 = vmatpush1.bf16.msra.mxu0 %v1445
  %3445 = vmatprep.subr.bf16.mxu0 %v1448
  %3446 = vmatpush1.bf16.msra.mxu0 %v1447
  %3447 = vmatprep.subr.bf16.mxu0 %v1450
  %3448 = vmatpush1.bf16.msra.mxu0 %v1449
  %3449 = vmatprep.subr.bf16.mxu0 %v1452
  %3450 = vmatpush1.bf16.msra.mxu0 %v1451
  %3451 = vmatprep.subr.bf16.mxu0 %v1454
  %3452 = vmatpush1.bf16.msra.mxu0 %v1453
  %3453 = vmatprep.subr.bf16.mxu0 %v1456
  %3454 = vmatpush1.bf16.msra.mxu0 %v1455
  %3455 = vmatprep.subr.bf16.mxu0 %v1458
  %3456 = vmatpush1.bf16.msra.mxu0 %v1457
  %3457 = vmatprep.subr.bf16.mxu0 %v1460
  %3458 = vmatpush1.bf16.msra.mxu0 %v1459
  %3459 = vmatprep.subr.bf16.mxu0 %v1462
  %3460 = vmatpush1.bf16.msra.mxu0 %v1461
  %3461 = vmatprep.subr.bf16.mxu0 %v1464
  %3462 = vmatpush1.bf16.msra.mxu0 %v1463
  %3463 = vmatprep.subr.bf16.mxu0 %v1466
  %3464 = vmatpush1.bf16.msra.mxu0 %v1465
  %3465 = vmatprep.mubr.bf16.mxu0 %v3164
  %3466 = vmatmul.mubr.bf16.gmra.mrb[0].mxu0 %v3163
  %v3467 = vpop.f32.mrb[0].mxu0
  %v3468 = vadd.f32 %v3427, %v3467
  %v3469 = vpop.f32.mrb[0].mxu0
  %v3470 = vadd.f32 %v3429, %v3469
  %v3471 = vpop.f32.mrb[0].mxu0
  %v3472 = vpop.f32.mrb[0].mxu0
  %3473 = vdwg.mxu0
  %3474 = vmatprep.subr.bf16.mxu0 %v1468
  %3475 = vmatpush1.bf16.msra.mxu0 %v1467
  %3476 = vmatprep.subr.bf16.mxu0 %v1470
  %3477 = vmatpush1.bf16.msra.mxu0 %v1469
  %3478 = vmatprep.subr.bf16.mxu0 %v1472
  %3479 = vmatpush1.bf16.msra.mxu0 %v1471
  %3480 = vmatprep.subr.bf16.mxu0 %v1474
  %3481 = vmatpush1.bf16.msra.mxu0 %v1473
  %3482 = vmatprep.subr.bf16.mxu0 %v1476
  %3483 = vmatpush1.bf16.msra.mxu0 %v1475
  %3484 = vmatprep.subr.bf16.mxu0 %v1478
  %3485 = vmatpush1.bf16.msra.mxu0 %v1477
  %3486 = vmatprep.subr.bf16.mxu0 %v1480
  %3487 = vmatpush1.bf16.msra.mxu0 %v1479
  %3488 = vmatprep.subr.bf16.mxu0 %v1482
  %3489 = vmatpush1.bf16.msra.mxu0 %v1481
  %3490 = vmatprep.subr.bf16.mxu0 %v1484
  %3491 = vmatpush1.bf16.msra.mxu0 %v1483
  %3492 = vmatprep.subr.bf16.mxu0 %v1486
  %3493 = vmatpush1.bf16.msra.mxu0 %v1485
  %3494 = vmatprep.subr.bf16.mxu0 %v1488
  %3495 = vmatpush1.bf16.msra.mxu0 %v1487
  %3496 = vmatprep.subr.bf16.mxu0 %v1490
  %3497 = vmatpush1.bf16.msra.mxu0 %v1489
  %3498 = vmatprep.subr.bf16.mxu0 %v1492
  %3499 = vmatpush1.bf16.msra.mxu0 %v1491
  %3500 = vmatprep.subr.bf16.mxu0 %v1494
  %3501 = vmatpush1.bf16.msra.mxu0 %v1493
  %3502 = vmatprep.subr.bf16.mxu0 %v1496
  %3503 = vmatpush1.bf16.msra.mxu0 %v1495
  %3504 = vmatprep.subr.bf16.mxu0 %v1498
  %3505 = vmatpush1.bf16.msra.mxu0 %v1497
  %3506 = vmatprep.mubr.bf16.mxu0 %v3166
  %3507 = vmatmul.mubr.bf16.gmra.mrb[0].mxu0 %v3165
  %v3508 = vpop.f32.mrb[0].mxu0
  %v3509 = vadd.f32 %v3468, %v3508
  %v3510 = vpop.f32.mrb[0].mxu0
  %v3511 = vadd.f32 %v3470, %v3510
  %v3512 = vpop.f32.mrb[0].mxu0
  %v3513 = vpop.f32.mrb[0].mxu0
  %3514 = vdwg.mxu0
  %3515 = vmatprep.subr.bf16.mxu0 %v1500
  %3516 = vmatpush1.bf16.msra.mxu0 %v1499
  %3517 = vmatprep.subr.bf16.mxu0 %v1502
  %3518 = vmatpush1.bf16.msra.mxu0 %v1501
  %3519 = vmatprep.subr.bf16.mxu0 %v1504
  %3520 = vmatpush1.bf16.msra.mxu0 %v1503
  %3521 = vmatprep.subr.bf16.mxu0 %v1506
  %3522 = vmatpush1.bf16.msra.mxu0 %v1505
  %3523 = vmatprep.subr.bf16.mxu0 %v1508
  %3524 = vmatpush1.bf16.msra.mxu0 %v1507
  %3525 = vmatprep.subr.bf16.mxu0 %v1510
  %3526 = vmatpush1.bf16.msra.mxu0 %v1509
  %3527 = vmatprep.subr.bf16.mxu0 %v1512
  %3528 = vmatpush1.bf16.msra.mxu0 %v1511
  %3529 = vmatprep.subr.bf16.mxu0 %v1514
  %3530 = vmatpush1.bf16.msra.mxu0 %v1513
  %3531 = vmatprep.subr.bf16.mxu0 %v1516
  %3532 = vmatpush1.bf16.msra.mxu0 %v1515
  %3533 = vmatprep.subr.bf16.mxu0 %v1518
  %3534 = vmatpush1.bf16.msra.mxu0 %v1517
  %3535 = vmatprep.subr.bf16.mxu0 %v1520
  %3536 = vmatpush1.bf16.msra.mxu0 %v1519
  %3537 = vmatprep.subr.bf16.mxu0 %v1522
  %3538 = vmatpush1.bf16.msra.mxu0 %v1521
  %3539 = vmatprep.subr.bf16.mxu0 %v1524
  %3540 = vmatpush1.bf16.msra.mxu0 %v1523
  %3541 = vmatprep.subr.bf16.mxu0 %v1526
  %3542 = vmatpush1.bf16.msra.mxu0 %v1525
  %3543 = vmatprep.subr.bf16.mxu0 %v1528
  %3544 = vmatpush1.bf16.msra.mxu0 %v1527
  %3545 = vmatprep.subr.bf16.mxu0 %v1530
  %3546 = vmatpush1.bf16.msra.mxu0 %v1529
  %3547 = vmatprep.mubr.bf16.mxu0 %v3168
  %3548 = vmatmul.mubr.bf16.gmra.mrb[0].mxu0 %v3167
  %v3549 = vpop.f32.mrb[0].mxu0
  %v3550 = vadd.f32 %v3509, %v3549
  %v3551 = vpop.f32.mrb[0].mxu0
  %v3552 = vadd.f32 %v3511, %v3551
  %v3553 = vpop.f32.mrb[0].mxu0
  %v3554 = vpop.f32.mrb[0].mxu0
  %3555 = vdwg.mxu0
  %v3556 = vmul.f32 %v3550, %v2192
  %v3557 = vmul.f32 %v3552, %v2196
  %v3558 = vadd.f32 %v3556, %v2205
  %v3559 = vadd.f32 %v3557, %v2209
  %v3560 = vmax.f32 %v3558, 0.0
  %v3561 = vmax.f32 %v3559, 0.0
  %v3562 = vmax.f32 %v3112, %v3560
  %v3563 = vmax.f32 %v3113, %v3561
  %v3564 = vmax.f32 %v2664, %v3562
  %v3565 = vmax.f32 %v2665, %v3563
  %3566 = vst [vmem:[%s4] sm:$0xff] %v3564
  %3567 = vst [vmem:[%s4 + $0x8] sm:$0xff] %v3565
  // Predicated region
  $region18: #{cnn_forward.13} parent=0 // pred_check
    _
  $region19: #{cnn_forward.13} parent=0 // pred_check_branch
    %3569 = sbr.rel (0) target = $region21
  $region20: #{cnn_forward.13} parent=0 // pred_region
    _
  $region21: #{cnn_forward.13} parent=0 // pred_fallthru
    _
  // Predicated region
  $region22: #{cnn_forward.13} parent=0 // pred_check
    _
  $region23: #{cnn_forward.13} parent=0 // pred_check_branch
    %3571 = sbr.rel (0) target = $region25
  $region24: #{cnn_forward.13} parent=0 // pred_region
    _
  $region25: #{cnn_forward.13} parent=0 // pred_fallthru
    _

// kernel: cnn_forward.15
$region0: #{cnn_forward.15}
  #allocation0 [shape = 'u32[]', space=smem, size = 0x4, offset = 0x4, fixed_abs, tag = 'smem constant byte address 0x4 - core index']
  #allocation1 [shape = 'u32[144,128]{1,0:T(1,128)}', space=vmem, size = 0x12000, scoped, tag = 'internal scratch']
  %s0 = inlined_call_operand.vmem [shape: bf16[2,256], index: 0, kind: input, shape index: {}]
  %s1 = inlined_call_operand.vmem [shape: bf16[256,128], index: 1, kind: input, shape index: {}]
  %s2 = inlined_call_operand.vmem [shape: f32[1,128], index: 2, kind: input, shape index: {}]
  %s3 = inlined_call_operand.vmem [shape: f32[1,128], index: 3, kind: input, shape index: {}]
  %s4 = inlined_call_operand.vmem [shape: f32[2,128], index: 4, kind: output, shape index: {}]
  %s5 = sld [smem:[#allocation0]]
  $region26: #{cnn_forward.15} parent=0
    _
  %s7 = ssub.s32 1, %s5
  %s8 = scalar_select 0, %s7, %s5
  // Predicated region
  $region2: #{cnn_forward.15} parent=0 // pred_check
    _
  $region3: #{cnn_forward.15} parent=0 // pred_check_branch
    %10 = sbr.rel (0) target = $region5
  $region4: #{cnn_forward.15} parent=0 // pred_region
    _
  $region5: #{cnn_forward.15} parent=0 // pred_fallthru
    _
  // Predicated region
  $region6: #{cnn_forward.15} parent=0 // pred_check
    _
  $region7: #{cnn_forward.15} parent=0 // pred_check_branch
    %12 = sbr.rel (0) target = $region9
  $region8: #{cnn_forward.15} parent=0 // pred_region
    _
  $region9: #{cnn_forward.15} parent=0 // pred_fallthru
    _
  // Predicated region
  $region10: #{cnn_forward.15} parent=0 // pred_check
    _
  $region11: #{cnn_forward.15} parent=0 // pred_check_branch
    %14 = sbr.rel (0) target = $region13
  $region12: #{cnn_forward.15} parent=0 // pred_region
    _
  $region13: #{cnn_forward.15} parent=0 // pred_fallthru
    _
  // Predicated region
  $region14: #{cnn_forward.15} parent=0 // pred_check
    _
  $region15: #{cnn_forward.15} parent=0 // pred_check_branch
    %16 = sbr.rel (0) target = $region17
  $region16: #{cnn_forward.15} parent=0 // pred_region
    _
  $region17: #{cnn_forward.15} parent=0 // pred_fallthru
    _
  %v18 = vld [vmem:[%s0] sm:$0x3]
  %v19 = vld [vmem:[%s1] sm:$0xf]
  %v20 = vld [vmem:[%s1 + $0x4] sm:$0xf]
  %v21 = vld [vmem:[%s1 + $0x8] sm:$0xf]
  %v22 = vld [vmem:[%s1 + $0xc] sm:$0xf]
  %v23 = vld [vmem:[%s1 + $0x10] sm:$0xf]
  %v24 = vld [vmem:[%s1 + $0x14] sm:$0xf]
  %v25 = vld [vmem:[%s1 + $0x18] sm:$0xf]
  %v26 = vld [vmem:[%s1 + $0x1c] sm:$0xf]
  %v27 = vld [vmem:[%s1 + $0x20] sm:$0xf]
  %v28 = vld [vmem:[%s1 + $0x24] sm:$0xf]
  %v29 = vld [vmem:[%s1 + $0x28] sm:$0xf]
  %v30 = vld [vmem:[%s1 + $0x2c] sm:$0xf]
  %v31 = vld [vmem:[%s1 + $0x30] sm:$0xf]
  %v32 = vld [vmem:[%s1 + $0x34] sm:$0xf]
  %v33 = vld [vmem:[%s1 + $0x38] sm:$0xf]
  %v34 = vld [vmem:[%s1 + $0x3c] sm:$0xf]
  %v35 = vld [vmem:[%s1 + $0x40] sm:$0xf]
  %v36 = vld [vmem:[%s1 + $0x44] sm:$0xf]
  %v37 = vld [vmem:[%s1 + $0x48] sm:$0xf]
  %v38 = vld [vmem:[%s1 + $0x4c] sm:$0xf]
  %v39 = vld [vmem:[%s1 + $0x50] sm:$0xf]
  %v40 = vld [vmem:[%s1 + $0x54] sm:$0xf]
  %v41 = vld [vmem:[%s1 + $0x58] sm:$0xf]
  %v42 = vld [vmem:[%s1 + $0x5c] sm:$0xf]
  %v43 = vld [vmem:[%s1 + $0x60] sm:$0xf]
  %v44 = vld [vmem:[%s1 + $0x64] sm:$0xf]
  %v45 = vld [vmem:[%s1 + $0x68] sm:$0xf]
  %v46 = vld [vmem:[%s1 + $0x6c] sm:$0xf]
  %v47 = vld [vmem:[%s1 + $0x70] sm:$0xf]
  %v48 = vld [vmem:[%s1 + $0x74] sm:$0xf]
  %v49 = vld [vmem:[%s1 + $0x78] sm:$0xf]
  %v50 = vld [vmem:[%s1 + $0x7c] sm:$0xf]
  %v53 = vunpack.c.l.s4 1966171168
  %v54 = vunpack.c.0.s8 %v53
  %v55 = vlaneseq
  %v56 = vshrl.u32 %v55, 7
  %v57 = vsub.s32 %v54, %v56
  %v58 = vrot.slane %v18, %v57
  %v59 = vcombine.high %v58, %v58
  %v61 = vunpack.c.l.s4 1966171168
  %v62 = vunpack.c.0.s8 %v61
  %v63 = vlaneseq
  %v64 = vshrl.u32 %v63, 7
  %v65 = vsub.s32 %v62, %v64
  %v66 = vrot.slane %v58, %v65
  %v68 = vunpack.c.l.s4 1966171168
  %v69 = vunpack.c.0.s8 %v68
  %v70 = vlaneseq
  %v71 = vshrl.u32 %v70, 7
  %v72 = vsub.s32 %v69, %v71
  %v73 = vrot.slane %v59, %v72
  %v108 = vunpack.c.l.b16 %v19
  %v109 = vunpack.c.l.b16 %v20
  %v110 = vunpack.c.l.b16 %v21
  %v111 = vunpack.c.l.b16 %v22
  %v112 = vunpack.c.l.b16 %v23
  %v113 = vunpack.c.l.b16 %v24
  %v114 = vunpack.c.l.b16 %v25
  %v115 = vunpack.c.l.b16 %v26
  %v116 = vunpack.c.l.b16 %v27
  %v117 = vunpack.c.l.b16 %v28
  %v118 = vunpack.c.l.b16 %v29
  %v119 = vunpack.c.l.b16 %v30
  %v120 = vunpack.c.l.b16 %v31
  %v121 = vunpack.c.l.b16 %v32
  %v122 = vunpack.c.l.b16 %v33
  %v123 = vunpack.c.l.b16 %v34
  %v124 = vunpack.c.l.b16 %v35
  %v125 = vunpack.c.l.b16 %v36
  %v126 = vunpack.c.l.b16 %v37
  %v127 = vunpack.c.l.b16 %v38
  %v128 = vunpack.c.l.b16 %v39
  %v129 = vunpack.c.l.b16 %v40
  %v130 = vunpack.c.l.b16 %v41
  %v131 = vunpack.c.l.b16 %v42
  %v132 = vunpack.c.l.b16 %v43
  %v133 = vunpack.c.l.b16 %v44
  %v134 = vunpack.c.l.b16 %v45
  %v135 = vunpack.c.l.b16 %v46
  %v136 = vunpack.c.l.b16 %v47
  %v137 = vunpack.c.l.b16 %v48
  %v138 = vunpack.c.l.b16 %v49
  %v139 = vunpack.c.l.b16 %v50
  %v140 = vpack.c.b16 %v109, %v108
  %v141 = vpack.c.b16 %v111, %v110
  %v142 = vpack.c.b16 %v113, %v112
  %v143 = vpack.c.b16 %v115, %v114
  %v144 = vpack.c.b16 %v117, %v116
  %v145 = vpack.c.b16 %v119, %v118
  %v146 = vpack.c.b16 %v121, %v120
  %v147 = vpack.c.b16 %v123, %v122
  %v148 = vpack.c.b16 %v125, %v124
  %v149 = vpack.c.b16 %v127, %v126
  %v150 = vpack.c.b16 %v129, %v128
  %v151 = vpack.c.b16 %v131, %v130
  %v152 = vpack.c.b16 %v133, %v132
  %v153 = vpack.c.b16 %v135, %v134
  %v154 = vpack.c.b16 %v137, %v136
  %v155 = vpack.c.b16 %v139, %v138
  %172 = vmatprep.subr.bf16.mxu0 0
  %173 = vmatpush1.bf16.msra.mxu0 %v140
  %174 = vmatprep.subr.bf16.mxu0 0
  %175 = vmatpush1.bf16.msra.mxu0 %v141
  %176 = vmatprep.subr.bf16.mxu0 0
  %177 = vmatpush1.bf16.msra.mxu0 %v142
  %178 = vmatprep.subr.bf16.mxu0 0
  %179 = vmatpush1.bf16.msra.mxu0 %v143
  %180 = vmatprep.subr.bf16.mxu0 0
  %181 = vmatpush1.bf16.msra.mxu0 %v144
  %182 = vmatprep.subr.bf16.mxu0 0
  %183 = vmatpush1.bf16.msra.mxu0 %v145
  %184 = vmatprep.subr.bf16.mxu0 0
  %185 = vmatpush1.bf16.msra.mxu0 %v146
  %186 = vmatprep.subr.bf16.mxu0 0
  %187 = vmatpush1.bf16.msra.mxu0 %v147
  %188 = vmatprep.subr.bf16.mxu0 0
  %189 = vmatpush1.bf16.msra.mxu0 %v148
  %190 = vmatprep.subr.bf16.mxu0 0
  %191 = vmatpush1.bf16.msra.mxu0 %v149
  %192 = vmatprep.subr.bf16.mxu0 0
  %193 = vmatpush1.bf16.msra.mxu0 %v150
  %194 = vmatprep.subr.bf16.mxu0 0
  %195 = vmatpush1.bf16.msra.mxu0 %v151
  %196 = vmatprep.subr.bf16.mxu0 0
  %197 = vmatpush1.bf16.msra.mxu0 %v152
  %198 = vmatprep.subr.bf16.mxu0 0
  %199 = vmatpush1.bf16.msra.mxu0 %v153
  %200 = vmatprep.subr.bf16.mxu0 0
  %201 = vmatpush1.bf16.msra.mxu0 %v154
  %202 = vmatprep.subr.bf16.mxu0 0
  %203 = vmatpush1.bf16.msra.mxu0 %v155
  %204 = vmatprep.mubr.bf16.mxu0 %v73
  %205 = vmatmul.mubr.bf16.gmra.mrb[0].mxu0 %v66
  %v206 = vpop.f32.mrb[0].mxu0
  %v207 = vadd.f32 0.0, %v206
  %v208 = vpop.f32.mrb[0].mxu0
  %v209 = vpop.f32.mrb[0].mxu0
  %v210 = vpop.f32.mrb[0].mxu0
  %211 = vdwg.mxu0
  %v212 = vld [vmem:[%s2] sm:$0x1]
  %v214 = vlaneseq
  %v215 = vshrl.u32 %v214, 7
  %v216 = vsub.s32 0, %v215
  %v217 = vrot.slane %v212, %v216
  %v219 = vmul.f32 %v207, %v217
  %v220 = vld [vmem:[%s3] sm:$0x1]
  %v222 = vlaneseq
  %v223 = vshrl.u32 %v222, 7
  %v224 = vsub.s32 0, %v223
  %v225 = vrot.slane %v220, %v224
  %v227 = vadd.f32 %v219, %v225
  %228 = vst [vmem:[%s4] sm:$0x3] %v227
  // Predicated region
  $region18: #{cnn_forward.15} parent=0 // pred_check
    _
  $region19: #{cnn_forward.15} parent=0 // pred_check_branch
    %230 = sbr.rel (0) target = $region21
  $region20: #{cnn_forward.15} parent=0 // pred_region
    _
  $region21: #{cnn_forward.15} parent=0 // pred_fallthru
    _
  // Predicated region
  $region22: #{cnn_forward.15} parent=0 // pred_check
    _
  $region23: #{cnn_forward.15} parent=0 // pred_check_branch
    %232 = sbr.rel (0) target = $region25
  $region24: #{cnn_forward.15} parent=0 // pred_region
    _
  $region25: #{cnn_forward.15} parent=0 // pred_fallthru
    _

</llo_original>
